<compile_context>
chip_gen: v6e
topology: v6e:2x2x1
jax: 0.10.0
libtpu: 0.0.40
codegen_flags: <defaults>
</compile_context>

<pallas_src>
import jax
import jax.numpy as jnp
from jax.experimental import pallas as pl
from jax.experimental.pallas import tpu as pltpu

LANE = 128


def _round_up(x, m):
    return (x + m - 1) // m * m


def _pick_tile_h(H, W, target_m=256):
    """Smallest multiple-of-8 divisor of H whose tile gives M = tile_h*W >= 256."""
    cands = [t for t in range(8, H + 1, 8) if H % t == 0]
    if not cands:
        return H
    for t in cands:
        if t * W >= target_m:
            return t
    return cands[-1]


def _vmem_limit_bytes():
    """Per-generation VMEM budget: headroom under physical, capped at 100 MiB."""
    cap = None
    try:
        info = pltpu.get_tpu_info()
        cap = getattr(info, "vmem_capacity_bytes", None)
    except Exception:
        cap = None
    if not cap:
        cap = 64 * 1024 * 1024  # conservative default (v7x-sized)
    return int(min(int(cap * 0.8), 100 * 1024 * 1024))


def _make_conv_kernel(dilation, H, W, Cp, tile_h, n_res):
    """One 3x3 dilated conv + ReLU (optionally fused residual sum)."""
    p = dilation          # padding == dilation ("same")
    Wp = W + 2 * p        # padded canvas width

    def kernel(*refs):
        x_hbm, w_ref, b_ref = refs[0], refs[1], refs[2]
        res_refs = refs[3:3 + n_res]          # tiled residual inputs (f32)
        o_ref = refs[3 + n_res]
        canvas = refs[4 + n_res]              # (H+2p, W+2p, Cp) VMEM scratch
        sem = refs[5 + n_res]                 # DMA completion semaphore

        n = pl.program_id(0)
        t = pl.program_id(1)

        # Fill the zero-padded canvas once per batch element.  The canvas
        # persists across the sequential ("arbitrary") H-tile axis, so this
        # MUST stay the inner, non-parallel grid dimension.
        @pl.when(t == 0)
        def _():
            # HBM -> canvas interior DMA, overlapped with halo zeroing.
            cp = pltpu.make_async_copy(
                x_hbm.at[n],
                canvas.at[pl.ds(p, H), pl.ds(p, W), :],
                sem)
            cp.start()
            canvas[pl.ds(0, p), :, :] = jnp.zeros((p, Wp, Cp), canvas.dtype)
            canvas[pl.ds(p + H, p), :, :] = jnp.zeros((p, Wp, Cp), canvas.dtype)
            canvas[pl.ds(p, H), pl.ds(0, p), :] = jnp.zeros((H, p, Cp), canvas.dtype)
            canvas[pl.ds(p, H), pl.ds(p + W, p), :] = jnp.zeros((H, p, Cp), canvas.dtype)
            cp.wait()

        r0 = pl.multiple_of(t * tile_h, tile_h)   # first output row of tile

        # f32 accumulator initialised with the broadcast bias.
        acc = jnp.broadcast_to(b_ref[...].astype(jnp.float32),
                               (tile_h * W, Cp))

        # 9 dilated taps -> 9 (tile_h*W, Cp) x (Cp, Cp) bf16 MXU matmuls,
        # reading shifted windows directly from the VMEM canvas.
        for kh in range(3):
            for kw in range(3):
                patch = canvas[pl.ds(r0 + kh * dilation, tile_h),
                               pl.ds(kw * dilation, W), :]
                patch = patch.reshape(tile_h * W, Cp).astype(jnp.bfloat16)
                acc = acc + jnp.dot(patch, w_ref[kh, kw],
                                    preferred_element_type=jnp.float32)

        y = jnp.maximum(acc, 0.0).reshape(tile_h, W, Cp)

        if n_res:
            # Fused residual: out = x + d1 + d2 + d3 + relu(conv(d3)).
            # d3 (this conv's input) is read back in f32 from the canvas
            # interior (p == 8 here, so the window is sublane-aligned).
            y = y + canvas[pl.ds(r0 + p, tile_h), pl.ds(p, W), :]
            for r_ref in res_refs:
                y = y + r_ref[0].astype(jnp.float32)

        o_ref[...] = y.reshape(1, tile_h, W, Cp).astype(o_ref.dtype)

    return kernel


def _const_spec(shape, mode):
    """BlockSpec for a grid-constant block, optionally single-buffered."""
    imap = lambda n, t: (0,) * len(shape)
    if mode is None:
        return pl.BlockSpec(shape, imap)
    return pl.BlockSpec(shape, imap, pipeline_mode=mode)


def dilated_conv3x3_relu(x, w, b, dilation, *, residuals=(), tile_h=None,
                         vmem_limit=None):
    """One dilated 3x3 conv (+ReLU), optionally fused with a residual sum.

    x         : (N, H, W, Cp) float32, Cp a multiple of 128 (lane-dense)
    w         : (3, 3, Cp, Cp) bfloat16  (HWIO)
    b         : (1, Cp) float32
    residuals : extra (N, H, W, Cp) f32 tensors added to the output together
                with x itself (used for the final Dblock sum).
    """
    N, H, W, Cp = x.shape
    if tile_h is None:
        tile_h = _pick_tile_h(H, W)
    if tile_h > H or H % tile_h != 0:
        tile_h = H
    n_tiles = H // tile_h
    n_res = len(residuals)
    p = dilation
    if vmem_limit is None:
        vmem_limit = _vmem_limit_bytes()

    kernel = _make_conv_kernel(dilation, H, W, Cp, tile_h, n_res)

    def build(const_mode):
        in_specs = [
            # Conv input stays in HBM; DMA'd manually into the canvas.
            pl.BlockSpec(memory_space=pl.ANY),
            # Constant weight / bias blocks (single-buffered when supported).
            _const_spec((3, 3, Cp, Cp), const_mode),
            _const_spec((1, Cp), const_mode),
        ] + [
            # Residual inputs only need the current output tile.
            pl.BlockSpec((1, tile_h, W, Cp), lambda n, t: (n, t, 0, 0))
        ] * n_res

        out_spec = pl.BlockSpec((1, tile_h, W, Cp), lambda n, t: (n, t, 0, 0))

        return pl.pallas_call(
            kernel,
            out_shape=jax.ShapeDtypeStruct((N, H, W, Cp), x.dtype),
            grid_spec=pltpu.PrefetchScalarGridSpec(
                num_scalar_prefetch=0,
                grid=(N, n_tiles),
                in_specs=in_specs,
                out_specs=out_spec,
                scratch_shapes=[
                    pltpu.VMEM((H + 2 * p, W + 2 * p, Cp), x.dtype),
                    pltpu.SemaphoreType.DMA(()),
                ],
            ),
            compiler_params=pltpu.CompilerParams(
                # Batch axis parallel (megacore); H-tile axis must stay
                # sequential because the canvas is filled at t == 0.
                dimension_semantics=("parallel", "arbitrary"),
                vmem_limit_bytes=vmem_limit,
            ),
        )

    try:
        # Preferred: single-buffer the grid-constant weight/bias blocks.
        return build(pl.Buffered(1))(x, w, b, *residuals)
    except Exception:
        # Fallback for JAX versions without pipeline_mode on top-level specs.
        return build(None)(x, w, b, *residuals)


def dblock_forward(x_nchw, params, *, tile_h=None):
    """Dblock forward. x_nchw: (N, C, H, W). Returns (N, C, H, W)."""
    N, C, H, W = x_nchw.shape
    Cp = max(_round_up(C, LANE), LANE)   # lane-dense channel count
    dc = Cp - C
    vmem_limit = _vmem_limit_bytes()

    x = jnp.transpose(x_nchw, (0, 2, 3, 1))          # -> NHWC
    if dc:
        x = jnp.pad(x, ((0, 0), (0, 0), (0, 0), (0, dc)))

    ws, bs = [], []
    for i in range(1, 5):
        w = params[f"w{i}"]
        b = params[f"b{i}"]
        if dc:
            w = jnp.pad(w, ((0, 0), (0, 0), (0, dc), (0, dc)))
            b = jnp.pad(b, ((0, dc),))
        ws.append(w.astype(jnp.bfloat16))             # bf16 MXU operands
        bs.append(b.reshape(1, Cp).astype(jnp.float32))

    kw = dict(tile_h=tile_h, vmem_limit=vmem_limit)
    d1 = dilated_conv3x3_relu(x,  ws[0], bs[0], 1, **kw)
    d2 = dilated_conv3x3_relu(d1, ws[1], bs[1], 2, **kw)
    d3 = dilated_conv3x3_relu(d2, ws[2], bs[2], 4, **kw)
    # Last conv fuses the whole residual sum: out = x + d1 + d2 + d3 + d4.
    out = dilated_conv3x3_relu(d3, ws[3], bs[3], 8,
                               residuals=(x, d1, d2), **kw)

    if dc:
        out = out[..., :C]
    return jnp.transpose(out, (0, 3, 1, 2))          # -> NCHW


def make_params(channel, key):
    """Deterministic synthetic weights. Biases zero (as in Dblock.__init__)."""
    keys = jax.random.split(key, 4)
    params = {}
    for i, k in enumerate(keys, start=1):
        # HWIO layout: (kh, kw, in_c, out_c)
        params[f"w{i}"] = (0.1 * jax.random.normal(
            k, (3, 3, channel, channel), dtype=jnp.float32))
        params[f"b{i}"] = jnp.zeros((channel,), dtype=jnp.float32)
    return params


def dblock_reference(x_nchw, params):
    """Pure-JAX f32 reference (lax.conv_general_dilated) for correctness."""
    x = jnp.transpose(x_nchw, (0, 2, 3, 1))

    def conv(inp, w, b, d):
        y = jax.lax.conv_general_dilated(
            inp, w, window_strides=(1, 1),
            padding=((d, d), (d, d)), rhs_dilation=(d, d),
            dimension_numbers=("NHWC", "HWIO", "NHWC"))
        return jax.nn.relu(y + b[None, None, None, :])

    d1 = conv(x,  params["w1"], params["b1"], 1)
    d2 = conv(d1, params["w2"], params["b2"], 2)
    d3 = conv(d2, params["w3"], params["b3"], 4)
    d4 = conv(d3, params["w4"], params["b4"], 8)
    out = x + d1 + d2 + d3 + d4
    return jnp.transpose(out, (0, 3, 1, 2))


if __name__ == "__main__":
    key = jax.random.PRNGKey(0)
    kx, kp = jax.random.split(key)

    N, C, H, W = 2, 4, 16, 16
    x = jax.random.normal(kx, (N, C, H, W), dtype=jnp.float32)
    params = make_params(C, kp)

    out = dblock_forward(x, params)
    out = jax.block_until_ready(out)

    ref = jax.block_until_ready(dblock_reference(x, params))
    assert out.shape == (N, C, H, W)
    # bf16 MXU operands (f32 accumulation) -> loosened tolerance vs f32 ref.
    assert jnp.allclose(out, ref, atol=5e-2, rtol=5e-2), "mismatch vs reference"

    print("KERNEL_OK")
</pallas_src>

<mosaic_0001>
module attributes {stable_mosaic.version = 11 : i64} {
  func.func @kernel(%arg0: i32, %arg1: i32, %arg2: memref<2x16x16x128xf32, #tpu.memory_space<any>>, %arg3: memref<3x3x128x128xbf16, #tpu.memory_space<vmem>>, %arg4: memref<1x128xf32, #tpu.memory_space<vmem>>, %arg5: memref<1x16x16x128xf32, #tpu.memory_space<vmem>>, %arg6: memref<18x18x128xf32, #tpu.memory_space<vmem>>, %arg7: memref<!tpu.dma_semaphore, #tpu.memory_space<semaphore_mem>>) attributes {dimension_semantics = [#tpu.dimension_semantics<parallel>, #tpu.dimension_semantics<arbitrary>], iteration_bounds = array<i64: 2, 1>, scalar_prefetch = 0 : i64, scratch_operands = 2 : i64, tpu.core_type = #tpu.core_type<tc>, window_params = [{}, {pipeline_mode = #tpu.pipeline_mode<synchronous>, transform_indices = @transform_1, window_bounds = array<i64: 3, 3, 128, 128>}, {pipeline_mode = #tpu.pipeline_mode<synchronous>, transform_indices = @transform_2, window_bounds = array<i64: 1, 128>}, {transform_indices = @transform_3, window_bounds = array<i64: 1, 16, 16, 128>}]} {
    %c0_i32 = arith.constant 0 : i32
    %0 = arith.cmpi eq, %arg1, %c0_i32 : i32
    %1 = arith.extui %0 : i1 to i32
    %c0_i32_0 = arith.constant 0 : i32
    %2 = arith.cmpi ne, %1, %c0_i32_0 : i32
    scf.if %2 {
      %c0_i32_74 = arith.constant 0 : i32
      %c0_i32_75 = arith.constant 0 : i32
      %c0_i32_76 = arith.constant 0 : i32
      %94 = tpu.memref_slice %arg2[%arg0, %c0_i32_74, %c0_i32_75, %c0_i32_76] : memref<2x16x16x128xf32, #tpu.memory_space<any>> -> memref<1x16x16x128xf32, #tpu.memory_space<any>>
      %95 = tpu.memref_squeeze %94 : memref<1x16x16x128xf32, #tpu.memory_space<any>> -> memref<16x16x128xf32, #tpu.memory_space<any>>
      %c1_i32_77 = arith.constant 1 : i32
      %c1_i32_78 = arith.constant 1 : i32
      %c0_i32_79 = arith.constant 0 : i32
      %96 = tpu.memref_slice %arg6[%c1_i32_77, %c1_i32_78, %c0_i32_79] : memref<18x18x128xf32, #tpu.memory_space<vmem>> -> memref<16x16x128xf32, #tpu.memory_space<vmem>>
      tpu.enqueue_dma source(%95 : memref<16x16x128xf32, #tpu.memory_space<any>>) target(%96 : memref<16x16x128xf32, #tpu.memory_space<vmem>>) target_semaphore(%arg7 : memref<!tpu.dma_semaphore, #tpu.memory_space<semaphore_mem>>)
      %cst_80 = arith.constant 0.000000e+00 : f32
      %97 = vector.broadcast %cst_80 : f32 to vector<1x18x128xf32>
      %c0_81 = arith.constant 0 : index
      %c0_82 = arith.constant 0 : index
      %c0_83 = arith.constant 0 : index
      %98 = vector.load %arg6[%c0_81, %c0_82, %c0_83] : memref<18x18x128xf32, #tpu.memory_space<vmem>>, vector<1x18x128xf32>
      tpu.vector_store %arg6[%c0_81, %c0_82, %c0_83], %97 {strides = array<i32>} : memref<18x18x128xf32, #tpu.memory_space<vmem>>, vector<1x18x128xf32>,
      %cst_84 = arith.constant 0.000000e+00 : f32
      %99 = vector.broadcast %cst_84 : f32 to vector<1x18x128xf32>
      %c17 = arith.constant 17 : index
      %c0_85 = arith.constant 0 : index
      %c0_86 = arith.constant 0 : index
      %100 = vector.load %arg6[%c17, %c0_85, %c0_86] : memref<18x18x128xf32, #tpu.memory_space<vmem>>, vector<1x18x128xf32>
      tpu.vector_store %arg6[%c17, %c0_85, %c0_86], %99 {strides = array<i32>} : memref<18x18x128xf32, #tpu.memory_space<vmem>>, vector<1x18x128xf32>,
      %cst_87 = arith.constant 0.000000e+00 : f32
      %101 = vector.broadcast %cst_87 : f32 to vector<16x1x128xf32>
      %c1_88 = arith.constant 1 : index
      %c0_89 = arith.constant 0 : index
      %c0_90 = arith.constant 0 : index
      %102 = vector.load %arg6[%c1_88, %c0_89, %c0_90] : memref<18x18x128xf32, #tpu.memory_space<vmem>>, vector<16x1x128xf32>
      tpu.vector_store %arg6[%c1_88, %c0_89, %c0_90], %101 {strides = array<i32>} : memref<18x18x128xf32, #tpu.memory_space<vmem>>, vector<16x1x128xf32>,
      %cst_91 = arith.constant 0.000000e+00 : f32
      %103 = vector.broadcast %cst_91 : f32 to vector<16x1x128xf32>
      %c1_92 = arith.constant 1 : index
      %c17_93 = arith.constant 17 : index
      %c0_94 = arith.constant 0 : index
      %104 = vector.load %arg6[%c1_92, %c17_93, %c0_94] : memref<18x18x128xf32, #tpu.memory_space<vmem>>, vector<16x1x128xf32>
      tpu.vector_store %arg6[%c1_92, %c17_93, %c0_94], %103 {strides = array<i32>} : memref<18x18x128xf32, #tpu.memory_space<vmem>>, vector<16x1x128xf32>,
      %c0_i32_95 = arith.constant 0 : i32
      %c0_i32_96 = arith.constant 0 : i32
      %c0_i32_97 = arith.constant 0 : i32
      %105 = tpu.memref_slice %arg2[%arg0, %c0_i32_95, %c0_i32_96, %c0_i32_97] : memref<2x16x16x128xf32, #tpu.memory_space<any>> -> memref<1x16x16x128xf32, #tpu.memory_space<any>>
      %106 = tpu.memref_squeeze %105 : memref<1x16x16x128xf32, #tpu.memory_space<any>> -> memref<16x16x128xf32, #tpu.memory_space<any>>
      %c1_i32_98 = arith.constant 1 : i32
      %c1_i32_99 = arith.constant 1 : i32
      %c0_i32_100 = arith.constant 0 : i32
      %107 = tpu.memref_slice %arg6[%c1_i32_98, %c1_i32_99, %c0_i32_100] : memref<18x18x128xf32, #tpu.memory_space<vmem>> -> memref<16x16x128xf32, #tpu.memory_space<vmem>>
      tpu.wait_dma2 semaphore(%arg7 : memref<!tpu.dma_semaphore, #tpu.memory_space<semaphore_mem>>) src(%106 : memref<16x16x128xf32, #tpu.memory_space<any>>) dst(%107 : memref<16x16x128xf32, #tpu.memory_space<vmem>>)
    } else {
    }
    %c16_i32 = arith.constant 16 : i32
    %3 = arith.muli %arg1, %c16_i32 : i32
    %4 = tpu.assume_multiple %3, 16 : i32
    %c0 = arith.constant 0 : index
    %c0_1 = arith.constant 0 : index
    %5 = vector.load %arg4[%c0, %c0_1] : memref<1x128xf32, #tpu.memory_space<vmem>>, vector<1x128xf32>
    %6 = vector.shape_cast %5 : vector<1x128xf32> to vector<1x128xf32>
    %7 = vector.broadcast %6 : vector<1x128xf32> to vector<256x128xf32>
    %c0_i32_2 = arith.constant 0 : i32
    %8 = arith.addi %4, %c0_i32_2 : i32
    %9 = arith.index_cast %8 : i32 to index
    %c0_3 = arith.constant 0 : index
    %c0_4 = arith.constant 0 : index
    %10 = vector.load %arg6[%9, %c0_3, %c0_4] : memref<18x18x128xf32, #tpu.memory_space<vmem>>, vector<16x16x128xf32>
    %11 = vector.shape_cast %10 : vector<16x16x128xf32> to vector<256x128xf32>
    %12 = arith.truncf %11 : vector<256x128xf32> to vector<256x128xbf16>
    %c0_5 = arith.constant 0 : index
    %c0_6 = arith.constant 0 : index
    %c0_7 = arith.constant 0 : index
    %c0_8 = arith.constant 0 : index
    %13 = vector.load %arg3[%c0_5, %c0_6, %c0_7, %c0_8] : memref<3x3x128x128xbf16, #tpu.memory_space<vmem>>, vector<1x1x128x128xbf16>
    %14 = vector.shape_cast %13 : vector<1x1x128x128xbf16> to vector<128x128xbf16>
    %cst = arith.constant dense<0.000000e+00> : vector<256x128xf32>
    %15 = tpu.matmul %12, %14, %cst {dimension_numbers = #tpu.dot_dimension_numbers<[1], [0], [0], [1], [0, 0, 1, 1], [], []>} : vector<256x128xbf16>, vector<128x128xbf16>, vector<256x128xf32> -> vector<256x128xf32>
    %16 = arith.addf %7, %15 : vector<256x128xf32>
    %c0_i32_9 = arith.constant 0 : i32
    %17 = arith.addi %4, %c0_i32_9 : i32
    %18 = arith.index_cast %17 : i32 to index
    %c1 = arith.constant 1 : index
    %c0_10 = arith.constant 0 : index
    %19 = vector.load %arg6[%18, %c1, %c0_10] : memref<18x18x128xf32, #tpu.memory_space<vmem>>, vector<16x16x128xf32>
    %20 = vector.shape_cast %19 : vector<16x16x128xf32> to vector<256x128xf32>
    %21 = arith.truncf %20 : vector<256x128xf32> to vector<256x128xbf16>
    %c0_11 = arith.constant 0 : index
    %c1_12 = arith.constant 1 : index
    %c0_13 = arith.constant 0 : index
    %c0_14 = arith.constant 0 : index
    %22 = vector.load %arg3[%c0_11, %c1_12, %c0_13, %c0_14] : memref<3x3x128x128xbf16, #tpu.memory_space<vmem>>, vector<1x1x128x128xbf16>
    %23 = vector.shape_cast %22 : vector<1x1x128x128xbf16> to vector<128x128xbf16>
    %cst_15 = arith.constant dense<0.000000e+00> : vector<256x128xf32>
    %24 = tpu.matmul %21, %23, %cst_15 {dimension_numbers = #tpu.dot_dimension_numbers<[1], [0], [0], [1], [0, 0, 1, 1], [], []>} : vector<256x128xbf16>, vector<128x128xbf16>, vector<256x128xf32> -> vector<256x128xf32>
    %25 = arith.addf %16, %24 : vector<256x128xf32>
    %c0_i32_16 = arith.constant 0 : i32
    %26 = arith.addi %4, %c0_i32_16 : i32
    %27 = arith.index_cast %26 : i32 to index
    %c2 = arith.constant 2 : index
    %c0_17 = arith.constant 0 : index
    %28 = vector.load %arg6[%27, %c2, %c0_17] : memref<18x18x128xf32, #tpu.memory_space<vmem>>, vector<16x16x128xf32>
    %29 = vector.shape_cast %28 : vector<16x16x128xf32> to vector<256x128xf32>
    %30 = arith.truncf %29 : vector<256x128xf32> to vector<256x128xbf16>
    %c0_18 = arith.constant 0 : index
    %c2_19 = arith.constant 2 : index
    %c0_20 = arith.constant 0 : index
    %c0_21 = arith.constant 0 : index
    %31 = vector.load %arg3[%c0_18, %c2_19, %c0_20, %c0_21] : memref<3x3x128x128xbf16, #tpu.memory_space<vmem>>, vector<1x1x128x128xbf16>
    %32 = vector.shape_cast %31 : vector<1x1x128x128xbf16> to vector<128x128xbf16>
    %cst_22 = arith.constant dense<0.000000e+00> : vector<256x128xf32>
    %33 = tpu.matmul %30, %32, %cst_22 {dimension_numbers = #tpu.dot_dimension_numbers<[1], [0], [0], [1], [0, 0, 1, 1], [], []>} : vector<256x128xbf16>, vector<128x128xbf16>, vector<256x128xf32> -> vector<256x128xf32>
    %34 = arith.addf %25, %33 : vector<256x128xf32>
    %c1_i32 = arith.constant 1 : i32
    %35 = arith.addi %4, %c1_i32 : i32
    %36 = arith.index_cast %35 : i32 to index
    %c0_23 = arith.constant 0 : index
    %c0_24 = arith.constant 0 : index
    %37 = vector.load %arg6[%36, %c0_23, %c0_24] : memref<18x18x128xf32, #tpu.memory_space<vmem>>, vector<16x16x128xf32>
    %38 = vector.shape_cast %37 : vector<16x16x128xf32> to vector<256x128xf32>
    %39 = arith.truncf %38 : vector<256x128xf32> to vector<256x128xbf16>
    %c1_25 = arith.constant 1 : index
    %c0_26 = arith.constant 0 : index
    %c0_27 = arith.constant 0 : index
    %c0_28 = arith.constant 0 : index
    %40 = vector.load %arg3[%c1_25, %c0_26, %c0_27, %c0_28] : memref<3x3x128x128xbf16, #tpu.memory_space<vmem>>, vector<1x1x128x128xbf16>
    %41 = vector.shape_cast %40 : vector<1x1x128x128xbf16> to vector<128x128xbf16>
    %cst_29 = arith.constant dense<0.000000e+00> : vector<256x128xf32>
    %42 = tpu.matmul %39, %41, %cst_29 {dimension_numbers = #tpu.dot_dimension_numbers<[1], [0], [0], [1], [0, 0, 1, 1], [], []>} : vector<256x128xbf16>, vector<128x128xbf16>, vector<256x128xf32> -> vector<256x128xf32>
    %43 = arith.addf %34, %42 : vector<256x128xf32>
    %c1_i32_30 = arith.constant 1 : i32
    %44 = arith.addi %4, %c1_i32_30 : i32
    %45 = arith.index_cast %44 : i32 to index
    %c1_31 = arith.constant 1 : index
    %c0_32 = arith.constant 0 : index
    %46 = vector.load %arg6[%45, %c1_31, %c0_32] : memref<18x18x128xf32, #tpu.memory_space<vmem>>, vector<16x16x128xf32>
    %47 = vector.shape_cast %46 : vector<16x16x128xf32> to vector<256x128xf32>
    %48 = arith.truncf %47 : vector<256x128xf32> to vector<256x128xbf16>
    %c1_33 = arith.constant 1 : index
    %c1_34 = arith.constant 1 : index
    %c0_35 = arith.constant 0 : index
    %c0_36 = arith.constant 0 : index
    %49 = vector.load %arg3[%c1_33, %c1_34, %c0_35, %c0_36] : memref<3x3x128x128xbf16, #tpu.memory_space<vmem>>, vector<1x1x128x128xbf16>
    %50 = vector.shape_cast %49 : vector<1x1x128x128xbf16> to vector<128x128xbf16>
    %cst_37 = arith.constant dense<0.000000e+00> : vector<256x128xf32>
    %51 = tpu.matmul %48, %50, %cst_37 {dimension_numbers = #tpu.dot_dimension_numbers<[1], [0], [0], [1], [0, 0, 1, 1], [], []>} : vector<256x128xbf16>, vector<128x128xbf16>, vector<256x128xf32> -> vector<256x128xf32>
    %52 = arith.addf %43, %51 : vector<256x128xf32>
    %c1_i32_38 = arith.constant 1 : i32
    %53 = arith.addi %4, %c1_i32_38 : i32
    %54 = arith.index_cast %53 : i32 to index
    %c2_39 = arith.constant 2 : index
    %c0_40 = arith.constant 0 : index
    %55 = vector.load %arg6[%54, %c2_39, %c0_40] : memref<18x18x128xf32, #tpu.memory_space<vmem>>, vector<16x16x128xf32>
    %56 = vector.shape_cast %55 : vector<16x16x128xf32> to vector<256x128xf32>
    %57 = arith.truncf %56 : vector<256x128xf32> to vector<256x128xbf16>
    %c1_41 = arith.constant 1 : index
    %c2_42 = arith.constant 2 : index
    %c0_43 = arith.constant 0 : index
    %c0_44 = arith.constant 0 : index
    %58 = vector.load %arg3[%c1_41, %c2_42, %c0_43, %c0_44] : memref<3x3x128x128xbf16, #tpu.memory_space<vmem>>, vector<1x1x128x128xbf16>
    %59 = vector.shape_cast %58 : vector<1x1x128x128xbf16> to vector<128x128xbf16>
    %cst_45 = arith.constant dense<0.000000e+00> : vector<256x128xf32>
    %60 = tpu.matmul %57, %59, %cst_45 {dimension_numbers = #tpu.dot_dimension_numbers<[1], [0], [0], [1], [0, 0, 1, 1], [], []>} : vector<256x128xbf16>, vector<128x128xbf16>, vector<256x128xf32> -> vector<256x128xf32>
    %61 = arith.addf %52, %60 : vector<256x128xf32>
    %c2_i32 = arith.constant 2 : i32
    %62 = arith.addi %4, %c2_i32 : i32
    %63 = arith.index_cast %62 : i32 to index
    %c0_46 = arith.constant 0 : index
    %c0_47 = arith.constant 0 : index
    %64 = vector.load %arg6[%63, %c0_46, %c0_47] : memref<18x18x128xf32, #tpu.memory_space<vmem>>, vector<16x16x128xf32>
    %65 = vector.shape_cast %64 : vector<16x16x128xf32> to vector<256x128xf32>
    %66 = arith.truncf %65 : vector<256x128xf32> to vector<256x128xbf16>
    %c2_48 = arith.constant 2 : index
    %c0_49 = arith.constant 0 : index
    %c0_50 = arith.constant 0 : index
    %c0_51 = arith.constant 0 : index
    %67 = vector.load %arg3[%c2_48, %c0_49, %c0_50, %c0_51] : memref<3x3x128x128xbf16, #tpu.memory_space<vmem>>, vector<1x1x128x128xbf16>
    %68 = vector.shape_cast %67 : vector<1x1x128x128xbf16> to vector<128x128xbf16>
    %cst_52 = arith.constant dense<0.000000e+00> : vector<256x128xf32>
    %69 = tpu.matmul %66, %68, %cst_52 {dimension_numbers = #tpu.dot_dimension_numbers<[1], [0], [0], [1], [0, 0, 1, 1], [], []>} : vector<256x128xbf16>, vector<128x128xbf16>, vector<256x128xf32> -> vector<256x128xf32>
    %70 = arith.addf %61, %69 : vector<256x128xf32>
    %c2_i32_53 = arith.constant 2 : i32
    %71 = arith.addi %4, %c2_i32_53 : i32
    %72 = arith.index_cast %71 : i32 to index
    %c1_54 = arith.constant 1 : index
    %c0_55 = arith.constant 0 : index
    %73 = vector.load %arg6[%72, %c1_54, %c0_55] : memref<18x18x128xf32, #tpu.memory_space<vmem>>, vector<16x16x128xf32>
    %74 = vector.shape_cast %73 : vector<16x16x128xf32> to vector<256x128xf32>
    %75 = arith.truncf %74 : vector<256x128xf32> to vector<256x128xbf16>
    %c2_56 = arith.constant 2 : index
    %c1_57 = arith.constant 1 : index
    %c0_58 = arith.constant 0 : index
    %c0_59 = arith.constant 0 : index
    %76 = vector.load %arg3[%c2_56, %c1_57, %c0_58, %c0_59] : memref<3x3x128x128xbf16, #tpu.memory_space<vmem>>, vector<1x1x128x128xbf16>
    %77 = vector.shape_cast %76 : vector<1x1x128x128xbf16> to vector<128x128xbf16>
    %cst_60 = arith.constant dense<0.000000e+00> : vector<256x128xf32>
    %78 = tpu.matmul %75, %77, %cst_60 {dimension_numbers = #tpu.dot_dimension_numbers<[1], [0], [0], [1], [0, 0, 1, 1], [], []>} : vector<256x128xbf16>, vector<128x128xbf16>, vector<256x128xf32> -> vector<256x128xf32>
    %79 = arith.addf %70, %78 : vector<256x128xf32>
    %c2_i32_61 = arith.constant 2 : i32
    %80 = arith.addi %4, %c2_i32_61 : i32
    %81 = arith.index_cast %80 : i32 to index
    %c2_62 = arith.constant 2 : index
    %c0_63 = arith.constant 0 : index
    %82 = vector.load %arg6[%81, %c2_62, %c0_63] : memref<18x18x128xf32, #tpu.memory_space<vmem>>, vector<16x16x128xf32>
    %83 = vector.shape_cast %82 : vector<16x16x128xf32> to vector<256x128xf32>
    %84 = arith.truncf %83 : vector<256x128xf32> to vector<256x128xbf16>
    %c2_64 = arith.constant 2 : index
    %c2_65 = arith.constant 2 : index
    %c0_66 = arith.constant 0 : index
    %c0_67 = arith.constant 0 : index
    %85 = vector.load %arg3[%c2_64, %c2_65, %c0_66, %c0_67] : memref<3x3x128x128xbf16, #tpu.memory_space<vmem>>, vector<1x1x128x128xbf16>
    %86 = vector.shape_cast %85 : vector<1x1x128x128xbf16> to vector<128x128xbf16>
    %cst_68 = arith.constant dense<0.000000e+00> : vector<256x128xf32>
    %87 = tpu.matmul %84, %86, %cst_68 {dimension_numbers = #tpu.dot_dimension_numbers<[1], [0], [0], [1], [0, 0, 1, 1], [], []>} : vector<256x128xbf16>, vector<128x128xbf16>, vector<256x128xf32> -> vector<256x128xf32>
    %88 = arith.addf %79, %87 : vector<256x128xf32>
    %cst_69 = arith.constant 0.000000e+00 : f32
    %89 = vector.broadcast %cst_69 : f32 to vector<256x128xf32>
    %90 = arith.maximumf %88, %89 : vector<256x128xf32>
    %91 = vector.shape_cast %90 : vector<256x128xf32> to vector<16x16x128xf32>
    %92 = vector.shape_cast %91 : vector<16x16x128xf32> to vector<1x16x16x128xf32>
    %c0_70 = arith.constant 0 : index
    %c0_71 = arith.constant 0 : index
    %c0_72 = arith.constant 0 : index
    %c0_73 = arith.constant 0 : index
    %93 = vector.load %arg5[%c0_70, %c0_71, %c0_72, %c0_73] : memref<1x16x16x128xf32, #tpu.memory_space<vmem>>, vector<1x16x16x128xf32>
    tpu.vector_store %arg5[%c0_70, %c0_71, %c0_72, %c0_73], %92 {strides = array<i32>} : memref<1x16x16x128xf32, #tpu.memory_space<vmem>>, vector<1x16x16x128xf32>,
    return
  }
  func.func @transform_1(%arg0: i32, %arg1: i32) -> (i32, i32, i32, i32) {
    %c0_i32 = arith.constant 0 : i32
    %c0_i32_0 = arith.constant 0 : i32
    %c0_i32_1 = arith.constant 0 : i32
    %c0_i32_2 = arith.constant 0 : i32
    %c0_i32_3 = arith.constant 0 : i32
    return %c0_i32, %c0_i32_0, %c0_i32_1, %c0_i32_2 : i32, i32, i32, i32
  }
  func.func @transform_2(%arg0: i32, %arg1: i32) -> (i32, i32) {
    %c0_i32 = arith.constant 0 : i32
    %c0_i32_0 = arith.constant 0 : i32
    %c0_i32_1 = arith.constant 0 : i32
    return %c0_i32, %c0_i32_0 : i32, i32
  }
  func.func @transform_3(%arg0: i32, %arg1: i32) -> (i32, i32, i32, i32) {
    %c0_i32 = arith.constant 0 : i32
    %c0_i32_0 = arith.constant 0 : i32
    %c0_i32_1 = arith.constant 0 : i32
    return %arg0, %arg1, %c0_i32, %c0_i32_0 : i32, i32, i32, i32
  }
}

module attributes {stable_mosaic.version = 11 : i64} {
  func.func @kernel(%arg0: i32, %arg1: i32, %arg2: memref<2x16x16x128xf32, #tpu.memory_space<any>>, %arg3: memref<3x3x128x128xbf16, #tpu.memory_space<vmem>>, %arg4: memref<1x128xf32, #tpu.memory_space<vmem>>, %arg5: memref<1x16x16x128xf32, #tpu.memory_space<vmem>>, %arg6: memref<18x18x128xf32, #tpu.memory_space<vmem>>, %arg7: memref<!tpu.dma_semaphore, #tpu.memory_space<semaphore_mem>>) attributes {dimension_semantics = [#tpu.dimension_semantics<parallel>, #tpu.dimension_semantics<arbitrary>], iteration_bounds = array<i64: 2, 1>, scalar_prefetch = 0 : i64, scratch_operands = 2 : i64, tpu.core_type = #tpu.core_type<tc>, window_params = [{}, {pipeline_mode = #tpu.pipeline_mode<synchronous>, transform_indices = @transform_1, window_bounds = array<i64: 3, 3, 128, 128>}, {pipeline_mode = #tpu.pipeline_mode<synchronous>, transform_indices = @transform_2, window_bounds = array<i64: 1, 128>}, {transform_indices = @transform_3, window_bounds = array<i64: 1, 16, 16, 128>}]} {
    %c0_i32 = arith.constant 0 : i32
    %0 = arith.cmpi eq, %arg1, %c0_i32 : i32
    %1 = arith.extui %0 : i1 to i32
    %c0_i32_0 = arith.constant 0 : i32
    %2 = arith.cmpi ne, %1, %c0_i32_0 : i32
    scf.if %2 {
      %c0_i32_74 = arith.constant 0 : i32
      %c0_i32_75 = arith.constant 0 : i32
      %c0_i32_76 = arith.constant 0 : i32
      %94 = tpu.memref_slice %arg2[%arg0, %c0_i32_74, %c0_i32_75, %c0_i32_76] : memref<2x16x16x128xf32, #tpu.memory_space<any>> -> memref<1x16x16x128xf32, #tpu.memory_space<any>>
      %95 = tpu.memref_squeeze %94 : memref<1x16x16x128xf32, #tpu.memory_space<any>> -> memref<16x16x128xf32, #tpu.memory_space<any>>
      %c1_i32_77 = arith.constant 1 : i32
      %c1_i32_78 = arith.constant 1 : i32
      %c0_i32_79 = arith.constant 0 : i32
      %96 = tpu.memref_slice %arg6[%c1_i32_77, %c1_i32_78, %c0_i32_79] : memref<18x18x128xf32, #tpu.memory_space<vmem>> -> memref<16x16x128xf32, #tpu.memory_space<vmem>>
      tpu.enqueue_dma source(%95 : memref<16x16x128xf32, #tpu.memory_space<any>>) target(%96 : memref<16x16x128xf32, #tpu.memory_space<vmem>>) target_semaphore(%arg7 : memref<!tpu.dma_semaphore, #tpu.memory_space<semaphore_mem>>)
      %cst_80 = arith.constant 0.000000e+00 : f32
      %97 = vector.broadcast %cst_80 : f32 to vector<1x18x128xf32>
      %c0_81 = arith.constant 0 : index
      %c0_82 = arith.constant 0 : index
      %c0_83 = arith.constant 0 : index
      %98 = vector.load %arg6[%c0_81, %c0_82, %c0_83] : memref<18x18x128xf32, #tpu.memory_space<vmem>>, vector<1x18x128xf32>
      tpu.vector_store %arg6[%c0_81, %c0_82, %c0_83], %97 {strides = array<i32>} : memref<18x18x128xf32, #tpu.memory_space<vmem>>, vector<1x18x128xf32>,
      %cst_84 = arith.constant 0.000000e+00 : f32
      %99 = vector.broadcast %cst_84 : f32 to vector<1x18x128xf32>
      %c17 = arith.constant 17 : index
      %c0_85 = arith.constant 0 : index
      %c0_86 = arith.constant 0 : index
      %100 = vector.load %arg6[%c17, %c0_85, %c0_86] : memref<18x18x128xf32, #tpu.memory_space<vmem>>, vector<1x18x128xf32>
      tpu.vector_store %arg6[%c17, %c0_85, %c0_86], %99 {strides = array<i32>} : memref<18x18x128xf32, #tpu.memory_space<vmem>>, vector<1x18x128xf32>,
      %cst_87 = arith.constant 0.000000e+00 : f32
      %101 = vector.broadcast %cst_87 : f32 to vector<16x1x128xf32>
      %c1_88 = arith.constant 1 : index
      %c0_89 = arith.constant 0 : index
      %c0_90 = arith.constant 0 : index
      %102 = vector.load %arg6[%c1_88, %c0_89, %c0_90] : memref<18x18x128xf32, #tpu.memory_space<vmem>>, vector<16x1x128xf32>
      tpu.vector_store %arg6[%c1_88, %c0_89, %c0_90], %101 {strides = array<i32>} : memref<18x18x128xf32, #tpu.memory_space<vmem>>, vector<16x1x128xf32>,
      %cst_91 = arith.constant 0.000000e+00 : f32
      %103 = vector.broadcast %cst_91 : f32 to vector<16x1x128xf32>
      %c1_92 = arith.constant 1 : index
      %c17_93 = arith.constant 17 : index
      %c0_94 = arith.constant 0 : index
      %104 = vector.load %arg6[%c1_92, %c17_93, %c0_94] : memref<18x18x128xf32, #tpu.memory_space<vmem>>, vector<16x1x128xf32>
      tpu.vector_store %arg6[%c1_92, %c17_93, %c0_94], %103 {strides = array<i32>} : memref<18x18x128xf32, #tpu.memory_space<vmem>>, vector<16x1x128xf32>,
      %c0_i32_95 = arith.constant 0 : i32
      %c0_i32_96 = arith.constant 0 : i32
      %c0_i32_97 = arith.constant 0 : i32
      %105 = tpu.memref_slice %arg2[%arg0, %c0_i32_95, %c0_i32_96, %c0_i32_97] : memref<2x16x16x128xf32, #tpu.memory_space<any>> -> memref<1x16x16x128xf32, #tpu.memory_space<any>>
      %106 = tpu.memref_squeeze %105 : memref<1x16x16x128xf32, #tpu.memory_space<any>> -> memref<16x16x128xf32, #tpu.memory_space<any>>
      %c1_i32_98 = arith.constant 1 : i32
      %c1_i32_99 = arith.constant 1 : i32
      %c0_i32_100 = arith.constant 0 : i32
      %107 = tpu.memref_slice %arg6[%c1_i32_98, %c1_i32_99, %c0_i32_100] : memref<18x18x128xf32, #tpu.memory_space<vmem>> -> memref<16x16x128xf32, #tpu.memory_space<vmem>>
      tpu.wait_dma2 semaphore(%arg7 : memref<!tpu.dma_semaphore, #tpu.memory_space<semaphore_mem>>) src(%106 : memref<16x16x128xf32, #tpu.memory_space<any>>) dst(%107 : memref<16x16x128xf32, #tpu.memory_space<vmem>>)
    } else {
    }
    %c16_i32 = arith.constant 16 : i32
    %3 = arith.muli %arg1, %c16_i32 : i32
    %4 = tpu.assume_multiple %3, 16 : i32
    %c0 = arith.constant 0 : index
    %c0_1 = arith.constant 0 : index
    %5 = vector.load %arg4[%c0, %c0_1] : memref<1x128xf32, #tpu.memory_space<vmem>>, vector<1x128xf32>
    %6 = vector.shape_cast %5 : vector<1x128xf32> to vector<1x128xf32>
    %7 = vector.broadcast %6 : vector<1x128xf32> to vector<256x128xf32>
    %c0_i32_2 = arith.constant 0 : i32
    %8 = arith.addi %4, %c0_i32_2 : i32
    %9 = arith.index_cast %8 : i32 to index
    %c0_3 = arith.constant 0 : index
    %c0_4 = arith.constant 0 : index
    %10 = vector.load %arg6[%9, %c0_3, %c0_4] : memref<18x18x128xf32, #tpu.memory_space<vmem>>, vector<16x16x128xf32>
    %11 = vector.shape_cast %10 : vector<16x16x128xf32> to vector<256x128xf32>
    %12 = arith.truncf %11 : vector<256x128xf32> to vector<256x128xbf16>
    %c0_5 = arith.constant 0 : index
    %c0_6 = arith.constant 0 : index
    %c0_7 = arith.constant 0 : index
    %c0_8 = arith.constant 0 : index
    %13 = vector.load %arg3[%c0_5, %c0_6, %c0_7, %c0_8] : memref<3x3x128x128xbf16, #tpu.memory_space<vmem>>, vector<1x1x128x128xbf16>
    %14 = vector.shape_cast %13 : vector<1x1x128x128xbf16> to vector<128x128xbf16>
    %cst = arith.constant dense<0.000000e+00> : vector<256x128xf32>
    %15 = tpu.matmul %12, %14, %cst {dimension_numbers = #tpu.dot_dimension_numbers<[1], [0], [0], [1], [0, 0, 1, 1], [], []>} : vector<256x128xbf16>, vector<128x128xbf16>, vector<256x128xf32> -> vector<256x128xf32>
    %16 = arith.addf %7, %15 : vector<256x128xf32>
    %c0_i32_9 = arith.constant 0 : i32
    %17 = arith.addi %4, %c0_i32_9 : i32
    %18 = arith.index_cast %17 : i32 to index
    %c1 = arith.constant 1 : index
    %c0_10 = arith.constant 0 : index
    %19 = vector.load %arg6[%18, %c1, %c0_10] : memref<18x18x128xf32, #tpu.memory_space<vmem>>, vector<16x16x128xf32>
    %20 = vector.shape_cast %19 : vector<16x16x128xf32> to vector<256x128xf32>
    %21 = arith.truncf %20 : vector<256x128xf32> to vector<256x128xbf16>
    %c0_11 = arith.constant 0 : index
    %c1_12 = arith.constant 1 : index
    %c0_13 = arith.constant 0 : index
    %c0_14 = arith.constant 0 : index
    %22 = vector.load %arg3[%c0_11, %c1_12, %c0_13, %c0_14] : memref<3x3x128x128xbf16, #tpu.memory_space<vmem>>, vector<1x1x128x128xbf16>
    %23 = vector.shape_cast %22 : vector<1x1x128x128xbf16> to vector<128x128xbf16>
    %cst_15 = arith.constant dense<0.000000e+00> : vector<256x128xf32>
    %24 = tpu.matmul %21, %23, %cst_15 {dimension_numbers = #tpu.dot_dimension_numbers<[1], [0], [0], [1], [0, 0, 1, 1], [], []>} : vector<256x128xbf16>, vector<128x128xbf16>, vector<256x128xf32> -> vector<256x128xf32>
    %25 = arith.addf %16, %24 : vector<256x128xf32>
    %c0_i32_16 = arith.constant 0 : i32
    %26 = arith.addi %4, %c0_i32_16 : i32
    %27 = arith.index_cast %26 : i32 to index
    %c2 = arith.constant 2 : index
    %c0_17 = arith.constant 0 : index
    %28 = vector.load %arg6[%27, %c2, %c0_17] : memref<18x18x128xf32, #tpu.memory_space<vmem>>, vector<16x16x128xf32>
    %29 = vector.shape_cast %28 : vector<16x16x128xf32> to vector<256x128xf32>
    %30 = arith.truncf %29 : vector<256x128xf32> to vector<256x128xbf16>
    %c0_18 = arith.constant 0 : index
    %c2_19 = arith.constant 2 : index
    %c0_20 = arith.constant 0 : index
    %c0_21 = arith.constant 0 : index
    %31 = vector.load %arg3[%c0_18, %c2_19, %c0_20, %c0_21] : memref<3x3x128x128xbf16, #tpu.memory_space<vmem>>, vector<1x1x128x128xbf16>
    %32 = vector.shape_cast %31 : vector<1x1x128x128xbf16> to vector<128x128xbf16>
    %cst_22 = arith.constant dense<0.000000e+00> : vector<256x128xf32>
    %33 = tpu.matmul %30, %32, %cst_22 {dimension_numbers = #tpu.dot_dimension_numbers<[1], [0], [0], [1], [0, 0, 1, 1], [], []>} : vector<256x128xbf16>, vector<128x128xbf16>, vector<256x128xf32> -> vector<256x128xf32>
    %34 = arith.addf %25, %33 : vector<256x128xf32>
    %c1_i32 = arith.constant 1 : i32
    %35 = arith.addi %4, %c1_i32 : i32
    %36 = arith.index_cast %35 : i32 to index
    %c0_23 = arith.constant 0 : index
    %c0_24 = arith.constant 0 : index
    %37 = vector.load %arg6[%36, %c0_23, %c0_24] : memref<18x18x128xf32, #tpu.memory_space<vmem>>, vector<16x16x128xf32>
    %38 = vector.shape_cast %37 : vector<16x16x128xf32> to vector<256x128xf32>
    %39 = arith.truncf %38 : vector<256x128xf32> to vector<256x128xbf16>
    %c1_25 = arith.constant 1 : index
    %c0_26 = arith.constant 0 : index
    %c0_27 = arith.constant 0 : index
    %c0_28 = arith.constant 0 : index
    %40 = vector.load %arg3[%c1_25, %c0_26, %c0_27, %c0_28] : memref<3x3x128x128xbf16, #tpu.memory_space<vmem>>, vector<1x1x128x128xbf16>
    %41 = vector.shape_cast %40 : vector<1x1x128x128xbf16> to vector<128x128xbf16>
    %cst_29 = arith.constant dense<0.000000e+00> : vector<256x128xf32>
    %42 = tpu.matmul %39, %41, %cst_29 {dimension_numbers = #tpu.dot_dimension_numbers<[1], [0], [0], [1], [0, 0, 1, 1], [], []>} : vector<256x128xbf16>, vector<128x128xbf16>, vector<256x128xf32> -> vector<256x128xf32>
    %43 = arith.addf %34, %42 : vector<256x128xf32>
    %c1_i32_30 = arith.constant 1 : i32
    %44 = arith.addi %4, %c1_i32_30 : i32
    %45 = arith.index_cast %44 : i32 to index
    %c1_31 = arith.constant 1 : index
    %c0_32 = arith.constant 0 : index
    %46 = vector.load %arg6[%45, %c1_31, %c0_32] : memref<18x18x128xf32, #tpu.memory_space<vmem>>, vector<16x16x128xf32>
    %47 = vector.shape_cast %46 : vector<16x16x128xf32> to vector<256x128xf32>
    %48 = arith.truncf %47 : vector<256x128xf32> to vector<256x128xbf16>
    %c1_33 = arith.constant 1 : index
    %c1_34 = arith.constant 1 : index
    %c0_35 = arith.constant 0 : index
    %c0_36 = arith.constant 0 : index
    %49 = vector.load %arg3[%c1_33, %c1_34, %c0_35, %c0_36] : memref<3x3x128x128xbf16, #tpu.memory_space<vmem>>, vector<1x1x128x128xbf16>
    %50 = vector.shape_cast %49 : vector<1x1x128x128xbf16> to vector<128x128xbf16>
    %cst_37 = arith.constant dense<0.000000e+00> : vector<256x128xf32>
    %51 = tpu.matmul %48, %50, %cst_37 {dimension_numbers = #tpu.dot_dimension_numbers<[1], [0], [0], [1], [0, 0, 1, 1], [], []>} : vector<256x128xbf16>, vector<128x128xbf16>, vector<256x128xf32> -> vector<256x128xf32>
    %52 = arith.addf %43, %51 : vector<256x128xf32>
    %c1_i32_38 = arith.constant 1 : i32
    %53 = arith.addi %4, %c1_i32_38 : i32
    %54 = arith.index_cast %53 : i32 to index
    %c2_39 = arith.constant 2 : index
    %c0_40 = arith.constant 0 : index
    %55 = vector.load %arg6[%54, %c2_39, %c0_40] : memref<18x18x128xf32, #tpu.memory_space<vmem>>, vector<16x16x128xf32>
    %56 = vector.shape_cast %55 : vector<16x16x128xf32> to vector<256x128xf32>
    %57 = arith.truncf %56 : vector<256x128xf32> to vector<256x128xbf16>
    %c1_41 = arith.constant 1 : index
    %c2_42 = arith.constant 2 : index
    %c0_43 = arith.constant 0 : index
    %c0_44 = arith.constant 0 : index
    %58 = vector.load %arg3[%c1_41, %c2_42, %c0_43, %c0_44] : memref<3x3x128x128xbf16, #tpu.memory_space<vmem>>, vector<1x1x128x128xbf16>
    %59 = vector.shape_cast %58 : vector<1x1x128x128xbf16> to vector<128x128xbf16>
    %cst_45 = arith.constant dense<0.000000e+00> : vector<256x128xf32>
    %60 = tpu.matmul %57, %59, %cst_45 {dimension_numbers = #tpu.dot_dimension_numbers<[1], [0], [0], [1], [0, 0, 1, 1], [], []>} : vector<256x128xbf16>, vector<128x128xbf16>, vector<256x128xf32> -> vector<256x128xf32>
    %61 = arith.addf %52, %60 : vector<256x128xf32>
    %c2_i32 = arith.constant 2 : i32
    %62 = arith.addi %4, %c2_i32 : i32
    %63 = arith.index_cast %62 : i32 to index
    %c0_46 = arith.constant 0 : index
    %c0_47 = arith.constant 0 : index
    %64 = vector.load %arg6[%63, %c0_46, %c0_47] : memref<18x18x128xf32, #tpu.memory_space<vmem>>, vector<16x16x128xf32>
    %65 = vector.shape_cast %64 : vector<16x16x128xf32> to vector<256x128xf32>
    %66 = arith.truncf %65 : vector<256x128xf32> to vector<256x128xbf16>
    %c2_48 = arith.constant 2 : index
    %c0_49 = arith.constant 0 : index
    %c0_50 = arith.constant 0 : index
    %c0_51 = arith.constant 0 : index
    %67 = vector.load %arg3[%c2_48, %c0_49, %c0_50, %c0_51] : memref<3x3x128x128xbf16, #tpu.memory_space<vmem>>, vector<1x1x128x128xbf16>
    %68 = vector.shape_cast %67 : vector<1x1x128x128xbf16> to vector<128x128xbf16>
    %cst_52 = arith.constant dense<0.000000e+00> : vector<256x128xf32>
    %69 = tpu.matmul %66, %68, %cst_52 {dimension_numbers = #tpu.dot_dimension_numbers<[1], [0], [0], [1], [0, 0, 1, 1], [], []>} : vector<256x128xbf16>, vector<128x128xbf16>, vector<256x128xf32> -> vector<256x128xf32>
    %70 = arith.addf %61, %69 : vector<256x128xf32>
    %c2_i32_53 = arith.constant 2 : i32
    %71 = arith.addi %4, %c2_i32_53 : i32
    %72 = arith.index_cast %71 : i32 to index
    %c1_54 = arith.constant 1 : index
    %c0_55 = arith.constant 0 : index
    %73 = vector.load %arg6[%72, %c1_54, %c0_55] : memref<18x18x128xf32, #tpu.memory_space<vmem>>, vector<16x16x128xf32>
    %74 = vector.shape_cast %73 : vector<16x16x128xf32> to vector<256x128xf32>
    %75 = arith.truncf %74 : vector<256x128xf32> to vector<256x128xbf16>
    %c2_56 = arith.constant 2 : index
    %c1_57 = arith.constant 1 : index
    %c0_58 = arith.constant 0 : index
    %c0_59 = arith.constant 0 : index
    %76 = vector.load %arg3[%c2_56, %c1_57, %c0_58, %c0_59] : memref<3x3x128x128xbf16, #tpu.memory_space<vmem>>, vector<1x1x128x128xbf16>
    %77 = vector.shape_cast %76 : vector<1x1x128x128xbf16> to vector<128x128xbf16>
    %cst_60 = arith.constant dense<0.000000e+00> : vector<256x128xf32>
    %78 = tpu.matmul %75, %77, %cst_60 {dimension_numbers = #tpu.dot_dimension_numbers<[1], [0], [0], [1], [0, 0, 1, 1], [], []>} : vector<256x128xbf16>, vector<128x128xbf16>, vector<256x128xf32> -> vector<256x128xf32>
    %79 = arith.addf %70, %78 : vector<256x128xf32>
    %c2_i32_61 = arith.constant 2 : i32
    %80 = arith.addi %4, %c2_i32_61 : i32
    %81 = arith.index_cast %80 : i32 to index
    %c2_62 = arith.constant 2 : index
    %c0_63 = arith.constant 0 : index
    %82 = vector.load %arg6[%81, %c2_62, %c0_63] : memref<18x18x128xf32, #tpu.memory_space<vmem>>, vector<16x16x128xf32>
    %83 = vector.shape_cast %82 : vector<16x16x128xf32> to vector<256x128xf32>
    %84 = arith.truncf %83 : vector<256x128xf32> to vector<256x128xbf16>
    %c2_64 = arith.constant 2 : index
    %c2_65 = arith.constant 2 : index
    %c0_66 = arith.constant 0 : index
    %c0_67 = arith.constant 0 : index
    %85 = vector.load %arg3[%c2_64, %c2_65, %c0_66, %c0_67] : memref<3x3x128x128xbf16, #tpu.memory_space<vmem>>, vector<1x1x128x128xbf16>
    %86 = vector.shape_cast %85 : vector<1x1x128x128xbf16> to vector<128x128xbf16>
    %cst_68 = arith.constant dense<0.000000e+00> : vector<256x128xf32>
    %87 = tpu.matmul %84, %86, %cst_68 {dimension_numbers = #tpu.dot_dimension_numbers<[1], [0], [0], [1], [0, 0, 1, 1], [], []>} : vector<256x128xbf16>, vector<128x128xbf16>, vector<256x128xf32> -> vector<256x128xf32>
    %88 = arith.addf %79, %87 : vector<256x128xf32>
    %cst_69 = arith.constant 0.000000e+00 : f32
    %89 = vector.broadcast %cst_69 : f32 to vector<256x128xf32>
    %90 = arith.maximumf %88, %89 : vector<256x128xf32>
    %91 = vector.shape_cast %90 : vector<256x128xf32> to vector<16x16x128xf32>
    %92 = vector.shape_cast %91 : vector<16x16x128xf32> to vector<1x16x16x128xf32>
    %c0_70 = arith.constant 0 : index
    %c0_71 = arith.constant 0 : index
    %c0_72 = arith.constant 0 : index
    %c0_73 = arith.constant 0 : index
    %93 = vector.load %arg5[%c0_70, %c0_71, %c0_72, %c0_73] : memref<1x16x16x128xf32, #tpu.memory_space<vmem>>, vector<1x16x16x128xf32>
    tpu.vector_store %arg5[%c0_70, %c0_71, %c0_72, %c0_73], %92 {strides = array<i32>} : memref<1x16x16x128xf32, #tpu.memory_space<vmem>>, vector<1x16x16x128xf32>,
    return
  }
  func.func @transform_1(%arg0: i32, %arg1: i32) -> (i32, i32, i32, i32) {
    %c0_i32 = arith.constant 0 : i32
    %c0_i32_0 = arith.constant 0 : i32
    %c0_i32_1 = arith.constant 0 : i32
    %c0_i32_2 = arith.constant 0 : i32
    %c0_i32_3 = arith.constant 0 : i32
    return %c0_i32, %c0_i32_0, %c0_i32_1, %c0_i32_2 : i32, i32, i32, i32
  }
  func.func @transform_2(%arg0: i32, %arg1: i32) -> (i32, i32) {
    %c0_i32 = arith.constant 0 : i32
    %c0_i32_0 = arith.constant 0 : i32
    %c0_i32_1 = arith.constant 0 : i32
    return %c0_i32, %c0_i32_0 : i32, i32
  }
  func.func @transform_3(%arg0: i32, %arg1: i32) -> (i32, i32, i32, i32) {
    %c0_i32 = arith.constant 0 : i32
    %c0_i32_0 = arith.constant 0 : i32
    %c0_i32_1 = arith.constant 0 : i32
    return %arg0, %arg1, %c0_i32, %c0_i32_0 : i32, i32, i32, i32
  }
}

</mosaic_0001>

<llo_original>
// kernel: tpu_custom_call.1
$region0: #{tpu_custom_call.1}
  #allocation0 [shape = 'u32[]', space=smem, size = 0x4, offset = 0x4, fixed_abs, tag = 'smem constant byte address 0x4 - core index']
  #allocation1 [shape = 'u32[144,128]{1,0:T(1,128)}', space=vmem, size = 0x12000, scoped, tag = 'internal scratch']
  #allocation2 [shape = 'f32[18,18,128]{2,1,0:T(8,128)}', space=vmem, size = 0x36000, scoped, tag = 'scratch operand']
  #allocation3 [shape = 's32[1]{0}', space=sflag, size = 0x4, scoped, tag = 'scratch operand']
  #allocation8 [shape = 's32[]', space=sflag, size = 0x4, offset = 0, fixed_abs, tag = 'sflag constant byte address 0x0 - dummy sync flag']
  %s0 = inlined_call_operand.hbm [shape: f32[2,16,16,128], index: 0, kind: input, shape index: {}]
  %s1 = inlined_call_operand.hbm [shape: bf16[3,3,128,128], index: 1, kind: input, shape index: {}]
  %s2 = inlined_call_operand.vmem [shape: f32[1,128], index: 2, kind: input, shape index: {}]
  %s3 = inlined_call_operand.hbm [shape: f32[2,16,16,128], index: 3, kind: output, shape index: {}]
  %s4 = sld [smem:[#allocation0]]
  $region49: #{tpu_custom_call.1} parent=0
    _
  %s6 = ssub.s32 1, %s4
  %s7 = scalar_select 0, %s6, %s4
  $region1: #{tpu_custom_call.1} parent=0
    #allocation4 [shape = 'u8[294912]{0}', space=vmem, size = 0x48000, scoped, tag = 'input window, operand 1, single buffered']
    #allocation5 [shape = 's32[2]{0}', space=sflag, size = 0x8, scoped, tag = 'scoped memory for tpu_custom_call.1']
    #allocation6 [shape = 's32[2]{0}', space=sflag, size = 0x8, scoped, tag = 'scoped memory for tpu_custom_call.1']
    #allocation7 [shape = 'u8[262144]{0}', space=vmem, size = 0x40000, scoped, tag = 'output window, operand 0']
    %8 = vsyncpa [#allocation5], 0
    %9 = vsyncpa [#allocation6], 0
    %s10 = scalar_lea.sflag [#allocation6], 1
    %11 = vsyncpa %s10, 0
    loop: start=0, step=1, limit=4
    $region2: #{tpu_custom_call.1} parent=1 // loop_pre_header
      _
    $region3: #{tpu_custom_call.1} parent=1 // loop_header
      %s13 = sphi 0, %s17
      %p14 = scmp.ge.s32.totalorder %s13, 4
      %s20 = sphi 0, %s32
      %s21 = sphi 0, %s28
      %s22 = sphi 0, %s20
      %s23 = sphi 0, %s21
      %s24 = sphi 0, %s22
      %s25 = sphi 0, %s23
      %s33 = sphi 0, %s33
      %s35 = sphi 0, %s33
      %s36 = sphi 0, %s35
      %s50 = sphi 0, %s36
      %s54 = sphi 0, %s54
      %s56 = sphi 0, %s54
      %s57 = sphi 0, %s56
      %s71 = sphi 0, %s57
      %s79 = sphi 0, %s81
      %s82 = sphi 0, %s79
      %s83 = sphi 0, %s82
      %s99 = sphi 0, %s83
    $region4: #{tpu_custom_call.1} parent=1 // loop_header_branch
      %16 = sbr.rel (%p14) target = $region8
    $region5: #{tpu_custom_call.1} parent=1 // loop_body
      %s18 = ssub.s32 %s13, 1
      %s19 = ssub.s32 %s13, 2
      %s26 = sadd.s32 1, %s21
      %p27 = scmp.ge.s32.totalorder %s26, 1
      %s28 = scalar_select %p27, 0, %s26
      %s29 = sadd.s32 1, %s20
      %s30 = scalar_select %p27, %s29, %s20
      %p31 = scmp.ge.s32.totalorder %s30, 2
      %s32 = scalar_select %p31, 0, %s30
      %s34 = sadd.s32 %s33, 1
      %p37 = scmp.eq.s32.totalorder %s13, 1
      %p38 = scmp.ne.s32.totalorder %s33, %s35
      %p39 = scmp.eq.s32.totalorder %s13, 0
      %p40 = por %p38, %p39
      %p41 = scmp.ne.s32.totalorder %s33, %s35
      %p42 = scmp.eq.s32.totalorder %s18, 1
      %p43 = por %p41, %p42
      %p44 = scmp.ne.s32.totalorder %s35, %s36
      %p45 = scmp.eq.s32.totalorder %s18, 0
      %p46 = por %p44, %p45
      %p47 = scmp.ne.s32.totalorder %s35, %s36
      %p48 = scmp.eq.s32.totalorder %s19, 1
      %p49 = por %p47, %p48
      %p51 = scmp.ne.s32.totalorder %s36, %s50
      %p52 = scmp.eq.s32.totalorder %s19, 0
      %p53 = por %p51, %p52
      %s55 = sadd.s32 %s54, 1
      %p58 = scmp.eq.s32.totalorder %s13, 1
      %p59 = scmp.ne.s32.totalorder %s54, %s56
      %p60 = scmp.eq.s32.totalorder %s13, 0
      %p61 = por %p59, %p60
      %p62 = scmp.ne.s32.totalorder %s54, %s56
      %p63 = scmp.eq.s32.totalorder %s18, 1
      %p64 = por %p62, %p63
      %p65 = scmp.ne.s32.totalorder %s56, %s57
      %p66 = scmp.eq.s32.totalorder %s18, 0
      %p67 = por %p65, %p66
      %p68 = scmp.ne.s32.totalorder %s56, %s57
      %p69 = scmp.eq.s32.totalorder %s19, 1
      %p70 = por %p68, %p69
      %p72 = scmp.ne.s32.totalorder %s57, %s71
      %p73 = scmp.eq.s32.totalorder %s19, 0
      %p74 = por %p72, %p73
      %s75 = ssub.s32 %s20, %s32
      %s76 = ssub.s32 %s21, %s28
      %s77 = sor.u32 %s75, %s76
      %p78 = scmp.eq.s32.totalorder %s77, 0
      %s80 = sadd.s32 %s79, 1
      %s81 = scalar_select %p78, %s79, %s80
      %p84 = pneg %p78
      %p85 = scmp.eq.s32.totalorder %s13, 1
      %p86 = por %p84, %p85
      %p87 = scmp.ne.s32.totalorder %s79, %s82
      %p88 = scmp.eq.s32.totalorder %s13, 0
      %p89 = por %p87, %p88
      %p90 = scmp.ne.s32.totalorder %s79, %s82
      %p91 = scmp.eq.s32.totalorder %s18, 1
      %p92 = por %p90, %p91
      %p93 = scmp.ne.s32.totalorder %s82, %s83
      %p94 = scmp.eq.s32.totalorder %s18, 0
      %p95 = por %p93, %p94
      %p96 = scmp.ne.s32.totalorder %s82, %s83
      %p97 = scmp.eq.s32.totalorder %s19, 1
      %p98 = por %p96, %p97
      %p100 = scmp.ne.s32.totalorder %s83, %s99
      %p101 = scmp.eq.s32.totalorder %s19, 0
      %p102 = por %p100, %p101
      %p103 = scmp.le.s32.totalorder 1, %s13
      %p104 = scmp.lt.s32.totalorder %s13, 3
      %p105 = pnand %p103, %p104
      %p106 = pneg %p105
      // Predicated region
      $region9: #{tpu_custom_call.1} parent=5 // pred_check
        _
      $region10: #{tpu_custom_call.1} parent=5 // pred_check_branch
        %108 = sbr.rel (%p105) target = $region12
      $region11: #{tpu_custom_call.1} parent=5 // pred_region
        %s109 = ssub.s32 %s13, 1
        // Predicated region
        $region13: #{tpu_custom_call.1} parent=11 // pred_check
          %p110 = pneg %p46
        $region14: #{tpu_custom_call.1} parent=11 // pred_check_branch
          %112 = sbr.rel (%p110) target = $region16
        $region15: #{tpu_custom_call.1} parent=11 // pred_region
          %s114 = ssub.s32 9216, 9216
          %115 = vsyncadd [#allocation5], %s114
          %s116 = sshll.u32 [#allocation4], 4
          %s117 = int_to_ptr.vmem [resolvable:$true] %s116
          %122 = dma.hbm_to_vmem [thread:$0]  %s1, 9216, %s117, [#allocation5], 64, 64, 4
        $region16: #{tpu_custom_call.1} parent=11 // pred_fallthru
          _
        // Predicated region
        $region17: #{tpu_custom_call.1} parent=11 // pred_check
          %p123 = pneg %p67
        $region18: #{tpu_custom_call.1} parent=11 // pred_check_branch
          %125 = sbr.rel (%p123) target = $region20
        $region19: #{tpu_custom_call.1} parent=11 // pred_region
          _
        $region20: #{tpu_custom_call.1} parent=11 // pred_fallthru
          _
      $region12: #{tpu_custom_call.1} parent=5 // pred_fallthru
        _
      %p126 = scmp.lt.s32.totalorder %s13, 2
      // Predicated region
      $region21: #{tpu_custom_call.1} parent=5 // pred_check
        %p127 = pneg %p126
      $region22: #{tpu_custom_call.1} parent=5 // pred_check_branch
        %129 = sbr.rel (%p127) target = $region24
      $region23: #{tpu_custom_call.1} parent=5 // pred_region
        _
      $region24: #{tpu_custom_call.1} parent=5 // pred_fallthru
        _
      %p130 = scmp.le.s32.totalorder 1, %s13
      %p131 = scmp.lt.s32.totalorder %s13, 3
      %p132 = pnand %p130, %p131
      %p133 = pneg %p132
      // Predicated region
      $region25: #{tpu_custom_call.1} parent=5 // pred_check
        _
      $region26: #{tpu_custom_call.1} parent=5 // pred_check_branch
        %135 = sbr.rel (%p132) target = $region28
      $region27: #{tpu_custom_call.1} parent=5 // pred_region
        %s136 = ssub.s32 %s13, 1
        // Predicated region
        $region29: #{tpu_custom_call.1} parent=27 // pred_check
          %p137 = pneg %p46
        $region30: #{tpu_custom_call.1} parent=27 // pred_check_branch
          %139 = sbr.rel (%p137) target = $region32
        $region31: #{tpu_custom_call.1} parent=27 // pred_region
          %140 = dma.done [#allocation5], 9216
        $region32: #{tpu_custom_call.1} parent=27 // pred_fallthru
          _
        %p141 = pneg %p46
        %p142 = pneg %p43
        %p143 = pneg %p67
        %p144 = pneg %p64
        %p145 = pneg %p95
        %p146 = pneg %p92
        %s147 = sand.u32 %s82, 1
        %s148 = scalar_lea.sflag [#allocation6], %s147
        %s149 = sand.u32 %s82, 1
        %s150 = smul.addr %s149, 256
        %s151 = scalar_lea.vmem [#allocation7], %s150
        %s152 = smul.u32 16, %s23
        %p154 = scmp.eq.s32.totalorder %s23, 0
        // Predicated region
        $region33: #{tpu_custom_call.1} parent=27 // pred_check
          %p155 = pneg %p154
        $region34: #{tpu_custom_call.1} parent=27 // pred_check_branch
          %157 = sbr.rel (%p155) target = $region36
        $region35: #{tpu_custom_call.1} parent=27 // pred_region
          %s158 = smul.u32 %s22, 256
          %s159 = smul.addr %s158, 16
          %s160 = scalar_lea.hbm %s0, %s159
          %s161 = scalar_lea.vmem [#allocation2], 25
          %s163 = sshll.u32 %s161, 4
          %s164 = int_to_ptr.vmem [resolvable:$true] %s163
          %166 = dma.hbm_to_vmem [thread:$0]  %s160, 4096, %s164, [#allocation3], 256, 384, 16
          %167 = vst [vmem:[#allocation2] sm:$0xff] 0.0
          %168 = vst [vmem:[#allocation2 + $0x8] sm:$0xff] 0.0
          %169 = vst [vmem:[#allocation2 + $0x10] sm:$0x3] 0.0
          %s170 = scalar_lea.vmem [#allocation2], 408
          %171 = vst [vmem:[%s170] sm:$0xff] 0.0
          %172 = vst [vmem:[%s170 + $0x8] sm:$0xff] 0.0
          %173 = vst [vmem:[%s170 + $0x10] sm:$0x3] 0.0
          %s174 = scalar_lea.vmem [#allocation2], 24
          %175 = vst [vmem:[%s174] sm:$0x1] 0.0
          %176 = vst [vmem:[%s174 + $0x18] sm:$0x1] 0.0
          %177 = vst [vmem:[%s174 + $0x30] sm:$0x1] 0.0
          %178 = vst [vmem:[%s174 + $0x48] sm:$0x1] 0.0
          %179 = vst [vmem:[%s174 + $0x60] sm:$0x1] 0.0
          %180 = vst [vmem:[%s174 + $0x78] sm:$0x1] 0.0
          %181 = vst [vmem:[%s174 + $0x90] sm:$0x1] 0.0
          %182 = vst [vmem:[%s174 + $0xa8] sm:$0x1] 0.0
          %183 = vst [vmem:[%s174 + $0xc0] sm:$0x1] 0.0
          %184 = vst [vmem:[%s174 + $0xd8] sm:$0x1] 0.0
          %185 = vst [vmem:[%s174 + $0xf0] sm:$0x1] 0.0
          %186 = vst [vmem:[%s174 + $0x108] sm:$0x1] 0.0
          %187 = vst [vmem:[%s174 + $0x120] sm:$0x1] 0.0
          %188 = vst [vmem:[%s174 + $0x138] sm:$0x1] 0.0
          %189 = vst [vmem:[%s174 + $0x150] sm:$0x1] 0.0
          %190 = vst [vmem:[%s174 + $0x168] sm:$0x1] 0.0
          %191 = vst [vmem:[%s174 + $0x11] sm:$0x1] 0.0
          %192 = vst [vmem:[%s174 + $0x29] sm:$0x1] 0.0
          %193 = vst [vmem:[%s174 + $0x41] sm:$0x1] 0.0
          %194 = vst [vmem:[%s174 + $0x59] sm:$0x1] 0.0
          %195 = vst [vmem:[%s174 + $0x71] sm:$0x1] 0.0
          %196 = vst [vmem:[%s174 + $0x89] sm:$0x1] 0.0
          %197 = vst [vmem:[%s174 + $0xa1] sm:$0x1] 0.0
          %198 = vst [vmem:[%s174 + $0xb9] sm:$0x1] 0.0
          %199 = vst [vmem:[%s174 + $0xd1] sm:$0x1] 0.0
          %200 = vst [vmem:[%s174 + $0xe9] sm:$0x1] 0.0
          %201 = vst [vmem:[%s174 + $0x101] sm:$0x1] 0.0
          %202 = vst [vmem:[%s174 + $0x119] sm:$0x1] 0.0
          %203 = vst [vmem:[%s174 + $0x131] sm:$0x1] 0.0
          %204 = vst [vmem:[%s174 + $0x149] sm:$0x1] 0.0
          %205 = vst [vmem:[%s174 + $0x161] sm:$0x1] 0.0
          %206 = vst [vmem:[%s174 + $0x179] sm:$0x1] 0.0
          %s207 = smul.u32 16, 16
          %s208 = smul.u32 %s207, 1
          %s209 = sshll.u32 %s208, 4
          %210 = dma.done [#allocation3], %s209
        $region36: #{tpu_custom_call.1} parent=27 // pred_fallthru
          _
        %s211 = smul.u32 %s23, 16
        %v212 = vld [vmem:[%s2] sm:$0x1]
        %v214 = vlaneseq
        %v215 = vshrl.u32 %v214, 7
        %v216 = vsub.s32 0, %v215
        %v217 = vrot.slane %v212, %v216
        %s219 = smul.u32 %s211, 24
        %s220 = scalar_lea.vmem [#allocation2], %s219
        %v221 = vld [vmem:[%s220] sm:$0xff]
        %v222 = vld [vmem:[%s220 + $0x8] sm:$0xff]
        %v223 = vld [vmem:[%s220 + $0x18] sm:$0xff]
        %v224 = vld [vmem:[%s220 + $0x20] sm:$0xff]
        %v225 = vld [vmem:[%s220 + $0x30] sm:$0xff]
        %v226 = vld [vmem:[%s220 + $0x38] sm:$0xff]
        %v227 = vld [vmem:[%s220 + $0x48] sm:$0xff]
        %v228 = vld [vmem:[%s220 + $0x50] sm:$0xff]
        %v229 = vld [vmem:[%s220 + $0x60] sm:$0xff]
        %v230 = vld [vmem:[%s220 + $0x68] sm:$0xff]
        %v231 = vld [vmem:[%s220 + $0x78] sm:$0xff]
        %v232 = vld [vmem:[%s220 + $0x80] sm:$0xff]
        %v233 = vld [vmem:[%s220 + $0x90] sm:$0xff]
        %v234 = vld [vmem:[%s220 + $0x98] sm:$0xff]
        %v235 = vld [vmem:[%s220 + $0xa8] sm:$0xff]
        %v236 = vld [vmem:[%s220 + $0xb0] sm:$0xff]
        %v237 = vld [vmem:[%s220 + $0xc0] sm:$0xff]
        %v238 = vld [vmem:[%s220 + $0xc8] sm:$0xff]
        %v239 = vld [vmem:[%s220 + $0xd8] sm:$0xff]
        %v240 = vld [vmem:[%s220 + $0xe0] sm:$0xff]
        %v241 = vld [vmem:[%s220 + $0xf0] sm:$0xff]
        %v242 = vld [vmem:[%s220 + $0xf8] sm:$0xff]
        %v243 = vld [vmem:[%s220 + $0x108] sm:$0xff]
        %v244 = vld [vmem:[%s220 + $0x110] sm:$0xff]
        %v245 = vld [vmem:[%s220 + $0x120] sm:$0xff]
        %v246 = vld [vmem:[%s220 + $0x128] sm:$0xff]
        %v247 = vld [vmem:[%s220 + $0x138] sm:$0xff]
        %v248 = vld [vmem:[%s220 + $0x140] sm:$0xff]
        %v249 = vld [vmem:[%s220 + $0x150] sm:$0xff]
        %v250 = vld [vmem:[%s220 + $0x158] sm:$0xff]
        %v251 = vld [vmem:[%s220 + $0x168] sm:$0xff]
        %v252 = vld [vmem:[%s220 + $0x170] sm:$0xff]
        %v253 = vpack.c.bf16 %v222, %v221
        %v254 = vpack.c.bf16 %v224, %v223
        %v255 = vpack.c.bf16 %v226, %v225
        %v256 = vpack.c.bf16 %v228, %v227
        %v257 = vpack.c.bf16 %v230, %v229
        %v258 = vpack.c.bf16 %v232, %v231
        %v259 = vpack.c.bf16 %v234, %v233
        %v260 = vpack.c.bf16 %v236, %v235
        %v261 = vpack.c.bf16 %v238, %v237
        %v262 = vpack.c.bf16 %v240, %v239
        %v263 = vpack.c.bf16 %v242, %v241
        %v264 = vpack.c.bf16 %v244, %v243
        %v265 = vpack.c.bf16 %v246, %v245
        %v266 = vpack.c.bf16 %v248, %v247
        %v267 = vpack.c.bf16 %v250, %v249
        %v268 = vpack.c.bf16 %v252, %v251
        %v269 = vld [vmem:[#allocation4] sm:$0xf]
        %v270 = vld [vmem:[#allocation4 + $0x4] sm:$0xf]
        %v271 = vld [vmem:[#allocation4 + $0x8] sm:$0xf]
        %v272 = vld [vmem:[#allocation4 + $0xc] sm:$0xf]
        %v273 = vld [vmem:[#allocation4 + $0x10] sm:$0xf]
        %v274 = vld [vmem:[#allocation4 + $0x14] sm:$0xf]
        %v275 = vld [vmem:[#allocation4 + $0x18] sm:$0xf]
        %v276 = vld [vmem:[#allocation4 + $0x1c] sm:$0xf]
        %v277 = vld [vmem:[#allocation4 + $0x20] sm:$0xf]
        %v278 = vld [vmem:[#allocation4 + $0x24] sm:$0xf]
        %v279 = vld [vmem:[#allocation4 + $0x28] sm:$0xf]
        %v280 = vld [vmem:[#allocation4 + $0x2c] sm:$0xf]
        %v281 = vld [vmem:[#allocation4 + $0x30] sm:$0xf]
        %v282 = vld [vmem:[#allocation4 + $0x34] sm:$0xf]
        %v283 = vld [vmem:[#allocation4 + $0x38] sm:$0xf]
        %v284 = vld [vmem:[#allocation4 + $0x3c] sm:$0xf]
        %v301 = vunpack.c.l.b16 %v269
        %v302 = vunpack.c.l.b16 %v270
        %v303 = vunpack.c.l.b16 %v271
        %v304 = vunpack.c.l.b16 %v272
        %v305 = vunpack.c.l.b16 %v273
        %v306 = vunpack.c.l.b16 %v274
        %v307 = vunpack.c.l.b16 %v275
        %v308 = vunpack.c.l.b16 %v276
        %v309 = vunpack.c.l.b16 %v277
        %v310 = vunpack.c.l.b16 %v278
        %v311 = vunpack.c.l.b16 %v279
        %v312 = vunpack.c.l.b16 %v280
        %v313 = vunpack.c.l.b16 %v281
        %v314 = vunpack.c.l.b16 %v282
        %v315 = vunpack.c.l.b16 %v283
        %v316 = vunpack.c.l.b16 %v284
        %v317 = vpack.c.b16 %v302, %v301
        %v318 = vpack.c.b16 %v304, %v303
        %v319 = vpack.c.b16 %v306, %v305
        %v320 = vpack.c.b16 %v308, %v307
        %v321 = vpack.c.b16 %v310, %v309
        %v322 = vpack.c.b16 %v312, %v311
        %v323 = vpack.c.b16 %v314, %v313
        %v324 = vpack.c.b16 %v316, %v315
        %333 = vmatprep.subr.bf16.mxu0 0
        %334 = vmatpush1.bf16.msra.mxu0 %v324
        %335 = vmatprep.subr.bf16.mxu0 0
        %336 = vmatpush1.bf16.msra.mxu0 %v323
        %337 = vmatprep.subr.bf16.mxu0 0
        %338 = vmatpush1.bf16.msra.mxu0 %v322
        %339 = vmatprep.subr.bf16.mxu0 0
        %340 = vmatpush1.bf16.msra.mxu0 %v321
        %341 = vmatprep.subr.bf16.mxu0 0
        %342 = vmatpush1.bf16.msra.mxu0 %v320
        %343 = vmatprep.subr.bf16.mxu0 0
        %344 = vmatpush1.bf16.msra.mxu0 %v319
        %345 = vmatprep.subr.bf16.mxu0 0
        %346 = vmatpush1.bf16.msra.mxu0 %v318
        %347 = vmatprep.subr.bf16.mxu0 0
        %348 = vmatpush1.bf16.msra.mxu0 %v317
        %349 = vmatprep.subr.bf16.mxu0 0
        %350 = vmatpush2.bf16.msra.mxu0 0
        %351 = vmatprep.subr.bf16.mxu0 0
        %352 = vmatpush2.bf16.msra.mxu0 0
        %353 = vmatprep.subr.bf16.mxu0 0
        %354 = vmatpush2.bf16.msra.mxu0 0
        %355 = vmatprep.subr.bf16.mxu0 0
        %356 = vmatpush2.bf16.msra.mxu0 0
        %357 = vmatprep.subr.bf16.mxu0 0
        %358 = vmatpush2.bf16.msra.mxu0 0
        %359 = vmatprep.subr.bf16.mxu0 0
        %360 = vmatpush2.bf16.msra.mxu0 0
        %361 = vmatprep.subr.bf16.mxu0 0
        %362 = vmatpush2.bf16.msra.mxu0 0
        %363 = vmatprep.subr.bf16.mxu0 0
        %364 = vmatpush2.bf16.msra.mxu0 0
        %365 = vmatprep.mubr.bf16.mxu0 0
        %366 = vmatmul.mubr.bf16.gmra.mxu0 %v253
        %v367 = vpop.f32.mrf.mxu0
        %v368 = vadd.f32 0.0, %v367
        %v369 = vpop.f32.mrf.mxu0
        %v370 = vpop.f32.mrf.mxu0
        %v371 = vadd.f32 0.0, %v370
        %v372 = vpop.f32.mrf.mxu0
        %373 = vmatprep.mubr.bf16.mxu0 0
        %374 = vmatmul.mubr.bf16.gmra.mxu0 %v254
        %v375 = vpop.f32.mrf.mxu0
        %v376 = vadd.f32 0.0, %v375
        %v377 = vpop.f32.mrf.mxu0
        %v378 = vpop.f32.mrf.mxu0
        %v379 = vadd.f32 0.0, %v378
        %v380 = vpop.f32.mrf.mxu0
        %381 = vmatprep.mubr.bf16.mxu0 0
        %382 = vmatmul.mubr.bf16.gmra.mxu0 %v255
        %v383 = vpop.f32.mrf.mxu0
        %v384 = vadd.f32 0.0, %v383
        %v385 = vpop.f32.mrf.mxu0
        %v386 = vpop.f32.mrf.mxu0
        %v387 = vadd.f32 0.0, %v386
        %v388 = vpop.f32.mrf.mxu0
        %389 = vmatprep.mubr.bf16.mxu0 0
        %390 = vmatmul.mubr.bf16.gmra.mxu0 %v256
        %v391 = vpop.f32.mrf.mxu0
        %v392 = vadd.f32 0.0, %v391
        %v393 = vpop.f32.mrf.mxu0
        %v394 = vpop.f32.mrf.mxu0
        %v395 = vadd.f32 0.0, %v394
        %v396 = vpop.f32.mrf.mxu0
        %397 = vmatprep.mubr.bf16.mxu0 0
        %398 = vmatmul.mubr.bf16.gmra.mxu0 %v257
        %v399 = vpop.f32.mrf.mxu0
        %v400 = vadd.f32 0.0, %v399
        %v401 = vpop.f32.mrf.mxu0
        %v402 = vpop.f32.mrf.mxu0
        %v403 = vadd.f32 0.0, %v402
        %v404 = vpop.f32.mrf.mxu0
        %405 = vmatprep.mubr.bf16.mxu0 0
        %406 = vmatmul.mubr.bf16.gmra.mxu0 %v258
        %v407 = vpop.f32.mrf.mxu0
        %v408 = vadd.f32 0.0, %v407
        %v409 = vpop.f32.mrf.mxu0
        %v410 = vpop.f32.mrf.mxu0
        %v411 = vadd.f32 0.0, %v410
        %v412 = vpop.f32.mrf.mxu0
        %413 = vmatprep.mubr.bf16.mxu0 0
        %414 = vmatmul.mubr.bf16.gmra.mxu0 %v259
        %v415 = vpop.f32.mrf.mxu0
        %v416 = vadd.f32 0.0, %v415
        %v417 = vpop.f32.mrf.mxu0
        %v418 = vpop.f32.mrf.mxu0
        %v419 = vadd.f32 0.0, %v418
        %v420 = vpop.f32.mrf.mxu0
        %421 = vmatprep.mubr.bf16.mxu0 0
        %422 = vmatmul.mubr.bf16.gmra.mxu0 %v260
        %v423 = vpop.f32.mrf.mxu0
        %v424 = vadd.f32 0.0, %v423
        %v425 = vpop.f32.mrf.mxu0
        %v426 = vpop.f32.mrf.mxu0
        %v427 = vadd.f32 0.0, %v426
        %v428 = vpop.f32.mrf.mxu0
        %429 = vmatprep.mubr.bf16.mxu0 0
        %430 = vmatmul.mubr.bf16.gmra.mxu0 %v261
        %v431 = vpop.f32.mrf.mxu0
        %v432 = vadd.f32 0.0, %v431
        %v433 = vpop.f32.mrf.mxu0
        %v434 = vpop.f32.mrf.mxu0
        %v435 = vadd.f32 0.0, %v434
        %v436 = vpop.f32.mrf.mxu0
        %437 = vmatprep.mubr.bf16.mxu0 0
        %438 = vmatmul.mubr.bf16.gmra.mxu0 %v262
        %v439 = vpop.f32.mrf.mxu0
        %v440 = vadd.f32 0.0, %v439
        %v441 = vpop.f32.mrf.mxu0
        %v442 = vpop.f32.mrf.mxu0
        %v443 = vadd.f32 0.0, %v442
        %v444 = vpop.f32.mrf.mxu0
        %445 = vmatprep.mubr.bf16.mxu0 0
        %446 = vmatmul.mubr.bf16.gmra.mxu0 %v263
        %v447 = vpop.f32.mrf.mxu0
        %v448 = vadd.f32 0.0, %v447
        %v449 = vpop.f32.mrf.mxu0
        %v450 = vpop.f32.mrf.mxu0
        %v451 = vadd.f32 0.0, %v450
        %v452 = vpop.f32.mrf.mxu0
        %453 = vmatprep.mubr.bf16.mxu0 0
        %454 = vmatmul.mubr.bf16.gmra.mxu0 %v264
        %v455 = vpop.f32.mrf.mxu0
        %v456 = vadd.f32 0.0, %v455
        %v457 = vpop.f32.mrf.mxu0
        %v458 = vpop.f32.mrf.mxu0
        %v459 = vadd.f32 0.0, %v458
        %v460 = vpop.f32.mrf.mxu0
        %461 = vmatprep.mubr.bf16.mxu0 0
        %462 = vmatmul.mubr.bf16.gmra.mxu0 %v265
        %v463 = vpop.f32.mrf.mxu0
        %v464 = vadd.f32 0.0, %v463
        %v465 = vpop.f32.mrf.mxu0
        %v466 = vpop.f32.mrf.mxu0
        %v467 = vadd.f32 0.0, %v466
        %v468 = vpop.f32.mrf.mxu0
        %469 = vmatprep.mubr.bf16.mxu0 0
        %470 = vmatmul.mubr.bf16.gmra.mxu0 %v266
        %v471 = vpop.f32.mrf.mxu0
        %v472 = vadd.f32 0.0, %v471
        %v473 = vpop.f32.mrf.mxu0
        %v474 = vpop.f32.mrf.mxu0
        %v475 = vadd.f32 0.0, %v474
        %v476 = vpop.f32.mrf.mxu0
        %477 = vmatprep.mubr.bf16.mxu0 0
        %478 = vmatmul.mubr.bf16.gmra.mxu0 %v267
        %v479 = vpop.f32.mrf.mxu0
        %v480 = vadd.f32 0.0, %v479
        %v481 = vpop.f32.mrf.mxu0
        %v482 = vpop.f32.mrf.mxu0
        %v483 = vadd.f32 0.0, %v482
        %v484 = vpop.f32.mrf.mxu0
        %485 = vmatprep.mubr.bf16.mxu0 0
        %486 = vmatmul.mubr.bf16.gmra.mxu0 %v268
        %v487 = vpop.f32.mrf.mxu0
        %v488 = vadd.f32 0.0, %v487
        %v489 = vpop.f32.mrf.mxu0
        %v490 = vpop.f32.mrf.mxu0
        %v491 = vadd.f32 0.0, %v490
        %v492 = vpop.f32.mrf.mxu0
        %493 = vdwg.mxu0
        %v494 = vadd.f32 %v217, %v368
        %v495 = vadd.f32 %v217, %v371
        %v496 = vadd.f32 %v217, %v376
        %v497 = vadd.f32 %v217, %v379
        %v498 = vadd.f32 %v217, %v384
        %v499 = vadd.f32 %v217, %v387
        %v500 = vadd.f32 %v217, %v392
        %v501 = vadd.f32 %v217, %v395
        %v502 = vadd.f32 %v217, %v400
        %v503 = vadd.f32 %v217, %v403
        %v504 = vadd.f32 %v217, %v408
        %v505 = vadd.f32 %v217, %v411
        %v506 = vadd.f32 %v217, %v416
        %v507 = vadd.f32 %v217, %v419
        %v508 = vadd.f32 %v217, %v424
        %v509 = vadd.f32 %v217, %v427
        %v510 = vadd.f32 %v217, %v432
        %v511 = vadd.f32 %v217, %v435
        %v512 = vadd.f32 %v217, %v440
        %v513 = vadd.f32 %v217, %v443
        %v514 = vadd.f32 %v217, %v448
        %v515 = vadd.f32 %v217, %v451
        %v516 = vadd.f32 %v217, %v456
        %v517 = vadd.f32 %v217, %v459
        %v518 = vadd.f32 %v217, %v464
        %v519 = vadd.f32 %v217, %v467
        %v520 = vadd.f32 %v217, %v472
        %v521 = vadd.f32 %v217, %v475
        %v522 = vadd.f32 %v217, %v480
        %v523 = vadd.f32 %v217, %v483
        %v524 = vadd.f32 %v217, %v488
        %v525 = vadd.f32 %v217, %v491
        %v526 = vld [vmem:[%s220 + $0x1] sm:$0xff]
        %v527 = vld [vmem:[%s220 + $0x9] sm:$0xff]
        %v528 = vld [vmem:[%s220 + $0x19] sm:$0xff]
        %v529 = vld [vmem:[%s220 + $0x21] sm:$0xff]
        %v530 = vld [vmem:[%s220 + $0x31] sm:$0xff]
        %v531 = vld [vmem:[%s220 + $0x39] sm:$0xff]
        %v532 = vld [vmem:[%s220 + $0x49] sm:$0xff]
        %v533 = vld [vmem:[%s220 + $0x51] sm:$0xff]
        %v534 = vld [vmem:[%s220 + $0x61] sm:$0xff]
        %v535 = vld [vmem:[%s220 + $0x69] sm:$0xff]
        %v536 = vld [vmem:[%s220 + $0x79] sm:$0xff]
        %v537 = vld [vmem:[%s220 + $0x81] sm:$0xff]
        %v538 = vld [vmem:[%s220 + $0x91] sm:$0xff]
        %v539 = vld [vmem:[%s220 + $0x99] sm:$0xff]
        %v540 = vld [vmem:[%s220 + $0xa9] sm:$0xff]
        %v541 = vld [vmem:[%s220 + $0xb1] sm:$0xff]
        %v542 = vld [vmem:[%s220 + $0xc1] sm:$0xff]
        %v543 = vld [vmem:[%s220 + $0xc9] sm:$0xff]
        %v544 = vld [vmem:[%s220 + $0xd9] sm:$0xff]
        %v545 = vld [vmem:[%s220 + $0xe1] sm:$0xff]
        %v546 = vld [vmem:[%s220 + $0xf1] sm:$0xff]
        %v547 = vld [vmem:[%s220 + $0xf9] sm:$0xff]
        %v548 = vld [vmem:[%s220 + $0x109] sm:$0xff]
        %v549 = vld [vmem:[%s220 + $0x111] sm:$0xff]
        %v550 = vld [vmem:[%s220 + $0x121] sm:$0xff]
        %v551 = vld [vmem:[%s220 + $0x129] sm:$0xff]
        %v552 = vld [vmem:[%s220 + $0x139] sm:$0xff]
        %v553 = vld [vmem:[%s220 + $0x141] sm:$0xff]
        %v554 = vld [vmem:[%s220 + $0x151] sm:$0xff]
        %v555 = vld [vmem:[%s220 + $0x159] sm:$0xff]
        %v556 = vld [vmem:[%s220 + $0x169] sm:$0xff]
        %v557 = vld [vmem:[%s220 + $0x171] sm:$0xff]
        %v558 = vpack.c.bf16 %v527, %v526
        %v559 = vpack.c.bf16 %v529, %v528
        %v560 = vpack.c.bf16 %v531, %v530
        %v561 = vpack.c.bf16 %v533, %v532
        %v562 = vpack.c.bf16 %v535, %v534
        %v563 = vpack.c.bf16 %v537, %v536
        %v564 = vpack.c.bf16 %v539, %v538
        %v565 = vpack.c.bf16 %v541, %v540
        %v566 = vpack.c.bf16 %v543, %v542
        %v567 = vpack.c.bf16 %v545, %v544
        %v568 = vpack.c.bf16 %v547, %v546
        %v569 = vpack.c.bf16 %v549, %v548
        %v570 = vpack.c.bf16 %v551, %v550
        %v571 = vpack.c.bf16 %v553, %v552
        %v572 = vpack.c.bf16 %v555, %v554
        %v573 = vpack.c.bf16 %v557, %v556
        %s574 = scalar_lea.vmem [#allocation4], 64
        %v575 = vld [vmem:[%s574] sm:$0xf]
        %v576 = vld [vmem:[%s574 + $0x4] sm:$0xf]
        %v577 = vld [vmem:[%s574 + $0x8] sm:$0xf]
        %v578 = vld [vmem:[%s574 + $0xc] sm:$0xf]
        %v579 = vld [vmem:[%s574 + $0x10] sm:$0xf]
        %v580 = vld [vmem:[%s574 + $0x14] sm:$0xf]
        %v581 = vld [vmem:[%s574 + $0x18] sm:$0xf]
        %v582 = vld [vmem:[%s574 + $0x1c] sm:$0xf]
        %v583 = vld [vmem:[%s574 + $0x20] sm:$0xf]
        %v584 = vld [vmem:[%s574 + $0x24] sm:$0xf]
        %v585 = vld [vmem:[%s574 + $0x28] sm:$0xf]
        %v586 = vld [vmem:[%s574 + $0x2c] sm:$0xf]
        %v587 = vld [vmem:[%s574 + $0x30] sm:$0xf]
        %v588 = vld [vmem:[%s574 + $0x34] sm:$0xf]
        %v589 = vld [vmem:[%s574 + $0x38] sm:$0xf]
        %v590 = vld [vmem:[%s574 + $0x3c] sm:$0xf]
        %v607 = vunpack.c.l.b16 %v575
        %v608 = vunpack.c.l.b16 %v576
        %v609 = vunpack.c.l.b16 %v577
        %v610 = vunpack.c.l.b16 %v578
        %v611 = vunpack.c.l.b16 %v579
        %v612 = vunpack.c.l.b16 %v580
        %v613 = vunpack.c.l.b16 %v581
        %v614 = vunpack.c.l.b16 %v582
        %v615 = vunpack.c.l.b16 %v583
        %v616 = vunpack.c.l.b16 %v584
        %v617 = vunpack.c.l.b16 %v585
        %v618 = vunpack.c.l.b16 %v586
        %v619 = vunpack.c.l.b16 %v587
        %v620 = vunpack.c.l.b16 %v588
        %v621 = vunpack.c.l.b16 %v589
        %v622 = vunpack.c.l.b16 %v590
        %v623 = vpack.c.b16 %v608, %v607
        %v624 = vpack.c.b16 %v610, %v609
        %v625 = vpack.c.b16 %v612, %v611
        %v626 = vpack.c.b16 %v614, %v613
        %v627 = vpack.c.b16 %v616, %v615
        %v628 = vpack.c.b16 %v618, %v617
        %v629 = vpack.c.b16 %v620, %v619
        %v630 = vpack.c.b16 %v622, %v621
        %639 = vmatprep.subr.bf16.mxu0 0
        %640 = vmatpush1.bf16.msra.mxu0 %v630
        %641 = vmatprep.subr.bf16.mxu0 0
        %642 = vmatpush1.bf16.msra.mxu0 %v629
        %643 = vmatprep.subr.bf16.mxu0 0
        %644 = vmatpush1.bf16.msra.mxu0 %v628
        %645 = vmatprep.subr.bf16.mxu0 0
        %646 = vmatpush1.bf16.msra.mxu0 %v627
        %647 = vmatprep.subr.bf16.mxu0 0
        %648 = vmatpush1.bf16.msra.mxu0 %v626
        %649 = vmatprep.subr.bf16.mxu0 0
        %650 = vmatpush1.bf16.msra.mxu0 %v625
        %651 = vmatprep.subr.bf16.mxu0 0
        %652 = vmatpush1.bf16.msra.mxu0 %v624
        %653 = vmatprep.subr.bf16.mxu0 0
        %654 = vmatpush1.bf16.msra.mxu0 %v623
        %655 = vmatprep.subr.bf16.mxu0 0
        %656 = vmatpush2.bf16.msra.mxu0 0
        %657 = vmatprep.subr.bf16.mxu0 0
        %658 = vmatpush2.bf16.msra.mxu0 0
        %659 = vmatprep.subr.bf16.mxu0 0
        %660 = vmatpush2.bf16.msra.mxu0 0
        %661 = vmatprep.subr.bf16.mxu0 0
        %662 = vmatpush2.bf16.msra.mxu0 0
        %663 = vmatprep.subr.bf16.mxu0 0
        %664 = vmatpush2.bf16.msra.mxu0 0
        %665 = vmatprep.subr.bf16.mxu0 0
        %666 = vmatpush2.bf16.msra.mxu0 0
        %667 = vmatprep.subr.bf16.mxu0 0
        %668 = vmatpush2.bf16.msra.mxu0 0
        %669 = vmatprep.subr.bf16.mxu0 0
        %670 = vmatpush2.bf16.msra.mxu0 0
        %671 = vmatprep.mubr.bf16.mxu0 0
        %672 = vmatmul.mubr.bf16.gmra.mxu0 %v558
        %v673 = vpop.f32.mrf.mxu0
        %v674 = vadd.f32 0.0, %v673
        %v675 = vpop.f32.mrf.mxu0
        %v676 = vpop.f32.mrf.mxu0
        %v677 = vadd.f32 0.0, %v676
        %v678 = vpop.f32.mrf.mxu0
        %679 = vmatprep.mubr.bf16.mxu0 0
        %680 = vmatmul.mubr.bf16.gmra.mxu0 %v559
        %v681 = vpop.f32.mrf.mxu0
        %v682 = vadd.f32 0.0, %v681
        %v683 = vpop.f32.mrf.mxu0
        %v684 = vpop.f32.mrf.mxu0
        %v685 = vadd.f32 0.0, %v684
        %v686 = vpop.f32.mrf.mxu0
        %687 = vmatprep.mubr.bf16.mxu0 0
        %688 = vmatmul.mubr.bf16.gmra.mxu0 %v560
        %v689 = vpop.f32.mrf.mxu0
        %v690 = vadd.f32 0.0, %v689
        %v691 = vpop.f32.mrf.mxu0
        %v692 = vpop.f32.mrf.mxu0
        %v693 = vadd.f32 0.0, %v692
        %v694 = vpop.f32.mrf.mxu0
        %695 = vmatprep.mubr.bf16.mxu0 0
        %696 = vmatmul.mubr.bf16.gmra.mxu0 %v561
        %v697 = vpop.f32.mrf.mxu0
        %v698 = vadd.f32 0.0, %v697
        %v699 = vpop.f32.mrf.mxu0
        %v700 = vpop.f32.mrf.mxu0
        %v701 = vadd.f32 0.0, %v700
        %v702 = vpop.f32.mrf.mxu0
        %703 = vmatprep.mubr.bf16.mxu0 0
        %704 = vmatmul.mubr.bf16.gmra.mxu0 %v562
        %v705 = vpop.f32.mrf.mxu0
        %v706 = vadd.f32 0.0, %v705
        %v707 = vpop.f32.mrf.mxu0
        %v708 = vpop.f32.mrf.mxu0
        %v709 = vadd.f32 0.0, %v708
        %v710 = vpop.f32.mrf.mxu0
        %711 = vmatprep.mubr.bf16.mxu0 0
        %712 = vmatmul.mubr.bf16.gmra.mxu0 %v563
        %v713 = vpop.f32.mrf.mxu0
        %v714 = vadd.f32 0.0, %v713
        %v715 = vpop.f32.mrf.mxu0
        %v716 = vpop.f32.mrf.mxu0
        %v717 = vadd.f32 0.0, %v716
        %v718 = vpop.f32.mrf.mxu0
        %719 = vmatprep.mubr.bf16.mxu0 0
        %720 = vmatmul.mubr.bf16.gmra.mxu0 %v564
        %v721 = vpop.f32.mrf.mxu0
        %v722 = vadd.f32 0.0, %v721
        %v723 = vpop.f32.mrf.mxu0
        %v724 = vpop.f32.mrf.mxu0
        %v725 = vadd.f32 0.0, %v724
        %v726 = vpop.f32.mrf.mxu0
        %727 = vmatprep.mubr.bf16.mxu0 0
        %728 = vmatmul.mubr.bf16.gmra.mxu0 %v565
        %v729 = vpop.f32.mrf.mxu0
        %v730 = vadd.f32 0.0, %v729
        %v731 = vpop.f32.mrf.mxu0
        %v732 = vpop.f32.mrf.mxu0
        %v733 = vadd.f32 0.0, %v732
        %v734 = vpop.f32.mrf.mxu0
        %735 = vmatprep.mubr.bf16.mxu0 0
        %736 = vmatmul.mubr.bf16.gmra.mxu0 %v566
        %v737 = vpop.f32.mrf.mxu0
        %v738 = vadd.f32 0.0, %v737
        %v739 = vpop.f32.mrf.mxu0
        %v740 = vpop.f32.mrf.mxu0
        %v741 = vadd.f32 0.0, %v740
        %v742 = vpop.f32.mrf.mxu0
        %743 = vmatprep.mubr.bf16.mxu0 0
        %744 = vmatmul.mubr.bf16.gmra.mxu0 %v567
        %v745 = vpop.f32.mrf.mxu0
        %v746 = vadd.f32 0.0, %v745
        %v747 = vpop.f32.mrf.mxu0
        %v748 = vpop.f32.mrf.mxu0
        %v749 = vadd.f32 0.0, %v748
        %v750 = vpop.f32.mrf.mxu0
        %751 = vmatprep.mubr.bf16.mxu0 0
        %752 = vmatmul.mubr.bf16.gmra.mxu0 %v568
        %v753 = vpop.f32.mrf.mxu0
        %v754 = vadd.f32 0.0, %v753
        %v755 = vpop.f32.mrf.mxu0
        %v756 = vpop.f32.mrf.mxu0
        %v757 = vadd.f32 0.0, %v756
        %v758 = vpop.f32.mrf.mxu0
        %759 = vmatprep.mubr.bf16.mxu0 0
        %760 = vmatmul.mubr.bf16.gmra.mxu0 %v569
        %v761 = vpop.f32.mrf.mxu0
        %v762 = vadd.f32 0.0, %v761
        %v763 = vpop.f32.mrf.mxu0
        %v764 = vpop.f32.mrf.mxu0
        %v765 = vadd.f32 0.0, %v764
        %v766 = vpop.f32.mrf.mxu0
        %767 = vmatprep.mubr.bf16.mxu0 0
        %768 = vmatmul.mubr.bf16.gmra.mxu0 %v570
        %v769 = vpop.f32.mrf.mxu0
        %v770 = vadd.f32 0.0, %v769
        %v771 = vpop.f32.mrf.mxu0
        %v772 = vpop.f32.mrf.mxu0
        %v773 = vadd.f32 0.0, %v772
        %v774 = vpop.f32.mrf.mxu0
        %775 = vmatprep.mubr.bf16.mxu0 0
        %776 = vmatmul.mubr.bf16.gmra.mxu0 %v571
        %v777 = vpop.f32.mrf.mxu0
        %v778 = vadd.f32 0.0, %v777
        %v779 = vpop.f32.mrf.mxu0
        %v780 = vpop.f32.mrf.mxu0
        %v781 = vadd.f32 0.0, %v780
        %v782 = vpop.f32.mrf.mxu0
        %783 = vmatprep.mubr.bf16.mxu0 0
        %784 = vmatmul.mubr.bf16.gmra.mxu0 %v572
        %v785 = vpop.f32.mrf.mxu0
        %v786 = vadd.f32 0.0, %v785
        %v787 = vpop.f32.mrf.mxu0
        %v788 = vpop.f32.mrf.mxu0
        %v789 = vadd.f32 0.0, %v788
        %v790 = vpop.f32.mrf.mxu0
        %791 = vmatprep.mubr.bf16.mxu0 0
        %792 = vmatmul.mubr.bf16.gmra.mxu0 %v573
        %v793 = vpop.f32.mrf.mxu0
        %v794 = vadd.f32 0.0, %v793
        %v795 = vpop.f32.mrf.mxu0
        %v796 = vpop.f32.mrf.mxu0
        %v797 = vadd.f32 0.0, %v796
        %v798 = vpop.f32.mrf.mxu0
        %799 = vdwg.mxu0
        %v800 = vadd.f32 %v494, %v674
        %v801 = vadd.f32 %v495, %v677
        %v802 = vadd.f32 %v496, %v682
        %v803 = vadd.f32 %v497, %v685
        %v804 = vadd.f32 %v498, %v690
        %v805 = vadd.f32 %v499, %v693
        %v806 = vadd.f32 %v500, %v698
        %v807 = vadd.f32 %v501, %v701
        %v808 = vadd.f32 %v502, %v706
        %v809 = vadd.f32 %v503, %v709
        %v810 = vadd.f32 %v504, %v714
        %v811 = vadd.f32 %v505, %v717
        %v812 = vadd.f32 %v506, %v722
        %v813 = vadd.f32 %v507, %v725
        %v814 = vadd.f32 %v508, %v730
        %v815 = vadd.f32 %v509, %v733
        %v816 = vadd.f32 %v510, %v738
        %v817 = vadd.f32 %v511, %v741
        %v818 = vadd.f32 %v512, %v746
        %v819 = vadd.f32 %v513, %v749
        %v820 = vadd.f32 %v514, %v754
        %v821 = vadd.f32 %v515, %v757
        %v822 = vadd.f32 %v516, %v762
        %v823 = vadd.f32 %v517, %v765
        %v824 = vadd.f32 %v518, %v770
        %v825 = vadd.f32 %v519, %v773
        %v826 = vadd.f32 %v520, %v778
        %v827 = vadd.f32 %v521, %v781
        %v828 = vadd.f32 %v522, %v786
        %v829 = vadd.f32 %v523, %v789
        %v830 = vadd.f32 %v524, %v794
        %v831 = vadd.f32 %v525, %v797
        %v832 = vld [vmem:[%s220 + $0x2] sm:$0xff]
        %v833 = vld [vmem:[%s220 + $0xa] sm:$0xff]
        %v834 = vld [vmem:[%s220 + $0x1a] sm:$0xff]
        %v835 = vld [vmem:[%s220 + $0x22] sm:$0xff]
        %v836 = vld [vmem:[%s220 + $0x32] sm:$0xff]
        %v837 = vld [vmem:[%s220 + $0x3a] sm:$0xff]
        %v838 = vld [vmem:[%s220 + $0x4a] sm:$0xff]
        %v839 = vld [vmem:[%s220 + $0x52] sm:$0xff]
        %v840 = vld [vmem:[%s220 + $0x62] sm:$0xff]
        %v841 = vld [vmem:[%s220 + $0x6a] sm:$0xff]
        %v842 = vld [vmem:[%s220 + $0x7a] sm:$0xff]
        %v843 = vld [vmem:[%s220 + $0x82] sm:$0xff]
        %v844 = vld [vmem:[%s220 + $0x92] sm:$0xff]
        %v845 = vld [vmem:[%s220 + $0x9a] sm:$0xff]
        %v846 = vld [vmem:[%s220 + $0xaa] sm:$0xff]
        %v847 = vld [vmem:[%s220 + $0xb2] sm:$0xff]
        %v848 = vld [vmem:[%s220 + $0xc2] sm:$0xff]
        %v849 = vld [vmem:[%s220 + $0xca] sm:$0xff]
        %v850 = vld [vmem:[%s220 + $0xda] sm:$0xff]
        %v851 = vld [vmem:[%s220 + $0xe2] sm:$0xff]
        %v852 = vld [vmem:[%s220 + $0xf2] sm:$0xff]
        %v853 = vld [vmem:[%s220 + $0xfa] sm:$0xff]
        %v854 = vld [vmem:[%s220 + $0x10a] sm:$0xff]
        %v855 = vld [vmem:[%s220 + $0x112] sm:$0xff]
        %v856 = vld [vmem:[%s220 + $0x122] sm:$0xff]
        %v857 = vld [vmem:[%s220 + $0x12a] sm:$0xff]
        %v858 = vld [vmem:[%s220 + $0x13a] sm:$0xff]
        %v859 = vld [vmem:[%s220 + $0x142] sm:$0xff]
        %v860 = vld [vmem:[%s220 + $0x152] sm:$0xff]
        %v861 = vld [vmem:[%s220 + $0x15a] sm:$0xff]
        %v862 = vld [vmem:[%s220 + $0x16a] sm:$0xff]
        %v863 = vld [vmem:[%s220 + $0x172] sm:$0xff]
        %v864 = vpack.c.bf16 %v833, %v832
        %v865 = vpack.c.bf16 %v835, %v834
        %v866 = vpack.c.bf16 %v837, %v836
        %v867 = vpack.c.bf16 %v839, %v838
        %v868 = vpack.c.bf16 %v841, %v840
        %v869 = vpack.c.bf16 %v843, %v842
        %v870 = vpack.c.bf16 %v845, %v844
        %v871 = vpack.c.bf16 %v847, %v846
        %v872 = vpack.c.bf16 %v849, %v848
        %v873 = vpack.c.bf16 %v851, %v850
        %v874 = vpack.c.bf16 %v853, %v852
        %v875 = vpack.c.bf16 %v855, %v854
        %v876 = vpack.c.bf16 %v857, %v856
        %v877 = vpack.c.bf16 %v859, %v858
        %v878 = vpack.c.bf16 %v861, %v860
        %v879 = vpack.c.bf16 %v863, %v862
        %s880 = scalar_lea.vmem [#allocation4], 128
        %v881 = vld [vmem:[%s880] sm:$0xf]
        %v882 = vld [vmem:[%s880 + $0x4] sm:$0xf]
        %v883 = vld [vmem:[%s880 + $0x8] sm:$0xf]
        %v884 = vld [vmem:[%s880 + $0xc] sm:$0xf]
        %v885 = vld [vmem:[%s880 + $0x10] sm:$0xf]
        %v886 = vld [vmem:[%s880 + $0x14] sm:$0xf]
        %v887 = vld [vmem:[%s880 + $0x18] sm:$0xf]
        %v888 = vld [vmem:[%s880 + $0x1c] sm:$0xf]
        %v889 = vld [vmem:[%s880 + $0x20] sm:$0xf]
        %v890 = vld [vmem:[%s880 + $0x24] sm:$0xf]
        %v891 = vld [vmem:[%s880 + $0x28] sm:$0xf]
        %v892 = vld [vmem:[%s880 + $0x2c] sm:$0xf]
        %v893 = vld [vmem:[%s880 + $0x30] sm:$0xf]
        %v894 = vld [vmem:[%s880 + $0x34] sm:$0xf]
        %v895 = vld [vmem:[%s880 + $0x38] sm:$0xf]
        %v896 = vld [vmem:[%s880 + $0x3c] sm:$0xf]
        %v913 = vunpack.c.l.b16 %v881
        %v914 = vunpack.c.l.b16 %v882
        %v915 = vunpack.c.l.b16 %v883
        %v916 = vunpack.c.l.b16 %v884
        %v917 = vunpack.c.l.b16 %v885
        %v918 = vunpack.c.l.b16 %v886
        %v919 = vunpack.c.l.b16 %v887
        %v920 = vunpack.c.l.b16 %v888
        %v921 = vunpack.c.l.b16 %v889
        %v922 = vunpack.c.l.b16 %v890
        %v923 = vunpack.c.l.b16 %v891
        %v924 = vunpack.c.l.b16 %v892
        %v925 = vunpack.c.l.b16 %v893
        %v926 = vunpack.c.l.b16 %v894
        %v927 = vunpack.c.l.b16 %v895
        %v928 = vunpack.c.l.b16 %v896
        %v929 = vpack.c.b16 %v914, %v913
        %v930 = vpack.c.b16 %v916, %v915
        %v931 = vpack.c.b16 %v918, %v917
        %v932 = vpack.c.b16 %v920, %v919
        %v933 = vpack.c.b16 %v922, %v921
        %v934 = vpack.c.b16 %v924, %v923
        %v935 = vpack.c.b16 %v926, %v925
        %v936 = vpack.c.b16 %v928, %v927
        %945 = vmatprep.subr.bf16.mxu0 0
        %946 = vmatpush1.bf16.msra.mxu0 %v936
        %947 = vmatprep.subr.bf16.mxu0 0
        %948 = vmatpush1.bf16.msra.mxu0 %v935
        %949 = vmatprep.subr.bf16.mxu0 0
        %950 = vmatpush1.bf16.msra.mxu0 %v934
        %951 = vmatprep.subr.bf16.mxu0 0
        %952 = vmatpush1.bf16.msra.mxu0 %v933
        %953 = vmatprep.subr.bf16.mxu0 0
        %954 = vmatpush1.bf16.msra.mxu0 %v932
        %955 = vmatprep.subr.bf16.mxu0 0
        %956 = vmatpush1.bf16.msra.mxu0 %v931
        %957 = vmatprep.subr.bf16.mxu0 0
        %958 = vmatpush1.bf16.msra.mxu0 %v930
        %959 = vmatprep.subr.bf16.mxu0 0
        %960 = vmatpush1.bf16.msra.mxu0 %v929
        %961 = vmatprep.subr.bf16.mxu0 0
        %962 = vmatpush2.bf16.msra.mxu0 0
        %963 = vmatprep.subr.bf16.mxu0 0
        %964 = vmatpush2.bf16.msra.mxu0 0
        %965 = vmatprep.subr.bf16.mxu0 0
        %966 = vmatpush2.bf16.msra.mxu0 0
        %967 = vmatprep.subr.bf16.mxu0 0
        %968 = vmatpush2.bf16.msra.mxu0 0
        %969 = vmatprep.subr.bf16.mxu0 0
        %970 = vmatpush2.bf16.msra.mxu0 0
        %971 = vmatprep.subr.bf16.mxu0 0
        %972 = vmatpush2.bf16.msra.mxu0 0
        %973 = vmatprep.subr.bf16.mxu0 0
        %974 = vmatpush2.bf16.msra.mxu0 0
        %975 = vmatprep.subr.bf16.mxu0 0
        %976 = vmatpush2.bf16.msra.mxu0 0
        %977 = vmatprep.mubr.bf16.mxu0 0
        %978 = vmatmul.mubr.bf16.gmra.mxu0 %v864
        %v979 = vpop.f32.mrf.mxu0
        %v980 = vadd.f32 0.0, %v979
        %v981 = vpop.f32.mrf.mxu0
        %v982 = vpop.f32.mrf.mxu0
        %v983 = vadd.f32 0.0, %v982
        %v984 = vpop.f32.mrf.mxu0
        %985 = vmatprep.mubr.bf16.mxu0 0
        %986 = vmatmul.mubr.bf16.gmra.mxu0 %v865
        %v987 = vpop.f32.mrf.mxu0
        %v988 = vadd.f32 0.0, %v987
        %v989 = vpop.f32.mrf.mxu0
        %v990 = vpop.f32.mrf.mxu0
        %v991 = vadd.f32 0.0, %v990
        %v992 = vpop.f32.mrf.mxu0
        %993 = vmatprep.mubr.bf16.mxu0 0
        %994 = vmatmul.mubr.bf16.gmra.mxu0 %v866
        %v995 = vpop.f32.mrf.mxu0
        %v996 = vadd.f32 0.0, %v995
        %v997 = vpop.f32.mrf.mxu0
        %v998 = vpop.f32.mrf.mxu0
        %v999 = vadd.f32 0.0, %v998
        %v1000 = vpop.f32.mrf.mxu0
        %1001 = vmatprep.mubr.bf16.mxu0 0
        %1002 = vmatmul.mubr.bf16.gmra.mxu0 %v867
        %v1003 = vpop.f32.mrf.mxu0
        %v1004 = vadd.f32 0.0, %v1003
        %v1005 = vpop.f32.mrf.mxu0
        %v1006 = vpop.f32.mrf.mxu0
        %v1007 = vadd.f32 0.0, %v1006
        %v1008 = vpop.f32.mrf.mxu0
        %1009 = vmatprep.mubr.bf16.mxu0 0
        %1010 = vmatmul.mubr.bf16.gmra.mxu0 %v868
        %v1011 = vpop.f32.mrf.mxu0
        %v1012 = vadd.f32 0.0, %v1011
        %v1013 = vpop.f32.mrf.mxu0
        %v1014 = vpop.f32.mrf.mxu0
        %v1015 = vadd.f32 0.0, %v1014
        %v1016 = vpop.f32.mrf.mxu0
        %1017 = vmatprep.mubr.bf16.mxu0 0
        %1018 = vmatmul.mubr.bf16.gmra.mxu0 %v869
        %v1019 = vpop.f32.mrf.mxu0
        %v1020 = vadd.f32 0.0, %v1019
        %v1021 = vpop.f32.mrf.mxu0
        %v1022 = vpop.f32.mrf.mxu0
        %v1023 = vadd.f32 0.0, %v1022
        %v1024 = vpop.f32.mrf.mxu0
        %1025 = vmatprep.mubr.bf16.mxu0 0
        %1026 = vmatmul.mubr.bf16.gmra.mxu0 %v870
        %v1027 = vpop.f32.mrf.mxu0
        %v1028 = vadd.f32 0.0, %v1027
        %v1029 = vpop.f32.mrf.mxu0
        %v1030 = vpop.f32.mrf.mxu0
        %v1031 = vadd.f32 0.0, %v1030
        %v1032 = vpop.f32.mrf.mxu0
        %1033 = vmatprep.mubr.bf16.mxu0 0
        %1034 = vmatmul.mubr.bf16.gmra.mxu0 %v871
        %v1035 = vpop.f32.mrf.mxu0
        %v1036 = vadd.f32 0.0, %v1035
        %v1037 = vpop.f32.mrf.mxu0
        %v1038 = vpop.f32.mrf.mxu0
        %v1039 = vadd.f32 0.0, %v1038
        %v1040 = vpop.f32.mrf.mxu0
        %1041 = vmatprep.mubr.bf16.mxu0 0
        %1042 = vmatmul.mubr.bf16.gmra.mxu0 %v872
        %v1043 = vpop.f32.mrf.mxu0
        %v1044 = vadd.f32 0.0, %v1043
        %v1045 = vpop.f32.mrf.mxu0
        %v1046 = vpop.f32.mrf.mxu0
        %v1047 = vadd.f32 0.0, %v1046
        %v1048 = vpop.f32.mrf.mxu0
        %1049 = vmatprep.mubr.bf16.mxu0 0
        %1050 = vmatmul.mubr.bf16.gmra.mxu0 %v873
        %v1051 = vpop.f32.mrf.mxu0
        %v1052 = vadd.f32 0.0, %v1051
        %v1053 = vpop.f32.mrf.mxu0
        %v1054 = vpop.f32.mrf.mxu0
        %v1055 = vadd.f32 0.0, %v1054
        %v1056 = vpop.f32.mrf.mxu0
        %1057 = vmatprep.mubr.bf16.mxu0 0
        %1058 = vmatmul.mubr.bf16.gmra.mxu0 %v874
        %v1059 = vpop.f32.mrf.mxu0
        %v1060 = vadd.f32 0.0, %v1059
        %v1061 = vpop.f32.mrf.mxu0
        %v1062 = vpop.f32.mrf.mxu0
        %v1063 = vadd.f32 0.0, %v1062
        %v1064 = vpop.f32.mrf.mxu0
        %1065 = vmatprep.mubr.bf16.mxu0 0
        %1066 = vmatmul.mubr.bf16.gmra.mxu0 %v875
        %v1067 = vpop.f32.mrf.mxu0
        %v1068 = vadd.f32 0.0, %v1067
        %v1069 = vpop.f32.mrf.mxu0
        %v1070 = vpop.f32.mrf.mxu0
        %v1071 = vadd.f32 0.0, %v1070
        %v1072 = vpop.f32.mrf.mxu0
        %1073 = vmatprep.mubr.bf16.mxu0 0
        %1074 = vmatmul.mubr.bf16.gmra.mxu0 %v876
        %v1075 = vpop.f32.mrf.mxu0
        %v1076 = vadd.f32 0.0, %v1075
        %v1077 = vpop.f32.mrf.mxu0
        %v1078 = vpop.f32.mrf.mxu0
        %v1079 = vadd.f32 0.0, %v1078
        %v1080 = vpop.f32.mrf.mxu0
        %1081 = vmatprep.mubr.bf16.mxu0 0
        %1082 = vmatmul.mubr.bf16.gmra.mxu0 %v877
        %v1083 = vpop.f32.mrf.mxu0
        %v1084 = vadd.f32 0.0, %v1083
        %v1085 = vpop.f32.mrf.mxu0
        %v1086 = vpop.f32.mrf.mxu0
        %v1087 = vadd.f32 0.0, %v1086
        %v1088 = vpop.f32.mrf.mxu0
        %1089 = vmatprep.mubr.bf16.mxu0 0
        %1090 = vmatmul.mubr.bf16.gmra.mxu0 %v878
        %v1091 = vpop.f32.mrf.mxu0
        %v1092 = vadd.f32 0.0, %v1091
        %v1093 = vpop.f32.mrf.mxu0
        %v1094 = vpop.f32.mrf.mxu0
        %v1095 = vadd.f32 0.0, %v1094
        %v1096 = vpop.f32.mrf.mxu0
        %1097 = vmatprep.mubr.bf16.mxu0 0
        %1098 = vmatmul.mubr.bf16.gmra.mxu0 %v879
        %v1099 = vpop.f32.mrf.mxu0
        %v1100 = vadd.f32 0.0, %v1099
        %v1101 = vpop.f32.mrf.mxu0
        %v1102 = vpop.f32.mrf.mxu0
        %v1103 = vadd.f32 0.0, %v1102
        %v1104 = vpop.f32.mrf.mxu0
        %1105 = vdwg.mxu0
        %v1106 = vadd.f32 %v800, %v980
        %v1107 = vadd.f32 %v801, %v983
        %v1108 = vadd.f32 %v802, %v988
        %v1109 = vadd.f32 %v803, %v991
        %v1110 = vadd.f32 %v804, %v996
        %v1111 = vadd.f32 %v805, %v999
        %v1112 = vadd.f32 %v806, %v1004
        %v1113 = vadd.f32 %v807, %v1007
        %v1114 = vadd.f32 %v808, %v1012
        %v1115 = vadd.f32 %v809, %v1015
        %v1116 = vadd.f32 %v810, %v1020
        %v1117 = vadd.f32 %v811, %v1023
        %v1118 = vadd.f32 %v812, %v1028
        %v1119 = vadd.f32 %v813, %v1031
        %v1120 = vadd.f32 %v814, %v1036
        %v1121 = vadd.f32 %v815, %v1039
        %v1122 = vadd.f32 %v816, %v1044
        %v1123 = vadd.f32 %v817, %v1047
        %v1124 = vadd.f32 %v818, %v1052
        %v1125 = vadd.f32 %v819, %v1055
        %v1126 = vadd.f32 %v820, %v1060
        %v1127 = vadd.f32 %v821, %v1063
        %v1128 = vadd.f32 %v822, %v1068
        %v1129 = vadd.f32 %v823, %v1071
        %v1130 = vadd.f32 %v824, %v1076
        %v1131 = vadd.f32 %v825, %v1079
        %v1132 = vadd.f32 %v826, %v1084
        %v1133 = vadd.f32 %v827, %v1087
        %v1134 = vadd.f32 %v828, %v1092
        %v1135 = vadd.f32 %v829, %v1095
        %v1136 = vadd.f32 %v830, %v1100
        %v1137 = vadd.f32 %v831, %v1103
        %s1138 = sadd.s32 %s211, 1
        %s1139 = smul.u32 %s1138, 24
        %s1140 = scalar_lea.vmem [#allocation2], %s1139
        %v1141 = vld [vmem:[%s1140] sm:$0xff]
        %v1142 = vld [vmem:[%s1140 + $0x8] sm:$0xff]
        %v1143 = vld [vmem:[%s1140 + $0x18] sm:$0xff]
        %v1144 = vld [vmem:[%s1140 + $0x20] sm:$0xff]
        %v1145 = vld [vmem:[%s1140 + $0x30] sm:$0xff]
        %v1146 = vld [vmem:[%s1140 + $0x38] sm:$0xff]
        %v1147 = vld [vmem:[%s1140 + $0x48] sm:$0xff]
        %v1148 = vld [vmem:[%s1140 + $0x50] sm:$0xff]
        %v1149 = vld [vmem:[%s1140 + $0x60] sm:$0xff]
        %v1150 = vld [vmem:[%s1140 + $0x68] sm:$0xff]
        %v1151 = vld [vmem:[%s1140 + $0x78] sm:$0xff]
        %v1152 = vld [vmem:[%s1140 + $0x80] sm:$0xff]
        %v1153 = vld [vmem:[%s1140 + $0x90] sm:$0xff]
        %v1154 = vld [vmem:[%s1140 + $0x98] sm:$0xff]
        %v1155 = vld [vmem:[%s1140 + $0xa8] sm:$0xff]
        %v1156 = vld [vmem:[%s1140 + $0xb0] sm:$0xff]
        %v1157 = vld [vmem:[%s1140 + $0xc0] sm:$0xff]
        %v1158 = vld [vmem:[%s1140 + $0xc8] sm:$0xff]
        %v1159 = vld [vmem:[%s1140 + $0xd8] sm:$0xff]
        %v1160 = vld [vmem:[%s1140 + $0xe0] sm:$0xff]
        %v1161 = vld [vmem:[%s1140 + $0xf0] sm:$0xff]
        %v1162 = vld [vmem:[%s1140 + $0xf8] sm:$0xff]
        %v1163 = vld [vmem:[%s1140 + $0x108] sm:$0xff]
        %v1164 = vld [vmem:[%s1140 + $0x110] sm:$0xff]
        %v1165 = vld [vmem:[%s1140 + $0x120] sm:$0xff]
        %v1166 = vld [vmem:[%s1140 + $0x128] sm:$0xff]
        %v1167 = vld [vmem:[%s1140 + $0x138] sm:$0xff]
        %v1168 = vld [vmem:[%s1140 + $0x140] sm:$0xff]
        %v1169 = vld [vmem:[%s1140 + $0x150] sm:$0xff]
        %v1170 = vld [vmem:[%s1140 + $0x158] sm:$0xff]
        %v1171 = vld [vmem:[%s1140 + $0x168] sm:$0xff]
        %v1172 = vld [vmem:[%s1140 + $0x170] sm:$0xff]
        %v1173 = vpack.c.bf16 %v1142, %v1141
        %v1174 = vpack.c.bf16 %v1144, %v1143
        %v1175 = vpack.c.bf16 %v1146, %v1145
        %v1176 = vpack.c.bf16 %v1148, %v1147
        %v1177 = vpack.c.bf16 %v1150, %v1149
        %v1178 = vpack.c.bf16 %v1152, %v1151
        %v1179 = vpack.c.bf16 %v1154, %v1153
        %v1180 = vpack.c.bf16 %v1156, %v1155
        %v1181 = vpack.c.bf16 %v1158, %v1157
        %v1182 = vpack.c.bf16 %v1160, %v1159
        %v1183 = vpack.c.bf16 %v1162, %v1161
        %v1184 = vpack.c.bf16 %v1164, %v1163
        %v1185 = vpack.c.bf16 %v1166, %v1165
        %v1186 = vpack.c.bf16 %v1168, %v1167
        %v1187 = vpack.c.bf16 %v1170, %v1169
        %v1188 = vpack.c.bf16 %v1172, %v1171
        %s1189 = scalar_lea.vmem [#allocation4], 192
        %v1190 = vld [vmem:[%s1189] sm:$0xf]
        %v1191 = vld [vmem:[%s1189 + $0x4] sm:$0xf]
        %v1192 = vld [vmem:[%s1189 + $0x8] sm:$0xf]
        %v1193 = vld [vmem:[%s1189 + $0xc] sm:$0xf]
        %v1194 = vld [vmem:[%s1189 + $0x10] sm:$0xf]
        %v1195 = vld [vmem:[%s1189 + $0x14] sm:$0xf]
        %v1196 = vld [vmem:[%s1189 + $0x18] sm:$0xf]
        %v1197 = vld [vmem:[%s1189 + $0x1c] sm:$0xf]
        %v1198 = vld [vmem:[%s1189 + $0x20] sm:$0xf]
        %v1199 = vld [vmem:[%s1189 + $0x24] sm:$0xf]
        %v1200 = vld [vmem:[%s1189 + $0x28] sm:$0xf]
        %v1201 = vld [vmem:[%s1189 + $0x2c] sm:$0xf]
        %v1202 = vld [vmem:[%s1189 + $0x30] sm:$0xf]
        %v1203 = vld [vmem:[%s1189 + $0x34] sm:$0xf]
        %v1204 = vld [vmem:[%s1189 + $0x38] sm:$0xf]
        %v1205 = vld [vmem:[%s1189 + $0x3c] sm:$0xf]
        %v1222 = vunpack.c.l.b16 %v1190
        %v1223 = vunpack.c.l.b16 %v1191
        %v1224 = vunpack.c.l.b16 %v1192
        %v1225 = vunpack.c.l.b16 %v1193
        %v1226 = vunpack.c.l.b16 %v1194
        %v1227 = vunpack.c.l.b16 %v1195
        %v1228 = vunpack.c.l.b16 %v1196
        %v1229 = vunpack.c.l.b16 %v1197
        %v1230 = vunpack.c.l.b16 %v1198
        %v1231 = vunpack.c.l.b16 %v1199
        %v1232 = vunpack.c.l.b16 %v1200
        %v1233 = vunpack.c.l.b16 %v1201
        %v1234 = vunpack.c.l.b16 %v1202
        %v1235 = vunpack.c.l.b16 %v1203
        %v1236 = vunpack.c.l.b16 %v1204
        %v1237 = vunpack.c.l.b16 %v1205
        %v1238 = vpack.c.b16 %v1223, %v1222
        %v1239 = vpack.c.b16 %v1225, %v1224
        %v1240 = vpack.c.b16 %v1227, %v1226
        %v1241 = vpack.c.b16 %v1229, %v1228
        %v1242 = vpack.c.b16 %v1231, %v1230
        %v1243 = vpack.c.b16 %v1233, %v1232
        %v1244 = vpack.c.b16 %v1235, %v1234
        %v1245 = vpack.c.b16 %v1237, %v1236
        %1254 = vmatprep.subr.bf16.mxu0 0
        %1255 = vmatpush1.bf16.msra.mxu0 %v1245
        %1256 = vmatprep.subr.bf16.mxu0 0
        %1257 = vmatpush1.bf16.msra.mxu0 %v1244
        %1258 = vmatprep.subr.bf16.mxu0 0
        %1259 = vmatpush1.bf16.msra.mxu0 %v1243
        %1260 = vmatprep.subr.bf16.mxu0 0
        %1261 = vmatpush1.bf16.msra.mxu0 %v1242
        %1262 = vmatprep.subr.bf16.mxu0 0
        %1263 = vmatpush1.bf16.msra.mxu0 %v1241
        %1264 = vmatprep.subr.bf16.mxu0 0
        %1265 = vmatpush1.bf16.msra.mxu0 %v1240
        %1266 = vmatprep.subr.bf16.mxu0 0
        %1267 = vmatpush1.bf16.msra.mxu0 %v1239
        %1268 = vmatprep.subr.bf16.mxu0 0
        %1269 = vmatpush1.bf16.msra.mxu0 %v1238
        %1270 = vmatprep.subr.bf16.mxu0 0
        %1271 = vmatpush2.bf16.msra.mxu0 0
        %1272 = vmatprep.subr.bf16.mxu0 0
        %1273 = vmatpush2.bf16.msra.mxu0 0
        %1274 = vmatprep.subr.bf16.mxu0 0
        %1275 = vmatpush2.bf16.msra.mxu0 0
        %1276 = vmatprep.subr.bf16.mxu0 0
        %1277 = vmatpush2.bf16.msra.mxu0 0
        %1278 = vmatprep.subr.bf16.mxu0 0
        %1279 = vmatpush2.bf16.msra.mxu0 0
        %1280 = vmatprep.subr.bf16.mxu0 0
        %1281 = vmatpush2.bf16.msra.mxu0 0
        %1282 = vmatprep.subr.bf16.mxu0 0
        %1283 = vmatpush2.bf16.msra.mxu0 0
        %1284 = vmatprep.subr.bf16.mxu0 0
        %1285 = vmatpush2.bf16.msra.mxu0 0
        %1286 = vmatprep.mubr.bf16.mxu0 0
        %1287 = vmatmul.mubr.bf16.gmra.mxu0 %v1173
        %v1288 = vpop.f32.mrf.mxu0
        %v1289 = vadd.f32 0.0, %v1288
        %v1290 = vpop.f32.mrf.mxu0
        %v1291 = vpop.f32.mrf.mxu0
        %v1292 = vadd.f32 0.0, %v1291
        %v1293 = vpop.f32.mrf.mxu0
        %1294 = vmatprep.mubr.bf16.mxu0 0
        %1295 = vmatmul.mubr.bf16.gmra.mxu0 %v1174
        %v1296 = vpop.f32.mrf.mxu0
        %v1297 = vadd.f32 0.0, %v1296
        %v1298 = vpop.f32.mrf.mxu0
        %v1299 = vpop.f32.mrf.mxu0
        %v1300 = vadd.f32 0.0, %v1299
        %v1301 = vpop.f32.mrf.mxu0
        %1302 = vmatprep.mubr.bf16.mxu0 0
        %1303 = vmatmul.mubr.bf16.gmra.mxu0 %v1175
        %v1304 = vpop.f32.mrf.mxu0
        %v1305 = vadd.f32 0.0, %v1304
        %v1306 = vpop.f32.mrf.mxu0
        %v1307 = vpop.f32.mrf.mxu0
        %v1308 = vadd.f32 0.0, %v1307
        %v1309 = vpop.f32.mrf.mxu0
        %1310 = vmatprep.mubr.bf16.mxu0 0
        %1311 = vmatmul.mubr.bf16.gmra.mxu0 %v1176
        %v1312 = vpop.f32.mrf.mxu0
        %v1313 = vadd.f32 0.0, %v1312
        %v1314 = vpop.f32.mrf.mxu0
        %v1315 = vpop.f32.mrf.mxu0
        %v1316 = vadd.f32 0.0, %v1315
        %v1317 = vpop.f32.mrf.mxu0
        %1318 = vmatprep.mubr.bf16.mxu0 0
        %1319 = vmatmul.mubr.bf16.gmra.mxu0 %v1177
        %v1320 = vpop.f32.mrf.mxu0
        %v1321 = vadd.f32 0.0, %v1320
        %v1322 = vpop.f32.mrf.mxu0
        %v1323 = vpop.f32.mrf.mxu0
        %v1324 = vadd.f32 0.0, %v1323
        %v1325 = vpop.f32.mrf.mxu0
        %1326 = vmatprep.mubr.bf16.mxu0 0
        %1327 = vmatmul.mubr.bf16.gmra.mxu0 %v1178
        %v1328 = vpop.f32.mrf.mxu0
        %v1329 = vadd.f32 0.0, %v1328
        %v1330 = vpop.f32.mrf.mxu0
        %v1331 = vpop.f32.mrf.mxu0
        %v1332 = vadd.f32 0.0, %v1331
        %v1333 = vpop.f32.mrf.mxu0
        %1334 = vmatprep.mubr.bf16.mxu0 0
        %1335 = vmatmul.mubr.bf16.gmra.mxu0 %v1179
        %v1336 = vpop.f32.mrf.mxu0
        %v1337 = vadd.f32 0.0, %v1336
        %v1338 = vpop.f32.mrf.mxu0
        %v1339 = vpop.f32.mrf.mxu0
        %v1340 = vadd.f32 0.0, %v1339
        %v1341 = vpop.f32.mrf.mxu0
        %1342 = vmatprep.mubr.bf16.mxu0 0
        %1343 = vmatmul.mubr.bf16.gmra.mxu0 %v1180
        %v1344 = vpop.f32.mrf.mxu0
        %v1345 = vadd.f32 0.0, %v1344
        %v1346 = vpop.f32.mrf.mxu0
        %v1347 = vpop.f32.mrf.mxu0
        %v1348 = vadd.f32 0.0, %v1347
        %v1349 = vpop.f32.mrf.mxu0
        %1350 = vmatprep.mubr.bf16.mxu0 0
        %1351 = vmatmul.mubr.bf16.gmra.mxu0 %v1181
        %v1352 = vpop.f32.mrf.mxu0
        %v1353 = vadd.f32 0.0, %v1352
        %v1354 = vpop.f32.mrf.mxu0
        %v1355 = vpop.f32.mrf.mxu0
        %v1356 = vadd.f32 0.0, %v1355
        %v1357 = vpop.f32.mrf.mxu0
        %1358 = vmatprep.mubr.bf16.mxu0 0
        %1359 = vmatmul.mubr.bf16.gmra.mxu0 %v1182
        %v1360 = vpop.f32.mrf.mxu0
        %v1361 = vadd.f32 0.0, %v1360
        %v1362 = vpop.f32.mrf.mxu0
        %v1363 = vpop.f32.mrf.mxu0
        %v1364 = vadd.f32 0.0, %v1363
        %v1365 = vpop.f32.mrf.mxu0
        %1366 = vmatprep.mubr.bf16.mxu0 0
        %1367 = vmatmul.mubr.bf16.gmra.mxu0 %v1183
        %v1368 = vpop.f32.mrf.mxu0
        %v1369 = vadd.f32 0.0, %v1368
        %v1370 = vpop.f32.mrf.mxu0
        %v1371 = vpop.f32.mrf.mxu0
        %v1372 = vadd.f32 0.0, %v1371
        %v1373 = vpop.f32.mrf.mxu0
        %1374 = vmatprep.mubr.bf16.mxu0 0
        %1375 = vmatmul.mubr.bf16.gmra.mxu0 %v1184
        %v1376 = vpop.f32.mrf.mxu0
        %v1377 = vadd.f32 0.0, %v1376
        %v1378 = vpop.f32.mrf.mxu0
        %v1379 = vpop.f32.mrf.mxu0
        %v1380 = vadd.f32 0.0, %v1379
        %v1381 = vpop.f32.mrf.mxu0
        %1382 = vmatprep.mubr.bf16.mxu0 0
        %1383 = vmatmul.mubr.bf16.gmra.mxu0 %v1185
        %v1384 = vpop.f32.mrf.mxu0
        %v1385 = vadd.f32 0.0, %v1384
        %v1386 = vpop.f32.mrf.mxu0
        %v1387 = vpop.f32.mrf.mxu0
        %v1388 = vadd.f32 0.0, %v1387
        %v1389 = vpop.f32.mrf.mxu0
        %1390 = vmatprep.mubr.bf16.mxu0 0
        %1391 = vmatmul.mubr.bf16.gmra.mxu0 %v1186
        %v1392 = vpop.f32.mrf.mxu0
        %v1393 = vadd.f32 0.0, %v1392
        %v1394 = vpop.f32.mrf.mxu0
        %v1395 = vpop.f32.mrf.mxu0
        %v1396 = vadd.f32 0.0, %v1395
        %v1397 = vpop.f32.mrf.mxu0
        %1398 = vmatprep.mubr.bf16.mxu0 0
        %1399 = vmatmul.mubr.bf16.gmra.mxu0 %v1187
        %v1400 = vpop.f32.mrf.mxu0
        %v1401 = vadd.f32 0.0, %v1400
        %v1402 = vpop.f32.mrf.mxu0
        %v1403 = vpop.f32.mrf.mxu0
        %v1404 = vadd.f32 0.0, %v1403
        %v1405 = vpop.f32.mrf.mxu0
        %1406 = vmatprep.mubr.bf16.mxu0 0
        %1407 = vmatmul.mubr.bf16.gmra.mxu0 %v1188
        %v1408 = vpop.f32.mrf.mxu0
        %v1409 = vadd.f32 0.0, %v1408
        %v1410 = vpop.f32.mrf.mxu0
        %v1411 = vpop.f32.mrf.mxu0
        %v1412 = vadd.f32 0.0, %v1411
        %v1413 = vpop.f32.mrf.mxu0
        %1414 = vdwg.mxu0
        %v1415 = vadd.f32 %v1106, %v1289
        %v1416 = vadd.f32 %v1107, %v1292
        %v1417 = vadd.f32 %v1108, %v1297
        %v1418 = vadd.f32 %v1109, %v1300
        %v1419 = vadd.f32 %v1110, %v1305
        %v1420 = vadd.f32 %v1111, %v1308
        %v1421 = vadd.f32 %v1112, %v1313
        %v1422 = vadd.f32 %v1113, %v1316
        %v1423 = vadd.f32 %v1114, %v1321
        %v1424 = vadd.f32 %v1115, %v1324
        %v1425 = vadd.f32 %v1116, %v1329
        %v1426 = vadd.f32 %v1117, %v1332
        %v1427 = vadd.f32 %v1118, %v1337
        %v1428 = vadd.f32 %v1119, %v1340
        %v1429 = vadd.f32 %v1120, %v1345
        %v1430 = vadd.f32 %v1121, %v1348
        %v1431 = vadd.f32 %v1122, %v1353
        %v1432 = vadd.f32 %v1123, %v1356
        %v1433 = vadd.f32 %v1124, %v1361
        %v1434 = vadd.f32 %v1125, %v1364
        %v1435 = vadd.f32 %v1126, %v1369
        %v1436 = vadd.f32 %v1127, %v1372
        %v1437 = vadd.f32 %v1128, %v1377
        %v1438 = vadd.f32 %v1129, %v1380
        %v1439 = vadd.f32 %v1130, %v1385
        %v1440 = vadd.f32 %v1131, %v1388
        %v1441 = vadd.f32 %v1132, %v1393
        %v1442 = vadd.f32 %v1133, %v1396
        %v1443 = vadd.f32 %v1134, %v1401
        %v1444 = vadd.f32 %v1135, %v1404
        %v1445 = vadd.f32 %v1136, %v1409
        %v1446 = vadd.f32 %v1137, %v1412
        %v1447 = vld [vmem:[%s1140 + $0x1] sm:$0xff]
        %v1448 = vld [vmem:[%s1140 + $0x9] sm:$0xff]
        %v1449 = vld [vmem:[%s1140 + $0x19] sm:$0xff]
        %v1450 = vld [vmem:[%s1140 + $0x21] sm:$0xff]
        %v1451 = vld [vmem:[%s1140 + $0x31] sm:$0xff]
        %v1452 = vld [vmem:[%s1140 + $0x39] sm:$0xff]
        %v1453 = vld [vmem:[%s1140 + $0x49] sm:$0xff]
        %v1454 = vld [vmem:[%s1140 + $0x51] sm:$0xff]
        %v1455 = vld [vmem:[%s1140 + $0x61] sm:$0xff]
        %v1456 = vld [vmem:[%s1140 + $0x69] sm:$0xff]
        %v1457 = vld [vmem:[%s1140 + $0x79] sm:$0xff]
        %v1458 = vld [vmem:[%s1140 + $0x81] sm:$0xff]
        %v1459 = vld [vmem:[%s1140 + $0x91] sm:$0xff]
        %v1460 = vld [vmem:[%s1140 + $0x99] sm:$0xff]
        %v1461 = vld [vmem:[%s1140 + $0xa9] sm:$0xff]
        %v1462 = vld [vmem:[%s1140 + $0xb1] sm:$0xff]
        %v1463 = vld [vmem:[%s1140 + $0xc1] sm:$0xff]
        %v1464 = vld [vmem:[%s1140 + $0xc9] sm:$0xff]
        %v1465 = vld [vmem:[%s1140 + $0xd9] sm:$0xff]
        %v1466 = vld [vmem:[%s1140 + $0xe1] sm:$0xff]
        %v1467 = vld [vmem:[%s1140 + $0xf1] sm:$0xff]
        %v1468 = vld [vmem:[%s1140 + $0xf9] sm:$0xff]
        %v1469 = vld [vmem:[%s1140 + $0x109] sm:$0xff]
        %v1470 = vld [vmem:[%s1140 + $0x111] sm:$0xff]
        %v1471 = vld [vmem:[%s1140 + $0x121] sm:$0xff]
        %v1472 = vld [vmem:[%s1140 + $0x129] sm:$0xff]
        %v1473 = vld [vmem:[%s1140 + $0x139] sm:$0xff]
        %v1474 = vld [vmem:[%s1140 + $0x141] sm:$0xff]
        %v1475 = vld [vmem:[%s1140 + $0x151] sm:$0xff]
        %v1476 = vld [vmem:[%s1140 + $0x159] sm:$0xff]
        %v1477 = vld [vmem:[%s1140 + $0x169] sm:$0xff]
        %v1478 = vld [vmem:[%s1140 + $0x171] sm:$0xff]
        %v1479 = vpack.c.bf16 %v1448, %v1447
        %v1480 = vpack.c.bf16 %v1450, %v1449
        %v1481 = vpack.c.bf16 %v1452, %v1451
        %v1482 = vpack.c.bf16 %v1454, %v1453
        %v1483 = vpack.c.bf16 %v1456, %v1455
        %v1484 = vpack.c.bf16 %v1458, %v1457
        %v1485 = vpack.c.bf16 %v1460, %v1459
        %v1486 = vpack.c.bf16 %v1462, %v1461
        %v1487 = vpack.c.bf16 %v1464, %v1463
        %v1488 = vpack.c.bf16 %v1466, %v1465
        %v1489 = vpack.c.bf16 %v1468, %v1467
        %v1490 = vpack.c.bf16 %v1470, %v1469
        %v1491 = vpack.c.bf16 %v1472, %v1471
        %v1492 = vpack.c.bf16 %v1474, %v1473
        %v1493 = vpack.c.bf16 %v1476, %v1475
        %v1494 = vpack.c.bf16 %v1478, %v1477
        %s1495 = scalar_lea.vmem [#allocation4], 256
        %v1496 = vld [vmem:[%s1495] sm:$0xf]
        %v1497 = vld [vmem:[%s1495 + $0x4] sm:$0xf]
        %v1498 = vld [vmem:[%s1495 + $0x8] sm:$0xf]
        %v1499 = vld [vmem:[%s1495 + $0xc] sm:$0xf]
        %v1500 = vld [vmem:[%s1495 + $0x10] sm:$0xf]
        %v1501 = vld [vmem:[%s1495 + $0x14] sm:$0xf]
        %v1502 = vld [vmem:[%s1495 + $0x18] sm:$0xf]
        %v1503 = vld [vmem:[%s1495 + $0x1c] sm:$0xf]
        %v1504 = vld [vmem:[%s1495 + $0x20] sm:$0xf]
        %v1505 = vld [vmem:[%s1495 + $0x24] sm:$0xf]
        %v1506 = vld [vmem:[%s1495 + $0x28] sm:$0xf]
        %v1507 = vld [vmem:[%s1495 + $0x2c] sm:$0xf]
        %v1508 = vld [vmem:[%s1495 + $0x30] sm:$0xf]
        %v1509 = vld [vmem:[%s1495 + $0x34] sm:$0xf]
        %v1510 = vld [vmem:[%s1495 + $0x38] sm:$0xf]
        %v1511 = vld [vmem:[%s1495 + $0x3c] sm:$0xf]
        %v1528 = vunpack.c.l.b16 %v1496
        %v1529 = vunpack.c.l.b16 %v1497
        %v1530 = vunpack.c.l.b16 %v1498
        %v1531 = vunpack.c.l.b16 %v1499
        %v1532 = vunpack.c.l.b16 %v1500
        %v1533 = vunpack.c.l.b16 %v1501
        %v1534 = vunpack.c.l.b16 %v1502
        %v1535 = vunpack.c.l.b16 %v1503
        %v1536 = vunpack.c.l.b16 %v1504
        %v1537 = vunpack.c.l.b16 %v1505
        %v1538 = vunpack.c.l.b16 %v1506
        %v1539 = vunpack.c.l.b16 %v1507
        %v1540 = vunpack.c.l.b16 %v1508
        %v1541 = vunpack.c.l.b16 %v1509
        %v1542 = vunpack.c.l.b16 %v1510
        %v1543 = vunpack.c.l.b16 %v1511
        %v1544 = vpack.c.b16 %v1529, %v1528
        %v1545 = vpack.c.b16 %v1531, %v1530
        %v1546 = vpack.c.b16 %v1533, %v1532
        %v1547 = vpack.c.b16 %v1535, %v1534
        %v1548 = vpack.c.b16 %v1537, %v1536
        %v1549 = vpack.c.b16 %v1539, %v1538
        %v1550 = vpack.c.b16 %v1541, %v1540
        %v1551 = vpack.c.b16 %v1543, %v1542
        %1560 = vmatprep.subr.bf16.mxu0 0
        %1561 = vmatpush1.bf16.msra.mxu0 %v1551
        %1562 = vmatprep.subr.bf16.mxu0 0
        %1563 = vmatpush1.bf16.msra.mxu0 %v1550
        %1564 = vmatprep.subr.bf16.mxu0 0
        %1565 = vmatpush1.bf16.msra.mxu0 %v1549
        %1566 = vmatprep.subr.bf16.mxu0 0
        %1567 = vmatpush1.bf16.msra.mxu0 %v1548
        %1568 = vmatprep.subr.bf16.mxu0 0
        %1569 = vmatpush1.bf16.msra.mxu0 %v1547
        %1570 = vmatprep.subr.bf16.mxu0 0
        %1571 = vmatpush1.bf16.msra.mxu0 %v1546
        %1572 = vmatprep.subr.bf16.mxu0 0
        %1573 = vmatpush1.bf16.msra.mxu0 %v1545
        %1574 = vmatprep.subr.bf16.mxu0 0
        %1575 = vmatpush1.bf16.msra.mxu0 %v1544
        %1576 = vmatprep.subr.bf16.mxu0 0
        %1577 = vmatpush2.bf16.msra.mxu0 0
        %1578 = vmatprep.subr.bf16.mxu0 0
        %1579 = vmatpush2.bf16.msra.mxu0 0
        %1580 = vmatprep.subr.bf16.mxu0 0
        %1581 = vmatpush2.bf16.msra.mxu0 0
        %1582 = vmatprep.subr.bf16.mxu0 0
        %1583 = vmatpush2.bf16.msra.mxu0 0
        %1584 = vmatprep.subr.bf16.mxu0 0
        %1585 = vmatpush2.bf16.msra.mxu0 0
        %1586 = vmatprep.subr.bf16.mxu0 0
        %1587 = vmatpush2.bf16.msra.mxu0 0
        %1588 = vmatprep.subr.bf16.mxu0 0
        %1589 = vmatpush2.bf16.msra.mxu0 0
        %1590 = vmatprep.subr.bf16.mxu0 0
        %1591 = vmatpush2.bf16.msra.mxu0 0
        %1592 = vmatprep.mubr.bf16.mxu0 0
        %1593 = vmatmul.mubr.bf16.gmra.mxu0 %v1479
        %v1594 = vpop.f32.mrf.mxu0
        %v1595 = vadd.f32 0.0, %v1594
        %v1596 = vpop.f32.mrf.mxu0
        %v1597 = vpop.f32.mrf.mxu0
        %v1598 = vadd.f32 0.0, %v1597
        %v1599 = vpop.f32.mrf.mxu0
        %1600 = vmatprep.mubr.bf16.mxu0 0
        %1601 = vmatmul.mubr.bf16.gmra.mxu0 %v1480
        %v1602 = vpop.f32.mrf.mxu0
        %v1603 = vadd.f32 0.0, %v1602
        %v1604 = vpop.f32.mrf.mxu0
        %v1605 = vpop.f32.mrf.mxu0
        %v1606 = vadd.f32 0.0, %v1605
        %v1607 = vpop.f32.mrf.mxu0
        %1608 = vmatprep.mubr.bf16.mxu0 0
        %1609 = vmatmul.mubr.bf16.gmra.mxu0 %v1481
        %v1610 = vpop.f32.mrf.mxu0
        %v1611 = vadd.f32 0.0, %v1610
        %v1612 = vpop.f32.mrf.mxu0
        %v1613 = vpop.f32.mrf.mxu0
        %v1614 = vadd.f32 0.0, %v1613
        %v1615 = vpop.f32.mrf.mxu0
        %1616 = vmatprep.mubr.bf16.mxu0 0
        %1617 = vmatmul.mubr.bf16.gmra.mxu0 %v1482
        %v1618 = vpop.f32.mrf.mxu0
        %v1619 = vadd.f32 0.0, %v1618
        %v1620 = vpop.f32.mrf.mxu0
        %v1621 = vpop.f32.mrf.mxu0
        %v1622 = vadd.f32 0.0, %v1621
        %v1623 = vpop.f32.mrf.mxu0
        %1624 = vmatprep.mubr.bf16.mxu0 0
        %1625 = vmatmul.mubr.bf16.gmra.mxu0 %v1483
        %v1626 = vpop.f32.mrf.mxu0
        %v1627 = vadd.f32 0.0, %v1626
        %v1628 = vpop.f32.mrf.mxu0
        %v1629 = vpop.f32.mrf.mxu0
        %v1630 = vadd.f32 0.0, %v1629
        %v1631 = vpop.f32.mrf.mxu0
        %1632 = vmatprep.mubr.bf16.mxu0 0
        %1633 = vmatmul.mubr.bf16.gmra.mxu0 %v1484
        %v1634 = vpop.f32.mrf.mxu0
        %v1635 = vadd.f32 0.0, %v1634
        %v1636 = vpop.f32.mrf.mxu0
        %v1637 = vpop.f32.mrf.mxu0
        %v1638 = vadd.f32 0.0, %v1637
        %v1639 = vpop.f32.mrf.mxu0
        %1640 = vmatprep.mubr.bf16.mxu0 0
        %1641 = vmatmul.mubr.bf16.gmra.mxu0 %v1485
        %v1642 = vpop.f32.mrf.mxu0
        %v1643 = vadd.f32 0.0, %v1642
        %v1644 = vpop.f32.mrf.mxu0
        %v1645 = vpop.f32.mrf.mxu0
        %v1646 = vadd.f32 0.0, %v1645
        %v1647 = vpop.f32.mrf.mxu0
        %1648 = vmatprep.mubr.bf16.mxu0 0
        %1649 = vmatmul.mubr.bf16.gmra.mxu0 %v1486
        %v1650 = vpop.f32.mrf.mxu0
        %v1651 = vadd.f32 0.0, %v1650
        %v1652 = vpop.f32.mrf.mxu0
        %v1653 = vpop.f32.mrf.mxu0
        %v1654 = vadd.f32 0.0, %v1653
        %v1655 = vpop.f32.mrf.mxu0
        %1656 = vmatprep.mubr.bf16.mxu0 0
        %1657 = vmatmul.mubr.bf16.gmra.mxu0 %v1487
        %v1658 = vpop.f32.mrf.mxu0
        %v1659 = vadd.f32 0.0, %v1658
        %v1660 = vpop.f32.mrf.mxu0
        %v1661 = vpop.f32.mrf.mxu0
        %v1662 = vadd.f32 0.0, %v1661
        %v1663 = vpop.f32.mrf.mxu0
        %1664 = vmatprep.mubr.bf16.mxu0 0
        %1665 = vmatmul.mubr.bf16.gmra.mxu0 %v1488
        %v1666 = vpop.f32.mrf.mxu0
        %v1667 = vadd.f32 0.0, %v1666
        %v1668 = vpop.f32.mrf.mxu0
        %v1669 = vpop.f32.mrf.mxu0
        %v1670 = vadd.f32 0.0, %v1669
        %v1671 = vpop.f32.mrf.mxu0
        %1672 = vmatprep.mubr.bf16.mxu0 0
        %1673 = vmatmul.mubr.bf16.gmra.mxu0 %v1489
        %v1674 = vpop.f32.mrf.mxu0
        %v1675 = vadd.f32 0.0, %v1674
        %v1676 = vpop.f32.mrf.mxu0
        %v1677 = vpop.f32.mrf.mxu0
        %v1678 = vadd.f32 0.0, %v1677
        %v1679 = vpop.f32.mrf.mxu0
        %1680 = vmatprep.mubr.bf16.mxu0 0
        %1681 = vmatmul.mubr.bf16.gmra.mxu0 %v1490
        %v1682 = vpop.f32.mrf.mxu0
        %v1683 = vadd.f32 0.0, %v1682
        %v1684 = vpop.f32.mrf.mxu0
        %v1685 = vpop.f32.mrf.mxu0
        %v1686 = vadd.f32 0.0, %v1685
        %v1687 = vpop.f32.mrf.mxu0
        %1688 = vmatprep.mubr.bf16.mxu0 0
        %1689 = vmatmul.mubr.bf16.gmra.mxu0 %v1491
        %v1690 = vpop.f32.mrf.mxu0
        %v1691 = vadd.f32 0.0, %v1690
        %v1692 = vpop.f32.mrf.mxu0
        %v1693 = vpop.f32.mrf.mxu0
        %v1694 = vadd.f32 0.0, %v1693
        %v1695 = vpop.f32.mrf.mxu0
        %1696 = vmatprep.mubr.bf16.mxu0 0
        %1697 = vmatmul.mubr.bf16.gmra.mxu0 %v1492
        %v1698 = vpop.f32.mrf.mxu0
        %v1699 = vadd.f32 0.0, %v1698
        %v1700 = vpop.f32.mrf.mxu0
        %v1701 = vpop.f32.mrf.mxu0
        %v1702 = vadd.f32 0.0, %v1701
        %v1703 = vpop.f32.mrf.mxu0
        %1704 = vmatprep.mubr.bf16.mxu0 0
        %1705 = vmatmul.mubr.bf16.gmra.mxu0 %v1493
        %v1706 = vpop.f32.mrf.mxu0
        %v1707 = vadd.f32 0.0, %v1706
        %v1708 = vpop.f32.mrf.mxu0
        %v1709 = vpop.f32.mrf.mxu0
        %v1710 = vadd.f32 0.0, %v1709
        %v1711 = vpop.f32.mrf.mxu0
        %1712 = vmatprep.mubr.bf16.mxu0 0
        %1713 = vmatmul.mubr.bf16.gmra.mxu0 %v1494
        %v1714 = vpop.f32.mrf.mxu0
        %v1715 = vadd.f32 0.0, %v1714
        %v1716 = vpop.f32.mrf.mxu0
        %v1717 = vpop.f32.mrf.mxu0
        %v1718 = vadd.f32 0.0, %v1717
        %v1719 = vpop.f32.mrf.mxu0
        %1720 = vdwg.mxu0
        %v1721 = vadd.f32 %v1415, %v1595
        %v1722 = vadd.f32 %v1416, %v1598
        %v1723 = vadd.f32 %v1417, %v1603
        %v1724 = vadd.f32 %v1418, %v1606
        %v1725 = vadd.f32 %v1419, %v1611
        %v1726 = vadd.f32 %v1420, %v1614
        %v1727 = vadd.f32 %v1421, %v1619
        %v1728 = vadd.f32 %v1422, %v1622
        %v1729 = vadd.f32 %v1423, %v1627
        %v1730 = vadd.f32 %v1424, %v1630
        %v1731 = vadd.f32 %v1425, %v1635
        %v1732 = vadd.f32 %v1426, %v1638
        %v1733 = vadd.f32 %v1427, %v1643
        %v1734 = vadd.f32 %v1428, %v1646
        %v1735 = vadd.f32 %v1429, %v1651
        %v1736 = vadd.f32 %v1430, %v1654
        %v1737 = vadd.f32 %v1431, %v1659
        %v1738 = vadd.f32 %v1432, %v1662
        %v1739 = vadd.f32 %v1433, %v1667
        %v1740 = vadd.f32 %v1434, %v1670
        %v1741 = vadd.f32 %v1435, %v1675
        %v1742 = vadd.f32 %v1436, %v1678
        %v1743 = vadd.f32 %v1437, %v1683
        %v1744 = vadd.f32 %v1438, %v1686
        %v1745 = vadd.f32 %v1439, %v1691
        %v1746 = vadd.f32 %v1440, %v1694
        %v1747 = vadd.f32 %v1441, %v1699
        %v1748 = vadd.f32 %v1442, %v1702
        %v1749 = vadd.f32 %v1443, %v1707
        %v1750 = vadd.f32 %v1444, %v1710
        %v1751 = vadd.f32 %v1445, %v1715
        %v1752 = vadd.f32 %v1446, %v1718
        %v1753 = vld [vmem:[%s1140 + $0x2] sm:$0xff]
        %v1754 = vld [vmem:[%s1140 + $0xa] sm:$0xff]
        %v1755 = vld [vmem:[%s1140 + $0x1a] sm:$0xff]
        %v1756 = vld [vmem:[%s1140 + $0x22] sm:$0xff]
        %v1757 = vld [vmem:[%s1140 + $0x32] sm:$0xff]
        %v1758 = vld [vmem:[%s1140 + $0x3a] sm:$0xff]
        %v1759 = vld [vmem:[%s1140 + $0x4a] sm:$0xff]
        %v1760 = vld [vmem:[%s1140 + $0x52] sm:$0xff]
        %v1761 = vld [vmem:[%s1140 + $0x62] sm:$0xff]
        %v1762 = vld [vmem:[%s1140 + $0x6a] sm:$0xff]
        %v1763 = vld [vmem:[%s1140 + $0x7a] sm:$0xff]
        %v1764 = vld [vmem:[%s1140 + $0x82] sm:$0xff]
        %v1765 = vld [vmem:[%s1140 + $0x92] sm:$0xff]
        %v1766 = vld [vmem:[%s1140 + $0x9a] sm:$0xff]
        %v1767 = vld [vmem:[%s1140 + $0xaa] sm:$0xff]
        %v1768 = vld [vmem:[%s1140 + $0xb2] sm:$0xff]
        %v1769 = vld [vmem:[%s1140 + $0xc2] sm:$0xff]
        %v1770 = vld [vmem:[%s1140 + $0xca] sm:$0xff]
        %v1771 = vld [vmem:[%s1140 + $0xda] sm:$0xff]
        %v1772 = vld [vmem:[%s1140 + $0xe2] sm:$0xff]
        %v1773 = vld [vmem:[%s1140 + $0xf2] sm:$0xff]
        %v1774 = vld [vmem:[%s1140 + $0xfa] sm:$0xff]
        %v1775 = vld [vmem:[%s1140 + $0x10a] sm:$0xff]
        %v1776 = vld [vmem:[%s1140 + $0x112] sm:$0xff]
        %v1777 = vld [vmem:[%s1140 + $0x122] sm:$0xff]
        %v1778 = vld [vmem:[%s1140 + $0x12a] sm:$0xff]
        %v1779 = vld [vmem:[%s1140 + $0x13a] sm:$0xff]
        %v1780 = vld [vmem:[%s1140 + $0x142] sm:$0xff]
        %v1781 = vld [vmem:[%s1140 + $0x152] sm:$0xff]
        %v1782 = vld [vmem:[%s1140 + $0x15a] sm:$0xff]
        %v1783 = vld [vmem:[%s1140 + $0x16a] sm:$0xff]
        %v1784 = vld [vmem:[%s1140 + $0x172] sm:$0xff]
        %v1785 = vpack.c.bf16 %v1754, %v1753
        %v1786 = vpack.c.bf16 %v1756, %v1755
        %v1787 = vpack.c.bf16 %v1758, %v1757
        %v1788 = vpack.c.bf16 %v1760, %v1759
        %v1789 = vpack.c.bf16 %v1762, %v1761
        %v1790 = vpack.c.bf16 %v1764, %v1763
        %v1791 = vpack.c.bf16 %v1766, %v1765
        %v1792 = vpack.c.bf16 %v1768, %v1767
        %v1793 = vpack.c.bf16 %v1770, %v1769
        %v1794 = vpack.c.bf16 %v1772, %v1771
        %v1795 = vpack.c.bf16 %v1774, %v1773
        %v1796 = vpack.c.bf16 %v1776, %v1775
        %v1797 = vpack.c.bf16 %v1778, %v1777
        %v1798 = vpack.c.bf16 %v1780, %v1779
        %v1799 = vpack.c.bf16 %v1782, %v1781
        %v1800 = vpack.c.bf16 %v1784, %v1783
        %s1801 = scalar_lea.vmem [#allocation4], 320
        %v1802 = vld [vmem:[%s1801] sm:$0xf]
        %v1803 = vld [vmem:[%s1801 + $0x4] sm:$0xf]
        %v1804 = vld [vmem:[%s1801 + $0x8] sm:$0xf]
        %v1805 = vld [vmem:[%s1801 + $0xc] sm:$0xf]
        %v1806 = vld [vmem:[%s1801 + $0x10] sm:$0xf]
        %v1807 = vld [vmem:[%s1801 + $0x14] sm:$0xf]
        %v1808 = vld [vmem:[%s1801 + $0x18] sm:$0xf]
        %v1809 = vld [vmem:[%s1801 + $0x1c] sm:$0xf]
        %v1810 = vld [vmem:[%s1801 + $0x20] sm:$0xf]
        %v1811 = vld [vmem:[%s1801 + $0x24] sm:$0xf]
        %v1812 = vld [vmem:[%s1801 + $0x28] sm:$0xf]
        %v1813 = vld [vmem:[%s1801 + $0x2c] sm:$0xf]
        %v1814 = vld [vmem:[%s1801 + $0x30] sm:$0xf]
        %v1815 = vld [vmem:[%s1801 + $0x34] sm:$0xf]
        %v1816 = vld [vmem:[%s1801 + $0x38] sm:$0xf]
        %v1817 = vld [vmem:[%s1801 + $0x3c] sm:$0xf]
        %v1834 = vunpack.c.l.b16 %v1802
        %v1835 = vunpack.c.l.b16 %v1803
        %v1836 = vunpack.c.l.b16 %v1804
        %v1837 = vunpack.c.l.b16 %v1805
        %v1838 = vunpack.c.l.b16 %v1806
        %v1839 = vunpack.c.l.b16 %v1807
        %v1840 = vunpack.c.l.b16 %v1808
        %v1841 = vunpack.c.l.b16 %v1809
        %v1842 = vunpack.c.l.b16 %v1810
        %v1843 = vunpack.c.l.b16 %v1811
        %v1844 = vunpack.c.l.b16 %v1812
        %v1845 = vunpack.c.l.b16 %v1813
        %v1846 = vunpack.c.l.b16 %v1814
        %v1847 = vunpack.c.l.b16 %v1815
        %v1848 = vunpack.c.l.b16 %v1816
        %v1849 = vunpack.c.l.b16 %v1817
        %v1850 = vpack.c.b16 %v1835, %v1834
        %v1851 = vpack.c.b16 %v1837, %v1836
        %v1852 = vpack.c.b16 %v1839, %v1838
        %v1853 = vpack.c.b16 %v1841, %v1840
        %v1854 = vpack.c.b16 %v1843, %v1842
        %v1855 = vpack.c.b16 %v1845, %v1844
        %v1856 = vpack.c.b16 %v1847, %v1846
        %v1857 = vpack.c.b16 %v1849, %v1848
        %1866 = vmatprep.subr.bf16.mxu0 0
        %1867 = vmatpush1.bf16.msra.mxu0 %v1857
        %1868 = vmatprep.subr.bf16.mxu0 0
        %1869 = vmatpush1.bf16.msra.mxu0 %v1856
        %1870 = vmatprep.subr.bf16.mxu0 0
        %1871 = vmatpush1.bf16.msra.mxu0 %v1855
        %1872 = vmatprep.subr.bf16.mxu0 0
        %1873 = vmatpush1.bf16.msra.mxu0 %v1854
        %1874 = vmatprep.subr.bf16.mxu0 0
        %1875 = vmatpush1.bf16.msra.mxu0 %v1853
        %1876 = vmatprep.subr.bf16.mxu0 0
        %1877 = vmatpush1.bf16.msra.mxu0 %v1852
        %1878 = vmatprep.subr.bf16.mxu0 0
        %1879 = vmatpush1.bf16.msra.mxu0 %v1851
        %1880 = vmatprep.subr.bf16.mxu0 0
        %1881 = vmatpush1.bf16.msra.mxu0 %v1850
        %1882 = vmatprep.subr.bf16.mxu0 0
        %1883 = vmatpush2.bf16.msra.mxu0 0
        %1884 = vmatprep.subr.bf16.mxu0 0
        %1885 = vmatpush2.bf16.msra.mxu0 0
        %1886 = vmatprep.subr.bf16.mxu0 0
        %1887 = vmatpush2.bf16.msra.mxu0 0
        %1888 = vmatprep.subr.bf16.mxu0 0
        %1889 = vmatpush2.bf16.msra.mxu0 0
        %1890 = vmatprep.subr.bf16.mxu0 0
        %1891 = vmatpush2.bf16.msra.mxu0 0
        %1892 = vmatprep.subr.bf16.mxu0 0
        %1893 = vmatpush2.bf16.msra.mxu0 0
        %1894 = vmatprep.subr.bf16.mxu0 0
        %1895 = vmatpush2.bf16.msra.mxu0 0
        %1896 = vmatprep.subr.bf16.mxu0 0
        %1897 = vmatpush2.bf16.msra.mxu0 0
        %1898 = vmatprep.mubr.bf16.mxu0 0
        %1899 = vmatmul.mubr.bf16.gmra.mxu0 %v1785
        %v1900 = vpop.f32.mrf.mxu0
        %v1901 = vadd.f32 0.0, %v1900
        %v1902 = vpop.f32.mrf.mxu0
        %v1903 = vpop.f32.mrf.mxu0
        %v1904 = vadd.f32 0.0, %v1903
        %v1905 = vpop.f32.mrf.mxu0
        %1906 = vmatprep.mubr.bf16.mxu0 0
        %1907 = vmatmul.mubr.bf16.gmra.mxu0 %v1786
        %v1908 = vpop.f32.mrf.mxu0
        %v1909 = vadd.f32 0.0, %v1908
        %v1910 = vpop.f32.mrf.mxu0
        %v1911 = vpop.f32.mrf.mxu0
        %v1912 = vadd.f32 0.0, %v1911
        %v1913 = vpop.f32.mrf.mxu0
        %1914 = vmatprep.mubr.bf16.mxu0 0
        %1915 = vmatmul.mubr.bf16.gmra.mxu0 %v1787
        %v1916 = vpop.f32.mrf.mxu0
        %v1917 = vadd.f32 0.0, %v1916
        %v1918 = vpop.f32.mrf.mxu0
        %v1919 = vpop.f32.mrf.mxu0
        %v1920 = vadd.f32 0.0, %v1919
        %v1921 = vpop.f32.mrf.mxu0
        %1922 = vmatprep.mubr.bf16.mxu0 0
        %1923 = vmatmul.mubr.bf16.gmra.mxu0 %v1788
        %v1924 = vpop.f32.mrf.mxu0
        %v1925 = vadd.f32 0.0, %v1924
        %v1926 = vpop.f32.mrf.mxu0
        %v1927 = vpop.f32.mrf.mxu0
        %v1928 = vadd.f32 0.0, %v1927
        %v1929 = vpop.f32.mrf.mxu0
        %1930 = vmatprep.mubr.bf16.mxu0 0
        %1931 = vmatmul.mubr.bf16.gmra.mxu0 %v1789
        %v1932 = vpop.f32.mrf.mxu0
        %v1933 = vadd.f32 0.0, %v1932
        %v1934 = vpop.f32.mrf.mxu0
        %v1935 = vpop.f32.mrf.mxu0
        %v1936 = vadd.f32 0.0, %v1935
        %v1937 = vpop.f32.mrf.mxu0
        %1938 = vmatprep.mubr.bf16.mxu0 0
        %1939 = vmatmul.mubr.bf16.gmra.mxu0 %v1790
        %v1940 = vpop.f32.mrf.mxu0
        %v1941 = vadd.f32 0.0, %v1940
        %v1942 = vpop.f32.mrf.mxu0
        %v1943 = vpop.f32.mrf.mxu0
        %v1944 = vadd.f32 0.0, %v1943
        %v1945 = vpop.f32.mrf.mxu0
        %1946 = vmatprep.mubr.bf16.mxu0 0
        %1947 = vmatmul.mubr.bf16.gmra.mxu0 %v1791
        %v1948 = vpop.f32.mrf.mxu0
        %v1949 = vadd.f32 0.0, %v1948
        %v1950 = vpop.f32.mrf.mxu0
        %v1951 = vpop.f32.mrf.mxu0
        %v1952 = vadd.f32 0.0, %v1951
        %v1953 = vpop.f32.mrf.mxu0
        %1954 = vmatprep.mubr.bf16.mxu0 0
        %1955 = vmatmul.mubr.bf16.gmra.mxu0 %v1792
        %v1956 = vpop.f32.mrf.mxu0
        %v1957 = vadd.f32 0.0, %v1956
        %v1958 = vpop.f32.mrf.mxu0
        %v1959 = vpop.f32.mrf.mxu0
        %v1960 = vadd.f32 0.0, %v1959
        %v1961 = vpop.f32.mrf.mxu0
        %1962 = vmatprep.mubr.bf16.mxu0 0
        %1963 = vmatmul.mubr.bf16.gmra.mxu0 %v1793
        %v1964 = vpop.f32.mrf.mxu0
        %v1965 = vadd.f32 0.0, %v1964
        %v1966 = vpop.f32.mrf.mxu0
        %v1967 = vpop.f32.mrf.mxu0
        %v1968 = vadd.f32 0.0, %v1967
        %v1969 = vpop.f32.mrf.mxu0
        %1970 = vmatprep.mubr.bf16.mxu0 0
        %1971 = vmatmul.mubr.bf16.gmra.mxu0 %v1794
        %v1972 = vpop.f32.mrf.mxu0
        %v1973 = vadd.f32 0.0, %v1972
        %v1974 = vpop.f32.mrf.mxu0
        %v1975 = vpop.f32.mrf.mxu0
        %v1976 = vadd.f32 0.0, %v1975
        %v1977 = vpop.f32.mrf.mxu0
        %1978 = vmatprep.mubr.bf16.mxu0 0
        %1979 = vmatmul.mubr.bf16.gmra.mxu0 %v1795
        %v1980 = vpop.f32.mrf.mxu0
        %v1981 = vadd.f32 0.0, %v1980
        %v1982 = vpop.f32.mrf.mxu0
        %v1983 = vpop.f32.mrf.mxu0
        %v1984 = vadd.f32 0.0, %v1983
        %v1985 = vpop.f32.mrf.mxu0
        %1986 = vmatprep.mubr.bf16.mxu0 0
        %1987 = vmatmul.mubr.bf16.gmra.mxu0 %v1796
        %v1988 = vpop.f32.mrf.mxu0
        %v1989 = vadd.f32 0.0, %v1988
        %v1990 = vpop.f32.mrf.mxu0
        %v1991 = vpop.f32.mrf.mxu0
        %v1992 = vadd.f32 0.0, %v1991
        %v1993 = vpop.f32.mrf.mxu0
        %1994 = vmatprep.mubr.bf16.mxu0 0
        %1995 = vmatmul.mubr.bf16.gmra.mxu0 %v1797
        %v1996 = vpop.f32.mrf.mxu0
        %v1997 = vadd.f32 0.0, %v1996
        %v1998 = vpop.f32.mrf.mxu0
        %v1999 = vpop.f32.mrf.mxu0
        %v2000 = vadd.f32 0.0, %v1999
        %v2001 = vpop.f32.mrf.mxu0
        %2002 = vmatprep.mubr.bf16.mxu0 0
        %2003 = vmatmul.mubr.bf16.gmra.mxu0 %v1798
        %v2004 = vpop.f32.mrf.mxu0
        %v2005 = vadd.f32 0.0, %v2004
        %v2006 = vpop.f32.mrf.mxu0
        %v2007 = vpop.f32.mrf.mxu0
        %v2008 = vadd.f32 0.0, %v2007
        %v2009 = vpop.f32.mrf.mxu0
        %2010 = vmatprep.mubr.bf16.mxu0 0
        %2011 = vmatmul.mubr.bf16.gmra.mxu0 %v1799
        %v2012 = vpop.f32.mrf.mxu0
        %v2013 = vadd.f32 0.0, %v2012
        %v2014 = vpop.f32.mrf.mxu0
        %v2015 = vpop.f32.mrf.mxu0
        %v2016 = vadd.f32 0.0, %v2015
        %v2017 = vpop.f32.mrf.mxu0
        %2018 = vmatprep.mubr.bf16.mxu0 0
        %2019 = vmatmul.mubr.bf16.gmra.mxu0 %v1800
        %v2020 = vpop.f32.mrf.mxu0
        %v2021 = vadd.f32 0.0, %v2020
        %v2022 = vpop.f32.mrf.mxu0
        %v2023 = vpop.f32.mrf.mxu0
        %v2024 = vadd.f32 0.0, %v2023
        %v2025 = vpop.f32.mrf.mxu0
        %2026 = vdwg.mxu0
        %v2027 = vadd.f32 %v1721, %v1901
        %v2028 = vadd.f32 %v1722, %v1904
        %v2029 = vadd.f32 %v1723, %v1909
        %v2030 = vadd.f32 %v1724, %v1912
        %v2031 = vadd.f32 %v1725, %v1917
        %v2032 = vadd.f32 %v1726, %v1920
        %v2033 = vadd.f32 %v1727, %v1925
        %v2034 = vadd.f32 %v1728, %v1928
        %v2035 = vadd.f32 %v1729, %v1933
        %v2036 = vadd.f32 %v1730, %v1936
        %v2037 = vadd.f32 %v1731, %v1941
        %v2038 = vadd.f32 %v1732, %v1944
        %v2039 = vadd.f32 %v1733, %v1949
        %v2040 = vadd.f32 %v1734, %v1952
        %v2041 = vadd.f32 %v1735, %v1957
        %v2042 = vadd.f32 %v1736, %v1960
        %v2043 = vadd.f32 %v1737, %v1965
        %v2044 = vadd.f32 %v1738, %v1968
        %v2045 = vadd.f32 %v1739, %v1973
        %v2046 = vadd.f32 %v1740, %v1976
        %v2047 = vadd.f32 %v1741, %v1981
        %v2048 = vadd.f32 %v1742, %v1984
        %v2049 = vadd.f32 %v1743, %v1989
        %v2050 = vadd.f32 %v1744, %v1992
        %v2051 = vadd.f32 %v1745, %v1997
        %v2052 = vadd.f32 %v1746, %v2000
        %v2053 = vadd.f32 %v1747, %v2005
        %v2054 = vadd.f32 %v1748, %v2008
        %v2055 = vadd.f32 %v1749, %v2013
        %v2056 = vadd.f32 %v1750, %v2016
        %v2057 = vadd.f32 %v1751, %v2021
        %v2058 = vadd.f32 %v1752, %v2024
        %s2059 = sadd.s32 %s211, 2
        %s2060 = smul.u32 %s2059, 24
        %s2061 = scalar_lea.vmem [#allocation2], %s2060
        %v2062 = vld [vmem:[%s2061] sm:$0xff]
        %v2063 = vld [vmem:[%s2061 + $0x8] sm:$0xff]
        %v2064 = vld [vmem:[%s2061 + $0x18] sm:$0xff]
        %v2065 = vld [vmem:[%s2061 + $0x20] sm:$0xff]
        %v2066 = vld [vmem:[%s2061 + $0x30] sm:$0xff]
        %v2067 = vld [vmem:[%s2061 + $0x38] sm:$0xff]
        %v2068 = vld [vmem:[%s2061 + $0x48] sm:$0xff]
        %v2069 = vld [vmem:[%s2061 + $0x50] sm:$0xff]
        %v2070 = vld [vmem:[%s2061 + $0x60] sm:$0xff]
        %v2071 = vld [vmem:[%s2061 + $0x68] sm:$0xff]
        %v2072 = vld [vmem:[%s2061 + $0x78] sm:$0xff]
        %v2073 = vld [vmem:[%s2061 + $0x80] sm:$0xff]
        %v2074 = vld [vmem:[%s2061 + $0x90] sm:$0xff]
        %v2075 = vld [vmem:[%s2061 + $0x98] sm:$0xff]
        %v2076 = vld [vmem:[%s2061 + $0xa8] sm:$0xff]
        %v2077 = vld [vmem:[%s2061 + $0xb0] sm:$0xff]
        %v2078 = vld [vmem:[%s2061 + $0xc0] sm:$0xff]
        %v2079 = vld [vmem:[%s2061 + $0xc8] sm:$0xff]
        %v2080 = vld [vmem:[%s2061 + $0xd8] sm:$0xff]
        %v2081 = vld [vmem:[%s2061 + $0xe0] sm:$0xff]
        %v2082 = vld [vmem:[%s2061 + $0xf0] sm:$0xff]
        %v2083 = vld [vmem:[%s2061 + $0xf8] sm:$0xff]
        %v2084 = vld [vmem:[%s2061 + $0x108] sm:$0xff]
        %v2085 = vld [vmem:[%s2061 + $0x110] sm:$0xff]
        %v2086 = vld [vmem:[%s2061 + $0x120] sm:$0xff]
        %v2087 = vld [vmem:[%s2061 + $0x128] sm:$0xff]
        %v2088 = vld [vmem:[%s2061 + $0x138] sm:$0xff]
        %v2089 = vld [vmem:[%s2061 + $0x140] sm:$0xff]
        %v2090 = vld [vmem:[%s2061 + $0x150] sm:$0xff]
        %v2091 = vld [vmem:[%s2061 + $0x158] sm:$0xff]
        %v2092 = vld [vmem:[%s2061 + $0x168] sm:$0xff]
        %v2093 = vld [vmem:[%s2061 + $0x170] sm:$0xff]
        %v2094 = vpack.c.bf16 %v2063, %v2062
        %v2095 = vpack.c.bf16 %v2065, %v2064
        %v2096 = vpack.c.bf16 %v2067, %v2066
        %v2097 = vpack.c.bf16 %v2069, %v2068
        %v2098 = vpack.c.bf16 %v2071, %v2070
        %v2099 = vpack.c.bf16 %v2073, %v2072
        %v2100 = vpack.c.bf16 %v2075, %v2074
        %v2101 = vpack.c.bf16 %v2077, %v2076
        %v2102 = vpack.c.bf16 %v2079, %v2078
        %v2103 = vpack.c.bf16 %v2081, %v2080
        %v2104 = vpack.c.bf16 %v2083, %v2082
        %v2105 = vpack.c.bf16 %v2085, %v2084
        %v2106 = vpack.c.bf16 %v2087, %v2086
        %v2107 = vpack.c.bf16 %v2089, %v2088
        %v2108 = vpack.c.bf16 %v2091, %v2090
        %v2109 = vpack.c.bf16 %v2093, %v2092
        %s2110 = scalar_lea.vmem [#allocation4], 384
        %v2111 = vld [vmem:[%s2110] sm:$0xf]
        %v2112 = vld [vmem:[%s2110 + $0x4] sm:$0xf]
        %v2113 = vld [vmem:[%s2110 + $0x8] sm:$0xf]
        %v2114 = vld [vmem:[%s2110 + $0xc] sm:$0xf]
        %v2115 = vld [vmem:[%s2110 + $0x10] sm:$0xf]
        %v2116 = vld [vmem:[%s2110 + $0x14] sm:$0xf]
        %v2117 = vld [vmem:[%s2110 + $0x18] sm:$0xf]
        %v2118 = vld [vmem:[%s2110 + $0x1c] sm:$0xf]
        %v2119 = vld [vmem:[%s2110 + $0x20] sm:$0xf]
        %v2120 = vld [vmem:[%s2110 + $0x24] sm:$0xf]
        %v2121 = vld [vmem:[%s2110 + $0x28] sm:$0xf]
        %v2122 = vld [vmem:[%s2110 + $0x2c] sm:$0xf]
        %v2123 = vld [vmem:[%s2110 + $0x30] sm:$0xf]
        %v2124 = vld [vmem:[%s2110 + $0x34] sm:$0xf]
        %v2125 = vld [vmem:[%s2110 + $0x38] sm:$0xf]
        %v2126 = vld [vmem:[%s2110 + $0x3c] sm:$0xf]
        %v2143 = vunpack.c.l.b16 %v2111
        %v2144 = vunpack.c.l.b16 %v2112
        %v2145 = vunpack.c.l.b16 %v2113
        %v2146 = vunpack.c.l.b16 %v2114
        %v2147 = vunpack.c.l.b16 %v2115
        %v2148 = vunpack.c.l.b16 %v2116
        %v2149 = vunpack.c.l.b16 %v2117
        %v2150 = vunpack.c.l.b16 %v2118
        %v2151 = vunpack.c.l.b16 %v2119
        %v2152 = vunpack.c.l.b16 %v2120
        %v2153 = vunpack.c.l.b16 %v2121
        %v2154 = vunpack.c.l.b16 %v2122
        %v2155 = vunpack.c.l.b16 %v2123
        %v2156 = vunpack.c.l.b16 %v2124
        %v2157 = vunpack.c.l.b16 %v2125
        %v2158 = vunpack.c.l.b16 %v2126
        %v2159 = vpack.c.b16 %v2144, %v2143
        %v2160 = vpack.c.b16 %v2146, %v2145
        %v2161 = vpack.c.b16 %v2148, %v2147
        %v2162 = vpack.c.b16 %v2150, %v2149
        %v2163 = vpack.c.b16 %v2152, %v2151
        %v2164 = vpack.c.b16 %v2154, %v2153
        %v2165 = vpack.c.b16 %v2156, %v2155
        %v2166 = vpack.c.b16 %v2158, %v2157
        %2175 = vmatprep.subr.bf16.mxu0 0
        %2176 = vmatpush1.bf16.msra.mxu0 %v2166
        %2177 = vmatprep.subr.bf16.mxu0 0
        %2178 = vmatpush1.bf16.msra.mxu0 %v2165
        %2179 = vmatprep.subr.bf16.mxu0 0
        %2180 = vmatpush1.bf16.msra.mxu0 %v2164
        %2181 = vmatprep.subr.bf16.mxu0 0
        %2182 = vmatpush1.bf16.msra.mxu0 %v2163
        %2183 = vmatprep.subr.bf16.mxu0 0
        %2184 = vmatpush1.bf16.msra.mxu0 %v2162
        %2185 = vmatprep.subr.bf16.mxu0 0
        %2186 = vmatpush1.bf16.msra.mxu0 %v2161
        %2187 = vmatprep.subr.bf16.mxu0 0
        %2188 = vmatpush1.bf16.msra.mxu0 %v2160
        %2189 = vmatprep.subr.bf16.mxu0 0
        %2190 = vmatpush1.bf16.msra.mxu0 %v2159
        %2191 = vmatprep.subr.bf16.mxu0 0
        %2192 = vmatpush2.bf16.msra.mxu0 0
        %2193 = vmatprep.subr.bf16.mxu0 0
        %2194 = vmatpush2.bf16.msra.mxu0 0
        %2195 = vmatprep.subr.bf16.mxu0 0
        %2196 = vmatpush2.bf16.msra.mxu0 0
        %2197 = vmatprep.subr.bf16.mxu0 0
        %2198 = vmatpush2.bf16.msra.mxu0 0
        %2199 = vmatprep.subr.bf16.mxu0 0
        %2200 = vmatpush2.bf16.msra.mxu0 0
        %2201 = vmatprep.subr.bf16.mxu0 0
        %2202 = vmatpush2.bf16.msra.mxu0 0
        %2203 = vmatprep.subr.bf16.mxu0 0
        %2204 = vmatpush2.bf16.msra.mxu0 0
        %2205 = vmatprep.subr.bf16.mxu0 0
        %2206 = vmatpush2.bf16.msra.mxu0 0
        %2207 = vmatprep.mubr.bf16.mxu0 0
        %2208 = vmatmul.mubr.bf16.gmra.mxu0 %v2094
        %v2209 = vpop.f32.mrf.mxu0
        %v2210 = vadd.f32 0.0, %v2209
        %v2211 = vpop.f32.mrf.mxu0
        %v2212 = vpop.f32.mrf.mxu0
        %v2213 = vadd.f32 0.0, %v2212
        %v2214 = vpop.f32.mrf.mxu0
        %2215 = vmatprep.mubr.bf16.mxu0 0
        %2216 = vmatmul.mubr.bf16.gmra.mxu0 %v2095
        %v2217 = vpop.f32.mrf.mxu0
        %v2218 = vadd.f32 0.0, %v2217
        %v2219 = vpop.f32.mrf.mxu0
        %v2220 = vpop.f32.mrf.mxu0
        %v2221 = vadd.f32 0.0, %v2220
        %v2222 = vpop.f32.mrf.mxu0
        %2223 = vmatprep.mubr.bf16.mxu0 0
        %2224 = vmatmul.mubr.bf16.gmra.mxu0 %v2096
        %v2225 = vpop.f32.mrf.mxu0
        %v2226 = vadd.f32 0.0, %v2225
        %v2227 = vpop.f32.mrf.mxu0
        %v2228 = vpop.f32.mrf.mxu0
        %v2229 = vadd.f32 0.0, %v2228
        %v2230 = vpop.f32.mrf.mxu0
        %2231 = vmatprep.mubr.bf16.mxu0 0
        %2232 = vmatmul.mubr.bf16.gmra.mxu0 %v2097
        %v2233 = vpop.f32.mrf.mxu0
        %v2234 = vadd.f32 0.0, %v2233
        %v2235 = vpop.f32.mrf.mxu0
        %v2236 = vpop.f32.mrf.mxu0
        %v2237 = vadd.f32 0.0, %v2236
        %v2238 = vpop.f32.mrf.mxu0
        %2239 = vmatprep.mubr.bf16.mxu0 0
        %2240 = vmatmul.mubr.bf16.gmra.mxu0 %v2098
        %v2241 = vpop.f32.mrf.mxu0
        %v2242 = vadd.f32 0.0, %v2241
        %v2243 = vpop.f32.mrf.mxu0
        %v2244 = vpop.f32.mrf.mxu0
        %v2245 = vadd.f32 0.0, %v2244
        %v2246 = vpop.f32.mrf.mxu0
        %2247 = vmatprep.mubr.bf16.mxu0 0
        %2248 = vmatmul.mubr.bf16.gmra.mxu0 %v2099
        %v2249 = vpop.f32.mrf.mxu0
        %v2250 = vadd.f32 0.0, %v2249
        %v2251 = vpop.f32.mrf.mxu0
        %v2252 = vpop.f32.mrf.mxu0
        %v2253 = vadd.f32 0.0, %v2252
        %v2254 = vpop.f32.mrf.mxu0
        %2255 = vmatprep.mubr.bf16.mxu0 0
        %2256 = vmatmul.mubr.bf16.gmra.mxu0 %v2100
        %v2257 = vpop.f32.mrf.mxu0
        %v2258 = vadd.f32 0.0, %v2257
        %v2259 = vpop.f32.mrf.mxu0
        %v2260 = vpop.f32.mrf.mxu0
        %v2261 = vadd.f32 0.0, %v2260
        %v2262 = vpop.f32.mrf.mxu0
        %2263 = vmatprep.mubr.bf16.mxu0 0
        %2264 = vmatmul.mubr.bf16.gmra.mxu0 %v2101
        %v2265 = vpop.f32.mrf.mxu0
        %v2266 = vadd.f32 0.0, %v2265
        %v2267 = vpop.f32.mrf.mxu0
        %v2268 = vpop.f32.mrf.mxu0
        %v2269 = vadd.f32 0.0, %v2268
        %v2270 = vpop.f32.mrf.mxu0
        %2271 = vmatprep.mubr.bf16.mxu0 0
        %2272 = vmatmul.mubr.bf16.gmra.mxu0 %v2102
        %v2273 = vpop.f32.mrf.mxu0
        %v2274 = vadd.f32 0.0, %v2273
        %v2275 = vpop.f32.mrf.mxu0
        %v2276 = vpop.f32.mrf.mxu0
        %v2277 = vadd.f32 0.0, %v2276
        %v2278 = vpop.f32.mrf.mxu0
        %2279 = vmatprep.mubr.bf16.mxu0 0
        %2280 = vmatmul.mubr.bf16.gmra.mxu0 %v2103
        %v2281 = vpop.f32.mrf.mxu0
        %v2282 = vadd.f32 0.0, %v2281
        %v2283 = vpop.f32.mrf.mxu0
        %v2284 = vpop.f32.mrf.mxu0
        %v2285 = vadd.f32 0.0, %v2284
        %v2286 = vpop.f32.mrf.mxu0
        %2287 = vmatprep.mubr.bf16.mxu0 0
        %2288 = vmatmul.mubr.bf16.gmra.mxu0 %v2104
        %v2289 = vpop.f32.mrf.mxu0
        %v2290 = vadd.f32 0.0, %v2289
        %v2291 = vpop.f32.mrf.mxu0
        %v2292 = vpop.f32.mrf.mxu0
        %v2293 = vadd.f32 0.0, %v2292
        %v2294 = vpop.f32.mrf.mxu0
        %2295 = vmatprep.mubr.bf16.mxu0 0
        %2296 = vmatmul.mubr.bf16.gmra.mxu0 %v2105
        %v2297 = vpop.f32.mrf.mxu0
        %v2298 = vadd.f32 0.0, %v2297
        %v2299 = vpop.f32.mrf.mxu0
        %v2300 = vpop.f32.mrf.mxu0
        %v2301 = vadd.f32 0.0, %v2300
        %v2302 = vpop.f32.mrf.mxu0
        %2303 = vmatprep.mubr.bf16.mxu0 0
        %2304 = vmatmul.mubr.bf16.gmra.mxu0 %v2106
        %v2305 = vpop.f32.mrf.mxu0
        %v2306 = vadd.f32 0.0, %v2305
        %v2307 = vpop.f32.mrf.mxu0
        %v2308 = vpop.f32.mrf.mxu0
        %v2309 = vadd.f32 0.0, %v2308
        %v2310 = vpop.f32.mrf.mxu0
        %2311 = vmatprep.mubr.bf16.mxu0 0
        %2312 = vmatmul.mubr.bf16.gmra.mxu0 %v2107
        %v2313 = vpop.f32.mrf.mxu0
        %v2314 = vadd.f32 0.0, %v2313
        %v2315 = vpop.f32.mrf.mxu0
        %v2316 = vpop.f32.mrf.mxu0
        %v2317 = vadd.f32 0.0, %v2316
        %v2318 = vpop.f32.mrf.mxu0
        %2319 = vmatprep.mubr.bf16.mxu0 0
        %2320 = vmatmul.mubr.bf16.gmra.mxu0 %v2108
        %v2321 = vpop.f32.mrf.mxu0
        %v2322 = vadd.f32 0.0, %v2321
        %v2323 = vpop.f32.mrf.mxu0
        %v2324 = vpop.f32.mrf.mxu0
        %v2325 = vadd.f32 0.0, %v2324
        %v2326 = vpop.f32.mrf.mxu0
        %2327 = vmatprep.mubr.bf16.mxu0 0
        %2328 = vmatmul.mubr.bf16.gmra.mxu0 %v2109
        %v2329 = vpop.f32.mrf.mxu0
        %v2330 = vadd.f32 0.0, %v2329
        %v2331 = vpop.f32.mrf.mxu0
        %v2332 = vpop.f32.mrf.mxu0
        %v2333 = vadd.f32 0.0, %v2332
        %v2334 = vpop.f32.mrf.mxu0
        %2335 = vdwg.mxu0
        %v2336 = vadd.f32 %v2027, %v2210
        %v2337 = vadd.f32 %v2028, %v2213
        %v2338 = vadd.f32 %v2029, %v2218
        %v2339 = vadd.f32 %v2030, %v2221
        %v2340 = vadd.f32 %v2031, %v2226
        %v2341 = vadd.f32 %v2032, %v2229
        %v2342 = vadd.f32 %v2033, %v2234
        %v2343 = vadd.f32 %v2034, %v2237
        %v2344 = vadd.f32 %v2035, %v2242
        %v2345 = vadd.f32 %v2036, %v2245
        %v2346 = vadd.f32 %v2037, %v2250
        %v2347 = vadd.f32 %v2038, %v2253
        %v2348 = vadd.f32 %v2039, %v2258
        %v2349 = vadd.f32 %v2040, %v2261
        %v2350 = vadd.f32 %v2041, %v2266
        %v2351 = vadd.f32 %v2042, %v2269
        %v2352 = vadd.f32 %v2043, %v2274
        %v2353 = vadd.f32 %v2044, %v2277
        %v2354 = vadd.f32 %v2045, %v2282
        %v2355 = vadd.f32 %v2046, %v2285
        %v2356 = vadd.f32 %v2047, %v2290
        %v2357 = vadd.f32 %v2048, %v2293
        %v2358 = vadd.f32 %v2049, %v2298
        %v2359 = vadd.f32 %v2050, %v2301
        %v2360 = vadd.f32 %v2051, %v2306
        %v2361 = vadd.f32 %v2052, %v2309
        %v2362 = vadd.f32 %v2053, %v2314
        %v2363 = vadd.f32 %v2054, %v2317
        %v2364 = vadd.f32 %v2055, %v2322
        %v2365 = vadd.f32 %v2056, %v2325
        %v2366 = vadd.f32 %v2057, %v2330
        %v2367 = vadd.f32 %v2058, %v2333
        %v2368 = vld [vmem:[%s2061 + $0x1] sm:$0xff]
        %v2369 = vld [vmem:[%s2061 + $0x9] sm:$0xff]
        %v2370 = vld [vmem:[%s2061 + $0x19] sm:$0xff]
        %v2371 = vld [vmem:[%s2061 + $0x21] sm:$0xff]
        %v2372 = vld [vmem:[%s2061 + $0x31] sm:$0xff]
        %v2373 = vld [vmem:[%s2061 + $0x39] sm:$0xff]
        %v2374 = vld [vmem:[%s2061 + $0x49] sm:$0xff]
        %v2375 = vld [vmem:[%s2061 + $0x51] sm:$0xff]
        %v2376 = vld [vmem:[%s2061 + $0x61] sm:$0xff]
        %v2377 = vld [vmem:[%s2061 + $0x69] sm:$0xff]
        %v2378 = vld [vmem:[%s2061 + $0x79] sm:$0xff]
        %v2379 = vld [vmem:[%s2061 + $0x81] sm:$0xff]
        %v2380 = vld [vmem:[%s2061 + $0x91] sm:$0xff]
        %v2381 = vld [vmem:[%s2061 + $0x99] sm:$0xff]
        %v2382 = vld [vmem:[%s2061 + $0xa9] sm:$0xff]
        %v2383 = vld [vmem:[%s2061 + $0xb1] sm:$0xff]
        %v2384 = vld [vmem:[%s2061 + $0xc1] sm:$0xff]
        %v2385 = vld [vmem:[%s2061 + $0xc9] sm:$0xff]
        %v2386 = vld [vmem:[%s2061 + $0xd9] sm:$0xff]
        %v2387 = vld [vmem:[%s2061 + $0xe1] sm:$0xff]
        %v2388 = vld [vmem:[%s2061 + $0xf1] sm:$0xff]
        %v2389 = vld [vmem:[%s2061 + $0xf9] sm:$0xff]
        %v2390 = vld [vmem:[%s2061 + $0x109] sm:$0xff]
        %v2391 = vld [vmem:[%s2061 + $0x111] sm:$0xff]
        %v2392 = vld [vmem:[%s2061 + $0x121] sm:$0xff]
        %v2393 = vld [vmem:[%s2061 + $0x129] sm:$0xff]
        %v2394 = vld [vmem:[%s2061 + $0x139] sm:$0xff]
        %v2395 = vld [vmem:[%s2061 + $0x141] sm:$0xff]
        %v2396 = vld [vmem:[%s2061 + $0x151] sm:$0xff]
        %v2397 = vld [vmem:[%s2061 + $0x159] sm:$0xff]
        %v2398 = vld [vmem:[%s2061 + $0x169] sm:$0xff]
        %v2399 = vld [vmem:[%s2061 + $0x171] sm:$0xff]
        %v2400 = vpack.c.bf16 %v2369, %v2368
        %v2401 = vpack.c.bf16 %v2371, %v2370
        %v2402 = vpack.c.bf16 %v2373, %v2372
        %v2403 = vpack.c.bf16 %v2375, %v2374
        %v2404 = vpack.c.bf16 %v2377, %v2376
        %v2405 = vpack.c.bf16 %v2379, %v2378
        %v2406 = vpack.c.bf16 %v2381, %v2380
        %v2407 = vpack.c.bf16 %v2383, %v2382
        %v2408 = vpack.c.bf16 %v2385, %v2384
        %v2409 = vpack.c.bf16 %v2387, %v2386
        %v2410 = vpack.c.bf16 %v2389, %v2388
        %v2411 = vpack.c.bf16 %v2391, %v2390
        %v2412 = vpack.c.bf16 %v2393, %v2392
        %v2413 = vpack.c.bf16 %v2395, %v2394
        %v2414 = vpack.c.bf16 %v2397, %v2396
        %v2415 = vpack.c.bf16 %v2399, %v2398
        %s2416 = scalar_lea.vmem [#allocation4], 448
        %v2417 = vld [vmem:[%s2416] sm:$0xf]
        %v2418 = vld [vmem:[%s2416 + $0x4] sm:$0xf]
        %v2419 = vld [vmem:[%s2416 + $0x8] sm:$0xf]
        %v2420 = vld [vmem:[%s2416 + $0xc] sm:$0xf]
        %v2421 = vld [vmem:[%s2416 + $0x10] sm:$0xf]
        %v2422 = vld [vmem:[%s2416 + $0x14] sm:$0xf]
        %v2423 = vld [vmem:[%s2416 + $0x18] sm:$0xf]
        %v2424 = vld [vmem:[%s2416 + $0x1c] sm:$0xf]
        %v2425 = vld [vmem:[%s2416 + $0x20] sm:$0xf]
        %v2426 = vld [vmem:[%s2416 + $0x24] sm:$0xf]
        %v2427 = vld [vmem:[%s2416 + $0x28] sm:$0xf]
        %v2428 = vld [vmem:[%s2416 + $0x2c] sm:$0xf]
        %v2429 = vld [vmem:[%s2416 + $0x30] sm:$0xf]
        %v2430 = vld [vmem:[%s2416 + $0x34] sm:$0xf]
        %v2431 = vld [vmem:[%s2416 + $0x38] sm:$0xf]
        %v2432 = vld [vmem:[%s2416 + $0x3c] sm:$0xf]
        %v2449 = vunpack.c.l.b16 %v2417
        %v2450 = vunpack.c.l.b16 %v2418
        %v2451 = vunpack.c.l.b16 %v2419
        %v2452 = vunpack.c.l.b16 %v2420
        %v2453 = vunpack.c.l.b16 %v2421
        %v2454 = vunpack.c.l.b16 %v2422
        %v2455 = vunpack.c.l.b16 %v2423
        %v2456 = vunpack.c.l.b16 %v2424
        %v2457 = vunpack.c.l.b16 %v2425
        %v2458 = vunpack.c.l.b16 %v2426
        %v2459 = vunpack.c.l.b16 %v2427
        %v2460 = vunpack.c.l.b16 %v2428
        %v2461 = vunpack.c.l.b16 %v2429
        %v2462 = vunpack.c.l.b16 %v2430
        %v2463 = vunpack.c.l.b16 %v2431
        %v2464 = vunpack.c.l.b16 %v2432
        %v2465 = vpack.c.b16 %v2450, %v2449
        %v2466 = vpack.c.b16 %v2452, %v2451
        %v2467 = vpack.c.b16 %v2454, %v2453
        %v2468 = vpack.c.b16 %v2456, %v2455
        %v2469 = vpack.c.b16 %v2458, %v2457
        %v2470 = vpack.c.b16 %v2460, %v2459
        %v2471 = vpack.c.b16 %v2462, %v2461
        %v2472 = vpack.c.b16 %v2464, %v2463
        %2481 = vmatprep.subr.bf16.mxu0 0
        %2482 = vmatpush1.bf16.msra.mxu0 %v2472
        %2483 = vmatprep.subr.bf16.mxu0 0
        %2484 = vmatpush1.bf16.msra.mxu0 %v2471
        %2485 = vmatprep.subr.bf16.mxu0 0
        %2486 = vmatpush1.bf16.msra.mxu0 %v2470
        %2487 = vmatprep.subr.bf16.mxu0 0
        %2488 = vmatpush1.bf16.msra.mxu0 %v2469
        %2489 = vmatprep.subr.bf16.mxu0 0
        %2490 = vmatpush1.bf16.msra.mxu0 %v2468
        %2491 = vmatprep.subr.bf16.mxu0 0
        %2492 = vmatpush1.bf16.msra.mxu0 %v2467
        %2493 = vmatprep.subr.bf16.mxu0 0
        %2494 = vmatpush1.bf16.msra.mxu0 %v2466
        %2495 = vmatprep.subr.bf16.mxu0 0
        %2496 = vmatpush1.bf16.msra.mxu0 %v2465
        %2497 = vmatprep.subr.bf16.mxu0 0
        %2498 = vmatpush2.bf16.msra.mxu0 0
        %2499 = vmatprep.subr.bf16.mxu0 0
        %2500 = vmatpush2.bf16.msra.mxu0 0
        %2501 = vmatprep.subr.bf16.mxu0 0
        %2502 = vmatpush2.bf16.msra.mxu0 0
        %2503 = vmatprep.subr.bf16.mxu0 0
        %2504 = vmatpush2.bf16.msra.mxu0 0
        %2505 = vmatprep.subr.bf16.mxu0 0
        %2506 = vmatpush2.bf16.msra.mxu0 0
        %2507 = vmatprep.subr.bf16.mxu0 0
        %2508 = vmatpush2.bf16.msra.mxu0 0
        %2509 = vmatprep.subr.bf16.mxu0 0
        %2510 = vmatpush2.bf16.msra.mxu0 0
        %2511 = vmatprep.subr.bf16.mxu0 0
        %2512 = vmatpush2.bf16.msra.mxu0 0
        %2513 = vmatprep.mubr.bf16.mxu0 0
        %2514 = vmatmul.mubr.bf16.gmra.mxu0 %v2400
        %v2515 = vpop.f32.mrf.mxu0
        %v2516 = vadd.f32 0.0, %v2515
        %v2517 = vpop.f32.mrf.mxu0
        %v2518 = vpop.f32.mrf.mxu0
        %v2519 = vadd.f32 0.0, %v2518
        %v2520 = vpop.f32.mrf.mxu0
        %2521 = vmatprep.mubr.bf16.mxu0 0
        %2522 = vmatmul.mubr.bf16.gmra.mxu0 %v2401
        %v2523 = vpop.f32.mrf.mxu0
        %v2524 = vadd.f32 0.0, %v2523
        %v2525 = vpop.f32.mrf.mxu0
        %v2526 = vpop.f32.mrf.mxu0
        %v2527 = vadd.f32 0.0, %v2526
        %v2528 = vpop.f32.mrf.mxu0
        %2529 = vmatprep.mubr.bf16.mxu0 0
        %2530 = vmatmul.mubr.bf16.gmra.mxu0 %v2402
        %v2531 = vpop.f32.mrf.mxu0
        %v2532 = vadd.f32 0.0, %v2531
        %v2533 = vpop.f32.mrf.mxu0
        %v2534 = vpop.f32.mrf.mxu0
        %v2535 = vadd.f32 0.0, %v2534
        %v2536 = vpop.f32.mrf.mxu0
        %2537 = vmatprep.mubr.bf16.mxu0 0
        %2538 = vmatmul.mubr.bf16.gmra.mxu0 %v2403
        %v2539 = vpop.f32.mrf.mxu0
        %v2540 = vadd.f32 0.0, %v2539
        %v2541 = vpop.f32.mrf.mxu0
        %v2542 = vpop.f32.mrf.mxu0
        %v2543 = vadd.f32 0.0, %v2542
        %v2544 = vpop.f32.mrf.mxu0
        %2545 = vmatprep.mubr.bf16.mxu0 0
        %2546 = vmatmul.mubr.bf16.gmra.mxu0 %v2404
        %v2547 = vpop.f32.mrf.mxu0
        %v2548 = vadd.f32 0.0, %v2547
        %v2549 = vpop.f32.mrf.mxu0
        %v2550 = vpop.f32.mrf.mxu0
        %v2551 = vadd.f32 0.0, %v2550
        %v2552 = vpop.f32.mrf.mxu0
        %2553 = vmatprep.mubr.bf16.mxu0 0
        %2554 = vmatmul.mubr.bf16.gmra.mxu0 %v2405
        %v2555 = vpop.f32.mrf.mxu0
        %v2556 = vadd.f32 0.0, %v2555
        %v2557 = vpop.f32.mrf.mxu0
        %v2558 = vpop.f32.mrf.mxu0
        %v2559 = vadd.f32 0.0, %v2558
        %v2560 = vpop.f32.mrf.mxu0
        %2561 = vmatprep.mubr.bf16.mxu0 0
        %2562 = vmatmul.mubr.bf16.gmra.mxu0 %v2406
        %v2563 = vpop.f32.mrf.mxu0
        %v2564 = vadd.f32 0.0, %v2563
        %v2565 = vpop.f32.mrf.mxu0
        %v2566 = vpop.f32.mrf.mxu0
        %v2567 = vadd.f32 0.0, %v2566
        %v2568 = vpop.f32.mrf.mxu0
        %2569 = vmatprep.mubr.bf16.mxu0 0
        %2570 = vmatmul.mubr.bf16.gmra.mxu0 %v2407
        %v2571 = vpop.f32.mrf.mxu0
        %v2572 = vadd.f32 0.0, %v2571
        %v2573 = vpop.f32.mrf.mxu0
        %v2574 = vpop.f32.mrf.mxu0
        %v2575 = vadd.f32 0.0, %v2574
        %v2576 = vpop.f32.mrf.mxu0
        %2577 = vmatprep.mubr.bf16.mxu0 0
        %2578 = vmatmul.mubr.bf16.gmra.mxu0 %v2408
        %v2579 = vpop.f32.mrf.mxu0
        %v2580 = vadd.f32 0.0, %v2579
        %v2581 = vpop.f32.mrf.mxu0
        %v2582 = vpop.f32.mrf.mxu0
        %v2583 = vadd.f32 0.0, %v2582
        %v2584 = vpop.f32.mrf.mxu0
        %2585 = vmatprep.mubr.bf16.mxu0 0
        %2586 = vmatmul.mubr.bf16.gmra.mxu0 %v2409
        %v2587 = vpop.f32.mrf.mxu0
        %v2588 = vadd.f32 0.0, %v2587
        %v2589 = vpop.f32.mrf.mxu0
        %v2590 = vpop.f32.mrf.mxu0
        %v2591 = vadd.f32 0.0, %v2590
        %v2592 = vpop.f32.mrf.mxu0
        %2593 = vmatprep.mubr.bf16.mxu0 0
        %2594 = vmatmul.mubr.bf16.gmra.mxu0 %v2410
        %v2595 = vpop.f32.mrf.mxu0
        %v2596 = vadd.f32 0.0, %v2595
        %v2597 = vpop.f32.mrf.mxu0
        %v2598 = vpop.f32.mrf.mxu0
        %v2599 = vadd.f32 0.0, %v2598
        %v2600 = vpop.f32.mrf.mxu0
        %2601 = vmatprep.mubr.bf16.mxu0 0
        %2602 = vmatmul.mubr.bf16.gmra.mxu0 %v2411
        %v2603 = vpop.f32.mrf.mxu0
        %v2604 = vadd.f32 0.0, %v2603
        %v2605 = vpop.f32.mrf.mxu0
        %v2606 = vpop.f32.mrf.mxu0
        %v2607 = vadd.f32 0.0, %v2606
        %v2608 = vpop.f32.mrf.mxu0
        %2609 = vmatprep.mubr.bf16.mxu0 0
        %2610 = vmatmul.mubr.bf16.gmra.mxu0 %v2412
        %v2611 = vpop.f32.mrf.mxu0
        %v2612 = vadd.f32 0.0, %v2611
        %v2613 = vpop.f32.mrf.mxu0
        %v2614 = vpop.f32.mrf.mxu0
        %v2615 = vadd.f32 0.0, %v2614
        %v2616 = vpop.f32.mrf.mxu0
        %2617 = vmatprep.mubr.bf16.mxu0 0
        %2618 = vmatmul.mubr.bf16.gmra.mxu0 %v2413
        %v2619 = vpop.f32.mrf.mxu0
        %v2620 = vadd.f32 0.0, %v2619
        %v2621 = vpop.f32.mrf.mxu0
        %v2622 = vpop.f32.mrf.mxu0
        %v2623 = vadd.f32 0.0, %v2622
        %v2624 = vpop.f32.mrf.mxu0
        %2625 = vmatprep.mubr.bf16.mxu0 0
        %2626 = vmatmul.mubr.bf16.gmra.mxu0 %v2414
        %v2627 = vpop.f32.mrf.mxu0
        %v2628 = vadd.f32 0.0, %v2627
        %v2629 = vpop.f32.mrf.mxu0
        %v2630 = vpop.f32.mrf.mxu0
        %v2631 = vadd.f32 0.0, %v2630
        %v2632 = vpop.f32.mrf.mxu0
        %2633 = vmatprep.mubr.bf16.mxu0 0
        %2634 = vmatmul.mubr.bf16.gmra.mxu0 %v2415
        %v2635 = vpop.f32.mrf.mxu0
        %v2636 = vadd.f32 0.0, %v2635
        %v2637 = vpop.f32.mrf.mxu0
        %v2638 = vpop.f32.mrf.mxu0
        %v2639 = vadd.f32 0.0, %v2638
        %v2640 = vpop.f32.mrf.mxu0
        %2641 = vdwg.mxu0
        %v2642 = vadd.f32 %v2336, %v2516
        %v2643 = vadd.f32 %v2337, %v2519
        %v2644 = vadd.f32 %v2338, %v2524
        %v2645 = vadd.f32 %v2339, %v2527
        %v2646 = vadd.f32 %v2340, %v2532
        %v2647 = vadd.f32 %v2341, %v2535
        %v2648 = vadd.f32 %v2342, %v2540
        %v2649 = vadd.f32 %v2343, %v2543
        %v2650 = vadd.f32 %v2344, %v2548
        %v2651 = vadd.f32 %v2345, %v2551
        %v2652 = vadd.f32 %v2346, %v2556
        %v2653 = vadd.f32 %v2347, %v2559
        %v2654 = vadd.f32 %v2348, %v2564
        %v2655 = vadd.f32 %v2349, %v2567
        %v2656 = vadd.f32 %v2350, %v2572
        %v2657 = vadd.f32 %v2351, %v2575
        %v2658 = vadd.f32 %v2352, %v2580
        %v2659 = vadd.f32 %v2353, %v2583
        %v2660 = vadd.f32 %v2354, %v2588
        %v2661 = vadd.f32 %v2355, %v2591
        %v2662 = vadd.f32 %v2356, %v2596
        %v2663 = vadd.f32 %v2357, %v2599
        %v2664 = vadd.f32 %v2358, %v2604
        %v2665 = vadd.f32 %v2359, %v2607
        %v2666 = vadd.f32 %v2360, %v2612
        %v2667 = vadd.f32 %v2361, %v2615
        %v2668 = vadd.f32 %v2362, %v2620
        %v2669 = vadd.f32 %v2363, %v2623
        %v2670 = vadd.f32 %v2364, %v2628
        %v2671 = vadd.f32 %v2365, %v2631
        %v2672 = vadd.f32 %v2366, %v2636
        %v2673 = vadd.f32 %v2367, %v2639
        %v2674 = vld [vmem:[%s2061 + $0x2] sm:$0xff]
        %v2675 = vld [vmem:[%s2061 + $0xa] sm:$0xff]
        %v2676 = vld [vmem:[%s2061 + $0x1a] sm:$0xff]
        %v2677 = vld [vmem:[%s2061 + $0x22] sm:$0xff]
        %v2678 = vld [vmem:[%s2061 + $0x32] sm:$0xff]
        %v2679 = vld [vmem:[%s2061 + $0x3a] sm:$0xff]
        %v2680 = vld [vmem:[%s2061 + $0x4a] sm:$0xff]
        %v2681 = vld [vmem:[%s2061 + $0x52] sm:$0xff]
        %v2682 = vld [vmem:[%s2061 + $0x62] sm:$0xff]
        %v2683 = vld [vmem:[%s2061 + $0x6a] sm:$0xff]
        %v2684 = vld [vmem:[%s2061 + $0x7a] sm:$0xff]
        %v2685 = vld [vmem:[%s2061 + $0x82] sm:$0xff]
        %v2686 = vld [vmem:[%s2061 + $0x92] sm:$0xff]
        %v2687 = vld [vmem:[%s2061 + $0x9a] sm:$0xff]
        %v2688 = vld [vmem:[%s2061 + $0xaa] sm:$0xff]
        %v2689 = vld [vmem:[%s2061 + $0xb2] sm:$0xff]
        %v2690 = vld [vmem:[%s2061 + $0xc2] sm:$0xff]
        %v2691 = vld [vmem:[%s2061 + $0xca] sm:$0xff]
        %v2692 = vld [vmem:[%s2061 + $0xda] sm:$0xff]
        %v2693 = vld [vmem:[%s2061 + $0xe2] sm:$0xff]
        %v2694 = vld [vmem:[%s2061 + $0xf2] sm:$0xff]
        %v2695 = vld [vmem:[%s2061 + $0xfa] sm:$0xff]
        %v2696 = vld [vmem:[%s2061 + $0x10a] sm:$0xff]
        %v2697 = vld [vmem:[%s2061 + $0x112] sm:$0xff]
        %v2698 = vld [vmem:[%s2061 + $0x122] sm:$0xff]
        %v2699 = vld [vmem:[%s2061 + $0x12a] sm:$0xff]
        %v2700 = vld [vmem:[%s2061 + $0x13a] sm:$0xff]
        %v2701 = vld [vmem:[%s2061 + $0x142] sm:$0xff]
        %v2702 = vld [vmem:[%s2061 + $0x152] sm:$0xff]
        %v2703 = vld [vmem:[%s2061 + $0x15a] sm:$0xff]
        %v2704 = vld [vmem:[%s2061 + $0x16a] sm:$0xff]
        %v2705 = vld [vmem:[%s2061 + $0x172] sm:$0xff]
        %v2706 = vpack.c.bf16 %v2675, %v2674
        %v2707 = vpack.c.bf16 %v2677, %v2676
        %v2708 = vpack.c.bf16 %v2679, %v2678
        %v2709 = vpack.c.bf16 %v2681, %v2680
        %v2710 = vpack.c.bf16 %v2683, %v2682
        %v2711 = vpack.c.bf16 %v2685, %v2684
        %v2712 = vpack.c.bf16 %v2687, %v2686
        %v2713 = vpack.c.bf16 %v2689, %v2688
        %v2714 = vpack.c.bf16 %v2691, %v2690
        %v2715 = vpack.c.bf16 %v2693, %v2692
        %v2716 = vpack.c.bf16 %v2695, %v2694
        %v2717 = vpack.c.bf16 %v2697, %v2696
        %v2718 = vpack.c.bf16 %v2699, %v2698
        %v2719 = vpack.c.bf16 %v2701, %v2700
        %v2720 = vpack.c.bf16 %v2703, %v2702
        %v2721 = vpack.c.bf16 %v2705, %v2704
        %s2722 = scalar_lea.vmem [#allocation4], 512
        %v2723 = vld [vmem:[%s2722] sm:$0xf]
        %v2724 = vld [vmem:[%s2722 + $0x4] sm:$0xf]
        %v2725 = vld [vmem:[%s2722 + $0x8] sm:$0xf]
        %v2726 = vld [vmem:[%s2722 + $0xc] sm:$0xf]
        %v2727 = vld [vmem:[%s2722 + $0x10] sm:$0xf]
        %v2728 = vld [vmem:[%s2722 + $0x14] sm:$0xf]
        %v2729 = vld [vmem:[%s2722 + $0x18] sm:$0xf]
        %v2730 = vld [vmem:[%s2722 + $0x1c] sm:$0xf]
        %v2731 = vld [vmem:[%s2722 + $0x20] sm:$0xf]
        %v2732 = vld [vmem:[%s2722 + $0x24] sm:$0xf]
        %v2733 = vld [vmem:[%s2722 + $0x28] sm:$0xf]
        %v2734 = vld [vmem:[%s2722 + $0x2c] sm:$0xf]
        %v2735 = vld [vmem:[%s2722 + $0x30] sm:$0xf]
        %v2736 = vld [vmem:[%s2722 + $0x34] sm:$0xf]
        %v2737 = vld [vmem:[%s2722 + $0x38] sm:$0xf]
        %v2738 = vld [vmem:[%s2722 + $0x3c] sm:$0xf]
        %v2755 = vunpack.c.l.b16 %v2723
        %v2756 = vunpack.c.l.b16 %v2724
        %v2757 = vunpack.c.l.b16 %v2725
        %v2758 = vunpack.c.l.b16 %v2726
        %v2759 = vunpack.c.l.b16 %v2727
        %v2760 = vunpack.c.l.b16 %v2728
        %v2761 = vunpack.c.l.b16 %v2729
        %v2762 = vunpack.c.l.b16 %v2730
        %v2763 = vunpack.c.l.b16 %v2731
        %v2764 = vunpack.c.l.b16 %v2732
        %v2765 = vunpack.c.l.b16 %v2733
        %v2766 = vunpack.c.l.b16 %v2734
        %v2767 = vunpack.c.l.b16 %v2735
        %v2768 = vunpack.c.l.b16 %v2736
        %v2769 = vunpack.c.l.b16 %v2737
        %v2770 = vunpack.c.l.b16 %v2738
        %v2771 = vpack.c.b16 %v2756, %v2755
        %v2772 = vpack.c.b16 %v2758, %v2757
        %v2773 = vpack.c.b16 %v2760, %v2759
        %v2774 = vpack.c.b16 %v2762, %v2761
        %v2775 = vpack.c.b16 %v2764, %v2763
        %v2776 = vpack.c.b16 %v2766, %v2765
        %v2777 = vpack.c.b16 %v2768, %v2767
        %v2778 = vpack.c.b16 %v2770, %v2769
        %2787 = vmatprep.subr.bf16.mxu0 0
        %2788 = vmatpush1.bf16.msra.mxu0 %v2778
        %2789 = vmatprep.subr.bf16.mxu0 0
        %2790 = vmatpush1.bf16.msra.mxu0 %v2777
        %2791 = vmatprep.subr.bf16.mxu0 0
        %2792 = vmatpush1.bf16.msra.mxu0 %v2776
        %2793 = vmatprep.subr.bf16.mxu0 0
        %2794 = vmatpush1.bf16.msra.mxu0 %v2775
        %2795 = vmatprep.subr.bf16.mxu0 0
        %2796 = vmatpush1.bf16.msra.mxu0 %v2774
        %2797 = vmatprep.subr.bf16.mxu0 0
        %2798 = vmatpush1.bf16.msra.mxu0 %v2773
        %2799 = vmatprep.subr.bf16.mxu0 0
        %2800 = vmatpush1.bf16.msra.mxu0 %v2772
        %2801 = vmatprep.subr.bf16.mxu0 0
        %2802 = vmatpush1.bf16.msra.mxu0 %v2771
        %2803 = vmatprep.subr.bf16.mxu0 0
        %2804 = vmatpush2.bf16.msra.mxu0 0
        %2805 = vmatprep.subr.bf16.mxu0 0
        %2806 = vmatpush2.bf16.msra.mxu0 0
        %2807 = vmatprep.subr.bf16.mxu0 0
        %2808 = vmatpush2.bf16.msra.mxu0 0
        %2809 = vmatprep.subr.bf16.mxu0 0
        %2810 = vmatpush2.bf16.msra.mxu0 0
        %2811 = vmatprep.subr.bf16.mxu0 0
        %2812 = vmatpush2.bf16.msra.mxu0 0
        %2813 = vmatprep.subr.bf16.mxu0 0
        %2814 = vmatpush2.bf16.msra.mxu0 0
        %2815 = vmatprep.subr.bf16.mxu0 0
        %2816 = vmatpush2.bf16.msra.mxu0 0
        %2817 = vmatprep.subr.bf16.mxu0 0
        %2818 = vmatpush2.bf16.msra.mxu0 0
        %2819 = vmatprep.mubr.bf16.mxu0 0
        %2820 = vmatmul.mubr.bf16.gmra.mxu0 %v2706
        %v2821 = vpop.f32.mrf.mxu0
        %v2822 = vadd.f32 0.0, %v2821
        %v2823 = vpop.f32.mrf.mxu0
        %v2824 = vpop.f32.mrf.mxu0
        %v2825 = vadd.f32 0.0, %v2824
        %v2826 = vpop.f32.mrf.mxu0
        %2827 = vmatprep.mubr.bf16.mxu0 0
        %2828 = vmatmul.mubr.bf16.gmra.mxu0 %v2707
        %v2829 = vpop.f32.mrf.mxu0
        %v2830 = vadd.f32 0.0, %v2829
        %v2831 = vpop.f32.mrf.mxu0
        %v2832 = vpop.f32.mrf.mxu0
        %v2833 = vadd.f32 0.0, %v2832
        %v2834 = vpop.f32.mrf.mxu0
        %2835 = vmatprep.mubr.bf16.mxu0 0
        %2836 = vmatmul.mubr.bf16.gmra.mxu0 %v2708
        %v2837 = vpop.f32.mrf.mxu0
        %v2838 = vadd.f32 0.0, %v2837
        %v2839 = vpop.f32.mrf.mxu0
        %v2840 = vpop.f32.mrf.mxu0
        %v2841 = vadd.f32 0.0, %v2840
        %v2842 = vpop.f32.mrf.mxu0
        %2843 = vmatprep.mubr.bf16.mxu0 0
        %2844 = vmatmul.mubr.bf16.gmra.mxu0 %v2709
        %v2845 = vpop.f32.mrf.mxu0
        %v2846 = vadd.f32 0.0, %v2845
        %v2847 = vpop.f32.mrf.mxu0
        %v2848 = vpop.f32.mrf.mxu0
        %v2849 = vadd.f32 0.0, %v2848
        %v2850 = vpop.f32.mrf.mxu0
        %2851 = vmatprep.mubr.bf16.mxu0 0
        %2852 = vmatmul.mubr.bf16.gmra.mxu0 %v2710
        %v2853 = vpop.f32.mrf.mxu0
        %v2854 = vadd.f32 0.0, %v2853
        %v2855 = vpop.f32.mrf.mxu0
        %v2856 = vpop.f32.mrf.mxu0
        %v2857 = vadd.f32 0.0, %v2856
        %v2858 = vpop.f32.mrf.mxu0
        %2859 = vmatprep.mubr.bf16.mxu0 0
        %2860 = vmatmul.mubr.bf16.gmra.mxu0 %v2711
        %v2861 = vpop.f32.mrf.mxu0
        %v2862 = vadd.f32 0.0, %v2861
        %v2863 = vpop.f32.mrf.mxu0
        %v2864 = vpop.f32.mrf.mxu0
        %v2865 = vadd.f32 0.0, %v2864
        %v2866 = vpop.f32.mrf.mxu0
        %2867 = vmatprep.mubr.bf16.mxu0 0
        %2868 = vmatmul.mubr.bf16.gmra.mxu0 %v2712
        %v2869 = vpop.f32.mrf.mxu0
        %v2870 = vadd.f32 0.0, %v2869
        %v2871 = vpop.f32.mrf.mxu0
        %v2872 = vpop.f32.mrf.mxu0
        %v2873 = vadd.f32 0.0, %v2872
        %v2874 = vpop.f32.mrf.mxu0
        %2875 = vmatprep.mubr.bf16.mxu0 0
        %2876 = vmatmul.mubr.bf16.gmra.mxu0 %v2713
        %v2877 = vpop.f32.mrf.mxu0
        %v2878 = vadd.f32 0.0, %v2877
        %v2879 = vpop.f32.mrf.mxu0
        %v2880 = vpop.f32.mrf.mxu0
        %v2881 = vadd.f32 0.0, %v2880
        %v2882 = vpop.f32.mrf.mxu0
        %2883 = vmatprep.mubr.bf16.mxu0 0
        %2884 = vmatmul.mubr.bf16.gmra.mxu0 %v2714
        %v2885 = vpop.f32.mrf.mxu0
        %v2886 = vadd.f32 0.0, %v2885
        %v2887 = vpop.f32.mrf.mxu0
        %v2888 = vpop.f32.mrf.mxu0
        %v2889 = vadd.f32 0.0, %v2888
        %v2890 = vpop.f32.mrf.mxu0
        %2891 = vmatprep.mubr.bf16.mxu0 0
        %2892 = vmatmul.mubr.bf16.gmra.mxu0 %v2715
        %v2893 = vpop.f32.mrf.mxu0
        %v2894 = vadd.f32 0.0, %v2893
        %v2895 = vpop.f32.mrf.mxu0
        %v2896 = vpop.f32.mrf.mxu0
        %v2897 = vadd.f32 0.0, %v2896
        %v2898 = vpop.f32.mrf.mxu0
        %2899 = vmatprep.mubr.bf16.mxu0 0
        %2900 = vmatmul.mubr.bf16.gmra.mxu0 %v2716
        %v2901 = vpop.f32.mrf.mxu0
        %v2902 = vadd.f32 0.0, %v2901
        %v2903 = vpop.f32.mrf.mxu0
        %v2904 = vpop.f32.mrf.mxu0
        %v2905 = vadd.f32 0.0, %v2904
        %v2906 = vpop.f32.mrf.mxu0
        %2907 = vmatprep.mubr.bf16.mxu0 0
        %2908 = vmatmul.mubr.bf16.gmra.mxu0 %v2717
        %v2909 = vpop.f32.mrf.mxu0
        %v2910 = vadd.f32 0.0, %v2909
        %v2911 = vpop.f32.mrf.mxu0
        %v2912 = vpop.f32.mrf.mxu0
        %v2913 = vadd.f32 0.0, %v2912
        %v2914 = vpop.f32.mrf.mxu0
        %2915 = vmatprep.mubr.bf16.mxu0 0
        %2916 = vmatmul.mubr.bf16.gmra.mxu0 %v2718
        %v2917 = vpop.f32.mrf.mxu0
        %v2918 = vadd.f32 0.0, %v2917
        %v2919 = vpop.f32.mrf.mxu0
        %v2920 = vpop.f32.mrf.mxu0
        %v2921 = vadd.f32 0.0, %v2920
        %v2922 = vpop.f32.mrf.mxu0
        %2923 = vmatprep.mubr.bf16.mxu0 0
        %2924 = vmatmul.mubr.bf16.gmra.mxu0 %v2719
        %v2925 = vpop.f32.mrf.mxu0
        %v2926 = vadd.f32 0.0, %v2925
        %v2927 = vpop.f32.mrf.mxu0
        %v2928 = vpop.f32.mrf.mxu0
        %v2929 = vadd.f32 0.0, %v2928
        %v2930 = vpop.f32.mrf.mxu0
        %2931 = vmatprep.mubr.bf16.mxu0 0
        %2932 = vmatmul.mubr.bf16.gmra.mxu0 %v2720
        %v2933 = vpop.f32.mrf.mxu0
        %v2934 = vadd.f32 0.0, %v2933
        %v2935 = vpop.f32.mrf.mxu0
        %v2936 = vpop.f32.mrf.mxu0
        %v2937 = vadd.f32 0.0, %v2936
        %v2938 = vpop.f32.mrf.mxu0
        %2939 = vmatprep.mubr.bf16.mxu0 0
        %2940 = vmatmul.mubr.bf16.gmra.mxu0 %v2721
        %v2941 = vpop.f32.mrf.mxu0
        %v2942 = vadd.f32 0.0, %v2941
        %v2943 = vpop.f32.mrf.mxu0
        %v2944 = vpop.f32.mrf.mxu0
        %v2945 = vadd.f32 0.0, %v2944
        %v2946 = vpop.f32.mrf.mxu0
        %2947 = vdwg.mxu0
        %v2948 = vadd.f32 %v2642, %v2822
        %v2949 = vadd.f32 %v2643, %v2825
        %v2950 = vadd.f32 %v2644, %v2830
        %v2951 = vadd.f32 %v2645, %v2833
        %v2952 = vadd.f32 %v2646, %v2838
        %v2953 = vadd.f32 %v2647, %v2841
        %v2954 = vadd.f32 %v2648, %v2846
        %v2955 = vadd.f32 %v2649, %v2849
        %v2956 = vadd.f32 %v2650, %v2854
        %v2957 = vadd.f32 %v2651, %v2857
        %v2958 = vadd.f32 %v2652, %v2862
        %v2959 = vadd.f32 %v2653, %v2865
        %v2960 = vadd.f32 %v2654, %v2870
        %v2961 = vadd.f32 %v2655, %v2873
        %v2962 = vadd.f32 %v2656, %v2878
        %v2963 = vadd.f32 %v2657, %v2881
        %v2964 = vadd.f32 %v2658, %v2886
        %v2965 = vadd.f32 %v2659, %v2889
        %v2966 = vadd.f32 %v2660, %v2894
        %v2967 = vadd.f32 %v2661, %v2897
        %v2968 = vadd.f32 %v2662, %v2902
        %v2969 = vadd.f32 %v2663, %v2905
        %v2970 = vadd.f32 %v2664, %v2910
        %v2971 = vadd.f32 %v2665, %v2913
        %v2972 = vadd.f32 %v2666, %v2918
        %v2973 = vadd.f32 %v2667, %v2921
        %v2974 = vadd.f32 %v2668, %v2926
        %v2975 = vadd.f32 %v2669, %v2929
        %v2976 = vadd.f32 %v2670, %v2934
        %v2977 = vadd.f32 %v2671, %v2937
        %v2978 = vadd.f32 %v2672, %v2942
        %v2979 = vadd.f32 %v2673, %v2945
        %v2980 = vmax.f32 %v2948, 0.0
        %v2981 = vmax.f32 %v2949, 0.0
        %v2982 = vmax.f32 %v2950, 0.0
        %v2983 = vmax.f32 %v2951, 0.0
        %v2984 = vmax.f32 %v2952, 0.0
        %v2985 = vmax.f32 %v2953, 0.0
        %v2986 = vmax.f32 %v2954, 0.0
        %v2987 = vmax.f32 %v2955, 0.0
        %v2988 = vmax.f32 %v2956, 0.0
        %v2989 = vmax.f32 %v2957, 0.0
        %v2990 = vmax.f32 %v2958, 0.0
        %v2991 = vmax.f32 %v2959, 0.0
        %v2992 = vmax.f32 %v2960, 0.0
        %v2993 = vmax.f32 %v2961, 0.0
        %v2994 = vmax.f32 %v2962, 0.0
        %v2995 = vmax.f32 %v2963, 0.0
        %v2996 = vmax.f32 %v2964, 0.0
        %v2997 = vmax.f32 %v2965, 0.0
        %v2998 = vmax.f32 %v2966, 0.0
        %v2999 = vmax.f32 %v2967, 0.0
        %v3000 = vmax.f32 %v2968, 0.0
        %v3001 = vmax.f32 %v2969, 0.0
        %v3002 = vmax.f32 %v2970, 0.0
        %v3003 = vmax.f32 %v2971, 0.0
        %v3004 = vmax.f32 %v2972, 0.0
        %v3005 = vmax.f32 %v2973, 0.0
        %v3006 = vmax.f32 %v2974, 0.0
        %v3007 = vmax.f32 %v2975, 0.0
        %v3008 = vmax.f32 %v2976, 0.0
        %v3009 = vmax.f32 %v2977, 0.0
        %v3010 = vmax.f32 %v2978, 0.0
        %v3011 = vmax.f32 %v2979, 0.0
        %3012 = vst [vmem:[%s151] sm:$0xff] %v2980
        %3013 = vst [vmem:[%s151 + $0x8] sm:$0xff] %v2981
        %3014 = vst [vmem:[%s151 + $0x10] sm:$0xff] %v2982
        %3015 = vst [vmem:[%s151 + $0x18] sm:$0xff] %v2983
        %3016 = vst [vmem:[%s151 + $0x20] sm:$0xff] %v2984
        %3017 = vst [vmem:[%s151 + $0x28] sm:$0xff] %v2985
        %3018 = vst [vmem:[%s151 + $0x30] sm:$0xff] %v2986
        %3019 = vst [vmem:[%s151 + $0x38] sm:$0xff] %v2987
        %3020 = vst [vmem:[%s151 + $0x40] sm:$0xff] %v2988
        %3021 = vst [vmem:[%s151 + $0x48] sm:$0xff] %v2989
        %3022 = vst [vmem:[%s151 + $0x50] sm:$0xff] %v2990
        %3023 = vst [vmem:[%s151 + $0x58] sm:$0xff] %v2991
        %3024 = vst [vmem:[%s151 + $0x60] sm:$0xff] %v2992
        %3025 = vst [vmem:[%s151 + $0x68] sm:$0xff] %v2993
        %3026 = vst [vmem:[%s151 + $0x70] sm:$0xff] %v2994
        %3027 = vst [vmem:[%s151 + $0x78] sm:$0xff] %v2995
        %3028 = vst [vmem:[%s151 + $0x80] sm:$0xff] %v2996
        %3029 = vst [vmem:[%s151 + $0x88] sm:$0xff] %v2997
        %3030 = vst [vmem:[%s151 + $0x90] sm:$0xff] %v2998
        %3031 = vst [vmem:[%s151 + $0x98] sm:$0xff] %v2999
        %3032 = vst [vmem:[%s151 + $0xa0] sm:$0xff] %v3000
        %3033 = vst [vmem:[%s151 + $0xa8] sm:$0xff] %v3001
        %3034 = vst [vmem:[%s151 + $0xb0] sm:$0xff] %v3002
        %3035 = vst [vmem:[%s151 + $0xb8] sm:$0xff] %v3003
        %3036 = vst [vmem:[%s151 + $0xc0] sm:$0xff] %v3004
        %3037 = vst [vmem:[%s151 + $0xc8] sm:$0xff] %v3005
        %3038 = vst [vmem:[%s151 + $0xd0] sm:$0xff] %v3006
        %3039 = vst [vmem:[%s151 + $0xd8] sm:$0xff] %v3007
        %3040 = vst [vmem:[%s151 + $0xe0] sm:$0xff] %v3008
        %3041 = vst [vmem:[%s151 + $0xe8] sm:$0xff] %v3009
        %3042 = vst [vmem:[%s151 + $0xf0] sm:$0xff] %v3010
        %3043 = vst [vmem:[%s151 + $0xf8] sm:$0xff] %v3011
        %s3044 = sand.u32 %s82, 1
        %s3045 = scalar_lea.sflag [#allocation6], %s3044
        %s3046 = sand.u32 %s82, 1
        %s3047 = smul.addr %s3046, 256
        %s3048 = scalar_lea.vmem [#allocation7], %s3047
        // Predicated region
        $region37: #{tpu_custom_call.1} parent=27 // pred_check
          %p3049 = pneg %p92
        $region38: #{tpu_custom_call.1} parent=27 // pred_check_branch
          %3051 = sbr.rel (%p3049) target = $region40
        $region39: #{tpu_custom_call.1} parent=27 // pred_region
          %s3052 = smul.u32 16, %s23
          %s3054 = ssub.s32 4096, 4096
          %3055 = vsyncadd %s3045, %s3054
          %s3056 = smul.addr %s3052, 2
          %s3057 = smul.addr %s22, 32
          %s3058 = sadd.s32 %s3056, %s3057
          %s3059 = smul.addr %s3058, 128
          %s3060 = scalar_lea.hbm %s3, %s3059
          %s3061 = sshll.u32 %s3048, 4
          %s3062 = int_to_ptr.vmem [resolvable:$true] %s3061
          %3067 = dma.vmem_to_hbm [thread:$0]  %s3062, 4096, %s3060, %s3045, 128, 128, 8
        $region40: #{tpu_custom_call.1} parent=27 // pred_fallthru
          _
      $region28: #{tpu_custom_call.1} parent=5 // pred_fallthru
        _
      %p3068 = scmp.le.s32.totalorder 2, %s13
      // Predicated region
      $region41: #{tpu_custom_call.1} parent=5 // pred_check
        %p3069 = pneg %p3068
      $region42: #{tpu_custom_call.1} parent=5 // pred_check_branch
        %3071 = sbr.rel (%p3069) target = $region44
      $region43: #{tpu_custom_call.1} parent=5 // pred_region
        %s3072 = ssub.s32 %s13, 2
        // Predicated region
        $region45: #{tpu_custom_call.1} parent=43 // pred_check
          %p3073 = pneg %p98
        $region46: #{tpu_custom_call.1} parent=43 // pred_check_branch
          %3075 = sbr.rel (%p3073) target = $region48
        $region47: #{tpu_custom_call.1} parent=43 // pred_region
          %s3076 = sand.u32 %s83, 1
          %s3077 = scalar_lea.sflag [#allocation6], %s3076
          %s3078 = sand.u32 %s83, 1
          %s3079 = smul.addr %s3078, 256
          %s3080 = scalar_lea.vmem [#allocation7], %s3079
          %3081 = dma.done %s3077, 4096
        $region48: #{tpu_custom_call.1} parent=43 // pred_fallthru
          _
      $region44: #{tpu_custom_call.1} parent=5 // pred_fallthru
        _
    $region6: #{tpu_custom_call.1} parent=1 // loop_footer
      %s17 = sadd.s32 1, %s13
    $region7: #{tpu_custom_call.1} parent=1 // loop_footer_branch
      %12 = sbr.rel target = $region3
    $region8: #{tpu_custom_call.1} parent=1 // loop_exit
      _
    %3082 = vsyncpa [#allocation5], 1
    %s3083 = scalar_lea.sflag [#allocation5], 1
    %3084 = vsyncpa %s3083, 1
    %3085 = vsyncpa [#allocation6], 1
    %s3086 = scalar_lea.sflag [#allocation6], 1
    %3087 = vsyncpa %s3086, 1
  %3088 = vsyncmov [#allocation3]
  %s3089 = vpop.sfrf %3088
  %p3090 = scmp.eq.s32.totalorder %s3089, 0
  %p3091 = pneg %p3090
  %3093 = shalt.err (%p3091)

// kernel: tpu_custom_call.1
$region0: #{tpu_custom_call.1}
  #allocation0 [shape = 'u32[]', space=smem, size = 0x4, offset = 0x4, fixed_abs, tag = 'smem constant byte address 0x4 - core index']
  #allocation1 [shape = 'u32[144,128]{1,0:T(1,128)}', space=vmem, size = 0x12000, scoped, tag = 'internal scratch']
  #allocation2 [shape = 'f32[18,18,128]{2,1,0:T(8,128)}', space=vmem, size = 0x36000, scoped, tag = 'scratch operand']
  #allocation3 [shape = 's32[1]{0}', space=sflag, size = 0x4, scoped, tag = 'scratch operand']
  #allocation8 [shape = 's32[]', space=sflag, size = 0x4, offset = 0, fixed_abs, tag = 'sflag constant byte address 0x0 - dummy sync flag']
  %s0 = inlined_call_operand.hbm [shape: f32[2,16,16,128], index: 0, kind: input, shape index: {}]
  %s1 = inlined_call_operand.hbm [shape: bf16[3,3,128,128], index: 1, kind: input, shape index: {}]
  %s2 = inlined_call_operand.vmem [shape: f32[1,128], index: 2, kind: input, shape index: {}]
  %s3 = inlined_call_operand.hbm [shape: f32[2,16,16,128], index: 3, kind: output, shape index: {}]
  %s4 = sld [smem:[#allocation0]]
  $region49: #{tpu_custom_call.1} parent=0
    _
  %s6 = ssub.s32 1, %s4
  %s7 = scalar_select 0, %s6, %s4
  $region1: #{tpu_custom_call.1} parent=0
    #allocation4 [shape = 'u8[294912]{0}', space=vmem, size = 0x48000, scoped, tag = 'input window, operand 1, single buffered']
    #allocation5 [shape = 's32[2]{0}', space=sflag, size = 0x8, scoped, tag = 'scoped memory for tpu_custom_call.1']
    #allocation6 [shape = 's32[2]{0}', space=sflag, size = 0x8, scoped, tag = 'scoped memory for tpu_custom_call.1']
    #allocation7 [shape = 'u8[262144]{0}', space=vmem, size = 0x40000, scoped, tag = 'output window, operand 0']
    %8 = vsyncpa [#allocation5], 0
    %9 = vsyncpa [#allocation6], 0
    %s10 = scalar_lea.sflag [#allocation6], 1
    %11 = vsyncpa %s10, 0
    loop: start=0, step=1, limit=4
    $region2: #{tpu_custom_call.1} parent=1 // loop_pre_header
      _
    $region3: #{tpu_custom_call.1} parent=1 // loop_header
      %s13 = sphi 0, %s17
      %p14 = scmp.ge.s32.totalorder %s13, 4
      %s20 = sphi 0, %s32
      %s21 = sphi 0, %s28
      %s22 = sphi 0, %s20
      %s23 = sphi 0, %s21
      %s24 = sphi 0, %s22
      %s25 = sphi 0, %s23
      %s33 = sphi 0, %s33
      %s35 = sphi 0, %s33
      %s36 = sphi 0, %s35
      %s50 = sphi 0, %s36
      %s54 = sphi 0, %s54
      %s56 = sphi 0, %s54
      %s57 = sphi 0, %s56
      %s71 = sphi 0, %s57
      %s79 = sphi 0, %s81
      %s82 = sphi 0, %s79
      %s83 = sphi 0, %s82
      %s99 = sphi 0, %s83
    $region4: #{tpu_custom_call.1} parent=1 // loop_header_branch
      %16 = sbr.rel (%p14) target = $region8
    $region5: #{tpu_custom_call.1} parent=1 // loop_body
      %s18 = ssub.s32 %s13, 1
      %s19 = ssub.s32 %s13, 2
      %s26 = sadd.s32 1, %s21
      %p27 = scmp.ge.s32.totalorder %s26, 1
      %s28 = scalar_select %p27, 0, %s26
      %s29 = sadd.s32 1, %s20
      %s30 = scalar_select %p27, %s29, %s20
      %p31 = scmp.ge.s32.totalorder %s30, 2
      %s32 = scalar_select %p31, 0, %s30
      %s34 = sadd.s32 %s33, 1
      %p37 = scmp.eq.s32.totalorder %s13, 1
      %p38 = scmp.ne.s32.totalorder %s33, %s35
      %p39 = scmp.eq.s32.totalorder %s13, 0
      %p40 = por %p38, %p39
      %p41 = scmp.ne.s32.totalorder %s33, %s35
      %p42 = scmp.eq.s32.totalorder %s18, 1
      %p43 = por %p41, %p42
      %p44 = scmp.ne.s32.totalorder %s35, %s36
      %p45 = scmp.eq.s32.totalorder %s18, 0
      %p46 = por %p44, %p45
      %p47 = scmp.ne.s32.totalorder %s35, %s36
      %p48 = scmp.eq.s32.totalorder %s19, 1
      %p49 = por %p47, %p48
      %p51 = scmp.ne.s32.totalorder %s36, %s50
      %p52 = scmp.eq.s32.totalorder %s19, 0
      %p53 = por %p51, %p52
      %s55 = sadd.s32 %s54, 1
      %p58 = scmp.eq.s32.totalorder %s13, 1
      %p59 = scmp.ne.s32.totalorder %s54, %s56
      %p60 = scmp.eq.s32.totalorder %s13, 0
      %p61 = por %p59, %p60
      %p62 = scmp.ne.s32.totalorder %s54, %s56
      %p63 = scmp.eq.s32.totalorder %s18, 1
      %p64 = por %p62, %p63
      %p65 = scmp.ne.s32.totalorder %s56, %s57
      %p66 = scmp.eq.s32.totalorder %s18, 0
      %p67 = por %p65, %p66
      %p68 = scmp.ne.s32.totalorder %s56, %s57
      %p69 = scmp.eq.s32.totalorder %s19, 1
      %p70 = por %p68, %p69
      %p72 = scmp.ne.s32.totalorder %s57, %s71
      %p73 = scmp.eq.s32.totalorder %s19, 0
      %p74 = por %p72, %p73
      %s75 = ssub.s32 %s20, %s32
      %s76 = ssub.s32 %s21, %s28
      %s77 = sor.u32 %s75, %s76
      %p78 = scmp.eq.s32.totalorder %s77, 0
      %s80 = sadd.s32 %s79, 1
      %s81 = scalar_select %p78, %s79, %s80
      %p84 = pneg %p78
      %p85 = scmp.eq.s32.totalorder %s13, 1
      %p86 = por %p84, %p85
      %p87 = scmp.ne.s32.totalorder %s79, %s82
      %p88 = scmp.eq.s32.totalorder %s13, 0
      %p89 = por %p87, %p88
      %p90 = scmp.ne.s32.totalorder %s79, %s82
      %p91 = scmp.eq.s32.totalorder %s18, 1
      %p92 = por %p90, %p91
      %p93 = scmp.ne.s32.totalorder %s82, %s83
      %p94 = scmp.eq.s32.totalorder %s18, 0
      %p95 = por %p93, %p94
      %p96 = scmp.ne.s32.totalorder %s82, %s83
      %p97 = scmp.eq.s32.totalorder %s19, 1
      %p98 = por %p96, %p97
      %p100 = scmp.ne.s32.totalorder %s83, %s99
      %p101 = scmp.eq.s32.totalorder %s19, 0
      %p102 = por %p100, %p101
      %p103 = scmp.le.s32.totalorder 1, %s13
      %p104 = scmp.lt.s32.totalorder %s13, 3
      %p105 = pnand %p103, %p104
      %p106 = pneg %p105
      // Predicated region
      $region9: #{tpu_custom_call.1} parent=5 // pred_check
        _
      $region10: #{tpu_custom_call.1} parent=5 // pred_check_branch
        %108 = sbr.rel (%p105) target = $region12
      $region11: #{tpu_custom_call.1} parent=5 // pred_region
        %s109 = ssub.s32 %s13, 1
        // Predicated region
        $region13: #{tpu_custom_call.1} parent=11 // pred_check
          %p110 = pneg %p46
        $region14: #{tpu_custom_call.1} parent=11 // pred_check_branch
          %112 = sbr.rel (%p110) target = $region16
        $region15: #{tpu_custom_call.1} parent=11 // pred_region
          %s114 = ssub.s32 9216, 9216
          %115 = vsyncadd [#allocation5], %s114
          %s116 = sshll.u32 [#allocation4], 4
          %s117 = int_to_ptr.vmem [resolvable:$true] %s116
          %122 = dma.hbm_to_vmem [thread:$0]  %s1, 9216, %s117, [#allocation5], 64, 64, 4
        $region16: #{tpu_custom_call.1} parent=11 // pred_fallthru
          _
        // Predicated region
        $region17: #{tpu_custom_call.1} parent=11 // pred_check
          %p123 = pneg %p67
        $region18: #{tpu_custom_call.1} parent=11 // pred_check_branch
          %125 = sbr.rel (%p123) target = $region20
        $region19: #{tpu_custom_call.1} parent=11 // pred_region
          _
        $region20: #{tpu_custom_call.1} parent=11 // pred_fallthru
          _
      $region12: #{tpu_custom_call.1} parent=5 // pred_fallthru
        _
      %p126 = scmp.lt.s32.totalorder %s13, 2
      // Predicated region
      $region21: #{tpu_custom_call.1} parent=5 // pred_check
        %p127 = pneg %p126
      $region22: #{tpu_custom_call.1} parent=5 // pred_check_branch
        %129 = sbr.rel (%p127) target = $region24
      $region23: #{tpu_custom_call.1} parent=5 // pred_region
        _
      $region24: #{tpu_custom_call.1} parent=5 // pred_fallthru
        _
      %p130 = scmp.le.s32.totalorder 1, %s13
      %p131 = scmp.lt.s32.totalorder %s13, 3
      %p132 = pnand %p130, %p131
      %p133 = pneg %p132
      // Predicated region
      $region25: #{tpu_custom_call.1} parent=5 // pred_check
        _
      $region26: #{tpu_custom_call.1} parent=5 // pred_check_branch
        %135 = sbr.rel (%p132) target = $region28
      $region27: #{tpu_custom_call.1} parent=5 // pred_region
        %s136 = ssub.s32 %s13, 1
        // Predicated region
        $region29: #{tpu_custom_call.1} parent=27 // pred_check
          %p137 = pneg %p46
        $region30: #{tpu_custom_call.1} parent=27 // pred_check_branch
          %139 = sbr.rel (%p137) target = $region32
        $region31: #{tpu_custom_call.1} parent=27 // pred_region
          %140 = dma.done [#allocation5], 9216
        $region32: #{tpu_custom_call.1} parent=27 // pred_fallthru
          _
        %p141 = pneg %p46
        %p142 = pneg %p43
        %p143 = pneg %p67
        %p144 = pneg %p64
        %p145 = pneg %p95
        %p146 = pneg %p92
        %s147 = sand.u32 %s82, 1
        %s148 = scalar_lea.sflag [#allocation6], %s147
        %s149 = sand.u32 %s82, 1
        %s150 = smul.addr %s149, 256
        %s151 = scalar_lea.vmem [#allocation7], %s150
        %s152 = smul.u32 16, %s23
        %p154 = scmp.eq.s32.totalorder %s23, 0
        // Predicated region
        $region33: #{tpu_custom_call.1} parent=27 // pred_check
          %p155 = pneg %p154
        $region34: #{tpu_custom_call.1} parent=27 // pred_check_branch
          %157 = sbr.rel (%p155) target = $region36
        $region35: #{tpu_custom_call.1} parent=27 // pred_region
          %s158 = smul.u32 %s22, 256
          %s159 = smul.addr %s158, 16
          %s160 = scalar_lea.hbm %s0, %s159
          %s161 = scalar_lea.vmem [#allocation2], 25
          %s163 = sshll.u32 %s161, 4
          %s164 = int_to_ptr.vmem [resolvable:$true] %s163
          %166 = dma.hbm_to_vmem [thread:$0]  %s160, 4096, %s164, [#allocation3], 256, 384, 16
          %167 = vst [vmem:[#allocation2] sm:$0xff] 0.0
          %168 = vst [vmem:[#allocation2 + $0x8] sm:$0xff] 0.0
          %169 = vst [vmem:[#allocation2 + $0x10] sm:$0x3] 0.0
          %s170 = scalar_lea.vmem [#allocation2], 408
          %171 = vst [vmem:[%s170] sm:$0xff] 0.0
          %172 = vst [vmem:[%s170 + $0x8] sm:$0xff] 0.0
          %173 = vst [vmem:[%s170 + $0x10] sm:$0x3] 0.0
          %s174 = scalar_lea.vmem [#allocation2], 24
          %175 = vst [vmem:[%s174] sm:$0x1] 0.0
          %176 = vst [vmem:[%s174 + $0x18] sm:$0x1] 0.0
          %177 = vst [vmem:[%s174 + $0x30] sm:$0x1] 0.0
          %178 = vst [vmem:[%s174 + $0x48] sm:$0x1] 0.0
          %179 = vst [vmem:[%s174 + $0x60] sm:$0x1] 0.0
          %180 = vst [vmem:[%s174 + $0x78] sm:$0x1] 0.0
          %181 = vst [vmem:[%s174 + $0x90] sm:$0x1] 0.0
          %182 = vst [vmem:[%s174 + $0xa8] sm:$0x1] 0.0
          %183 = vst [vmem:[%s174 + $0xc0] sm:$0x1] 0.0
          %184 = vst [vmem:[%s174 + $0xd8] sm:$0x1] 0.0
          %185 = vst [vmem:[%s174 + $0xf0] sm:$0x1] 0.0
          %186 = vst [vmem:[%s174 + $0x108] sm:$0x1] 0.0
          %187 = vst [vmem:[%s174 + $0x120] sm:$0x1] 0.0
          %188 = vst [vmem:[%s174 + $0x138] sm:$0x1] 0.0
          %189 = vst [vmem:[%s174 + $0x150] sm:$0x1] 0.0
          %190 = vst [vmem:[%s174 + $0x168] sm:$0x1] 0.0
          %191 = vst [vmem:[%s174 + $0x11] sm:$0x1] 0.0
          %192 = vst [vmem:[%s174 + $0x29] sm:$0x1] 0.0
          %193 = vst [vmem:[%s174 + $0x41] sm:$0x1] 0.0
          %194 = vst [vmem:[%s174 + $0x59] sm:$0x1] 0.0
          %195 = vst [vmem:[%s174 + $0x71] sm:$0x1] 0.0
          %196 = vst [vmem:[%s174 + $0x89] sm:$0x1] 0.0
          %197 = vst [vmem:[%s174 + $0xa1] sm:$0x1] 0.0
          %198 = vst [vmem:[%s174 + $0xb9] sm:$0x1] 0.0
          %199 = vst [vmem:[%s174 + $0xd1] sm:$0x1] 0.0
          %200 = vst [vmem:[%s174 + $0xe9] sm:$0x1] 0.0
          %201 = vst [vmem:[%s174 + $0x101] sm:$0x1] 0.0
          %202 = vst [vmem:[%s174 + $0x119] sm:$0x1] 0.0
          %203 = vst [vmem:[%s174 + $0x131] sm:$0x1] 0.0
          %204 = vst [vmem:[%s174 + $0x149] sm:$0x1] 0.0
          %205 = vst [vmem:[%s174 + $0x161] sm:$0x1] 0.0
          %206 = vst [vmem:[%s174 + $0x179] sm:$0x1] 0.0
          %s207 = smul.u32 16, 16
          %s208 = smul.u32 %s207, 1
          %s209 = sshll.u32 %s208, 4
          %210 = dma.done [#allocation3], %s209
        $region36: #{tpu_custom_call.1} parent=27 // pred_fallthru
          _
        %s211 = smul.u32 %s23, 16
        %v212 = vld [vmem:[%s2] sm:$0x1]
        %v214 = vlaneseq
        %v215 = vshrl.u32 %v214, 7
        %v216 = vsub.s32 0, %v215
        %v217 = vrot.slane %v212, %v216
        %s219 = smul.u32 %s211, 24
        %s220 = scalar_lea.vmem [#allocation2], %s219
        %v221 = vld [vmem:[%s220] sm:$0xff]
        %v222 = vld [vmem:[%s220 + $0x8] sm:$0xff]
        %v223 = vld [vmem:[%s220 + $0x18] sm:$0xff]
        %v224 = vld [vmem:[%s220 + $0x20] sm:$0xff]
        %v225 = vld [vmem:[%s220 + $0x30] sm:$0xff]
        %v226 = vld [vmem:[%s220 + $0x38] sm:$0xff]
        %v227 = vld [vmem:[%s220 + $0x48] sm:$0xff]
        %v228 = vld [vmem:[%s220 + $0x50] sm:$0xff]
        %v229 = vld [vmem:[%s220 + $0x60] sm:$0xff]
        %v230 = vld [vmem:[%s220 + $0x68] sm:$0xff]
        %v231 = vld [vmem:[%s220 + $0x78] sm:$0xff]
        %v232 = vld [vmem:[%s220 + $0x80] sm:$0xff]
        %v233 = vld [vmem:[%s220 + $0x90] sm:$0xff]
        %v234 = vld [vmem:[%s220 + $0x98] sm:$0xff]
        %v235 = vld [vmem:[%s220 + $0xa8] sm:$0xff]
        %v236 = vld [vmem:[%s220 + $0xb0] sm:$0xff]
        %v237 = vld [vmem:[%s220 + $0xc0] sm:$0xff]
        %v238 = vld [vmem:[%s220 + $0xc8] sm:$0xff]
        %v239 = vld [vmem:[%s220 + $0xd8] sm:$0xff]
        %v240 = vld [vmem:[%s220 + $0xe0] sm:$0xff]
        %v241 = vld [vmem:[%s220 + $0xf0] sm:$0xff]
        %v242 = vld [vmem:[%s220 + $0xf8] sm:$0xff]
        %v243 = vld [vmem:[%s220 + $0x108] sm:$0xff]
        %v244 = vld [vmem:[%s220 + $0x110] sm:$0xff]
        %v245 = vld [vmem:[%s220 + $0x120] sm:$0xff]
        %v246 = vld [vmem:[%s220 + $0x128] sm:$0xff]
        %v247 = vld [vmem:[%s220 + $0x138] sm:$0xff]
        %v248 = vld [vmem:[%s220 + $0x140] sm:$0xff]
        %v249 = vld [vmem:[%s220 + $0x150] sm:$0xff]
        %v250 = vld [vmem:[%s220 + $0x158] sm:$0xff]
        %v251 = vld [vmem:[%s220 + $0x168] sm:$0xff]
        %v252 = vld [vmem:[%s220 + $0x170] sm:$0xff]
        %v253 = vpack.c.bf16 %v222, %v221
        %v254 = vpack.c.bf16 %v224, %v223
        %v255 = vpack.c.bf16 %v226, %v225
        %v256 = vpack.c.bf16 %v228, %v227
        %v257 = vpack.c.bf16 %v230, %v229
        %v258 = vpack.c.bf16 %v232, %v231
        %v259 = vpack.c.bf16 %v234, %v233
        %v260 = vpack.c.bf16 %v236, %v235
        %v261 = vpack.c.bf16 %v238, %v237
        %v262 = vpack.c.bf16 %v240, %v239
        %v263 = vpack.c.bf16 %v242, %v241
        %v264 = vpack.c.bf16 %v244, %v243
        %v265 = vpack.c.bf16 %v246, %v245
        %v266 = vpack.c.bf16 %v248, %v247
        %v267 = vpack.c.bf16 %v250, %v249
        %v268 = vpack.c.bf16 %v252, %v251
        %v269 = vld [vmem:[#allocation4] sm:$0xf]
        %v270 = vld [vmem:[#allocation4 + $0x4] sm:$0xf]
        %v271 = vld [vmem:[#allocation4 + $0x8] sm:$0xf]
        %v272 = vld [vmem:[#allocation4 + $0xc] sm:$0xf]
        %v273 = vld [vmem:[#allocation4 + $0x10] sm:$0xf]
        %v274 = vld [vmem:[#allocation4 + $0x14] sm:$0xf]
        %v275 = vld [vmem:[#allocation4 + $0x18] sm:$0xf]
        %v276 = vld [vmem:[#allocation4 + $0x1c] sm:$0xf]
        %v277 = vld [vmem:[#allocation4 + $0x20] sm:$0xf]
        %v278 = vld [vmem:[#allocation4 + $0x24] sm:$0xf]
        %v279 = vld [vmem:[#allocation4 + $0x28] sm:$0xf]
        %v280 = vld [vmem:[#allocation4 + $0x2c] sm:$0xf]
        %v281 = vld [vmem:[#allocation4 + $0x30] sm:$0xf]
        %v282 = vld [vmem:[#allocation4 + $0x34] sm:$0xf]
        %v283 = vld [vmem:[#allocation4 + $0x38] sm:$0xf]
        %v284 = vld [vmem:[#allocation4 + $0x3c] sm:$0xf]
        %v301 = vunpack.c.l.b16 %v269
        %v302 = vunpack.c.l.b16 %v270
        %v303 = vunpack.c.l.b16 %v271
        %v304 = vunpack.c.l.b16 %v272
        %v305 = vunpack.c.l.b16 %v273
        %v306 = vunpack.c.l.b16 %v274
        %v307 = vunpack.c.l.b16 %v275
        %v308 = vunpack.c.l.b16 %v276
        %v309 = vunpack.c.l.b16 %v277
        %v310 = vunpack.c.l.b16 %v278
        %v311 = vunpack.c.l.b16 %v279
        %v312 = vunpack.c.l.b16 %v280
        %v313 = vunpack.c.l.b16 %v281
        %v314 = vunpack.c.l.b16 %v282
        %v315 = vunpack.c.l.b16 %v283
        %v316 = vunpack.c.l.b16 %v284
        %v317 = vpack.c.b16 %v302, %v301
        %v318 = vpack.c.b16 %v304, %v303
        %v319 = vpack.c.b16 %v306, %v305
        %v320 = vpack.c.b16 %v308, %v307
        %v321 = vpack.c.b16 %v310, %v309
        %v322 = vpack.c.b16 %v312, %v311
        %v323 = vpack.c.b16 %v314, %v313
        %v324 = vpack.c.b16 %v316, %v315
        %333 = vmatprep.subr.bf16.mxu0 0
        %334 = vmatpush1.bf16.msra.mxu0 %v324
        %335 = vmatprep.subr.bf16.mxu0 0
        %336 = vmatpush1.bf16.msra.mxu0 %v323
        %337 = vmatprep.subr.bf16.mxu0 0
        %338 = vmatpush1.bf16.msra.mxu0 %v322
        %339 = vmatprep.subr.bf16.mxu0 0
        %340 = vmatpush1.bf16.msra.mxu0 %v321
        %341 = vmatprep.subr.bf16.mxu0 0
        %342 = vmatpush1.bf16.msra.mxu0 %v320
        %343 = vmatprep.subr.bf16.mxu0 0
        %344 = vmatpush1.bf16.msra.mxu0 %v319
        %345 = vmatprep.subr.bf16.mxu0 0
        %346 = vmatpush1.bf16.msra.mxu0 %v318
        %347 = vmatprep.subr.bf16.mxu0 0
        %348 = vmatpush1.bf16.msra.mxu0 %v317
        %349 = vmatprep.subr.bf16.mxu0 0
        %350 = vmatpush2.bf16.msra.mxu0 0
        %351 = vmatprep.subr.bf16.mxu0 0
        %352 = vmatpush2.bf16.msra.mxu0 0
        %353 = vmatprep.subr.bf16.mxu0 0
        %354 = vmatpush2.bf16.msra.mxu0 0
        %355 = vmatprep.subr.bf16.mxu0 0
        %356 = vmatpush2.bf16.msra.mxu0 0
        %357 = vmatprep.subr.bf16.mxu0 0
        %358 = vmatpush2.bf16.msra.mxu0 0
        %359 = vmatprep.subr.bf16.mxu0 0
        %360 = vmatpush2.bf16.msra.mxu0 0
        %361 = vmatprep.subr.bf16.mxu0 0
        %362 = vmatpush2.bf16.msra.mxu0 0
        %363 = vmatprep.subr.bf16.mxu0 0
        %364 = vmatpush2.bf16.msra.mxu0 0
        %365 = vmatprep.mubr.bf16.mxu0 0
        %366 = vmatmul.mubr.bf16.gmra.mxu0 %v253
        %v367 = vpop.f32.mrf.mxu0
        %v368 = vadd.f32 0.0, %v367
        %v369 = vpop.f32.mrf.mxu0
        %v370 = vpop.f32.mrf.mxu0
        %v371 = vadd.f32 0.0, %v370
        %v372 = vpop.f32.mrf.mxu0
        %373 = vmatprep.mubr.bf16.mxu0 0
        %374 = vmatmul.mubr.bf16.gmra.mxu0 %v254
        %v375 = vpop.f32.mrf.mxu0
        %v376 = vadd.f32 0.0, %v375
        %v377 = vpop.f32.mrf.mxu0
        %v378 = vpop.f32.mrf.mxu0
        %v379 = vadd.f32 0.0, %v378
        %v380 = vpop.f32.mrf.mxu0
        %381 = vmatprep.mubr.bf16.mxu0 0
        %382 = vmatmul.mubr.bf16.gmra.mxu0 %v255
        %v383 = vpop.f32.mrf.mxu0
        %v384 = vadd.f32 0.0, %v383
        %v385 = vpop.f32.mrf.mxu0
        %v386 = vpop.f32.mrf.mxu0
        %v387 = vadd.f32 0.0, %v386
        %v388 = vpop.f32.mrf.mxu0
        %389 = vmatprep.mubr.bf16.mxu0 0
        %390 = vmatmul.mubr.bf16.gmra.mxu0 %v256
        %v391 = vpop.f32.mrf.mxu0
        %v392 = vadd.f32 0.0, %v391
        %v393 = vpop.f32.mrf.mxu0
        %v394 = vpop.f32.mrf.mxu0
        %v395 = vadd.f32 0.0, %v394
        %v396 = vpop.f32.mrf.mxu0
        %397 = vmatprep.mubr.bf16.mxu0 0
        %398 = vmatmul.mubr.bf16.gmra.mxu0 %v257
        %v399 = vpop.f32.mrf.mxu0
        %v400 = vadd.f32 0.0, %v399
        %v401 = vpop.f32.mrf.mxu0
        %v402 = vpop.f32.mrf.mxu0
        %v403 = vadd.f32 0.0, %v402
        %v404 = vpop.f32.mrf.mxu0
        %405 = vmatprep.mubr.bf16.mxu0 0
        %406 = vmatmul.mubr.bf16.gmra.mxu0 %v258
        %v407 = vpop.f32.mrf.mxu0
        %v408 = vadd.f32 0.0, %v407
        %v409 = vpop.f32.mrf.mxu0
        %v410 = vpop.f32.mrf.mxu0
        %v411 = vadd.f32 0.0, %v410
        %v412 = vpop.f32.mrf.mxu0
        %413 = vmatprep.mubr.bf16.mxu0 0
        %414 = vmatmul.mubr.bf16.gmra.mxu0 %v259
        %v415 = vpop.f32.mrf.mxu0
        %v416 = vadd.f32 0.0, %v415
        %v417 = vpop.f32.mrf.mxu0
        %v418 = vpop.f32.mrf.mxu0
        %v419 = vadd.f32 0.0, %v418
        %v420 = vpop.f32.mrf.mxu0
        %421 = vmatprep.mubr.bf16.mxu0 0
        %422 = vmatmul.mubr.bf16.gmra.mxu0 %v260
        %v423 = vpop.f32.mrf.mxu0
        %v424 = vadd.f32 0.0, %v423
        %v425 = vpop.f32.mrf.mxu0
        %v426 = vpop.f32.mrf.mxu0
        %v427 = vadd.f32 0.0, %v426
        %v428 = vpop.f32.mrf.mxu0
        %429 = vmatprep.mubr.bf16.mxu0 0
        %430 = vmatmul.mubr.bf16.gmra.mxu0 %v261
        %v431 = vpop.f32.mrf.mxu0
        %v432 = vadd.f32 0.0, %v431
        %v433 = vpop.f32.mrf.mxu0
        %v434 = vpop.f32.mrf.mxu0
        %v435 = vadd.f32 0.0, %v434
        %v436 = vpop.f32.mrf.mxu0
        %437 = vmatprep.mubr.bf16.mxu0 0
        %438 = vmatmul.mubr.bf16.gmra.mxu0 %v262
        %v439 = vpop.f32.mrf.mxu0
        %v440 = vadd.f32 0.0, %v439
        %v441 = vpop.f32.mrf.mxu0
        %v442 = vpop.f32.mrf.mxu0
        %v443 = vadd.f32 0.0, %v442
        %v444 = vpop.f32.mrf.mxu0
        %445 = vmatprep.mubr.bf16.mxu0 0
        %446 = vmatmul.mubr.bf16.gmra.mxu0 %v263
        %v447 = vpop.f32.mrf.mxu0
        %v448 = vadd.f32 0.0, %v447
        %v449 = vpop.f32.mrf.mxu0
        %v450 = vpop.f32.mrf.mxu0
        %v451 = vadd.f32 0.0, %v450
        %v452 = vpop.f32.mrf.mxu0
        %453 = vmatprep.mubr.bf16.mxu0 0
        %454 = vmatmul.mubr.bf16.gmra.mxu0 %v264
        %v455 = vpop.f32.mrf.mxu0
        %v456 = vadd.f32 0.0, %v455
        %v457 = vpop.f32.mrf.mxu0
        %v458 = vpop.f32.mrf.mxu0
        %v459 = vadd.f32 0.0, %v458
        %v460 = vpop.f32.mrf.mxu0
        %461 = vmatprep.mubr.bf16.mxu0 0
        %462 = vmatmul.mubr.bf16.gmra.mxu0 %v265
        %v463 = vpop.f32.mrf.mxu0
        %v464 = vadd.f32 0.0, %v463
        %v465 = vpop.f32.mrf.mxu0
        %v466 = vpop.f32.mrf.mxu0
        %v467 = vadd.f32 0.0, %v466
        %v468 = vpop.f32.mrf.mxu0
        %469 = vmatprep.mubr.bf16.mxu0 0
        %470 = vmatmul.mubr.bf16.gmra.mxu0 %v266
        %v471 = vpop.f32.mrf.mxu0
        %v472 = vadd.f32 0.0, %v471
        %v473 = vpop.f32.mrf.mxu0
        %v474 = vpop.f32.mrf.mxu0
        %v475 = vadd.f32 0.0, %v474
        %v476 = vpop.f32.mrf.mxu0
        %477 = vmatprep.mubr.bf16.mxu0 0
        %478 = vmatmul.mubr.bf16.gmra.mxu0 %v267
        %v479 = vpop.f32.mrf.mxu0
        %v480 = vadd.f32 0.0, %v479
        %v481 = vpop.f32.mrf.mxu0
        %v482 = vpop.f32.mrf.mxu0
        %v483 = vadd.f32 0.0, %v482
        %v484 = vpop.f32.mrf.mxu0
        %485 = vmatprep.mubr.bf16.mxu0 0
        %486 = vmatmul.mubr.bf16.gmra.mxu0 %v268
        %v487 = vpop.f32.mrf.mxu0
        %v488 = vadd.f32 0.0, %v487
        %v489 = vpop.f32.mrf.mxu0
        %v490 = vpop.f32.mrf.mxu0
        %v491 = vadd.f32 0.0, %v490
        %v492 = vpop.f32.mrf.mxu0
        %493 = vdwg.mxu0
        %v494 = vadd.f32 %v217, %v368
        %v495 = vadd.f32 %v217, %v371
        %v496 = vadd.f32 %v217, %v376
        %v497 = vadd.f32 %v217, %v379
        %v498 = vadd.f32 %v217, %v384
        %v499 = vadd.f32 %v217, %v387
        %v500 = vadd.f32 %v217, %v392
        %v501 = vadd.f32 %v217, %v395
        %v502 = vadd.f32 %v217, %v400
        %v503 = vadd.f32 %v217, %v403
        %v504 = vadd.f32 %v217, %v408
        %v505 = vadd.f32 %v217, %v411
        %v506 = vadd.f32 %v217, %v416
        %v507 = vadd.f32 %v217, %v419
        %v508 = vadd.f32 %v217, %v424
        %v509 = vadd.f32 %v217, %v427
        %v510 = vadd.f32 %v217, %v432
        %v511 = vadd.f32 %v217, %v435
        %v512 = vadd.f32 %v217, %v440
        %v513 = vadd.f32 %v217, %v443
        %v514 = vadd.f32 %v217, %v448
        %v515 = vadd.f32 %v217, %v451
        %v516 = vadd.f32 %v217, %v456
        %v517 = vadd.f32 %v217, %v459
        %v518 = vadd.f32 %v217, %v464
        %v519 = vadd.f32 %v217, %v467
        %v520 = vadd.f32 %v217, %v472
        %v521 = vadd.f32 %v217, %v475
        %v522 = vadd.f32 %v217, %v480
        %v523 = vadd.f32 %v217, %v483
        %v524 = vadd.f32 %v217, %v488
        %v525 = vadd.f32 %v217, %v491
        %v526 = vld [vmem:[%s220 + $0x1] sm:$0xff]
        %v527 = vld [vmem:[%s220 + $0x9] sm:$0xff]
        %v528 = vld [vmem:[%s220 + $0x19] sm:$0xff]
        %v529 = vld [vmem:[%s220 + $0x21] sm:$0xff]
        %v530 = vld [vmem:[%s220 + $0x31] sm:$0xff]
        %v531 = vld [vmem:[%s220 + $0x39] sm:$0xff]
        %v532 = vld [vmem:[%s220 + $0x49] sm:$0xff]
        %v533 = vld [vmem:[%s220 + $0x51] sm:$0xff]
        %v534 = vld [vmem:[%s220 + $0x61] sm:$0xff]
        %v535 = vld [vmem:[%s220 + $0x69] sm:$0xff]
        %v536 = vld [vmem:[%s220 + $0x79] sm:$0xff]
        %v537 = vld [vmem:[%s220 + $0x81] sm:$0xff]
        %v538 = vld [vmem:[%s220 + $0x91] sm:$0xff]
        %v539 = vld [vmem:[%s220 + $0x99] sm:$0xff]
        %v540 = vld [vmem:[%s220 + $0xa9] sm:$0xff]
        %v541 = vld [vmem:[%s220 + $0xb1] sm:$0xff]
        %v542 = vld [vmem:[%s220 + $0xc1] sm:$0xff]
        %v543 = vld [vmem:[%s220 + $0xc9] sm:$0xff]
        %v544 = vld [vmem:[%s220 + $0xd9] sm:$0xff]
        %v545 = vld [vmem:[%s220 + $0xe1] sm:$0xff]
        %v546 = vld [vmem:[%s220 + $0xf1] sm:$0xff]
        %v547 = vld [vmem:[%s220 + $0xf9] sm:$0xff]
        %v548 = vld [vmem:[%s220 + $0x109] sm:$0xff]
        %v549 = vld [vmem:[%s220 + $0x111] sm:$0xff]
        %v550 = vld [vmem:[%s220 + $0x121] sm:$0xff]
        %v551 = vld [vmem:[%s220 + $0x129] sm:$0xff]
        %v552 = vld [vmem:[%s220 + $0x139] sm:$0xff]
        %v553 = vld [vmem:[%s220 + $0x141] sm:$0xff]
        %v554 = vld [vmem:[%s220 + $0x151] sm:$0xff]
        %v555 = vld [vmem:[%s220 + $0x159] sm:$0xff]
        %v556 = vld [vmem:[%s220 + $0x169] sm:$0xff]
        %v557 = vld [vmem:[%s220 + $0x171] sm:$0xff]
        %v558 = vpack.c.bf16 %v527, %v526
        %v559 = vpack.c.bf16 %v529, %v528
        %v560 = vpack.c.bf16 %v531, %v530
        %v561 = vpack.c.bf16 %v533, %v532
        %v562 = vpack.c.bf16 %v535, %v534
        %v563 = vpack.c.bf16 %v537, %v536
        %v564 = vpack.c.bf16 %v539, %v538
        %v565 = vpack.c.bf16 %v541, %v540
        %v566 = vpack.c.bf16 %v543, %v542
        %v567 = vpack.c.bf16 %v545, %v544
        %v568 = vpack.c.bf16 %v547, %v546
        %v569 = vpack.c.bf16 %v549, %v548
        %v570 = vpack.c.bf16 %v551, %v550
        %v571 = vpack.c.bf16 %v553, %v552
        %v572 = vpack.c.bf16 %v555, %v554
        %v573 = vpack.c.bf16 %v557, %v556
        %s574 = scalar_lea.vmem [#allocation4], 64
        %v575 = vld [vmem:[%s574] sm:$0xf]
        %v576 = vld [vmem:[%s574 + $0x4] sm:$0xf]
        %v577 = vld [vmem:[%s574 + $0x8] sm:$0xf]
        %v578 = vld [vmem:[%s574 + $0xc] sm:$0xf]
        %v579 = vld [vmem:[%s574 + $0x10] sm:$0xf]
        %v580 = vld [vmem:[%s574 + $0x14] sm:$0xf]
        %v581 = vld [vmem:[%s574 + $0x18] sm:$0xf]
        %v582 = vld [vmem:[%s574 + $0x1c] sm:$0xf]
        %v583 = vld [vmem:[%s574 + $0x20] sm:$0xf]
        %v584 = vld [vmem:[%s574 + $0x24] sm:$0xf]
        %v585 = vld [vmem:[%s574 + $0x28] sm:$0xf]
        %v586 = vld [vmem:[%s574 + $0x2c] sm:$0xf]
        %v587 = vld [vmem:[%s574 + $0x30] sm:$0xf]
        %v588 = vld [vmem:[%s574 + $0x34] sm:$0xf]
        %v589 = vld [vmem:[%s574 + $0x38] sm:$0xf]
        %v590 = vld [vmem:[%s574 + $0x3c] sm:$0xf]
        %v607 = vunpack.c.l.b16 %v575
        %v608 = vunpack.c.l.b16 %v576
        %v609 = vunpack.c.l.b16 %v577
        %v610 = vunpack.c.l.b16 %v578
        %v611 = vunpack.c.l.b16 %v579
        %v612 = vunpack.c.l.b16 %v580
        %v613 = vunpack.c.l.b16 %v581
        %v614 = vunpack.c.l.b16 %v582
        %v615 = vunpack.c.l.b16 %v583
        %v616 = vunpack.c.l.b16 %v584
        %v617 = vunpack.c.l.b16 %v585
        %v618 = vunpack.c.l.b16 %v586
        %v619 = vunpack.c.l.b16 %v587
        %v620 = vunpack.c.l.b16 %v588
        %v621 = vunpack.c.l.b16 %v589
        %v622 = vunpack.c.l.b16 %v590
        %v623 = vpack.c.b16 %v608, %v607
        %v624 = vpack.c.b16 %v610, %v609
        %v625 = vpack.c.b16 %v612, %v611
        %v626 = vpack.c.b16 %v614, %v613
        %v627 = vpack.c.b16 %v616, %v615
        %v628 = vpack.c.b16 %v618, %v617
        %v629 = vpack.c.b16 %v620, %v619
        %v630 = vpack.c.b16 %v622, %v621
        %639 = vmatprep.subr.bf16.mxu0 0
        %640 = vmatpush1.bf16.msra.mxu0 %v630
        %641 = vmatprep.subr.bf16.mxu0 0
        %642 = vmatpush1.bf16.msra.mxu0 %v629
        %643 = vmatprep.subr.bf16.mxu0 0
        %644 = vmatpush1.bf16.msra.mxu0 %v628
        %645 = vmatprep.subr.bf16.mxu0 0
        %646 = vmatpush1.bf16.msra.mxu0 %v627
        %647 = vmatprep.subr.bf16.mxu0 0
        %648 = vmatpush1.bf16.msra.mxu0 %v626
        %649 = vmatprep.subr.bf16.mxu0 0
        %650 = vmatpush1.bf16.msra.mxu0 %v625
        %651 = vmatprep.subr.bf16.mxu0 0
        %652 = vmatpush1.bf16.msra.mxu0 %v624
        %653 = vmatprep.subr.bf16.mxu0 0
        %654 = vmatpush1.bf16.msra.mxu0 %v623
        %655 = vmatprep.subr.bf16.mxu0 0
        %656 = vmatpush2.bf16.msra.mxu0 0
        %657 = vmatprep.subr.bf16.mxu0 0
        %658 = vmatpush2.bf16.msra.mxu0 0
        %659 = vmatprep.subr.bf16.mxu0 0
        %660 = vmatpush2.bf16.msra.mxu0 0
        %661 = vmatprep.subr.bf16.mxu0 0
        %662 = vmatpush2.bf16.msra.mxu0 0
        %663 = vmatprep.subr.bf16.mxu0 0
        %664 = vmatpush2.bf16.msra.mxu0 0
        %665 = vmatprep.subr.bf16.mxu0 0
        %666 = vmatpush2.bf16.msra.mxu0 0
        %667 = vmatprep.subr.bf16.mxu0 0
        %668 = vmatpush2.bf16.msra.mxu0 0
        %669 = vmatprep.subr.bf16.mxu0 0
        %670 = vmatpush2.bf16.msra.mxu0 0
        %671 = vmatprep.mubr.bf16.mxu0 0
        %672 = vmatmul.mubr.bf16.gmra.mxu0 %v558
        %v673 = vpop.f32.mrf.mxu0
        %v674 = vadd.f32 0.0, %v673
        %v675 = vpop.f32.mrf.mxu0
        %v676 = vpop.f32.mrf.mxu0
        %v677 = vadd.f32 0.0, %v676
        %v678 = vpop.f32.mrf.mxu0
        %679 = vmatprep.mubr.bf16.mxu0 0
        %680 = vmatmul.mubr.bf16.gmra.mxu0 %v559
        %v681 = vpop.f32.mrf.mxu0
        %v682 = vadd.f32 0.0, %v681
        %v683 = vpop.f32.mrf.mxu0
        %v684 = vpop.f32.mrf.mxu0
        %v685 = vadd.f32 0.0, %v684
        %v686 = vpop.f32.mrf.mxu0
        %687 = vmatprep.mubr.bf16.mxu0 0
        %688 = vmatmul.mubr.bf16.gmra.mxu0 %v560
        %v689 = vpop.f32.mrf.mxu0
        %v690 = vadd.f32 0.0, %v689
        %v691 = vpop.f32.mrf.mxu0
        %v692 = vpop.f32.mrf.mxu0
        %v693 = vadd.f32 0.0, %v692
        %v694 = vpop.f32.mrf.mxu0
        %695 = vmatprep.mubr.bf16.mxu0 0
        %696 = vmatmul.mubr.bf16.gmra.mxu0 %v561
        %v697 = vpop.f32.mrf.mxu0
        %v698 = vadd.f32 0.0, %v697
        %v699 = vpop.f32.mrf.mxu0
        %v700 = vpop.f32.mrf.mxu0
        %v701 = vadd.f32 0.0, %v700
        %v702 = vpop.f32.mrf.mxu0
        %703 = vmatprep.mubr.bf16.mxu0 0
        %704 = vmatmul.mubr.bf16.gmra.mxu0 %v562
        %v705 = vpop.f32.mrf.mxu0
        %v706 = vadd.f32 0.0, %v705
        %v707 = vpop.f32.mrf.mxu0
        %v708 = vpop.f32.mrf.mxu0
        %v709 = vadd.f32 0.0, %v708
        %v710 = vpop.f32.mrf.mxu0
        %711 = vmatprep.mubr.bf16.mxu0 0
        %712 = vmatmul.mubr.bf16.gmra.mxu0 %v563
        %v713 = vpop.f32.mrf.mxu0
        %v714 = vadd.f32 0.0, %v713
        %v715 = vpop.f32.mrf.mxu0
        %v716 = vpop.f32.mrf.mxu0
        %v717 = vadd.f32 0.0, %v716
        %v718 = vpop.f32.mrf.mxu0
        %719 = vmatprep.mubr.bf16.mxu0 0
        %720 = vmatmul.mubr.bf16.gmra.mxu0 %v564
        %v721 = vpop.f32.mrf.mxu0
        %v722 = vadd.f32 0.0, %v721
        %v723 = vpop.f32.mrf.mxu0
        %v724 = vpop.f32.mrf.mxu0
        %v725 = vadd.f32 0.0, %v724
        %v726 = vpop.f32.mrf.mxu0
        %727 = vmatprep.mubr.bf16.mxu0 0
        %728 = vmatmul.mubr.bf16.gmra.mxu0 %v565
        %v729 = vpop.f32.mrf.mxu0
        %v730 = vadd.f32 0.0, %v729
        %v731 = vpop.f32.mrf.mxu0
        %v732 = vpop.f32.mrf.mxu0
        %v733 = vadd.f32 0.0, %v732
        %v734 = vpop.f32.mrf.mxu0
        %735 = vmatprep.mubr.bf16.mxu0 0
        %736 = vmatmul.mubr.bf16.gmra.mxu0 %v566
        %v737 = vpop.f32.mrf.mxu0
        %v738 = vadd.f32 0.0, %v737
        %v739 = vpop.f32.mrf.mxu0
        %v740 = vpop.f32.mrf.mxu0
        %v741 = vadd.f32 0.0, %v740
        %v742 = vpop.f32.mrf.mxu0
        %743 = vmatprep.mubr.bf16.mxu0 0
        %744 = vmatmul.mubr.bf16.gmra.mxu0 %v567
        %v745 = vpop.f32.mrf.mxu0
        %v746 = vadd.f32 0.0, %v745
        %v747 = vpop.f32.mrf.mxu0
        %v748 = vpop.f32.mrf.mxu0
        %v749 = vadd.f32 0.0, %v748
        %v750 = vpop.f32.mrf.mxu0
        %751 = vmatprep.mubr.bf16.mxu0 0
        %752 = vmatmul.mubr.bf16.gmra.mxu0 %v568
        %v753 = vpop.f32.mrf.mxu0
        %v754 = vadd.f32 0.0, %v753
        %v755 = vpop.f32.mrf.mxu0
        %v756 = vpop.f32.mrf.mxu0
        %v757 = vadd.f32 0.0, %v756
        %v758 = vpop.f32.mrf.mxu0
        %759 = vmatprep.mubr.bf16.mxu0 0
        %760 = vmatmul.mubr.bf16.gmra.mxu0 %v569
        %v761 = vpop.f32.mrf.mxu0
        %v762 = vadd.f32 0.0, %v761
        %v763 = vpop.f32.mrf.mxu0
        %v764 = vpop.f32.mrf.mxu0
        %v765 = vadd.f32 0.0, %v764
        %v766 = vpop.f32.mrf.mxu0
        %767 = vmatprep.mubr.bf16.mxu0 0
        %768 = vmatmul.mubr.bf16.gmra.mxu0 %v570
        %v769 = vpop.f32.mrf.mxu0
        %v770 = vadd.f32 0.0, %v769
        %v771 = vpop.f32.mrf.mxu0
        %v772 = vpop.f32.mrf.mxu0
        %v773 = vadd.f32 0.0, %v772
        %v774 = vpop.f32.mrf.mxu0
        %775 = vmatprep.mubr.bf16.mxu0 0
        %776 = vmatmul.mubr.bf16.gmra.mxu0 %v571
        %v777 = vpop.f32.mrf.mxu0
        %v778 = vadd.f32 0.0, %v777
        %v779 = vpop.f32.mrf.mxu0
        %v780 = vpop.f32.mrf.mxu0
        %v781 = vadd.f32 0.0, %v780
        %v782 = vpop.f32.mrf.mxu0
        %783 = vmatprep.mubr.bf16.mxu0 0
        %784 = vmatmul.mubr.bf16.gmra.mxu0 %v572
        %v785 = vpop.f32.mrf.mxu0
        %v786 = vadd.f32 0.0, %v785
        %v787 = vpop.f32.mrf.mxu0
        %v788 = vpop.f32.mrf.mxu0
        %v789 = vadd.f32 0.0, %v788
        %v790 = vpop.f32.mrf.mxu0
        %791 = vmatprep.mubr.bf16.mxu0 0
        %792 = vmatmul.mubr.bf16.gmra.mxu0 %v573
        %v793 = vpop.f32.mrf.mxu0
        %v794 = vadd.f32 0.0, %v793
        %v795 = vpop.f32.mrf.mxu0
        %v796 = vpop.f32.mrf.mxu0
        %v797 = vadd.f32 0.0, %v796
        %v798 = vpop.f32.mrf.mxu0
        %799 = vdwg.mxu0
        %v800 = vadd.f32 %v494, %v674
        %v801 = vadd.f32 %v495, %v677
        %v802 = vadd.f32 %v496, %v682
        %v803 = vadd.f32 %v497, %v685
        %v804 = vadd.f32 %v498, %v690
        %v805 = vadd.f32 %v499, %v693
        %v806 = vadd.f32 %v500, %v698
        %v807 = vadd.f32 %v501, %v701
        %v808 = vadd.f32 %v502, %v706
        %v809 = vadd.f32 %v503, %v709
        %v810 = vadd.f32 %v504, %v714
        %v811 = vadd.f32 %v505, %v717
        %v812 = vadd.f32 %v506, %v722
        %v813 = vadd.f32 %v507, %v725
        %v814 = vadd.f32 %v508, %v730
        %v815 = vadd.f32 %v509, %v733
        %v816 = vadd.f32 %v510, %v738
        %v817 = vadd.f32 %v511, %v741
        %v818 = vadd.f32 %v512, %v746
        %v819 = vadd.f32 %v513, %v749
        %v820 = vadd.f32 %v514, %v754
        %v821 = vadd.f32 %v515, %v757
        %v822 = vadd.f32 %v516, %v762
        %v823 = vadd.f32 %v517, %v765
        %v824 = vadd.f32 %v518, %v770
        %v825 = vadd.f32 %v519, %v773
        %v826 = vadd.f32 %v520, %v778
        %v827 = vadd.f32 %v521, %v781
        %v828 = vadd.f32 %v522, %v786
        %v829 = vadd.f32 %v523, %v789
        %v830 = vadd.f32 %v524, %v794
        %v831 = vadd.f32 %v525, %v797
        %v832 = vld [vmem:[%s220 + $0x2] sm:$0xff]
        %v833 = vld [vmem:[%s220 + $0xa] sm:$0xff]
        %v834 = vld [vmem:[%s220 + $0x1a] sm:$0xff]
        %v835 = vld [vmem:[%s220 + $0x22] sm:$0xff]
        %v836 = vld [vmem:[%s220 + $0x32] sm:$0xff]
        %v837 = vld [vmem:[%s220 + $0x3a] sm:$0xff]
        %v838 = vld [vmem:[%s220 + $0x4a] sm:$0xff]
        %v839 = vld [vmem:[%s220 + $0x52] sm:$0xff]
        %v840 = vld [vmem:[%s220 + $0x62] sm:$0xff]
        %v841 = vld [vmem:[%s220 + $0x6a] sm:$0xff]
        %v842 = vld [vmem:[%s220 + $0x7a] sm:$0xff]
        %v843 = vld [vmem:[%s220 + $0x82] sm:$0xff]
        %v844 = vld [vmem:[%s220 + $0x92] sm:$0xff]
        %v845 = vld [vmem:[%s220 + $0x9a] sm:$0xff]
        %v846 = vld [vmem:[%s220 + $0xaa] sm:$0xff]
        %v847 = vld [vmem:[%s220 + $0xb2] sm:$0xff]
        %v848 = vld [vmem:[%s220 + $0xc2] sm:$0xff]
        %v849 = vld [vmem:[%s220 + $0xca] sm:$0xff]
        %v850 = vld [vmem:[%s220 + $0xda] sm:$0xff]
        %v851 = vld [vmem:[%s220 + $0xe2] sm:$0xff]
        %v852 = vld [vmem:[%s220 + $0xf2] sm:$0xff]
        %v853 = vld [vmem:[%s220 + $0xfa] sm:$0xff]
        %v854 = vld [vmem:[%s220 + $0x10a] sm:$0xff]
        %v855 = vld [vmem:[%s220 + $0x112] sm:$0xff]
        %v856 = vld [vmem:[%s220 + $0x122] sm:$0xff]
        %v857 = vld [vmem:[%s220 + $0x12a] sm:$0xff]
        %v858 = vld [vmem:[%s220 + $0x13a] sm:$0xff]
        %v859 = vld [vmem:[%s220 + $0x142] sm:$0xff]
        %v860 = vld [vmem:[%s220 + $0x152] sm:$0xff]
        %v861 = vld [vmem:[%s220 + $0x15a] sm:$0xff]
        %v862 = vld [vmem:[%s220 + $0x16a] sm:$0xff]
        %v863 = vld [vmem:[%s220 + $0x172] sm:$0xff]
        %v864 = vpack.c.bf16 %v833, %v832
        %v865 = vpack.c.bf16 %v835, %v834
        %v866 = vpack.c.bf16 %v837, %v836
        %v867 = vpack.c.bf16 %v839, %v838
        %v868 = vpack.c.bf16 %v841, %v840
        %v869 = vpack.c.bf16 %v843, %v842
        %v870 = vpack.c.bf16 %v845, %v844
        %v871 = vpack.c.bf16 %v847, %v846
        %v872 = vpack.c.bf16 %v849, %v848
        %v873 = vpack.c.bf16 %v851, %v850
        %v874 = vpack.c.bf16 %v853, %v852
        %v875 = vpack.c.bf16 %v855, %v854
        %v876 = vpack.c.bf16 %v857, %v856
        %v877 = vpack.c.bf16 %v859, %v858
        %v878 = vpack.c.bf16 %v861, %v860
        %v879 = vpack.c.bf16 %v863, %v862
        %s880 = scalar_lea.vmem [#allocation4], 128
        %v881 = vld [vmem:[%s880] sm:$0xf]
        %v882 = vld [vmem:[%s880 + $0x4] sm:$0xf]
        %v883 = vld [vmem:[%s880 + $0x8] sm:$0xf]
        %v884 = vld [vmem:[%s880 + $0xc] sm:$0xf]
        %v885 = vld [vmem:[%s880 + $0x10] sm:$0xf]
        %v886 = vld [vmem:[%s880 + $0x14] sm:$0xf]
        %v887 = vld [vmem:[%s880 + $0x18] sm:$0xf]
        %v888 = vld [vmem:[%s880 + $0x1c] sm:$0xf]
        %v889 = vld [vmem:[%s880 + $0x20] sm:$0xf]
        %v890 = vld [vmem:[%s880 + $0x24] sm:$0xf]
        %v891 = vld [vmem:[%s880 + $0x28] sm:$0xf]
        %v892 = vld [vmem:[%s880 + $0x2c] sm:$0xf]
        %v893 = vld [vmem:[%s880 + $0x30] sm:$0xf]
        %v894 = vld [vmem:[%s880 + $0x34] sm:$0xf]
        %v895 = vld [vmem:[%s880 + $0x38] sm:$0xf]
        %v896 = vld [vmem:[%s880 + $0x3c] sm:$0xf]
        %v913 = vunpack.c.l.b16 %v881
        %v914 = vunpack.c.l.b16 %v882
        %v915 = vunpack.c.l.b16 %v883
        %v916 = vunpack.c.l.b16 %v884
        %v917 = vunpack.c.l.b16 %v885
        %v918 = vunpack.c.l.b16 %v886
        %v919 = vunpack.c.l.b16 %v887
        %v920 = vunpack.c.l.b16 %v888
        %v921 = vunpack.c.l.b16 %v889
        %v922 = vunpack.c.l.b16 %v890
        %v923 = vunpack.c.l.b16 %v891
        %v924 = vunpack.c.l.b16 %v892
        %v925 = vunpack.c.l.b16 %v893
        %v926 = vunpack.c.l.b16 %v894
        %v927 = vunpack.c.l.b16 %v895
        %v928 = vunpack.c.l.b16 %v896
        %v929 = vpack.c.b16 %v914, %v913
        %v930 = vpack.c.b16 %v916, %v915
        %v931 = vpack.c.b16 %v918, %v917
        %v932 = vpack.c.b16 %v920, %v919
        %v933 = vpack.c.b16 %v922, %v921
        %v934 = vpack.c.b16 %v924, %v923
        %v935 = vpack.c.b16 %v926, %v925
        %v936 = vpack.c.b16 %v928, %v927
        %945 = vmatprep.subr.bf16.mxu0 0
        %946 = vmatpush1.bf16.msra.mxu0 %v936
        %947 = vmatprep.subr.bf16.mxu0 0
        %948 = vmatpush1.bf16.msra.mxu0 %v935
        %949 = vmatprep.subr.bf16.mxu0 0
        %950 = vmatpush1.bf16.msra.mxu0 %v934
        %951 = vmatprep.subr.bf16.mxu0 0
        %952 = vmatpush1.bf16.msra.mxu0 %v933
        %953 = vmatprep.subr.bf16.mxu0 0
        %954 = vmatpush1.bf16.msra.mxu0 %v932
        %955 = vmatprep.subr.bf16.mxu0 0
        %956 = vmatpush1.bf16.msra.mxu0 %v931
        %957 = vmatprep.subr.bf16.mxu0 0
        %958 = vmatpush1.bf16.msra.mxu0 %v930
        %959 = vmatprep.subr.bf16.mxu0 0
        %960 = vmatpush1.bf16.msra.mxu0 %v929
        %961 = vmatprep.subr.bf16.mxu0 0
        %962 = vmatpush2.bf16.msra.mxu0 0
        %963 = vmatprep.subr.bf16.mxu0 0
        %964 = vmatpush2.bf16.msra.mxu0 0
        %965 = vmatprep.subr.bf16.mxu0 0
        %966 = vmatpush2.bf16.msra.mxu0 0
        %967 = vmatprep.subr.bf16.mxu0 0
        %968 = vmatpush2.bf16.msra.mxu0 0
        %969 = vmatprep.subr.bf16.mxu0 0
        %970 = vmatpush2.bf16.msra.mxu0 0
        %971 = vmatprep.subr.bf16.mxu0 0
        %972 = vmatpush2.bf16.msra.mxu0 0
        %973 = vmatprep.subr.bf16.mxu0 0
        %974 = vmatpush2.bf16.msra.mxu0 0
        %975 = vmatprep.subr.bf16.mxu0 0
        %976 = vmatpush2.bf16.msra.mxu0 0
        %977 = vmatprep.mubr.bf16.mxu0 0
        %978 = vmatmul.mubr.bf16.gmra.mxu0 %v864
        %v979 = vpop.f32.mrf.mxu0
        %v980 = vadd.f32 0.0, %v979
        %v981 = vpop.f32.mrf.mxu0
        %v982 = vpop.f32.mrf.mxu0
        %v983 = vadd.f32 0.0, %v982
        %v984 = vpop.f32.mrf.mxu0
        %985 = vmatprep.mubr.bf16.mxu0 0
        %986 = vmatmul.mubr.bf16.gmra.mxu0 %v865
        %v987 = vpop.f32.mrf.mxu0
        %v988 = vadd.f32 0.0, %v987
        %v989 = vpop.f32.mrf.mxu0
        %v990 = vpop.f32.mrf.mxu0
        %v991 = vadd.f32 0.0, %v990
        %v992 = vpop.f32.mrf.mxu0
        %993 = vmatprep.mubr.bf16.mxu0 0
        %994 = vmatmul.mubr.bf16.gmra.mxu0 %v866
        %v995 = vpop.f32.mrf.mxu0
        %v996 = vadd.f32 0.0, %v995
        %v997 = vpop.f32.mrf.mxu0
        %v998 = vpop.f32.mrf.mxu0
        %v999 = vadd.f32 0.0, %v998
        %v1000 = vpop.f32.mrf.mxu0
        %1001 = vmatprep.mubr.bf16.mxu0 0
        %1002 = vmatmul.mubr.bf16.gmra.mxu0 %v867
        %v1003 = vpop.f32.mrf.mxu0
        %v1004 = vadd.f32 0.0, %v1003
        %v1005 = vpop.f32.mrf.mxu0
        %v1006 = vpop.f32.mrf.mxu0
        %v1007 = vadd.f32 0.0, %v1006
        %v1008 = vpop.f32.mrf.mxu0
        %1009 = vmatprep.mubr.bf16.mxu0 0
        %1010 = vmatmul.mubr.bf16.gmra.mxu0 %v868
        %v1011 = vpop.f32.mrf.mxu0
        %v1012 = vadd.f32 0.0, %v1011
        %v1013 = vpop.f32.mrf.mxu0
        %v1014 = vpop.f32.mrf.mxu0
        %v1015 = vadd.f32 0.0, %v1014
        %v1016 = vpop.f32.mrf.mxu0
        %1017 = vmatprep.mubr.bf16.mxu0 0
        %1018 = vmatmul.mubr.bf16.gmra.mxu0 %v869
        %v1019 = vpop.f32.mrf.mxu0
        %v1020 = vadd.f32 0.0, %v1019
        %v1021 = vpop.f32.mrf.mxu0
        %v1022 = vpop.f32.mrf.mxu0
        %v1023 = vadd.f32 0.0, %v1022
        %v1024 = vpop.f32.mrf.mxu0
        %1025 = vmatprep.mubr.bf16.mxu0 0
        %1026 = vmatmul.mubr.bf16.gmra.mxu0 %v870
        %v1027 = vpop.f32.mrf.mxu0
        %v1028 = vadd.f32 0.0, %v1027
        %v1029 = vpop.f32.mrf.mxu0
        %v1030 = vpop.f32.mrf.mxu0
        %v1031 = vadd.f32 0.0, %v1030
        %v1032 = vpop.f32.mrf.mxu0
        %1033 = vmatprep.mubr.bf16.mxu0 0
        %1034 = vmatmul.mubr.bf16.gmra.mxu0 %v871
        %v1035 = vpop.f32.mrf.mxu0
        %v1036 = vadd.f32 0.0, %v1035
        %v1037 = vpop.f32.mrf.mxu0
        %v1038 = vpop.f32.mrf.mxu0
        %v1039 = vadd.f32 0.0, %v1038
        %v1040 = vpop.f32.mrf.mxu0
        %1041 = vmatprep.mubr.bf16.mxu0 0
        %1042 = vmatmul.mubr.bf16.gmra.mxu0 %v872
        %v1043 = vpop.f32.mrf.mxu0
        %v1044 = vadd.f32 0.0, %v1043
        %v1045 = vpop.f32.mrf.mxu0
        %v1046 = vpop.f32.mrf.mxu0
        %v1047 = vadd.f32 0.0, %v1046
        %v1048 = vpop.f32.mrf.mxu0
        %1049 = vmatprep.mubr.bf16.mxu0 0
        %1050 = vmatmul.mubr.bf16.gmra.mxu0 %v873
        %v1051 = vpop.f32.mrf.mxu0
        %v1052 = vadd.f32 0.0, %v1051
        %v1053 = vpop.f32.mrf.mxu0
        %v1054 = vpop.f32.mrf.mxu0
        %v1055 = vadd.f32 0.0, %v1054
        %v1056 = vpop.f32.mrf.mxu0
        %1057 = vmatprep.mubr.bf16.mxu0 0
        %1058 = vmatmul.mubr.bf16.gmra.mxu0 %v874
        %v1059 = vpop.f32.mrf.mxu0
        %v1060 = vadd.f32 0.0, %v1059
        %v1061 = vpop.f32.mrf.mxu0
        %v1062 = vpop.f32.mrf.mxu0
        %v1063 = vadd.f32 0.0, %v1062
        %v1064 = vpop.f32.mrf.mxu0
        %1065 = vmatprep.mubr.bf16.mxu0 0
        %1066 = vmatmul.mubr.bf16.gmra.mxu0 %v875
        %v1067 = vpop.f32.mrf.mxu0
        %v1068 = vadd.f32 0.0, %v1067
        %v1069 = vpop.f32.mrf.mxu0
        %v1070 = vpop.f32.mrf.mxu0
        %v1071 = vadd.f32 0.0, %v1070
        %v1072 = vpop.f32.mrf.mxu0
        %1073 = vmatprep.mubr.bf16.mxu0 0
        %1074 = vmatmul.mubr.bf16.gmra.mxu0 %v876
        %v1075 = vpop.f32.mrf.mxu0
        %v1076 = vadd.f32 0.0, %v1075
        %v1077 = vpop.f32.mrf.mxu0
        %v1078 = vpop.f32.mrf.mxu0
        %v1079 = vadd.f32 0.0, %v1078
        %v1080 = vpop.f32.mrf.mxu0
        %1081 = vmatprep.mubr.bf16.mxu0 0
        %1082 = vmatmul.mubr.bf16.gmra.mxu0 %v877
        %v1083 = vpop.f32.mrf.mxu0
        %v1084 = vadd.f32 0.0, %v1083
        %v1085 = vpop.f32.mrf.mxu0
        %v1086 = vpop.f32.mrf.mxu0
        %v1087 = vadd.f32 0.0, %v1086
        %v1088 = vpop.f32.mrf.mxu0
        %1089 = vmatprep.mubr.bf16.mxu0 0
        %1090 = vmatmul.mubr.bf16.gmra.mxu0 %v878
        %v1091 = vpop.f32.mrf.mxu0
        %v1092 = vadd.f32 0.0, %v1091
        %v1093 = vpop.f32.mrf.mxu0
        %v1094 = vpop.f32.mrf.mxu0
        %v1095 = vadd.f32 0.0, %v1094
        %v1096 = vpop.f32.mrf.mxu0
        %1097 = vmatprep.mubr.bf16.mxu0 0
        %1098 = vmatmul.mubr.bf16.gmra.mxu0 %v879
        %v1099 = vpop.f32.mrf.mxu0
        %v1100 = vadd.f32 0.0, %v1099
        %v1101 = vpop.f32.mrf.mxu0
        %v1102 = vpop.f32.mrf.mxu0
        %v1103 = vadd.f32 0.0, %v1102
        %v1104 = vpop.f32.mrf.mxu0
        %1105 = vdwg.mxu0
        %v1106 = vadd.f32 %v800, %v980
        %v1107 = vadd.f32 %v801, %v983
        %v1108 = vadd.f32 %v802, %v988
        %v1109 = vadd.f32 %v803, %v991
        %v1110 = vadd.f32 %v804, %v996
        %v1111 = vadd.f32 %v805, %v999
        %v1112 = vadd.f32 %v806, %v1004
        %v1113 = vadd.f32 %v807, %v1007
        %v1114 = vadd.f32 %v808, %v1012
        %v1115 = vadd.f32 %v809, %v1015
        %v1116 = vadd.f32 %v810, %v1020
        %v1117 = vadd.f32 %v811, %v1023
        %v1118 = vadd.f32 %v812, %v1028
        %v1119 = vadd.f32 %v813, %v1031
        %v1120 = vadd.f32 %v814, %v1036
        %v1121 = vadd.f32 %v815, %v1039
        %v1122 = vadd.f32 %v816, %v1044
        %v1123 = vadd.f32 %v817, %v1047
        %v1124 = vadd.f32 %v818, %v1052
        %v1125 = vadd.f32 %v819, %v1055
        %v1126 = vadd.f32 %v820, %v1060
        %v1127 = vadd.f32 %v821, %v1063
        %v1128 = vadd.f32 %v822, %v1068
        %v1129 = vadd.f32 %v823, %v1071
        %v1130 = vadd.f32 %v824, %v1076
        %v1131 = vadd.f32 %v825, %v1079
        %v1132 = vadd.f32 %v826, %v1084
        %v1133 = vadd.f32 %v827, %v1087
        %v1134 = vadd.f32 %v828, %v1092
        %v1135 = vadd.f32 %v829, %v1095
        %v1136 = vadd.f32 %v830, %v1100
        %v1137 = vadd.f32 %v831, %v1103
        %s1138 = sadd.s32 %s211, 1
        %s1139 = smul.u32 %s1138, 24
        %s1140 = scalar_lea.vmem [#allocation2], %s1139
        %v1141 = vld [vmem:[%s1140] sm:$0xff]
        %v1142 = vld [vmem:[%s1140 + $0x8] sm:$0xff]
        %v1143 = vld [vmem:[%s1140 + $0x18] sm:$0xff]
        %v1144 = vld [vmem:[%s1140 + $0x20] sm:$0xff]
        %v1145 = vld [vmem:[%s1140 + $0x30] sm:$0xff]
        %v1146 = vld [vmem:[%s1140 + $0x38] sm:$0xff]
        %v1147 = vld [vmem:[%s1140 + $0x48] sm:$0xff]
        %v1148 = vld [vmem:[%s1140 + $0x50] sm:$0xff]
        %v1149 = vld [vmem:[%s1140 + $0x60] sm:$0xff]
        %v1150 = vld [vmem:[%s1140 + $0x68] sm:$0xff]
        %v1151 = vld [vmem:[%s1140 + $0x78] sm:$0xff]
        %v1152 = vld [vmem:[%s1140 + $0x80] sm:$0xff]
        %v1153 = vld [vmem:[%s1140 + $0x90] sm:$0xff]
        %v1154 = vld [vmem:[%s1140 + $0x98] sm:$0xff]
        %v1155 = vld [vmem:[%s1140 + $0xa8] sm:$0xff]
        %v1156 = vld [vmem:[%s1140 + $0xb0] sm:$0xff]
        %v1157 = vld [vmem:[%s1140 + $0xc0] sm:$0xff]
        %v1158 = vld [vmem:[%s1140 + $0xc8] sm:$0xff]
        %v1159 = vld [vmem:[%s1140 + $0xd8] sm:$0xff]
        %v1160 = vld [vmem:[%s1140 + $0xe0] sm:$0xff]
        %v1161 = vld [vmem:[%s1140 + $0xf0] sm:$0xff]
        %v1162 = vld [vmem:[%s1140 + $0xf8] sm:$0xff]
        %v1163 = vld [vmem:[%s1140 + $0x108] sm:$0xff]
        %v1164 = vld [vmem:[%s1140 + $0x110] sm:$0xff]
        %v1165 = vld [vmem:[%s1140 + $0x120] sm:$0xff]
        %v1166 = vld [vmem:[%s1140 + $0x128] sm:$0xff]
        %v1167 = vld [vmem:[%s1140 + $0x138] sm:$0xff]
        %v1168 = vld [vmem:[%s1140 + $0x140] sm:$0xff]
        %v1169 = vld [vmem:[%s1140 + $0x150] sm:$0xff]
        %v1170 = vld [vmem:[%s1140 + $0x158] sm:$0xff]
        %v1171 = vld [vmem:[%s1140 + $0x168] sm:$0xff]
        %v1172 = vld [vmem:[%s1140 + $0x170] sm:$0xff]
        %v1173 = vpack.c.bf16 %v1142, %v1141
        %v1174 = vpack.c.bf16 %v1144, %v1143
        %v1175 = vpack.c.bf16 %v1146, %v1145
        %v1176 = vpack.c.bf16 %v1148, %v1147
        %v1177 = vpack.c.bf16 %v1150, %v1149
        %v1178 = vpack.c.bf16 %v1152, %v1151
        %v1179 = vpack.c.bf16 %v1154, %v1153
        %v1180 = vpack.c.bf16 %v1156, %v1155
        %v1181 = vpack.c.bf16 %v1158, %v1157
        %v1182 = vpack.c.bf16 %v1160, %v1159
        %v1183 = vpack.c.bf16 %v1162, %v1161
        %v1184 = vpack.c.bf16 %v1164, %v1163
        %v1185 = vpack.c.bf16 %v1166, %v1165
        %v1186 = vpack.c.bf16 %v1168, %v1167
        %v1187 = vpack.c.bf16 %v1170, %v1169
        %v1188 = vpack.c.bf16 %v1172, %v1171
        %s1189 = scalar_lea.vmem [#allocation4], 192
        %v1190 = vld [vmem:[%s1189] sm:$0xf]
        %v1191 = vld [vmem:[%s1189 + $0x4] sm:$0xf]
        %v1192 = vld [vmem:[%s1189 + $0x8] sm:$0xf]
        %v1193 = vld [vmem:[%s1189 + $0xc] sm:$0xf]
        %v1194 = vld [vmem:[%s1189 + $0x10] sm:$0xf]
        %v1195 = vld [vmem:[%s1189 + $0x14] sm:$0xf]
        %v1196 = vld [vmem:[%s1189 + $0x18] sm:$0xf]
        %v1197 = vld [vmem:[%s1189 + $0x1c] sm:$0xf]
        %v1198 = vld [vmem:[%s1189 + $0x20] sm:$0xf]
        %v1199 = vld [vmem:[%s1189 + $0x24] sm:$0xf]
        %v1200 = vld [vmem:[%s1189 + $0x28] sm:$0xf]
        %v1201 = vld [vmem:[%s1189 + $0x2c] sm:$0xf]
        %v1202 = vld [vmem:[%s1189 + $0x30] sm:$0xf]
        %v1203 = vld [vmem:[%s1189 + $0x34] sm:$0xf]
        %v1204 = vld [vmem:[%s1189 + $0x38] sm:$0xf]
        %v1205 = vld [vmem:[%s1189 + $0x3c] sm:$0xf]
        %v1222 = vunpack.c.l.b16 %v1190
        %v1223 = vunpack.c.l.b16 %v1191
        %v1224 = vunpack.c.l.b16 %v1192
        %v1225 = vunpack.c.l.b16 %v1193
        %v1226 = vunpack.c.l.b16 %v1194
        %v1227 = vunpack.c.l.b16 %v1195
        %v1228 = vunpack.c.l.b16 %v1196
        %v1229 = vunpack.c.l.b16 %v1197
        %v1230 = vunpack.c.l.b16 %v1198
        %v1231 = vunpack.c.l.b16 %v1199
        %v1232 = vunpack.c.l.b16 %v1200
        %v1233 = vunpack.c.l.b16 %v1201
        %v1234 = vunpack.c.l.b16 %v1202
        %v1235 = vunpack.c.l.b16 %v1203
        %v1236 = vunpack.c.l.b16 %v1204
        %v1237 = vunpack.c.l.b16 %v1205
        %v1238 = vpack.c.b16 %v1223, %v1222
        %v1239 = vpack.c.b16 %v1225, %v1224
        %v1240 = vpack.c.b16 %v1227, %v1226
        %v1241 = vpack.c.b16 %v1229, %v1228
        %v1242 = vpack.c.b16 %v1231, %v1230
        %v1243 = vpack.c.b16 %v1233, %v1232
        %v1244 = vpack.c.b16 %v1235, %v1234
        %v1245 = vpack.c.b16 %v1237, %v1236
        %1254 = vmatprep.subr.bf16.mxu0 0
        %1255 = vmatpush1.bf16.msra.mxu0 %v1245
        %1256 = vmatprep.subr.bf16.mxu0 0
        %1257 = vmatpush1.bf16.msra.mxu0 %v1244
        %1258 = vmatprep.subr.bf16.mxu0 0
        %1259 = vmatpush1.bf16.msra.mxu0 %v1243
        %1260 = vmatprep.subr.bf16.mxu0 0
        %1261 = vmatpush1.bf16.msra.mxu0 %v1242
        %1262 = vmatprep.subr.bf16.mxu0 0
        %1263 = vmatpush1.bf16.msra.mxu0 %v1241
        %1264 = vmatprep.subr.bf16.mxu0 0
        %1265 = vmatpush1.bf16.msra.mxu0 %v1240
        %1266 = vmatprep.subr.bf16.mxu0 0
        %1267 = vmatpush1.bf16.msra.mxu0 %v1239
        %1268 = vmatprep.subr.bf16.mxu0 0
        %1269 = vmatpush1.bf16.msra.mxu0 %v1238
        %1270 = vmatprep.subr.bf16.mxu0 0
        %1271 = vmatpush2.bf16.msra.mxu0 0
        %1272 = vmatprep.subr.bf16.mxu0 0
        %1273 = vmatpush2.bf16.msra.mxu0 0
        %1274 = vmatprep.subr.bf16.mxu0 0
        %1275 = vmatpush2.bf16.msra.mxu0 0
        %1276 = vmatprep.subr.bf16.mxu0 0
        %1277 = vmatpush2.bf16.msra.mxu0 0
        %1278 = vmatprep.subr.bf16.mxu0 0
        %1279 = vmatpush2.bf16.msra.mxu0 0
        %1280 = vmatprep.subr.bf16.mxu0 0
        %1281 = vmatpush2.bf16.msra.mxu0 0
        %1282 = vmatprep.subr.bf16.mxu0 0
        %1283 = vmatpush2.bf16.msra.mxu0 0
        %1284 = vmatprep.subr.bf16.mxu0 0
        %1285 = vmatpush2.bf16.msra.mxu0 0
        %1286 = vmatprep.mubr.bf16.mxu0 0
        %1287 = vmatmul.mubr.bf16.gmra.mxu0 %v1173
        %v1288 = vpop.f32.mrf.mxu0
        %v1289 = vadd.f32 0.0, %v1288
        %v1290 = vpop.f32.mrf.mxu0
        %v1291 = vpop.f32.mrf.mxu0
        %v1292 = vadd.f32 0.0, %v1291
        %v1293 = vpop.f32.mrf.mxu0
        %1294 = vmatprep.mubr.bf16.mxu0 0
        %1295 = vmatmul.mubr.bf16.gmra.mxu0 %v1174
        %v1296 = vpop.f32.mrf.mxu0
        %v1297 = vadd.f32 0.0, %v1296
        %v1298 = vpop.f32.mrf.mxu0
        %v1299 = vpop.f32.mrf.mxu0
        %v1300 = vadd.f32 0.0, %v1299
        %v1301 = vpop.f32.mrf.mxu0
        %1302 = vmatprep.mubr.bf16.mxu0 0
        %1303 = vmatmul.mubr.bf16.gmra.mxu0 %v1175
        %v1304 = vpop.f32.mrf.mxu0
        %v1305 = vadd.f32 0.0, %v1304
        %v1306 = vpop.f32.mrf.mxu0
        %v1307 = vpop.f32.mrf.mxu0
        %v1308 = vadd.f32 0.0, %v1307
        %v1309 = vpop.f32.mrf.mxu0
        %1310 = vmatprep.mubr.bf16.mxu0 0
        %1311 = vmatmul.mubr.bf16.gmra.mxu0 %v1176
        %v1312 = vpop.f32.mrf.mxu0
        %v1313 = vadd.f32 0.0, %v1312
        %v1314 = vpop.f32.mrf.mxu0
        %v1315 = vpop.f32.mrf.mxu0
        %v1316 = vadd.f32 0.0, %v1315
        %v1317 = vpop.f32.mrf.mxu0
        %1318 = vmatprep.mubr.bf16.mxu0 0
        %1319 = vmatmul.mubr.bf16.gmra.mxu0 %v1177
        %v1320 = vpop.f32.mrf.mxu0
        %v1321 = vadd.f32 0.0, %v1320
        %v1322 = vpop.f32.mrf.mxu0
        %v1323 = vpop.f32.mrf.mxu0
        %v1324 = vadd.f32 0.0, %v1323
        %v1325 = vpop.f32.mrf.mxu0
        %1326 = vmatprep.mubr.bf16.mxu0 0
        %1327 = vmatmul.mubr.bf16.gmra.mxu0 %v1178
        %v1328 = vpop.f32.mrf.mxu0
        %v1329 = vadd.f32 0.0, %v1328
        %v1330 = vpop.f32.mrf.mxu0
        %v1331 = vpop.f32.mrf.mxu0
        %v1332 = vadd.f32 0.0, %v1331
        %v1333 = vpop.f32.mrf.mxu0
        %1334 = vmatprep.mubr.bf16.mxu0 0
        %1335 = vmatmul.mubr.bf16.gmra.mxu0 %v1179
        %v1336 = vpop.f32.mrf.mxu0
        %v1337 = vadd.f32 0.0, %v1336
        %v1338 = vpop.f32.mrf.mxu0
        %v1339 = vpop.f32.mrf.mxu0
        %v1340 = vadd.f32 0.0, %v1339
        %v1341 = vpop.f32.mrf.mxu0
        %1342 = vmatprep.mubr.bf16.mxu0 0
        %1343 = vmatmul.mubr.bf16.gmra.mxu0 %v1180
        %v1344 = vpop.f32.mrf.mxu0
        %v1345 = vadd.f32 0.0, %v1344
        %v1346 = vpop.f32.mrf.mxu0
        %v1347 = vpop.f32.mrf.mxu0
        %v1348 = vadd.f32 0.0, %v1347
        %v1349 = vpop.f32.mrf.mxu0
        %1350 = vmatprep.mubr.bf16.mxu0 0
        %1351 = vmatmul.mubr.bf16.gmra.mxu0 %v1181
        %v1352 = vpop.f32.mrf.mxu0
        %v1353 = vadd.f32 0.0, %v1352
        %v1354 = vpop.f32.mrf.mxu0
        %v1355 = vpop.f32.mrf.mxu0
        %v1356 = vadd.f32 0.0, %v1355
        %v1357 = vpop.f32.mrf.mxu0
        %1358 = vmatprep.mubr.bf16.mxu0 0
        %1359 = vmatmul.mubr.bf16.gmra.mxu0 %v1182
        %v1360 = vpop.f32.mrf.mxu0
        %v1361 = vadd.f32 0.0, %v1360
        %v1362 = vpop.f32.mrf.mxu0
        %v1363 = vpop.f32.mrf.mxu0
        %v1364 = vadd.f32 0.0, %v1363
        %v1365 = vpop.f32.mrf.mxu0
        %1366 = vmatprep.mubr.bf16.mxu0 0
        %1367 = vmatmul.mubr.bf16.gmra.mxu0 %v1183
        %v1368 = vpop.f32.mrf.mxu0
        %v1369 = vadd.f32 0.0, %v1368
        %v1370 = vpop.f32.mrf.mxu0
        %v1371 = vpop.f32.mrf.mxu0
        %v1372 = vadd.f32 0.0, %v1371
        %v1373 = vpop.f32.mrf.mxu0
        %1374 = vmatprep.mubr.bf16.mxu0 0
        %1375 = vmatmul.mubr.bf16.gmra.mxu0 %v1184
        %v1376 = vpop.f32.mrf.mxu0
        %v1377 = vadd.f32 0.0, %v1376
        %v1378 = vpop.f32.mrf.mxu0
        %v1379 = vpop.f32.mrf.mxu0
        %v1380 = vadd.f32 0.0, %v1379
        %v1381 = vpop.f32.mrf.mxu0
        %1382 = vmatprep.mubr.bf16.mxu0 0
        %1383 = vmatmul.mubr.bf16.gmra.mxu0 %v1185
        %v1384 = vpop.f32.mrf.mxu0
        %v1385 = vadd.f32 0.0, %v1384
        %v1386 = vpop.f32.mrf.mxu0
        %v1387 = vpop.f32.mrf.mxu0
        %v1388 = vadd.f32 0.0, %v1387
        %v1389 = vpop.f32.mrf.mxu0
        %1390 = vmatprep.mubr.bf16.mxu0 0
        %1391 = vmatmul.mubr.bf16.gmra.mxu0 %v1186
        %v1392 = vpop.f32.mrf.mxu0
        %v1393 = vadd.f32 0.0, %v1392
        %v1394 = vpop.f32.mrf.mxu0
        %v1395 = vpop.f32.mrf.mxu0
        %v1396 = vadd.f32 0.0, %v1395
        %v1397 = vpop.f32.mrf.mxu0
        %1398 = vmatprep.mubr.bf16.mxu0 0
        %1399 = vmatmul.mubr.bf16.gmra.mxu0 %v1187
        %v1400 = vpop.f32.mrf.mxu0
        %v1401 = vadd.f32 0.0, %v1400
        %v1402 = vpop.f32.mrf.mxu0
        %v1403 = vpop.f32.mrf.mxu0
        %v1404 = vadd.f32 0.0, %v1403
        %v1405 = vpop.f32.mrf.mxu0
        %1406 = vmatprep.mubr.bf16.mxu0 0
        %1407 = vmatmul.mubr.bf16.gmra.mxu0 %v1188
        %v1408 = vpop.f32.mrf.mxu0
        %v1409 = vadd.f32 0.0, %v1408
        %v1410 = vpop.f32.mrf.mxu0
        %v1411 = vpop.f32.mrf.mxu0
        %v1412 = vadd.f32 0.0, %v1411
        %v1413 = vpop.f32.mrf.mxu0
        %1414 = vdwg.mxu0
        %v1415 = vadd.f32 %v1106, %v1289
        %v1416 = vadd.f32 %v1107, %v1292
        %v1417 = vadd.f32 %v1108, %v1297
        %v1418 = vadd.f32 %v1109, %v1300
        %v1419 = vadd.f32 %v1110, %v1305
        %v1420 = vadd.f32 %v1111, %v1308
        %v1421 = vadd.f32 %v1112, %v1313
        %v1422 = vadd.f32 %v1113, %v1316
        %v1423 = vadd.f32 %v1114, %v1321
        %v1424 = vadd.f32 %v1115, %v1324
        %v1425 = vadd.f32 %v1116, %v1329
        %v1426 = vadd.f32 %v1117, %v1332
        %v1427 = vadd.f32 %v1118, %v1337
        %v1428 = vadd.f32 %v1119, %v1340
        %v1429 = vadd.f32 %v1120, %v1345
        %v1430 = vadd.f32 %v1121, %v1348
        %v1431 = vadd.f32 %v1122, %v1353
        %v1432 = vadd.f32 %v1123, %v1356
        %v1433 = vadd.f32 %v1124, %v1361
        %v1434 = vadd.f32 %v1125, %v1364
        %v1435 = vadd.f32 %v1126, %v1369
        %v1436 = vadd.f32 %v1127, %v1372
        %v1437 = vadd.f32 %v1128, %v1377
        %v1438 = vadd.f32 %v1129, %v1380
        %v1439 = vadd.f32 %v1130, %v1385
        %v1440 = vadd.f32 %v1131, %v1388
        %v1441 = vadd.f32 %v1132, %v1393
        %v1442 = vadd.f32 %v1133, %v1396
        %v1443 = vadd.f32 %v1134, %v1401
        %v1444 = vadd.f32 %v1135, %v1404
        %v1445 = vadd.f32 %v1136, %v1409
        %v1446 = vadd.f32 %v1137, %v1412
        %v1447 = vld [vmem:[%s1140 + $0x1] sm:$0xff]
        %v1448 = vld [vmem:[%s1140 + $0x9] sm:$0xff]
        %v1449 = vld [vmem:[%s1140 + $0x19] sm:$0xff]
        %v1450 = vld [vmem:[%s1140 + $0x21] sm:$0xff]
        %v1451 = vld [vmem:[%s1140 + $0x31] sm:$0xff]
        %v1452 = vld [vmem:[%s1140 + $0x39] sm:$0xff]
        %v1453 = vld [vmem:[%s1140 + $0x49] sm:$0xff]
        %v1454 = vld [vmem:[%s1140 + $0x51] sm:$0xff]
        %v1455 = vld [vmem:[%s1140 + $0x61] sm:$0xff]
        %v1456 = vld [vmem:[%s1140 + $0x69] sm:$0xff]
        %v1457 = vld [vmem:[%s1140 + $0x79] sm:$0xff]
        %v1458 = vld [vmem:[%s1140 + $0x81] sm:$0xff]
        %v1459 = vld [vmem:[%s1140 + $0x91] sm:$0xff]
        %v1460 = vld [vmem:[%s1140 + $0x99] sm:$0xff]
        %v1461 = vld [vmem:[%s1140 + $0xa9] sm:$0xff]
        %v1462 = vld [vmem:[%s1140 + $0xb1] sm:$0xff]
        %v1463 = vld [vmem:[%s1140 + $0xc1] sm:$0xff]
        %v1464 = vld [vmem:[%s1140 + $0xc9] sm:$0xff]
        %v1465 = vld [vmem:[%s1140 + $0xd9] sm:$0xff]
        %v1466 = vld [vmem:[%s1140 + $0xe1] sm:$0xff]
        %v1467 = vld [vmem:[%s1140 + $0xf1] sm:$0xff]
        %v1468 = vld [vmem:[%s1140 + $0xf9] sm:$0xff]
        %v1469 = vld [vmem:[%s1140 + $0x109] sm:$0xff]
        %v1470 = vld [vmem:[%s1140 + $0x111] sm:$0xff]
        %v1471 = vld [vmem:[%s1140 + $0x121] sm:$0xff]
        %v1472 = vld [vmem:[%s1140 + $0x129] sm:$0xff]
        %v1473 = vld [vmem:[%s1140 + $0x139] sm:$0xff]
        %v1474 = vld [vmem:[%s1140 + $0x141] sm:$0xff]
        %v1475 = vld [vmem:[%s1140 + $0x151] sm:$0xff]
        %v1476 = vld [vmem:[%s1140 + $0x159] sm:$0xff]
        %v1477 = vld [vmem:[%s1140 + $0x169] sm:$0xff]
        %v1478 = vld [vmem:[%s1140 + $0x171] sm:$0xff]
        %v1479 = vpack.c.bf16 %v1448, %v1447
        %v1480 = vpack.c.bf16 %v1450, %v1449
        %v1481 = vpack.c.bf16 %v1452, %v1451
        %v1482 = vpack.c.bf16 %v1454, %v1453
        %v1483 = vpack.c.bf16 %v1456, %v1455
        %v1484 = vpack.c.bf16 %v1458, %v1457
        %v1485 = vpack.c.bf16 %v1460, %v1459
        %v1486 = vpack.c.bf16 %v1462, %v1461
        %v1487 = vpack.c.bf16 %v1464, %v1463
        %v1488 = vpack.c.bf16 %v1466, %v1465
        %v1489 = vpack.c.bf16 %v1468, %v1467
        %v1490 = vpack.c.bf16 %v1470, %v1469
        %v1491 = vpack.c.bf16 %v1472, %v1471
        %v1492 = vpack.c.bf16 %v1474, %v1473
        %v1493 = vpack.c.bf16 %v1476, %v1475
        %v1494 = vpack.c.bf16 %v1478, %v1477
        %s1495 = scalar_lea.vmem [#allocation4], 256
        %v1496 = vld [vmem:[%s1495] sm:$0xf]
        %v1497 = vld [vmem:[%s1495 + $0x4] sm:$0xf]
        %v1498 = vld [vmem:[%s1495 + $0x8] sm:$0xf]
        %v1499 = vld [vmem:[%s1495 + $0xc] sm:$0xf]
        %v1500 = vld [vmem:[%s1495 + $0x10] sm:$0xf]
        %v1501 = vld [vmem:[%s1495 + $0x14] sm:$0xf]
        %v1502 = vld [vmem:[%s1495 + $0x18] sm:$0xf]
        %v1503 = vld [vmem:[%s1495 + $0x1c] sm:$0xf]
        %v1504 = vld [vmem:[%s1495 + $0x20] sm:$0xf]
        %v1505 = vld [vmem:[%s1495 + $0x24] sm:$0xf]
        %v1506 = vld [vmem:[%s1495 + $0x28] sm:$0xf]
        %v1507 = vld [vmem:[%s1495 + $0x2c] sm:$0xf]
        %v1508 = vld [vmem:[%s1495 + $0x30] sm:$0xf]
        %v1509 = vld [vmem:[%s1495 + $0x34] sm:$0xf]
        %v1510 = vld [vmem:[%s1495 + $0x38] sm:$0xf]
        %v1511 = vld [vmem:[%s1495 + $0x3c] sm:$0xf]
        %v1528 = vunpack.c.l.b16 %v1496
        %v1529 = vunpack.c.l.b16 %v1497
        %v1530 = vunpack.c.l.b16 %v1498
        %v1531 = vunpack.c.l.b16 %v1499
        %v1532 = vunpack.c.l.b16 %v1500
        %v1533 = vunpack.c.l.b16 %v1501
        %v1534 = vunpack.c.l.b16 %v1502
        %v1535 = vunpack.c.l.b16 %v1503
        %v1536 = vunpack.c.l.b16 %v1504
        %v1537 = vunpack.c.l.b16 %v1505
        %v1538 = vunpack.c.l.b16 %v1506
        %v1539 = vunpack.c.l.b16 %v1507
        %v1540 = vunpack.c.l.b16 %v1508
        %v1541 = vunpack.c.l.b16 %v1509
        %v1542 = vunpack.c.l.b16 %v1510
        %v1543 = vunpack.c.l.b16 %v1511
        %v1544 = vpack.c.b16 %v1529, %v1528
        %v1545 = vpack.c.b16 %v1531, %v1530
        %v1546 = vpack.c.b16 %v1533, %v1532
        %v1547 = vpack.c.b16 %v1535, %v1534
        %v1548 = vpack.c.b16 %v1537, %v1536
        %v1549 = vpack.c.b16 %v1539, %v1538
        %v1550 = vpack.c.b16 %v1541, %v1540
        %v1551 = vpack.c.b16 %v1543, %v1542
        %1560 = vmatprep.subr.bf16.mxu0 0
        %1561 = vmatpush1.bf16.msra.mxu0 %v1551
        %1562 = vmatprep.subr.bf16.mxu0 0
        %1563 = vmatpush1.bf16.msra.mxu0 %v1550
        %1564 = vmatprep.subr.bf16.mxu0 0
        %1565 = vmatpush1.bf16.msra.mxu0 %v1549
        %1566 = vmatprep.subr.bf16.mxu0 0
        %1567 = vmatpush1.bf16.msra.mxu0 %v1548
        %1568 = vmatprep.subr.bf16.mxu0 0
        %1569 = vmatpush1.bf16.msra.mxu0 %v1547
        %1570 = vmatprep.subr.bf16.mxu0 0
        %1571 = vmatpush1.bf16.msra.mxu0 %v1546
        %1572 = vmatprep.subr.bf16.mxu0 0
        %1573 = vmatpush1.bf16.msra.mxu0 %v1545
        %1574 = vmatprep.subr.bf16.mxu0 0
        %1575 = vmatpush1.bf16.msra.mxu0 %v1544
        %1576 = vmatprep.subr.bf16.mxu0 0
        %1577 = vmatpush2.bf16.msra.mxu0 0
        %1578 = vmatprep.subr.bf16.mxu0 0
        %1579 = vmatpush2.bf16.msra.mxu0 0
        %1580 = vmatprep.subr.bf16.mxu0 0
        %1581 = vmatpush2.bf16.msra.mxu0 0
        %1582 = vmatprep.subr.bf16.mxu0 0
        %1583 = vmatpush2.bf16.msra.mxu0 0
        %1584 = vmatprep.subr.bf16.mxu0 0
        %1585 = vmatpush2.bf16.msra.mxu0 0
        %1586 = vmatprep.subr.bf16.mxu0 0
        %1587 = vmatpush2.bf16.msra.mxu0 0
        %1588 = vmatprep.subr.bf16.mxu0 0
        %1589 = vmatpush2.bf16.msra.mxu0 0
        %1590 = vmatprep.subr.bf16.mxu0 0
        %1591 = vmatpush2.bf16.msra.mxu0 0
        %1592 = vmatprep.mubr.bf16.mxu0 0
        %1593 = vmatmul.mubr.bf16.gmra.mxu0 %v1479
        %v1594 = vpop.f32.mrf.mxu0
        %v1595 = vadd.f32 0.0, %v1594
        %v1596 = vpop.f32.mrf.mxu0
        %v1597 = vpop.f32.mrf.mxu0
        %v1598 = vadd.f32 0.0, %v1597
        %v1599 = vpop.f32.mrf.mxu0
        %1600 = vmatprep.mubr.bf16.mxu0 0
        %1601 = vmatmul.mubr.bf16.gmra.mxu0 %v1480
        %v1602 = vpop.f32.mrf.mxu0
        %v1603 = vadd.f32 0.0, %v1602
        %v1604 = vpop.f32.mrf.mxu0
        %v1605 = vpop.f32.mrf.mxu0
        %v1606 = vadd.f32 0.0, %v1605
        %v1607 = vpop.f32.mrf.mxu0
        %1608 = vmatprep.mubr.bf16.mxu0 0
        %1609 = vmatmul.mubr.bf16.gmra.mxu0 %v1481
        %v1610 = vpop.f32.mrf.mxu0
        %v1611 = vadd.f32 0.0, %v1610
        %v1612 = vpop.f32.mrf.mxu0
        %v1613 = vpop.f32.mrf.mxu0
        %v1614 = vadd.f32 0.0, %v1613
        %v1615 = vpop.f32.mrf.mxu0
        %1616 = vmatprep.mubr.bf16.mxu0 0
        %1617 = vmatmul.mubr.bf16.gmra.mxu0 %v1482
        %v1618 = vpop.f32.mrf.mxu0
        %v1619 = vadd.f32 0.0, %v1618
        %v1620 = vpop.f32.mrf.mxu0
        %v1621 = vpop.f32.mrf.mxu0
        %v1622 = vadd.f32 0.0, %v1621
        %v1623 = vpop.f32.mrf.mxu0
        %1624 = vmatprep.mubr.bf16.mxu0 0
        %1625 = vmatmul.mubr.bf16.gmra.mxu0 %v1483
        %v1626 = vpop.f32.mrf.mxu0
        %v1627 = vadd.f32 0.0, %v1626
        %v1628 = vpop.f32.mrf.mxu0
        %v1629 = vpop.f32.mrf.mxu0
        %v1630 = vadd.f32 0.0, %v1629
        %v1631 = vpop.f32.mrf.mxu0
        %1632 = vmatprep.mubr.bf16.mxu0 0
        %1633 = vmatmul.mubr.bf16.gmra.mxu0 %v1484
        %v1634 = vpop.f32.mrf.mxu0
        %v1635 = vadd.f32 0.0, %v1634
        %v1636 = vpop.f32.mrf.mxu0
        %v1637 = vpop.f32.mrf.mxu0
        %v1638 = vadd.f32 0.0, %v1637
        %v1639 = vpop.f32.mrf.mxu0
        %1640 = vmatprep.mubr.bf16.mxu0 0
        %1641 = vmatmul.mubr.bf16.gmra.mxu0 %v1485
        %v1642 = vpop.f32.mrf.mxu0
        %v1643 = vadd.f32 0.0, %v1642
        %v1644 = vpop.f32.mrf.mxu0
        %v1645 = vpop.f32.mrf.mxu0
        %v1646 = vadd.f32 0.0, %v1645
        %v1647 = vpop.f32.mrf.mxu0
        %1648 = vmatprep.mubr.bf16.mxu0 0
        %1649 = vmatmul.mubr.bf16.gmra.mxu0 %v1486
        %v1650 = vpop.f32.mrf.mxu0
        %v1651 = vadd.f32 0.0, %v1650
        %v1652 = vpop.f32.mrf.mxu0
        %v1653 = vpop.f32.mrf.mxu0
        %v1654 = vadd.f32 0.0, %v1653
        %v1655 = vpop.f32.mrf.mxu0
        %1656 = vmatprep.mubr.bf16.mxu0 0
        %1657 = vmatmul.mubr.bf16.gmra.mxu0 %v1487
        %v1658 = vpop.f32.mrf.mxu0
        %v1659 = vadd.f32 0.0, %v1658
        %v1660 = vpop.f32.mrf.mxu0
        %v1661 = vpop.f32.mrf.mxu0
        %v1662 = vadd.f32 0.0, %v1661
        %v1663 = vpop.f32.mrf.mxu0
        %1664 = vmatprep.mubr.bf16.mxu0 0
        %1665 = vmatmul.mubr.bf16.gmra.mxu0 %v1488
        %v1666 = vpop.f32.mrf.mxu0
        %v1667 = vadd.f32 0.0, %v1666
        %v1668 = vpop.f32.mrf.mxu0
        %v1669 = vpop.f32.mrf.mxu0
        %v1670 = vadd.f32 0.0, %v1669
        %v1671 = vpop.f32.mrf.mxu0
        %1672 = vmatprep.mubr.bf16.mxu0 0
        %1673 = vmatmul.mubr.bf16.gmra.mxu0 %v1489
        %v1674 = vpop.f32.mrf.mxu0
        %v1675 = vadd.f32 0.0, %v1674
        %v1676 = vpop.f32.mrf.mxu0
        %v1677 = vpop.f32.mrf.mxu0
        %v1678 = vadd.f32 0.0, %v1677
        %v1679 = vpop.f32.mrf.mxu0
        %1680 = vmatprep.mubr.bf16.mxu0 0
        %1681 = vmatmul.mubr.bf16.gmra.mxu0 %v1490
        %v1682 = vpop.f32.mrf.mxu0
        %v1683 = vadd.f32 0.0, %v1682
        %v1684 = vpop.f32.mrf.mxu0
        %v1685 = vpop.f32.mrf.mxu0
        %v1686 = vadd.f32 0.0, %v1685
        %v1687 = vpop.f32.mrf.mxu0
        %1688 = vmatprep.mubr.bf16.mxu0 0
        %1689 = vmatmul.mubr.bf16.gmra.mxu0 %v1491
        %v1690 = vpop.f32.mrf.mxu0
        %v1691 = vadd.f32 0.0, %v1690
        %v1692 = vpop.f32.mrf.mxu0
        %v1693 = vpop.f32.mrf.mxu0
        %v1694 = vadd.f32 0.0, %v1693
        %v1695 = vpop.f32.mrf.mxu0
        %1696 = vmatprep.mubr.bf16.mxu0 0
        %1697 = vmatmul.mubr.bf16.gmra.mxu0 %v1492
        %v1698 = vpop.f32.mrf.mxu0
        %v1699 = vadd.f32 0.0, %v1698
        %v1700 = vpop.f32.mrf.mxu0
        %v1701 = vpop.f32.mrf.mxu0
        %v1702 = vadd.f32 0.0, %v1701
        %v1703 = vpop.f32.mrf.mxu0
        %1704 = vmatprep.mubr.bf16.mxu0 0
        %1705 = vmatmul.mubr.bf16.gmra.mxu0 %v1493
        %v1706 = vpop.f32.mrf.mxu0
        %v1707 = vadd.f32 0.0, %v1706
        %v1708 = vpop.f32.mrf.mxu0
        %v1709 = vpop.f32.mrf.mxu0
        %v1710 = vadd.f32 0.0, %v1709
        %v1711 = vpop.f32.mrf.mxu0
        %1712 = vmatprep.mubr.bf16.mxu0 0
        %1713 = vmatmul.mubr.bf16.gmra.mxu0 %v1494
        %v1714 = vpop.f32.mrf.mxu0
        %v1715 = vadd.f32 0.0, %v1714
        %v1716 = vpop.f32.mrf.mxu0
        %v1717 = vpop.f32.mrf.mxu0
        %v1718 = vadd.f32 0.0, %v1717
        %v1719 = vpop.f32.mrf.mxu0
        %1720 = vdwg.mxu0
        %v1721 = vadd.f32 %v1415, %v1595
        %v1722 = vadd.f32 %v1416, %v1598
        %v1723 = vadd.f32 %v1417, %v1603
        %v1724 = vadd.f32 %v1418, %v1606
        %v1725 = vadd.f32 %v1419, %v1611
        %v1726 = vadd.f32 %v1420, %v1614
        %v1727 = vadd.f32 %v1421, %v1619
        %v1728 = vadd.f32 %v1422, %v1622
        %v1729 = vadd.f32 %v1423, %v1627
        %v1730 = vadd.f32 %v1424, %v1630
        %v1731 = vadd.f32 %v1425, %v1635
        %v1732 = vadd.f32 %v1426, %v1638
        %v1733 = vadd.f32 %v1427, %v1643
        %v1734 = vadd.f32 %v1428, %v1646
        %v1735 = vadd.f32 %v1429, %v1651
        %v1736 = vadd.f32 %v1430, %v1654
        %v1737 = vadd.f32 %v1431, %v1659
        %v1738 = vadd.f32 %v1432, %v1662
        %v1739 = vadd.f32 %v1433, %v1667
        %v1740 = vadd.f32 %v1434, %v1670
        %v1741 = vadd.f32 %v1435, %v1675
        %v1742 = vadd.f32 %v1436, %v1678
        %v1743 = vadd.f32 %v1437, %v1683
        %v1744 = vadd.f32 %v1438, %v1686
        %v1745 = vadd.f32 %v1439, %v1691
        %v1746 = vadd.f32 %v1440, %v1694
        %v1747 = vadd.f32 %v1441, %v1699
        %v1748 = vadd.f32 %v1442, %v1702
        %v1749 = vadd.f32 %v1443, %v1707
        %v1750 = vadd.f32 %v1444, %v1710
        %v1751 = vadd.f32 %v1445, %v1715
        %v1752 = vadd.f32 %v1446, %v1718
        %v1753 = vld [vmem:[%s1140 + $0x2] sm:$0xff]
        %v1754 = vld [vmem:[%s1140 + $0xa] sm:$0xff]
        %v1755 = vld [vmem:[%s1140 + $0x1a] sm:$0xff]
        %v1756 = vld [vmem:[%s1140 + $0x22] sm:$0xff]
        %v1757 = vld [vmem:[%s1140 + $0x32] sm:$0xff]
        %v1758 = vld [vmem:[%s1140 + $0x3a] sm:$0xff]
        %v1759 = vld [vmem:[%s1140 + $0x4a] sm:$0xff]
        %v1760 = vld [vmem:[%s1140 + $0x52] sm:$0xff]
        %v1761 = vld [vmem:[%s1140 + $0x62] sm:$0xff]
        %v1762 = vld [vmem:[%s1140 + $0x6a] sm:$0xff]
        %v1763 = vld [vmem:[%s1140 + $0x7a] sm:$0xff]
        %v1764 = vld [vmem:[%s1140 + $0x82] sm:$0xff]
        %v1765 = vld [vmem:[%s1140 + $0x92] sm:$0xff]
        %v1766 = vld [vmem:[%s1140 + $0x9a] sm:$0xff]
        %v1767 = vld [vmem:[%s1140 + $0xaa] sm:$0xff]
        %v1768 = vld [vmem:[%s1140 + $0xb2] sm:$0xff]
        %v1769 = vld [vmem:[%s1140 + $0xc2] sm:$0xff]
        %v1770 = vld [vmem:[%s1140 + $0xca] sm:$0xff]
        %v1771 = vld [vmem:[%s1140 + $0xda] sm:$0xff]
        %v1772 = vld [vmem:[%s1140 + $0xe2] sm:$0xff]
        %v1773 = vld [vmem:[%s1140 + $0xf2] sm:$0xff]
        %v1774 = vld [vmem:[%s1140 + $0xfa] sm:$0xff]
        %v1775 = vld [vmem:[%s1140 + $0x10a] sm:$0xff]
        %v1776 = vld [vmem:[%s1140 + $0x112] sm:$0xff]
        %v1777 = vld [vmem:[%s1140 + $0x122] sm:$0xff]
        %v1778 = vld [vmem:[%s1140 + $0x12a] sm:$0xff]
        %v1779 = vld [vmem:[%s1140 + $0x13a] sm:$0xff]
        %v1780 = vld [vmem:[%s1140 + $0x142] sm:$0xff]
        %v1781 = vld [vmem:[%s1140 + $0x152] sm:$0xff]
        %v1782 = vld [vmem:[%s1140 + $0x15a] sm:$0xff]
        %v1783 = vld [vmem:[%s1140 + $0x16a] sm:$0xff]
        %v1784 = vld [vmem:[%s1140 + $0x172] sm:$0xff]
        %v1785 = vpack.c.bf16 %v1754, %v1753
        %v1786 = vpack.c.bf16 %v1756, %v1755
        %v1787 = vpack.c.bf16 %v1758, %v1757
        %v1788 = vpack.c.bf16 %v1760, %v1759
        %v1789 = vpack.c.bf16 %v1762, %v1761
        %v1790 = vpack.c.bf16 %v1764, %v1763
        %v1791 = vpack.c.bf16 %v1766, %v1765
        %v1792 = vpack.c.bf16 %v1768, %v1767
        %v1793 = vpack.c.bf16 %v1770, %v1769
        %v1794 = vpack.c.bf16 %v1772, %v1771
        %v1795 = vpack.c.bf16 %v1774, %v1773
        %v1796 = vpack.c.bf16 %v1776, %v1775
        %v1797 = vpack.c.bf16 %v1778, %v1777
        %v1798 = vpack.c.bf16 %v1780, %v1779
        %v1799 = vpack.c.bf16 %v1782, %v1781
        %v1800 = vpack.c.bf16 %v1784, %v1783
        %s1801 = scalar_lea.vmem [#allocation4], 320
        %v1802 = vld [vmem:[%s1801] sm:$0xf]
        %v1803 = vld [vmem:[%s1801 + $0x4] sm:$0xf]
        %v1804 = vld [vmem:[%s1801 + $0x8] sm:$0xf]
        %v1805 = vld [vmem:[%s1801 + $0xc] sm:$0xf]
        %v1806 = vld [vmem:[%s1801 + $0x10] sm:$0xf]
        %v1807 = vld [vmem:[%s1801 + $0x14] sm:$0xf]
        %v1808 = vld [vmem:[%s1801 + $0x18] sm:$0xf]
        %v1809 = vld [vmem:[%s1801 + $0x1c] sm:$0xf]
        %v1810 = vld [vmem:[%s1801 + $0x20] sm:$0xf]
        %v1811 = vld [vmem:[%s1801 + $0x24] sm:$0xf]
        %v1812 = vld [vmem:[%s1801 + $0x28] sm:$0xf]
        %v1813 = vld [vmem:[%s1801 + $0x2c] sm:$0xf]
        %v1814 = vld [vmem:[%s1801 + $0x30] sm:$0xf]
        %v1815 = vld [vmem:[%s1801 + $0x34] sm:$0xf]
        %v1816 = vld [vmem:[%s1801 + $0x38] sm:$0xf]
        %v1817 = vld [vmem:[%s1801 + $0x3c] sm:$0xf]
        %v1834 = vunpack.c.l.b16 %v1802
        %v1835 = vunpack.c.l.b16 %v1803
        %v1836 = vunpack.c.l.b16 %v1804
        %v1837 = vunpack.c.l.b16 %v1805
        %v1838 = vunpack.c.l.b16 %v1806
        %v1839 = vunpack.c.l.b16 %v1807
        %v1840 = vunpack.c.l.b16 %v1808
        %v1841 = vunpack.c.l.b16 %v1809
        %v1842 = vunpack.c.l.b16 %v1810
        %v1843 = vunpack.c.l.b16 %v1811
        %v1844 = vunpack.c.l.b16 %v1812
        %v1845 = vunpack.c.l.b16 %v1813
        %v1846 = vunpack.c.l.b16 %v1814
        %v1847 = vunpack.c.l.b16 %v1815
        %v1848 = vunpack.c.l.b16 %v1816
        %v1849 = vunpack.c.l.b16 %v1817
        %v1850 = vpack.c.b16 %v1835, %v1834
        %v1851 = vpack.c.b16 %v1837, %v1836
        %v1852 = vpack.c.b16 %v1839, %v1838
        %v1853 = vpack.c.b16 %v1841, %v1840
        %v1854 = vpack.c.b16 %v1843, %v1842
        %v1855 = vpack.c.b16 %v1845, %v1844
        %v1856 = vpack.c.b16 %v1847, %v1846
        %v1857 = vpack.c.b16 %v1849, %v1848
        %1866 = vmatprep.subr.bf16.mxu0 0
        %1867 = vmatpush1.bf16.msra.mxu0 %v1857
        %1868 = vmatprep.subr.bf16.mxu0 0
        %1869 = vmatpush1.bf16.msra.mxu0 %v1856
        %1870 = vmatprep.subr.bf16.mxu0 0
        %1871 = vmatpush1.bf16.msra.mxu0 %v1855
        %1872 = vmatprep.subr.bf16.mxu0 0
        %1873 = vmatpush1.bf16.msra.mxu0 %v1854
        %1874 = vmatprep.subr.bf16.mxu0 0
        %1875 = vmatpush1.bf16.msra.mxu0 %v1853
        %1876 = vmatprep.subr.bf16.mxu0 0
        %1877 = vmatpush1.bf16.msra.mxu0 %v1852
        %1878 = vmatprep.subr.bf16.mxu0 0
        %1879 = vmatpush1.bf16.msra.mxu0 %v1851
        %1880 = vmatprep.subr.bf16.mxu0 0
        %1881 = vmatpush1.bf16.msra.mxu0 %v1850
        %1882 = vmatprep.subr.bf16.mxu0 0
        %1883 = vmatpush2.bf16.msra.mxu0 0
        %1884 = vmatprep.subr.bf16.mxu0 0
        %1885 = vmatpush2.bf16.msra.mxu0 0
        %1886 = vmatprep.subr.bf16.mxu0 0
        %1887 = vmatpush2.bf16.msra.mxu0 0
        %1888 = vmatprep.subr.bf16.mxu0 0
        %1889 = vmatpush2.bf16.msra.mxu0 0
        %1890 = vmatprep.subr.bf16.mxu0 0
        %1891 = vmatpush2.bf16.msra.mxu0 0
        %1892 = vmatprep.subr.bf16.mxu0 0
        %1893 = vmatpush2.bf16.msra.mxu0 0
        %1894 = vmatprep.subr.bf16.mxu0 0
        %1895 = vmatpush2.bf16.msra.mxu0 0
        %1896 = vmatprep.subr.bf16.mxu0 0
        %1897 = vmatpush2.bf16.msra.mxu0 0
        %1898 = vmatprep.mubr.bf16.mxu0 0
        %1899 = vmatmul.mubr.bf16.gmra.mxu0 %v1785
        %v1900 = vpop.f32.mrf.mxu0
        %v1901 = vadd.f32 0.0, %v1900
        %v1902 = vpop.f32.mrf.mxu0
        %v1903 = vpop.f32.mrf.mxu0
        %v1904 = vadd.f32 0.0, %v1903
        %v1905 = vpop.f32.mrf.mxu0
        %1906 = vmatprep.mubr.bf16.mxu0 0
        %1907 = vmatmul.mubr.bf16.gmra.mxu0 %v1786
        %v1908 = vpop.f32.mrf.mxu0
        %v1909 = vadd.f32 0.0, %v1908
        %v1910 = vpop.f32.mrf.mxu0
        %v1911 = vpop.f32.mrf.mxu0
        %v1912 = vadd.f32 0.0, %v1911
        %v1913 = vpop.f32.mrf.mxu0
        %1914 = vmatprep.mubr.bf16.mxu0 0
        %1915 = vmatmul.mubr.bf16.gmra.mxu0 %v1787
        %v1916 = vpop.f32.mrf.mxu0
        %v1917 = vadd.f32 0.0, %v1916
        %v1918 = vpop.f32.mrf.mxu0
        %v1919 = vpop.f32.mrf.mxu0
        %v1920 = vadd.f32 0.0, %v1919
        %v1921 = vpop.f32.mrf.mxu0
        %1922 = vmatprep.mubr.bf16.mxu0 0
        %1923 = vmatmul.mubr.bf16.gmra.mxu0 %v1788
        %v1924 = vpop.f32.mrf.mxu0
        %v1925 = vadd.f32 0.0, %v1924
        %v1926 = vpop.f32.mrf.mxu0
        %v1927 = vpop.f32.mrf.mxu0
        %v1928 = vadd.f32 0.0, %v1927
        %v1929 = vpop.f32.mrf.mxu0
        %1930 = vmatprep.mubr.bf16.mxu0 0
        %1931 = vmatmul.mubr.bf16.gmra.mxu0 %v1789
        %v1932 = vpop.f32.mrf.mxu0
        %v1933 = vadd.f32 0.0, %v1932
        %v1934 = vpop.f32.mrf.mxu0
        %v1935 = vpop.f32.mrf.mxu0
        %v1936 = vadd.f32 0.0, %v1935
        %v1937 = vpop.f32.mrf.mxu0
        %1938 = vmatprep.mubr.bf16.mxu0 0
        %1939 = vmatmul.mubr.bf16.gmra.mxu0 %v1790
        %v1940 = vpop.f32.mrf.mxu0
        %v1941 = vadd.f32 0.0, %v1940
        %v1942 = vpop.f32.mrf.mxu0
        %v1943 = vpop.f32.mrf.mxu0
        %v1944 = vadd.f32 0.0, %v1943
        %v1945 = vpop.f32.mrf.mxu0
        %1946 = vmatprep.mubr.bf16.mxu0 0
        %1947 = vmatmul.mubr.bf16.gmra.mxu0 %v1791
        %v1948 = vpop.f32.mrf.mxu0
        %v1949 = vadd.f32 0.0, %v1948
        %v1950 = vpop.f32.mrf.mxu0
        %v1951 = vpop.f32.mrf.mxu0
        %v1952 = vadd.f32 0.0, %v1951
        %v1953 = vpop.f32.mrf.mxu0
        %1954 = vmatprep.mubr.bf16.mxu0 0
        %1955 = vmatmul.mubr.bf16.gmra.mxu0 %v1792
        %v1956 = vpop.f32.mrf.mxu0
        %v1957 = vadd.f32 0.0, %v1956
        %v1958 = vpop.f32.mrf.mxu0
        %v1959 = vpop.f32.mrf.mxu0
        %v1960 = vadd.f32 0.0, %v1959
        %v1961 = vpop.f32.mrf.mxu0
        %1962 = vmatprep.mubr.bf16.mxu0 0
        %1963 = vmatmul.mubr.bf16.gmra.mxu0 %v1793
        %v1964 = vpop.f32.mrf.mxu0
        %v1965 = vadd.f32 0.0, %v1964
        %v1966 = vpop.f32.mrf.mxu0
        %v1967 = vpop.f32.mrf.mxu0
        %v1968 = vadd.f32 0.0, %v1967
        %v1969 = vpop.f32.mrf.mxu0
        %1970 = vmatprep.mubr.bf16.mxu0 0
        %1971 = vmatmul.mubr.bf16.gmra.mxu0 %v1794
        %v1972 = vpop.f32.mrf.mxu0
        %v1973 = vadd.f32 0.0, %v1972
        %v1974 = vpop.f32.mrf.mxu0
        %v1975 = vpop.f32.mrf.mxu0
        %v1976 = vadd.f32 0.0, %v1975
        %v1977 = vpop.f32.mrf.mxu0
        %1978 = vmatprep.mubr.bf16.mxu0 0
        %1979 = vmatmul.mubr.bf16.gmra.mxu0 %v1795
        %v1980 = vpop.f32.mrf.mxu0
        %v1981 = vadd.f32 0.0, %v1980
        %v1982 = vpop.f32.mrf.mxu0
        %v1983 = vpop.f32.mrf.mxu0
        %v1984 = vadd.f32 0.0, %v1983
        %v1985 = vpop.f32.mrf.mxu0
        %1986 = vmatprep.mubr.bf16.mxu0 0
        %1987 = vmatmul.mubr.bf16.gmra.mxu0 %v1796
        %v1988 = vpop.f32.mrf.mxu0
        %v1989 = vadd.f32 0.0, %v1988
        %v1990 = vpop.f32.mrf.mxu0
        %v1991 = vpop.f32.mrf.mxu0
        %v1992 = vadd.f32 0.0, %v1991
        %v1993 = vpop.f32.mrf.mxu0
        %1994 = vmatprep.mubr.bf16.mxu0 0
        %1995 = vmatmul.mubr.bf16.gmra.mxu0 %v1797
        %v1996 = vpop.f32.mrf.mxu0
        %v1997 = vadd.f32 0.0, %v1996
        %v1998 = vpop.f32.mrf.mxu0
        %v1999 = vpop.f32.mrf.mxu0
        %v2000 = vadd.f32 0.0, %v1999
        %v2001 = vpop.f32.mrf.mxu0
        %2002 = vmatprep.mubr.bf16.mxu0 0
        %2003 = vmatmul.mubr.bf16.gmra.mxu0 %v1798
        %v2004 = vpop.f32.mrf.mxu0
        %v2005 = vadd.f32 0.0, %v2004
        %v2006 = vpop.f32.mrf.mxu0
        %v2007 = vpop.f32.mrf.mxu0
        %v2008 = vadd.f32 0.0, %v2007
        %v2009 = vpop.f32.mrf.mxu0
        %2010 = vmatprep.mubr.bf16.mxu0 0
        %2011 = vmatmul.mubr.bf16.gmra.mxu0 %v1799
        %v2012 = vpop.f32.mrf.mxu0
        %v2013 = vadd.f32 0.0, %v2012
        %v2014 = vpop.f32.mrf.mxu0
        %v2015 = vpop.f32.mrf.mxu0
        %v2016 = vadd.f32 0.0, %v2015
        %v2017 = vpop.f32.mrf.mxu0
        %2018 = vmatprep.mubr.bf16.mxu0 0
        %2019 = vmatmul.mubr.bf16.gmra.mxu0 %v1800
        %v2020 = vpop.f32.mrf.mxu0
        %v2021 = vadd.f32 0.0, %v2020
        %v2022 = vpop.f32.mrf.mxu0
        %v2023 = vpop.f32.mrf.mxu0
        %v2024 = vadd.f32 0.0, %v2023
        %v2025 = vpop.f32.mrf.mxu0
        %2026 = vdwg.mxu0
        %v2027 = vadd.f32 %v1721, %v1901
        %v2028 = vadd.f32 %v1722, %v1904
        %v2029 = vadd.f32 %v1723, %v1909
        %v2030 = vadd.f32 %v1724, %v1912
        %v2031 = vadd.f32 %v1725, %v1917
        %v2032 = vadd.f32 %v1726, %v1920
        %v2033 = vadd.f32 %v1727, %v1925
        %v2034 = vadd.f32 %v1728, %v1928
        %v2035 = vadd.f32 %v1729, %v1933
        %v2036 = vadd.f32 %v1730, %v1936
        %v2037 = vadd.f32 %v1731, %v1941
        %v2038 = vadd.f32 %v1732, %v1944
        %v2039 = vadd.f32 %v1733, %v1949
        %v2040 = vadd.f32 %v1734, %v1952
        %v2041 = vadd.f32 %v1735, %v1957
        %v2042 = vadd.f32 %v1736, %v1960
        %v2043 = vadd.f32 %v1737, %v1965
        %v2044 = vadd.f32 %v1738, %v1968
        %v2045 = vadd.f32 %v1739, %v1973
        %v2046 = vadd.f32 %v1740, %v1976
        %v2047 = vadd.f32 %v1741, %v1981
        %v2048 = vadd.f32 %v1742, %v1984
        %v2049 = vadd.f32 %v1743, %v1989
        %v2050 = vadd.f32 %v1744, %v1992
        %v2051 = vadd.f32 %v1745, %v1997
        %v2052 = vadd.f32 %v1746, %v2000
        %v2053 = vadd.f32 %v1747, %v2005
        %v2054 = vadd.f32 %v1748, %v2008
        %v2055 = vadd.f32 %v1749, %v2013
        %v2056 = vadd.f32 %v1750, %v2016
        %v2057 = vadd.f32 %v1751, %v2021
        %v2058 = vadd.f32 %v1752, %v2024
        %s2059 = sadd.s32 %s211, 2
        %s2060 = smul.u32 %s2059, 24
        %s2061 = scalar_lea.vmem [#allocation2], %s2060
        %v2062 = vld [vmem:[%s2061] sm:$0xff]
        %v2063 = vld [vmem:[%s2061 + $0x8] sm:$0xff]
        %v2064 = vld [vmem:[%s2061 + $0x18] sm:$0xff]
        %v2065 = vld [vmem:[%s2061 + $0x20] sm:$0xff]
        %v2066 = vld [vmem:[%s2061 + $0x30] sm:$0xff]
        %v2067 = vld [vmem:[%s2061 + $0x38] sm:$0xff]
        %v2068 = vld [vmem:[%s2061 + $0x48] sm:$0xff]
        %v2069 = vld [vmem:[%s2061 + $0x50] sm:$0xff]
        %v2070 = vld [vmem:[%s2061 + $0x60] sm:$0xff]
        %v2071 = vld [vmem:[%s2061 + $0x68] sm:$0xff]
        %v2072 = vld [vmem:[%s2061 + $0x78] sm:$0xff]
        %v2073 = vld [vmem:[%s2061 + $0x80] sm:$0xff]
        %v2074 = vld [vmem:[%s2061 + $0x90] sm:$0xff]
        %v2075 = vld [vmem:[%s2061 + $0x98] sm:$0xff]
        %v2076 = vld [vmem:[%s2061 + $0xa8] sm:$0xff]
        %v2077 = vld [vmem:[%s2061 + $0xb0] sm:$0xff]
        %v2078 = vld [vmem:[%s2061 + $0xc0] sm:$0xff]
        %v2079 = vld [vmem:[%s2061 + $0xc8] sm:$0xff]
        %v2080 = vld [vmem:[%s2061 + $0xd8] sm:$0xff]
        %v2081 = vld [vmem:[%s2061 + $0xe0] sm:$0xff]
        %v2082 = vld [vmem:[%s2061 + $0xf0] sm:$0xff]
        %v2083 = vld [vmem:[%s2061 + $0xf8] sm:$0xff]
        %v2084 = vld [vmem:[%s2061 + $0x108] sm:$0xff]
        %v2085 = vld [vmem:[%s2061 + $0x110] sm:$0xff]
        %v2086 = vld [vmem:[%s2061 + $0x120] sm:$0xff]
        %v2087 = vld [vmem:[%s2061 + $0x128] sm:$0xff]
        %v2088 = vld [vmem:[%s2061 + $0x138] sm:$0xff]
        %v2089 = vld [vmem:[%s2061 + $0x140] sm:$0xff]
        %v2090 = vld [vmem:[%s2061 + $0x150] sm:$0xff]
        %v2091 = vld [vmem:[%s2061 + $0x158] sm:$0xff]
        %v2092 = vld [vmem:[%s2061 + $0x168] sm:$0xff]
        %v2093 = vld [vmem:[%s2061 + $0x170] sm:$0xff]
        %v2094 = vpack.c.bf16 %v2063, %v2062
        %v2095 = vpack.c.bf16 %v2065, %v2064
        %v2096 = vpack.c.bf16 %v2067, %v2066
        %v2097 = vpack.c.bf16 %v2069, %v2068
        %v2098 = vpack.c.bf16 %v2071, %v2070
        %v2099 = vpack.c.bf16 %v2073, %v2072
        %v2100 = vpack.c.bf16 %v2075, %v2074
        %v2101 = vpack.c.bf16 %v2077, %v2076
        %v2102 = vpack.c.bf16 %v2079, %v2078
        %v2103 = vpack.c.bf16 %v2081, %v2080
        %v2104 = vpack.c.bf16 %v2083, %v2082
        %v2105 = vpack.c.bf16 %v2085, %v2084
        %v2106 = vpack.c.bf16 %v2087, %v2086
        %v2107 = vpack.c.bf16 %v2089, %v2088
        %v2108 = vpack.c.bf16 %v2091, %v2090
        %v2109 = vpack.c.bf16 %v2093, %v2092
        %s2110 = scalar_lea.vmem [#allocation4], 384
        %v2111 = vld [vmem:[%s2110] sm:$0xf]
        %v2112 = vld [vmem:[%s2110 + $0x4] sm:$0xf]
        %v2113 = vld [vmem:[%s2110 + $0x8] sm:$0xf]
        %v2114 = vld [vmem:[%s2110 + $0xc] sm:$0xf]
        %v2115 = vld [vmem:[%s2110 + $0x10] sm:$0xf]
        %v2116 = vld [vmem:[%s2110 + $0x14] sm:$0xf]
        %v2117 = vld [vmem:[%s2110 + $0x18] sm:$0xf]
        %v2118 = vld [vmem:[%s2110 + $0x1c] sm:$0xf]
        %v2119 = vld [vmem:[%s2110 + $0x20] sm:$0xf]
        %v2120 = vld [vmem:[%s2110 + $0x24] sm:$0xf]
        %v2121 = vld [vmem:[%s2110 + $0x28] sm:$0xf]
        %v2122 = vld [vmem:[%s2110 + $0x2c] sm:$0xf]
        %v2123 = vld [vmem:[%s2110 + $0x30] sm:$0xf]
        %v2124 = vld [vmem:[%s2110 + $0x34] sm:$0xf]
        %v2125 = vld [vmem:[%s2110 + $0x38] sm:$0xf]
        %v2126 = vld [vmem:[%s2110 + $0x3c] sm:$0xf]
        %v2143 = vunpack.c.l.b16 %v2111
        %v2144 = vunpack.c.l.b16 %v2112
        %v2145 = vunpack.c.l.b16 %v2113
        %v2146 = vunpack.c.l.b16 %v2114
        %v2147 = vunpack.c.l.b16 %v2115
        %v2148 = vunpack.c.l.b16 %v2116
        %v2149 = vunpack.c.l.b16 %v2117
        %v2150 = vunpack.c.l.b16 %v2118
        %v2151 = vunpack.c.l.b16 %v2119
        %v2152 = vunpack.c.l.b16 %v2120
        %v2153 = vunpack.c.l.b16 %v2121
        %v2154 = vunpack.c.l.b16 %v2122
        %v2155 = vunpack.c.l.b16 %v2123
        %v2156 = vunpack.c.l.b16 %v2124
        %v2157 = vunpack.c.l.b16 %v2125
        %v2158 = vunpack.c.l.b16 %v2126
        %v2159 = vpack.c.b16 %v2144, %v2143
        %v2160 = vpack.c.b16 %v2146, %v2145
        %v2161 = vpack.c.b16 %v2148, %v2147
        %v2162 = vpack.c.b16 %v2150, %v2149
        %v2163 = vpack.c.b16 %v2152, %v2151
        %v2164 = vpack.c.b16 %v2154, %v2153
        %v2165 = vpack.c.b16 %v2156, %v2155
        %v2166 = vpack.c.b16 %v2158, %v2157
        %2175 = vmatprep.subr.bf16.mxu0 0
        %2176 = vmatpush1.bf16.msra.mxu0 %v2166
        %2177 = vmatprep.subr.bf16.mxu0 0
        %2178 = vmatpush1.bf16.msra.mxu0 %v2165
        %2179 = vmatprep.subr.bf16.mxu0 0
        %2180 = vmatpush1.bf16.msra.mxu0 %v2164
        %2181 = vmatprep.subr.bf16.mxu0 0
        %2182 = vmatpush1.bf16.msra.mxu0 %v2163
        %2183 = vmatprep.subr.bf16.mxu0 0
        %2184 = vmatpush1.bf16.msra.mxu0 %v2162
        %2185 = vmatprep.subr.bf16.mxu0 0
        %2186 = vmatpush1.bf16.msra.mxu0 %v2161
        %2187 = vmatprep.subr.bf16.mxu0 0
        %2188 = vmatpush1.bf16.msra.mxu0 %v2160
        %2189 = vmatprep.subr.bf16.mxu0 0
        %2190 = vmatpush1.bf16.msra.mxu0 %v2159
        %2191 = vmatprep.subr.bf16.mxu0 0
        %2192 = vmatpush2.bf16.msra.mxu0 0
        %2193 = vmatprep.subr.bf16.mxu0 0
        %2194 = vmatpush2.bf16.msra.mxu0 0
        %2195 = vmatprep.subr.bf16.mxu0 0
        %2196 = vmatpush2.bf16.msra.mxu0 0
        %2197 = vmatprep.subr.bf16.mxu0 0
        %2198 = vmatpush2.bf16.msra.mxu0 0
        %2199 = vmatprep.subr.bf16.mxu0 0
        %2200 = vmatpush2.bf16.msra.mxu0 0
        %2201 = vmatprep.subr.bf16.mxu0 0
        %2202 = vmatpush2.bf16.msra.mxu0 0
        %2203 = vmatprep.subr.bf16.mxu0 0
        %2204 = vmatpush2.bf16.msra.mxu0 0
        %2205 = vmatprep.subr.bf16.mxu0 0
        %2206 = vmatpush2.bf16.msra.mxu0 0
        %2207 = vmatprep.mubr.bf16.mxu0 0
        %2208 = vmatmul.mubr.bf16.gmra.mxu0 %v2094
        %v2209 = vpop.f32.mrf.mxu0
        %v2210 = vadd.f32 0.0, %v2209
        %v2211 = vpop.f32.mrf.mxu0
        %v2212 = vpop.f32.mrf.mxu0
        %v2213 = vadd.f32 0.0, %v2212
        %v2214 = vpop.f32.mrf.mxu0
        %2215 = vmatprep.mubr.bf16.mxu0 0
        %2216 = vmatmul.mubr.bf16.gmra.mxu0 %v2095
        %v2217 = vpop.f32.mrf.mxu0
        %v2218 = vadd.f32 0.0, %v2217
        %v2219 = vpop.f32.mrf.mxu0
        %v2220 = vpop.f32.mrf.mxu0
        %v2221 = vadd.f32 0.0, %v2220
        %v2222 = vpop.f32.mrf.mxu0
        %2223 = vmatprep.mubr.bf16.mxu0 0
        %2224 = vmatmul.mubr.bf16.gmra.mxu0 %v2096
        %v2225 = vpop.f32.mrf.mxu0
        %v2226 = vadd.f32 0.0, %v2225
        %v2227 = vpop.f32.mrf.mxu0
        %v2228 = vpop.f32.mrf.mxu0
        %v2229 = vadd.f32 0.0, %v2228
        %v2230 = vpop.f32.mrf.mxu0
        %2231 = vmatprep.mubr.bf16.mxu0 0
        %2232 = vmatmul.mubr.bf16.gmra.mxu0 %v2097
        %v2233 = vpop.f32.mrf.mxu0
        %v2234 = vadd.f32 0.0, %v2233
        %v2235 = vpop.f32.mrf.mxu0
        %v2236 = vpop.f32.mrf.mxu0
        %v2237 = vadd.f32 0.0, %v2236
        %v2238 = vpop.f32.mrf.mxu0
        %2239 = vmatprep.mubr.bf16.mxu0 0
        %2240 = vmatmul.mubr.bf16.gmra.mxu0 %v2098
        %v2241 = vpop.f32.mrf.mxu0
        %v2242 = vadd.f32 0.0, %v2241
        %v2243 = vpop.f32.mrf.mxu0
        %v2244 = vpop.f32.mrf.mxu0
        %v2245 = vadd.f32 0.0, %v2244
        %v2246 = vpop.f32.mrf.mxu0
        %2247 = vmatprep.mubr.bf16.mxu0 0
        %2248 = vmatmul.mubr.bf16.gmra.mxu0 %v2099
        %v2249 = vpop.f32.mrf.mxu0
        %v2250 = vadd.f32 0.0, %v2249
        %v2251 = vpop.f32.mrf.mxu0
        %v2252 = vpop.f32.mrf.mxu0
        %v2253 = vadd.f32 0.0, %v2252
        %v2254 = vpop.f32.mrf.mxu0
        %2255 = vmatprep.mubr.bf16.mxu0 0
        %2256 = vmatmul.mubr.bf16.gmra.mxu0 %v2100
        %v2257 = vpop.f32.mrf.mxu0
        %v2258 = vadd.f32 0.0, %v2257
        %v2259 = vpop.f32.mrf.mxu0
        %v2260 = vpop.f32.mrf.mxu0
        %v2261 = vadd.f32 0.0, %v2260
        %v2262 = vpop.f32.mrf.mxu0
        %2263 = vmatprep.mubr.bf16.mxu0 0
        %2264 = vmatmul.mubr.bf16.gmra.mxu0 %v2101
        %v2265 = vpop.f32.mrf.mxu0
        %v2266 = vadd.f32 0.0, %v2265
        %v2267 = vpop.f32.mrf.mxu0
        %v2268 = vpop.f32.mrf.mxu0
        %v2269 = vadd.f32 0.0, %v2268
        %v2270 = vpop.f32.mrf.mxu0
        %2271 = vmatprep.mubr.bf16.mxu0 0
        %2272 = vmatmul.mubr.bf16.gmra.mxu0 %v2102
        %v2273 = vpop.f32.mrf.mxu0
        %v2274 = vadd.f32 0.0, %v2273
        %v2275 = vpop.f32.mrf.mxu0
        %v2276 = vpop.f32.mrf.mxu0
        %v2277 = vadd.f32 0.0, %v2276
        %v2278 = vpop.f32.mrf.mxu0
        %2279 = vmatprep.mubr.bf16.mxu0 0
        %2280 = vmatmul.mubr.bf16.gmra.mxu0 %v2103
        %v2281 = vpop.f32.mrf.mxu0
        %v2282 = vadd.f32 0.0, %v2281
        %v2283 = vpop.f32.mrf.mxu0
        %v2284 = vpop.f32.mrf.mxu0
        %v2285 = vadd.f32 0.0, %v2284
        %v2286 = vpop.f32.mrf.mxu0
        %2287 = vmatprep.mubr.bf16.mxu0 0
        %2288 = vmatmul.mubr.bf16.gmra.mxu0 %v2104
        %v2289 = vpop.f32.mrf.mxu0
        %v2290 = vadd.f32 0.0, %v2289
        %v2291 = vpop.f32.mrf.mxu0
        %v2292 = vpop.f32.mrf.mxu0
        %v2293 = vadd.f32 0.0, %v2292
        %v2294 = vpop.f32.mrf.mxu0
        %2295 = vmatprep.mubr.bf16.mxu0 0
        %2296 = vmatmul.mubr.bf16.gmra.mxu0 %v2105
        %v2297 = vpop.f32.mrf.mxu0
        %v2298 = vadd.f32 0.0, %v2297
        %v2299 = vpop.f32.mrf.mxu0
        %v2300 = vpop.f32.mrf.mxu0
        %v2301 = vadd.f32 0.0, %v2300
        %v2302 = vpop.f32.mrf.mxu0
        %2303 = vmatprep.mubr.bf16.mxu0 0
        %2304 = vmatmul.mubr.bf16.gmra.mxu0 %v2106
        %v2305 = vpop.f32.mrf.mxu0
        %v2306 = vadd.f32 0.0, %v2305
        %v2307 = vpop.f32.mrf.mxu0
        %v2308 = vpop.f32.mrf.mxu0
        %v2309 = vadd.f32 0.0, %v2308
        %v2310 = vpop.f32.mrf.mxu0
        %2311 = vmatprep.mubr.bf16.mxu0 0
        %2312 = vmatmul.mubr.bf16.gmra.mxu0 %v2107
        %v2313 = vpop.f32.mrf.mxu0
        %v2314 = vadd.f32 0.0, %v2313
        %v2315 = vpop.f32.mrf.mxu0
        %v2316 = vpop.f32.mrf.mxu0
        %v2317 = vadd.f32 0.0, %v2316
        %v2318 = vpop.f32.mrf.mxu0
        %2319 = vmatprep.mubr.bf16.mxu0 0
        %2320 = vmatmul.mubr.bf16.gmra.mxu0 %v2108
        %v2321 = vpop.f32.mrf.mxu0
        %v2322 = vadd.f32 0.0, %v2321
        %v2323 = vpop.f32.mrf.mxu0
        %v2324 = vpop.f32.mrf.mxu0
        %v2325 = vadd.f32 0.0, %v2324
        %v2326 = vpop.f32.mrf.mxu0
        %2327 = vmatprep.mubr.bf16.mxu0 0
        %2328 = vmatmul.mubr.bf16.gmra.mxu0 %v2109
        %v2329 = vpop.f32.mrf.mxu0
        %v2330 = vadd.f32 0.0, %v2329
        %v2331 = vpop.f32.mrf.mxu0
        %v2332 = vpop.f32.mrf.mxu0
        %v2333 = vadd.f32 0.0, %v2332
        %v2334 = vpop.f32.mrf.mxu0
        %2335 = vdwg.mxu0
        %v2336 = vadd.f32 %v2027, %v2210
        %v2337 = vadd.f32 %v2028, %v2213
        %v2338 = vadd.f32 %v2029, %v2218
        %v2339 = vadd.f32 %v2030, %v2221
        %v2340 = vadd.f32 %v2031, %v2226
        %v2341 = vadd.f32 %v2032, %v2229
        %v2342 = vadd.f32 %v2033, %v2234
        %v2343 = vadd.f32 %v2034, %v2237
        %v2344 = vadd.f32 %v2035, %v2242
        %v2345 = vadd.f32 %v2036, %v2245
        %v2346 = vadd.f32 %v2037, %v2250
        %v2347 = vadd.f32 %v2038, %v2253
        %v2348 = vadd.f32 %v2039, %v2258
        %v2349 = vadd.f32 %v2040, %v2261
        %v2350 = vadd.f32 %v2041, %v2266
        %v2351 = vadd.f32 %v2042, %v2269
        %v2352 = vadd.f32 %v2043, %v2274
        %v2353 = vadd.f32 %v2044, %v2277
        %v2354 = vadd.f32 %v2045, %v2282
        %v2355 = vadd.f32 %v2046, %v2285
        %v2356 = vadd.f32 %v2047, %v2290
        %v2357 = vadd.f32 %v2048, %v2293
        %v2358 = vadd.f32 %v2049, %v2298
        %v2359 = vadd.f32 %v2050, %v2301
        %v2360 = vadd.f32 %v2051, %v2306
        %v2361 = vadd.f32 %v2052, %v2309
        %v2362 = vadd.f32 %v2053, %v2314
        %v2363 = vadd.f32 %v2054, %v2317
        %v2364 = vadd.f32 %v2055, %v2322
        %v2365 = vadd.f32 %v2056, %v2325
        %v2366 = vadd.f32 %v2057, %v2330
        %v2367 = vadd.f32 %v2058, %v2333
        %v2368 = vld [vmem:[%s2061 + $0x1] sm:$0xff]
        %v2369 = vld [vmem:[%s2061 + $0x9] sm:$0xff]
        %v2370 = vld [vmem:[%s2061 + $0x19] sm:$0xff]
        %v2371 = vld [vmem:[%s2061 + $0x21] sm:$0xff]
        %v2372 = vld [vmem:[%s2061 + $0x31] sm:$0xff]
        %v2373 = vld [vmem:[%s2061 + $0x39] sm:$0xff]
        %v2374 = vld [vmem:[%s2061 + $0x49] sm:$0xff]
        %v2375 = vld [vmem:[%s2061 + $0x51] sm:$0xff]
        %v2376 = vld [vmem:[%s2061 + $0x61] sm:$0xff]
        %v2377 = vld [vmem:[%s2061 + $0x69] sm:$0xff]
        %v2378 = vld [vmem:[%s2061 + $0x79] sm:$0xff]
        %v2379 = vld [vmem:[%s2061 + $0x81] sm:$0xff]
        %v2380 = vld [vmem:[%s2061 + $0x91] sm:$0xff]
        %v2381 = vld [vmem:[%s2061 + $0x99] sm:$0xff]
        %v2382 = vld [vmem:[%s2061 + $0xa9] sm:$0xff]
        %v2383 = vld [vmem:[%s2061 + $0xb1] sm:$0xff]
        %v2384 = vld [vmem:[%s2061 + $0xc1] sm:$0xff]
        %v2385 = vld [vmem:[%s2061 + $0xc9] sm:$0xff]
        %v2386 = vld [vmem:[%s2061 + $0xd9] sm:$0xff]
        %v2387 = vld [vmem:[%s2061 + $0xe1] sm:$0xff]
        %v2388 = vld [vmem:[%s2061 + $0xf1] sm:$0xff]
        %v2389 = vld [vmem:[%s2061 + $0xf9] sm:$0xff]
        %v2390 = vld [vmem:[%s2061 + $0x109] sm:$0xff]
        %v2391 = vld [vmem:[%s2061 + $0x111] sm:$0xff]
        %v2392 = vld [vmem:[%s2061 + $0x121] sm:$0xff]
        %v2393 = vld [vmem:[%s2061 + $0x129] sm:$0xff]
        %v2394 = vld [vmem:[%s2061 + $0x139] sm:$0xff]
        %v2395 = vld [vmem:[%s2061 + $0x141] sm:$0xff]
        %v2396 = vld [vmem:[%s2061 + $0x151] sm:$0xff]
        %v2397 = vld [vmem:[%s2061 + $0x159] sm:$0xff]
        %v2398 = vld [vmem:[%s2061 + $0x169] sm:$0xff]
        %v2399 = vld [vmem:[%s2061 + $0x171] sm:$0xff]
        %v2400 = vpack.c.bf16 %v2369, %v2368
        %v2401 = vpack.c.bf16 %v2371, %v2370
        %v2402 = vpack.c.bf16 %v2373, %v2372
        %v2403 = vpack.c.bf16 %v2375, %v2374
        %v2404 = vpack.c.bf16 %v2377, %v2376
        %v2405 = vpack.c.bf16 %v2379, %v2378
        %v2406 = vpack.c.bf16 %v2381, %v2380
        %v2407 = vpack.c.bf16 %v2383, %v2382
        %v2408 = vpack.c.bf16 %v2385, %v2384
        %v2409 = vpack.c.bf16 %v2387, %v2386
        %v2410 = vpack.c.bf16 %v2389, %v2388
        %v2411 = vpack.c.bf16 %v2391, %v2390
        %v2412 = vpack.c.bf16 %v2393, %v2392
        %v2413 = vpack.c.bf16 %v2395, %v2394
        %v2414 = vpack.c.bf16 %v2397, %v2396
        %v2415 = vpack.c.bf16 %v2399, %v2398
        %s2416 = scalar_lea.vmem [#allocation4], 448
        %v2417 = vld [vmem:[%s2416] sm:$0xf]
        %v2418 = vld [vmem:[%s2416 + $0x4] sm:$0xf]
        %v2419 = vld [vmem:[%s2416 + $0x8] sm:$0xf]
        %v2420 = vld [vmem:[%s2416 + $0xc] sm:$0xf]
        %v2421 = vld [vmem:[%s2416 + $0x10] sm:$0xf]
        %v2422 = vld [vmem:[%s2416 + $0x14] sm:$0xf]
        %v2423 = vld [vmem:[%s2416 + $0x18] sm:$0xf]
        %v2424 = vld [vmem:[%s2416 + $0x1c] sm:$0xf]
        %v2425 = vld [vmem:[%s2416 + $0x20] sm:$0xf]
        %v2426 = vld [vmem:[%s2416 + $0x24] sm:$0xf]
        %v2427 = vld [vmem:[%s2416 + $0x28] sm:$0xf]
        %v2428 = vld [vmem:[%s2416 + $0x2c] sm:$0xf]
        %v2429 = vld [vmem:[%s2416 + $0x30] sm:$0xf]
        %v2430 = vld [vmem:[%s2416 + $0x34] sm:$0xf]
        %v2431 = vld [vmem:[%s2416 + $0x38] sm:$0xf]
        %v2432 = vld [vmem:[%s2416 + $0x3c] sm:$0xf]
        %v2449 = vunpack.c.l.b16 %v2417
        %v2450 = vunpack.c.l.b16 %v2418
        %v2451 = vunpack.c.l.b16 %v2419
        %v2452 = vunpack.c.l.b16 %v2420
        %v2453 = vunpack.c.l.b16 %v2421
        %v2454 = vunpack.c.l.b16 %v2422
        %v2455 = vunpack.c.l.b16 %v2423
        %v2456 = vunpack.c.l.b16 %v2424
        %v2457 = vunpack.c.l.b16 %v2425
        %v2458 = vunpack.c.l.b16 %v2426
        %v2459 = vunpack.c.l.b16 %v2427
        %v2460 = vunpack.c.l.b16 %v2428
        %v2461 = vunpack.c.l.b16 %v2429
        %v2462 = vunpack.c.l.b16 %v2430
        %v2463 = vunpack.c.l.b16 %v2431
        %v2464 = vunpack.c.l.b16 %v2432
        %v2465 = vpack.c.b16 %v2450, %v2449
        %v2466 = vpack.c.b16 %v2452, %v2451
        %v2467 = vpack.c.b16 %v2454, %v2453
        %v2468 = vpack.c.b16 %v2456, %v2455
        %v2469 = vpack.c.b16 %v2458, %v2457
        %v2470 = vpack.c.b16 %v2460, %v2459
        %v2471 = vpack.c.b16 %v2462, %v2461
        %v2472 = vpack.c.b16 %v2464, %v2463
        %2481 = vmatprep.subr.bf16.mxu0 0
        %2482 = vmatpush1.bf16.msra.mxu0 %v2472
        %2483 = vmatprep.subr.bf16.mxu0 0
        %2484 = vmatpush1.bf16.msra.mxu0 %v2471
        %2485 = vmatprep.subr.bf16.mxu0 0
        %2486 = vmatpush1.bf16.msra.mxu0 %v2470
        %2487 = vmatprep.subr.bf16.mxu0 0
        %2488 = vmatpush1.bf16.msra.mxu0 %v2469
        %2489 = vmatprep.subr.bf16.mxu0 0
        %2490 = vmatpush1.bf16.msra.mxu0 %v2468
        %2491 = vmatprep.subr.bf16.mxu0 0
        %2492 = vmatpush1.bf16.msra.mxu0 %v2467
        %2493 = vmatprep.subr.bf16.mxu0 0
        %2494 = vmatpush1.bf16.msra.mxu0 %v2466
        %2495 = vmatprep.subr.bf16.mxu0 0
        %2496 = vmatpush1.bf16.msra.mxu0 %v2465
        %2497 = vmatprep.subr.bf16.mxu0 0
        %2498 = vmatpush2.bf16.msra.mxu0 0
        %2499 = vmatprep.subr.bf16.mxu0 0
        %2500 = vmatpush2.bf16.msra.mxu0 0
        %2501 = vmatprep.subr.bf16.mxu0 0
        %2502 = vmatpush2.bf16.msra.mxu0 0
        %2503 = vmatprep.subr.bf16.mxu0 0
        %2504 = vmatpush2.bf16.msra.mxu0 0
        %2505 = vmatprep.subr.bf16.mxu0 0
        %2506 = vmatpush2.bf16.msra.mxu0 0
        %2507 = vmatprep.subr.bf16.mxu0 0
        %2508 = vmatpush2.bf16.msra.mxu0 0
        %2509 = vmatprep.subr.bf16.mxu0 0
        %2510 = vmatpush2.bf16.msra.mxu0 0
        %2511 = vmatprep.subr.bf16.mxu0 0
        %2512 = vmatpush2.bf16.msra.mxu0 0
        %2513 = vmatprep.mubr.bf16.mxu0 0
        %2514 = vmatmul.mubr.bf16.gmra.mxu0 %v2400
        %v2515 = vpop.f32.mrf.mxu0
        %v2516 = vadd.f32 0.0, %v2515
        %v2517 = vpop.f32.mrf.mxu0
        %v2518 = vpop.f32.mrf.mxu0
        %v2519 = vadd.f32 0.0, %v2518
        %v2520 = vpop.f32.mrf.mxu0
        %2521 = vmatprep.mubr.bf16.mxu0 0
        %2522 = vmatmul.mubr.bf16.gmra.mxu0 %v2401
        %v2523 = vpop.f32.mrf.mxu0
        %v2524 = vadd.f32 0.0, %v2523
        %v2525 = vpop.f32.mrf.mxu0
        %v2526 = vpop.f32.mrf.mxu0
        %v2527 = vadd.f32 0.0, %v2526
        %v2528 = vpop.f32.mrf.mxu0
        %2529 = vmatprep.mubr.bf16.mxu0 0
        %2530 = vmatmul.mubr.bf16.gmra.mxu0 %v2402
        %v2531 = vpop.f32.mrf.mxu0
        %v2532 = vadd.f32 0.0, %v2531
        %v2533 = vpop.f32.mrf.mxu0
        %v2534 = vpop.f32.mrf.mxu0
        %v2535 = vadd.f32 0.0, %v2534
        %v2536 = vpop.f32.mrf.mxu0
        %2537 = vmatprep.mubr.bf16.mxu0 0
        %2538 = vmatmul.mubr.bf16.gmra.mxu0 %v2403
        %v2539 = vpop.f32.mrf.mxu0
        %v2540 = vadd.f32 0.0, %v2539
        %v2541 = vpop.f32.mrf.mxu0
        %v2542 = vpop.f32.mrf.mxu0
        %v2543 = vadd.f32 0.0, %v2542
        %v2544 = vpop.f32.mrf.mxu0
        %2545 = vmatprep.mubr.bf16.mxu0 0
        %2546 = vmatmul.mubr.bf16.gmra.mxu0 %v2404
        %v2547 = vpop.f32.mrf.mxu0
        %v2548 = vadd.f32 0.0, %v2547
        %v2549 = vpop.f32.mrf.mxu0
        %v2550 = vpop.f32.mrf.mxu0
        %v2551 = vadd.f32 0.0, %v2550
        %v2552 = vpop.f32.mrf.mxu0
        %2553 = vmatprep.mubr.bf16.mxu0 0
        %2554 = vmatmul.mubr.bf16.gmra.mxu0 %v2405
        %v2555 = vpop.f32.mrf.mxu0
        %v2556 = vadd.f32 0.0, %v2555
        %v2557 = vpop.f32.mrf.mxu0
        %v2558 = vpop.f32.mrf.mxu0
        %v2559 = vadd.f32 0.0, %v2558
        %v2560 = vpop.f32.mrf.mxu0
        %2561 = vmatprep.mubr.bf16.mxu0 0
        %2562 = vmatmul.mubr.bf16.gmra.mxu0 %v2406
        %v2563 = vpop.f32.mrf.mxu0
        %v2564 = vadd.f32 0.0, %v2563
        %v2565 = vpop.f32.mrf.mxu0
        %v2566 = vpop.f32.mrf.mxu0
        %v2567 = vadd.f32 0.0, %v2566
        %v2568 = vpop.f32.mrf.mxu0
        %2569 = vmatprep.mubr.bf16.mxu0 0
        %2570 = vmatmul.mubr.bf16.gmra.mxu0 %v2407
        %v2571 = vpop.f32.mrf.mxu0
        %v2572 = vadd.f32 0.0, %v2571
        %v2573 = vpop.f32.mrf.mxu0
        %v2574 = vpop.f32.mrf.mxu0
        %v2575 = vadd.f32 0.0, %v2574
        %v2576 = vpop.f32.mrf.mxu0
        %2577 = vmatprep.mubr.bf16.mxu0 0
        %2578 = vmatmul.mubr.bf16.gmra.mxu0 %v2408
        %v2579 = vpop.f32.mrf.mxu0
        %v2580 = vadd.f32 0.0, %v2579
        %v2581 = vpop.f32.mrf.mxu0
        %v2582 = vpop.f32.mrf.mxu0
        %v2583 = vadd.f32 0.0, %v2582
        %v2584 = vpop.f32.mrf.mxu0
        %2585 = vmatprep.mubr.bf16.mxu0 0
        %2586 = vmatmul.mubr.bf16.gmra.mxu0 %v2409
        %v2587 = vpop.f32.mrf.mxu0
        %v2588 = vadd.f32 0.0, %v2587
        %v2589 = vpop.f32.mrf.mxu0
        %v2590 = vpop.f32.mrf.mxu0
        %v2591 = vadd.f32 0.0, %v2590
        %v2592 = vpop.f32.mrf.mxu0
        %2593 = vmatprep.mubr.bf16.mxu0 0
        %2594 = vmatmul.mubr.bf16.gmra.mxu0 %v2410
        %v2595 = vpop.f32.mrf.mxu0
        %v2596 = vadd.f32 0.0, %v2595
        %v2597 = vpop.f32.mrf.mxu0
        %v2598 = vpop.f32.mrf.mxu0
        %v2599 = vadd.f32 0.0, %v2598
        %v2600 = vpop.f32.mrf.mxu0
        %2601 = vmatprep.mubr.bf16.mxu0 0
        %2602 = vmatmul.mubr.bf16.gmra.mxu0 %v2411
        %v2603 = vpop.f32.mrf.mxu0
        %v2604 = vadd.f32 0.0, %v2603
        %v2605 = vpop.f32.mrf.mxu0
        %v2606 = vpop.f32.mrf.mxu0
        %v2607 = vadd.f32 0.0, %v2606
        %v2608 = vpop.f32.mrf.mxu0
        %2609 = vmatprep.mubr.bf16.mxu0 0
        %2610 = vmatmul.mubr.bf16.gmra.mxu0 %v2412
        %v2611 = vpop.f32.mrf.mxu0
        %v2612 = vadd.f32 0.0, %v2611
        %v2613 = vpop.f32.mrf.mxu0
        %v2614 = vpop.f32.mrf.mxu0
        %v2615 = vadd.f32 0.0, %v2614
        %v2616 = vpop.f32.mrf.mxu0
        %2617 = vmatprep.mubr.bf16.mxu0 0
        %2618 = vmatmul.mubr.bf16.gmra.mxu0 %v2413
        %v2619 = vpop.f32.mrf.mxu0
        %v2620 = vadd.f32 0.0, %v2619
        %v2621 = vpop.f32.mrf.mxu0
        %v2622 = vpop.f32.mrf.mxu0
        %v2623 = vadd.f32 0.0, %v2622
        %v2624 = vpop.f32.mrf.mxu0
        %2625 = vmatprep.mubr.bf16.mxu0 0
        %2626 = vmatmul.mubr.bf16.gmra.mxu0 %v2414
        %v2627 = vpop.f32.mrf.mxu0
        %v2628 = vadd.f32 0.0, %v2627
        %v2629 = vpop.f32.mrf.mxu0
        %v2630 = vpop.f32.mrf.mxu0
        %v2631 = vadd.f32 0.0, %v2630
        %v2632 = vpop.f32.mrf.mxu0
        %2633 = vmatprep.mubr.bf16.mxu0 0
        %2634 = vmatmul.mubr.bf16.gmra.mxu0 %v2415
        %v2635 = vpop.f32.mrf.mxu0
        %v2636 = vadd.f32 0.0, %v2635
        %v2637 = vpop.f32.mrf.mxu0
        %v2638 = vpop.f32.mrf.mxu0
        %v2639 = vadd.f32 0.0, %v2638
        %v2640 = vpop.f32.mrf.mxu0
        %2641 = vdwg.mxu0
        %v2642 = vadd.f32 %v2336, %v2516
        %v2643 = vadd.f32 %v2337, %v2519
        %v2644 = vadd.f32 %v2338, %v2524
        %v2645 = vadd.f32 %v2339, %v2527
        %v2646 = vadd.f32 %v2340, %v2532
        %v2647 = vadd.f32 %v2341, %v2535
        %v2648 = vadd.f32 %v2342, %v2540
        %v2649 = vadd.f32 %v2343, %v2543
        %v2650 = vadd.f32 %v2344, %v2548
        %v2651 = vadd.f32 %v2345, %v2551
        %v2652 = vadd.f32 %v2346, %v2556
        %v2653 = vadd.f32 %v2347, %v2559
        %v2654 = vadd.f32 %v2348, %v2564
        %v2655 = vadd.f32 %v2349, %v2567
        %v2656 = vadd.f32 %v2350, %v2572
        %v2657 = vadd.f32 %v2351, %v2575
        %v2658 = vadd.f32 %v2352, %v2580
        %v2659 = vadd.f32 %v2353, %v2583
        %v2660 = vadd.f32 %v2354, %v2588
        %v2661 = vadd.f32 %v2355, %v2591
        %v2662 = vadd.f32 %v2356, %v2596
        %v2663 = vadd.f32 %v2357, %v2599
        %v2664 = vadd.f32 %v2358, %v2604
        %v2665 = vadd.f32 %v2359, %v2607
        %v2666 = vadd.f32 %v2360, %v2612
        %v2667 = vadd.f32 %v2361, %v2615
        %v2668 = vadd.f32 %v2362, %v2620
        %v2669 = vadd.f32 %v2363, %v2623
        %v2670 = vadd.f32 %v2364, %v2628
        %v2671 = vadd.f32 %v2365, %v2631
        %v2672 = vadd.f32 %v2366, %v2636
        %v2673 = vadd.f32 %v2367, %v2639
        %v2674 = vld [vmem:[%s2061 + $0x2] sm:$0xff]
        %v2675 = vld [vmem:[%s2061 + $0xa] sm:$0xff]
        %v2676 = vld [vmem:[%s2061 + $0x1a] sm:$0xff]
        %v2677 = vld [vmem:[%s2061 + $0x22] sm:$0xff]
        %v2678 = vld [vmem:[%s2061 + $0x32] sm:$0xff]
        %v2679 = vld [vmem:[%s2061 + $0x3a] sm:$0xff]
        %v2680 = vld [vmem:[%s2061 + $0x4a] sm:$0xff]
        %v2681 = vld [vmem:[%s2061 + $0x52] sm:$0xff]
        %v2682 = vld [vmem:[%s2061 + $0x62] sm:$0xff]
        %v2683 = vld [vmem:[%s2061 + $0x6a] sm:$0xff]
        %v2684 = vld [vmem:[%s2061 + $0x7a] sm:$0xff]
        %v2685 = vld [vmem:[%s2061 + $0x82] sm:$0xff]
        %v2686 = vld [vmem:[%s2061 + $0x92] sm:$0xff]
        %v2687 = vld [vmem:[%s2061 + $0x9a] sm:$0xff]
        %v2688 = vld [vmem:[%s2061 + $0xaa] sm:$0xff]
        %v2689 = vld [vmem:[%s2061 + $0xb2] sm:$0xff]
        %v2690 = vld [vmem:[%s2061 + $0xc2] sm:$0xff]
        %v2691 = vld [vmem:[%s2061 + $0xca] sm:$0xff]
        %v2692 = vld [vmem:[%s2061 + $0xda] sm:$0xff]
        %v2693 = vld [vmem:[%s2061 + $0xe2] sm:$0xff]
        %v2694 = vld [vmem:[%s2061 + $0xf2] sm:$0xff]
        %v2695 = vld [vmem:[%s2061 + $0xfa] sm:$0xff]
        %v2696 = vld [vmem:[%s2061 + $0x10a] sm:$0xff]
        %v2697 = vld [vmem:[%s2061 + $0x112] sm:$0xff]
        %v2698 = vld [vmem:[%s2061 + $0x122] sm:$0xff]
        %v2699 = vld [vmem:[%s2061 + $0x12a] sm:$0xff]
        %v2700 = vld [vmem:[%s2061 + $0x13a] sm:$0xff]
        %v2701 = vld [vmem:[%s2061 + $0x142] sm:$0xff]
        %v2702 = vld [vmem:[%s2061 + $0x152] sm:$0xff]
        %v2703 = vld [vmem:[%s2061 + $0x15a] sm:$0xff]
        %v2704 = vld [vmem:[%s2061 + $0x16a] sm:$0xff]
        %v2705 = vld [vmem:[%s2061 + $0x172] sm:$0xff]
        %v2706 = vpack.c.bf16 %v2675, %v2674
        %v2707 = vpack.c.bf16 %v2677, %v2676
        %v2708 = vpack.c.bf16 %v2679, %v2678
        %v2709 = vpack.c.bf16 %v2681, %v2680
        %v2710 = vpack.c.bf16 %v2683, %v2682
        %v2711 = vpack.c.bf16 %v2685, %v2684
        %v2712 = vpack.c.bf16 %v2687, %v2686
        %v2713 = vpack.c.bf16 %v2689, %v2688
        %v2714 = vpack.c.bf16 %v2691, %v2690
        %v2715 = vpack.c.bf16 %v2693, %v2692
        %v2716 = vpack.c.bf16 %v2695, %v2694
        %v2717 = vpack.c.bf16 %v2697, %v2696
        %v2718 = vpack.c.bf16 %v2699, %v2698
        %v2719 = vpack.c.bf16 %v2701, %v2700
        %v2720 = vpack.c.bf16 %v2703, %v2702
        %v2721 = vpack.c.bf16 %v2705, %v2704
        %s2722 = scalar_lea.vmem [#allocation4], 512
        %v2723 = vld [vmem:[%s2722] sm:$0xf]
        %v2724 = vld [vmem:[%s2722 + $0x4] sm:$0xf]
        %v2725 = vld [vmem:[%s2722 + $0x8] sm:$0xf]
        %v2726 = vld [vmem:[%s2722 + $0xc] sm:$0xf]
        %v2727 = vld [vmem:[%s2722 + $0x10] sm:$0xf]
        %v2728 = vld [vmem:[%s2722 + $0x14] sm:$0xf]
        %v2729 = vld [vmem:[%s2722 + $0x18] sm:$0xf]
        %v2730 = vld [vmem:[%s2722 + $0x1c] sm:$0xf]
        %v2731 = vld [vmem:[%s2722 + $0x20] sm:$0xf]
        %v2732 = vld [vmem:[%s2722 + $0x24] sm:$0xf]
        %v2733 = vld [vmem:[%s2722 + $0x28] sm:$0xf]
        %v2734 = vld [vmem:[%s2722 + $0x2c] sm:$0xf]
        %v2735 = vld [vmem:[%s2722 + $0x30] sm:$0xf]
        %v2736 = vld [vmem:[%s2722 + $0x34] sm:$0xf]
        %v2737 = vld [vmem:[%s2722 + $0x38] sm:$0xf]
        %v2738 = vld [vmem:[%s2722 + $0x3c] sm:$0xf]
        %v2755 = vunpack.c.l.b16 %v2723
        %v2756 = vunpack.c.l.b16 %v2724
        %v2757 = vunpack.c.l.b16 %v2725
        %v2758 = vunpack.c.l.b16 %v2726
        %v2759 = vunpack.c.l.b16 %v2727
        %v2760 = vunpack.c.l.b16 %v2728
        %v2761 = vunpack.c.l.b16 %v2729
        %v2762 = vunpack.c.l.b16 %v2730
        %v2763 = vunpack.c.l.b16 %v2731
        %v2764 = vunpack.c.l.b16 %v2732
        %v2765 = vunpack.c.l.b16 %v2733
        %v2766 = vunpack.c.l.b16 %v2734
        %v2767 = vunpack.c.l.b16 %v2735
        %v2768 = vunpack.c.l.b16 %v2736
        %v2769 = vunpack.c.l.b16 %v2737
        %v2770 = vunpack.c.l.b16 %v2738
        %v2771 = vpack.c.b16 %v2756, %v2755
        %v2772 = vpack.c.b16 %v2758, %v2757
        %v2773 = vpack.c.b16 %v2760, %v2759
        %v2774 = vpack.c.b16 %v2762, %v2761
        %v2775 = vpack.c.b16 %v2764, %v2763
        %v2776 = vpack.c.b16 %v2766, %v2765
        %v2777 = vpack.c.b16 %v2768, %v2767
        %v2778 = vpack.c.b16 %v2770, %v2769
        %2787 = vmatprep.subr.bf16.mxu0 0
        %2788 = vmatpush1.bf16.msra.mxu0 %v2778
        %2789 = vmatprep.subr.bf16.mxu0 0
        %2790 = vmatpush1.bf16.msra.mxu0 %v2777
        %2791 = vmatprep.subr.bf16.mxu0 0
        %2792 = vmatpush1.bf16.msra.mxu0 %v2776
        %2793 = vmatprep.subr.bf16.mxu0 0
        %2794 = vmatpush1.bf16.msra.mxu0 %v2775
        %2795 = vmatprep.subr.bf16.mxu0 0
        %2796 = vmatpush1.bf16.msra.mxu0 %v2774
        %2797 = vmatprep.subr.bf16.mxu0 0
        %2798 = vmatpush1.bf16.msra.mxu0 %v2773
        %2799 = vmatprep.subr.bf16.mxu0 0
        %2800 = vmatpush1.bf16.msra.mxu0 %v2772
        %2801 = vmatprep.subr.bf16.mxu0 0
        %2802 = vmatpush1.bf16.msra.mxu0 %v2771
        %2803 = vmatprep.subr.bf16.mxu0 0
        %2804 = vmatpush2.bf16.msra.mxu0 0
        %2805 = vmatprep.subr.bf16.mxu0 0
        %2806 = vmatpush2.bf16.msra.mxu0 0
        %2807 = vmatprep.subr.bf16.mxu0 0
        %2808 = vmatpush2.bf16.msra.mxu0 0
        %2809 = vmatprep.subr.bf16.mxu0 0
        %2810 = vmatpush2.bf16.msra.mxu0 0
        %2811 = vmatprep.subr.bf16.mxu0 0
        %2812 = vmatpush2.bf16.msra.mxu0 0
        %2813 = vmatprep.subr.bf16.mxu0 0
        %2814 = vmatpush2.bf16.msra.mxu0 0
        %2815 = vmatprep.subr.bf16.mxu0 0
        %2816 = vmatpush2.bf16.msra.mxu0 0
        %2817 = vmatprep.subr.bf16.mxu0 0
        %2818 = vmatpush2.bf16.msra.mxu0 0
        %2819 = vmatprep.mubr.bf16.mxu0 0
        %2820 = vmatmul.mubr.bf16.gmra.mxu0 %v2706
        %v2821 = vpop.f32.mrf.mxu0
        %v2822 = vadd.f32 0.0, %v2821
        %v2823 = vpop.f32.mrf.mxu0
        %v2824 = vpop.f32.mrf.mxu0
        %v2825 = vadd.f32 0.0, %v2824
        %v2826 = vpop.f32.mrf.mxu0
        %2827 = vmatprep.mubr.bf16.mxu0 0
        %2828 = vmatmul.mubr.bf16.gmra.mxu0 %v2707
        %v2829 = vpop.f32.mrf.mxu0
        %v2830 = vadd.f32 0.0, %v2829
        %v2831 = vpop.f32.mrf.mxu0
        %v2832 = vpop.f32.mrf.mxu0
        %v2833 = vadd.f32 0.0, %v2832
        %v2834 = vpop.f32.mrf.mxu0
        %2835 = vmatprep.mubr.bf16.mxu0 0
        %2836 = vmatmul.mubr.bf16.gmra.mxu0 %v2708
        %v2837 = vpop.f32.mrf.mxu0
        %v2838 = vadd.f32 0.0, %v2837
        %v2839 = vpop.f32.mrf.mxu0
        %v2840 = vpop.f32.mrf.mxu0
        %v2841 = vadd.f32 0.0, %v2840
        %v2842 = vpop.f32.mrf.mxu0
        %2843 = vmatprep.mubr.bf16.mxu0 0
        %2844 = vmatmul.mubr.bf16.gmra.mxu0 %v2709
        %v2845 = vpop.f32.mrf.mxu0
        %v2846 = vadd.f32 0.0, %v2845
        %v2847 = vpop.f32.mrf.mxu0
        %v2848 = vpop.f32.mrf.mxu0
        %v2849 = vadd.f32 0.0, %v2848
        %v2850 = vpop.f32.mrf.mxu0
        %2851 = vmatprep.mubr.bf16.mxu0 0
        %2852 = vmatmul.mubr.bf16.gmra.mxu0 %v2710
        %v2853 = vpop.f32.mrf.mxu0
        %v2854 = vadd.f32 0.0, %v2853
        %v2855 = vpop.f32.mrf.mxu0
        %v2856 = vpop.f32.mrf.mxu0
        %v2857 = vadd.f32 0.0, %v2856
        %v2858 = vpop.f32.mrf.mxu0
        %2859 = vmatprep.mubr.bf16.mxu0 0
        %2860 = vmatmul.mubr.bf16.gmra.mxu0 %v2711
        %v2861 = vpop.f32.mrf.mxu0
        %v2862 = vadd.f32 0.0, %v2861
        %v2863 = vpop.f32.mrf.mxu0
        %v2864 = vpop.f32.mrf.mxu0
        %v2865 = vadd.f32 0.0, %v2864
        %v2866 = vpop.f32.mrf.mxu0
        %2867 = vmatprep.mubr.bf16.mxu0 0
        %2868 = vmatmul.mubr.bf16.gmra.mxu0 %v2712
        %v2869 = vpop.f32.mrf.mxu0
        %v2870 = vadd.f32 0.0, %v2869
        %v2871 = vpop.f32.mrf.mxu0
        %v2872 = vpop.f32.mrf.mxu0
        %v2873 = vadd.f32 0.0, %v2872
        %v2874 = vpop.f32.mrf.mxu0
        %2875 = vmatprep.mubr.bf16.mxu0 0
        %2876 = vmatmul.mubr.bf16.gmra.mxu0 %v2713
        %v2877 = vpop.f32.mrf.mxu0
        %v2878 = vadd.f32 0.0, %v2877
        %v2879 = vpop.f32.mrf.mxu0
        %v2880 = vpop.f32.mrf.mxu0
        %v2881 = vadd.f32 0.0, %v2880
        %v2882 = vpop.f32.mrf.mxu0
        %2883 = vmatprep.mubr.bf16.mxu0 0
        %2884 = vmatmul.mubr.bf16.gmra.mxu0 %v2714
        %v2885 = vpop.f32.mrf.mxu0
        %v2886 = vadd.f32 0.0, %v2885
        %v2887 = vpop.f32.mrf.mxu0
        %v2888 = vpop.f32.mrf.mxu0
        %v2889 = vadd.f32 0.0, %v2888
        %v2890 = vpop.f32.mrf.mxu0
        %2891 = vmatprep.mubr.bf16.mxu0 0
        %2892 = vmatmul.mubr.bf16.gmra.mxu0 %v2715
        %v2893 = vpop.f32.mrf.mxu0
        %v2894 = vadd.f32 0.0, %v2893
        %v2895 = vpop.f32.mrf.mxu0
        %v2896 = vpop.f32.mrf.mxu0
        %v2897 = vadd.f32 0.0, %v2896
        %v2898 = vpop.f32.mrf.mxu0
        %2899 = vmatprep.mubr.bf16.mxu0 0
        %2900 = vmatmul.mubr.bf16.gmra.mxu0 %v2716
        %v2901 = vpop.f32.mrf.mxu0
        %v2902 = vadd.f32 0.0, %v2901
        %v2903 = vpop.f32.mrf.mxu0
        %v2904 = vpop.f32.mrf.mxu0
        %v2905 = vadd.f32 0.0, %v2904
        %v2906 = vpop.f32.mrf.mxu0
        %2907 = vmatprep.mubr.bf16.mxu0 0
        %2908 = vmatmul.mubr.bf16.gmra.mxu0 %v2717
        %v2909 = vpop.f32.mrf.mxu0
        %v2910 = vadd.f32 0.0, %v2909
        %v2911 = vpop.f32.mrf.mxu0
        %v2912 = vpop.f32.mrf.mxu0
        %v2913 = vadd.f32 0.0, %v2912
        %v2914 = vpop.f32.mrf.mxu0
        %2915 = vmatprep.mubr.bf16.mxu0 0
        %2916 = vmatmul.mubr.bf16.gmra.mxu0 %v2718
        %v2917 = vpop.f32.mrf.mxu0
        %v2918 = vadd.f32 0.0, %v2917
        %v2919 = vpop.f32.mrf.mxu0
        %v2920 = vpop.f32.mrf.mxu0
        %v2921 = vadd.f32 0.0, %v2920
        %v2922 = vpop.f32.mrf.mxu0
        %2923 = vmatprep.mubr.bf16.mxu0 0
        %2924 = vmatmul.mubr.bf16.gmra.mxu0 %v2719
        %v2925 = vpop.f32.mrf.mxu0
        %v2926 = vadd.f32 0.0, %v2925
        %v2927 = vpop.f32.mrf.mxu0
        %v2928 = vpop.f32.mrf.mxu0
        %v2929 = vadd.f32 0.0, %v2928
        %v2930 = vpop.f32.mrf.mxu0
        %2931 = vmatprep.mubr.bf16.mxu0 0
        %2932 = vmatmul.mubr.bf16.gmra.mxu0 %v2720
        %v2933 = vpop.f32.mrf.mxu0
        %v2934 = vadd.f32 0.0, %v2933
        %v2935 = vpop.f32.mrf.mxu0
        %v2936 = vpop.f32.mrf.mxu0
        %v2937 = vadd.f32 0.0, %v2936
        %v2938 = vpop.f32.mrf.mxu0
        %2939 = vmatprep.mubr.bf16.mxu0 0
        %2940 = vmatmul.mubr.bf16.gmra.mxu0 %v2721
        %v2941 = vpop.f32.mrf.mxu0
        %v2942 = vadd.f32 0.0, %v2941
        %v2943 = vpop.f32.mrf.mxu0
        %v2944 = vpop.f32.mrf.mxu0
        %v2945 = vadd.f32 0.0, %v2944
        %v2946 = vpop.f32.mrf.mxu0
        %2947 = vdwg.mxu0
        %v2948 = vadd.f32 %v2642, %v2822
        %v2949 = vadd.f32 %v2643, %v2825
        %v2950 = vadd.f32 %v2644, %v2830
        %v2951 = vadd.f32 %v2645, %v2833
        %v2952 = vadd.f32 %v2646, %v2838
        %v2953 = vadd.f32 %v2647, %v2841
        %v2954 = vadd.f32 %v2648, %v2846
        %v2955 = vadd.f32 %v2649, %v2849
        %v2956 = vadd.f32 %v2650, %v2854
        %v2957 = vadd.f32 %v2651, %v2857
        %v2958 = vadd.f32 %v2652, %v2862
        %v2959 = vadd.f32 %v2653, %v2865
        %v2960 = vadd.f32 %v2654, %v2870
        %v2961 = vadd.f32 %v2655, %v2873
        %v2962 = vadd.f32 %v2656, %v2878
        %v2963 = vadd.f32 %v2657, %v2881
        %v2964 = vadd.f32 %v2658, %v2886
        %v2965 = vadd.f32 %v2659, %v2889
        %v2966 = vadd.f32 %v2660, %v2894
        %v2967 = vadd.f32 %v2661, %v2897
        %v2968 = vadd.f32 %v2662, %v2902
        %v2969 = vadd.f32 %v2663, %v2905
        %v2970 = vadd.f32 %v2664, %v2910
        %v2971 = vadd.f32 %v2665, %v2913
        %v2972 = vadd.f32 %v2666, %v2918
        %v2973 = vadd.f32 %v2667, %v2921
        %v2974 = vadd.f32 %v2668, %v2926
        %v2975 = vadd.f32 %v2669, %v2929
        %v2976 = vadd.f32 %v2670, %v2934
        %v2977 = vadd.f32 %v2671, %v2937
        %v2978 = vadd.f32 %v2672, %v2942
        %v2979 = vadd.f32 %v2673, %v2945
        %v2980 = vmax.f32 %v2948, 0.0
        %v2981 = vmax.f32 %v2949, 0.0
        %v2982 = vmax.f32 %v2950, 0.0
        %v2983 = vmax.f32 %v2951, 0.0
        %v2984 = vmax.f32 %v2952, 0.0
        %v2985 = vmax.f32 %v2953, 0.0
        %v2986 = vmax.f32 %v2954, 0.0
        %v2987 = vmax.f32 %v2955, 0.0
        %v2988 = vmax.f32 %v2956, 0.0
        %v2989 = vmax.f32 %v2957, 0.0
        %v2990 = vmax.f32 %v2958, 0.0
        %v2991 = vmax.f32 %v2959, 0.0
        %v2992 = vmax.f32 %v2960, 0.0
        %v2993 = vmax.f32 %v2961, 0.0
        %v2994 = vmax.f32 %v2962, 0.0
        %v2995 = vmax.f32 %v2963, 0.0
        %v2996 = vmax.f32 %v2964, 0.0
        %v2997 = vmax.f32 %v2965, 0.0
        %v2998 = vmax.f32 %v2966, 0.0
        %v2999 = vmax.f32 %v2967, 0.0
        %v3000 = vmax.f32 %v2968, 0.0
        %v3001 = vmax.f32 %v2969, 0.0
        %v3002 = vmax.f32 %v2970, 0.0
        %v3003 = vmax.f32 %v2971, 0.0
        %v3004 = vmax.f32 %v2972, 0.0
        %v3005 = vmax.f32 %v2973, 0.0
        %v3006 = vmax.f32 %v2974, 0.0
        %v3007 = vmax.f32 %v2975, 0.0
        %v3008 = vmax.f32 %v2976, 0.0
        %v3009 = vmax.f32 %v2977, 0.0
        %v3010 = vmax.f32 %v2978, 0.0
        %v3011 = vmax.f32 %v2979, 0.0
        %3012 = vst [vmem:[%s151] sm:$0xff] %v2980
        %3013 = vst [vmem:[%s151 + $0x8] sm:$0xff] %v2981
        %3014 = vst [vmem:[%s151 + $0x10] sm:$0xff] %v2982
        %3015 = vst [vmem:[%s151 + $0x18] sm:$0xff] %v2983
        %3016 = vst [vmem:[%s151 + $0x20] sm:$0xff] %v2984
        %3017 = vst [vmem:[%s151 + $0x28] sm:$0xff] %v2985
        %3018 = vst [vmem:[%s151 + $0x30] sm:$0xff] %v2986
        %3019 = vst [vmem:[%s151 + $0x38] sm:$0xff] %v2987
        %3020 = vst [vmem:[%s151 + $0x40] sm:$0xff] %v2988
        %3021 = vst [vmem:[%s151 + $0x48] sm:$0xff] %v2989
        %3022 = vst [vmem:[%s151 + $0x50] sm:$0xff] %v2990
        %3023 = vst [vmem:[%s151 + $0x58] sm:$0xff] %v2991
        %3024 = vst [vmem:[%s151 + $0x60] sm:$0xff] %v2992
        %3025 = vst [vmem:[%s151 + $0x68] sm:$0xff] %v2993
        %3026 = vst [vmem:[%s151 + $0x70] sm:$0xff] %v2994
        %3027 = vst [vmem:[%s151 + $0x78] sm:$0xff] %v2995
        %3028 = vst [vmem:[%s151 + $0x80] sm:$0xff] %v2996
        %3029 = vst [vmem:[%s151 + $0x88] sm:$0xff] %v2997
        %3030 = vst [vmem:[%s151 + $0x90] sm:$0xff] %v2998
        %3031 = vst [vmem:[%s151 + $0x98] sm:$0xff] %v2999
        %3032 = vst [vmem:[%s151 + $0xa0] sm:$0xff] %v3000
        %3033 = vst [vmem:[%s151 + $0xa8] sm:$0xff] %v3001
        %3034 = vst [vmem:[%s151 + $0xb0] sm:$0xff] %v3002
        %3035 = vst [vmem:[%s151 + $0xb8] sm:$0xff] %v3003
        %3036 = vst [vmem:[%s151 + $0xc0] sm:$0xff] %v3004
        %3037 = vst [vmem:[%s151 + $0xc8] sm:$0xff] %v3005
        %3038 = vst [vmem:[%s151 + $0xd0] sm:$0xff] %v3006
        %3039 = vst [vmem:[%s151 + $0xd8] sm:$0xff] %v3007
        %3040 = vst [vmem:[%s151 + $0xe0] sm:$0xff] %v3008
        %3041 = vst [vmem:[%s151 + $0xe8] sm:$0xff] %v3009
        %3042 = vst [vmem:[%s151 + $0xf0] sm:$0xff] %v3010
        %3043 = vst [vmem:[%s151 + $0xf8] sm:$0xff] %v3011
        %s3044 = sand.u32 %s82, 1
        %s3045 = scalar_lea.sflag [#allocation6], %s3044
        %s3046 = sand.u32 %s82, 1
        %s3047 = smul.addr %s3046, 256
        %s3048 = scalar_lea.vmem [#allocation7], %s3047
        // Predicated region
        $region37: #{tpu_custom_call.1} parent=27 // pred_check
          %p3049 = pneg %p92
        $region38: #{tpu_custom_call.1} parent=27 // pred_check_branch
          %3051 = sbr.rel (%p3049) target = $region40
        $region39: #{tpu_custom_call.1} parent=27 // pred_region
          %s3052 = smul.u32 16, %s23
          %s3054 = ssub.s32 4096, 4096
          %3055 = vsyncadd %s3045, %s3054
          %s3056 = smul.addr %s3052, 2
          %s3057 = smul.addr %s22, 32
          %s3058 = sadd.s32 %s3056, %s3057
          %s3059 = smul.addr %s3058, 128
          %s3060 = scalar_lea.hbm %s3, %s3059
          %s3061 = sshll.u32 %s3048, 4
          %s3062 = int_to_ptr.vmem [resolvable:$true] %s3061
          %3067 = dma.vmem_to_hbm [thread:$0]  %s3062, 4096, %s3060, %s3045, 128, 128, 8
        $region40: #{tpu_custom_call.1} parent=27 // pred_fallthru
          _
      $region28: #{tpu_custom_call.1} parent=5 // pred_fallthru
        _
      %p3068 = scmp.le.s32.totalorder 2, %s13
      // Predicated region
      $region41: #{tpu_custom_call.1} parent=5 // pred_check
        %p3069 = pneg %p3068
      $region42: #{tpu_custom_call.1} parent=5 // pred_check_branch
        %3071 = sbr.rel (%p3069) target = $region44
      $region43: #{tpu_custom_call.1} parent=5 // pred_region
        %s3072 = ssub.s32 %s13, 2
        // Predicated region
        $region45: #{tpu_custom_call.1} parent=43 // pred_check
          %p3073 = pneg %p98
        $region46: #{tpu_custom_call.1} parent=43 // pred_check_branch
          %3075 = sbr.rel (%p3073) target = $region48
        $region47: #{tpu_custom_call.1} parent=43 // pred_region
          %s3076 = sand.u32 %s83, 1
          %s3077 = scalar_lea.sflag [#allocation6], %s3076
          %s3078 = sand.u32 %s83, 1
          %s3079 = smul.addr %s3078, 256
          %s3080 = scalar_lea.vmem [#allocation7], %s3079
          %3081 = dma.done %s3077, 4096
        $region48: #{tpu_custom_call.1} parent=43 // pred_fallthru
          _
      $region44: #{tpu_custom_call.1} parent=5 // pred_fallthru
        _
    $region6: #{tpu_custom_call.1} parent=1 // loop_footer
      %s17 = sadd.s32 1, %s13
    $region7: #{tpu_custom_call.1} parent=1 // loop_footer_branch
      %12 = sbr.rel target = $region3
    $region8: #{tpu_custom_call.1} parent=1 // loop_exit
      _
    %3082 = vsyncpa [#allocation5], 1
    %s3083 = scalar_lea.sflag [#allocation5], 1
    %3084 = vsyncpa %s3083, 1
    %3085 = vsyncpa [#allocation6], 1
    %s3086 = scalar_lea.sflag [#allocation6], 1
    %3087 = vsyncpa %s3086, 1
  %3088 = vsyncmov [#allocation3]
  %s3089 = vpop.sfrf %3088
  %p3090 = scmp.eq.s32.totalorder %s3089, 0
  %p3091 = pneg %p3090
  %3093 = shalt.err (%p3091)

</llo_original>
